<compile_context>
chip_gen: v6e
topology: v6e:2x2x1
jax: 0.10.0
libtpu: 0.0.40
codegen_flags: <defaults>
</compile_context>

<pallas_src>
import functools

import jax
import jax.numpy as jnp
from jax.experimental import pallas as pl
from jax.experimental.pallas import tpu as pltpu


def _vmem_limit_bytes():
    # v5e/v6e: 128 MiB physical VMEM -> raise the 16/32 MiB scoped default to
    # 64 MiB.  v7x: only 64 MiB physical -> cap at ~48 MiB so double-buffering
    # survives.
    try:
        cap = pltpu.get_tpu_info().vmem_capacity_bytes
    except Exception:  # conservative fallback if the query is unavailable
        cap = 64 * 1024 * 1024
    return int(max(32 * 1024 * 1024, min(cap * 3 // 4, 64 * 1024 * 1024)))


VMEM_LIMIT = _vmem_limit_bytes()


def _pick_lane_tile(s, per_lane_bytes):
    """Largest 128-multiple lane tile dividing `s` that fits the VMEM budget."""
    budget = VMEM_LIMIT // 2  # headroom for weights / pipeline buffers
    for t in (2048, 1024, 512, 256, 128):
        if s % t == 0 and t * per_lane_bytes <= budget:
            return t
    # TODO(synk): pad ragged spatial sizes up to a multiple of 128 so odd H*W
    # still gets lane-dense tiles instead of one full-width block.
    return s


# -----------------------------------------------------------------------------
# Kernel 1: pointwise (1x1) conv as lane-dense matmuls, fusing the 4-direction
# channel concat (conv2 / conv3).  Weight layout (n_dirs, Cout, Cin) -> per
# direction the kernel indexes w_ref[d] (free leading-dim pick, no unaligned
# lane slices).
# -----------------------------------------------------------------------------
def _make_pw_kernel(n_dirs, act):
    def kernel(*refs):
        x_refs = refs[:n_dirs]
        w_ref = refs[n_dirs]
        o_ref = refs[n_dirs + 1]
        acc = None
        # TODO(synk): on v6e/v7x stack the n_dirs tiles into one
        # (n_dirs*Cin, TILE) operand and issue a single K=n_dirs*Cin dot once
        # Mosaic's bf16 sublane-packed concatenate is verified for Cin < 16.
        for d in range(n_dirs):
            y = jnp.dot(w_ref[d], x_refs[d][0],
                        preferred_element_type=jnp.float32)
            acc = y if acc is None else acc + y          # (Cout, TILE) f32
        if act == "relu":
            acc = jnp.maximum(acc, 0.0)
        o_ref[0] = acc.astype(o_ref.dtype)

    return kernel


def pw_conv(xs, w, act="none", out_dtype=jnp.bfloat16):
    """Fused channel-concat + bias-free 1x1 conv.

    xs: list of (N, Cin, S) activations, concatenated along channels in order.
    w : (Cout, len(xs)*Cin) weight in PyTorch conv1x1 layout.
    Returns (N, Cout, S).
    """
    n_dirs = len(xs)
    N, cin, S = xs[0].shape
    cout = w.shape[0]
    out_bytes = jnp.dtype(out_dtype).itemsize
    per_lane = 2 * (n_dirs * cin * 2 + cout * out_bytes)   # double-buffered
    TL = _pick_lane_tile(S, per_lane)
    grid = (N, S // TL)

    # (n_dirs, Cout, Cin) so the kernel never lane-slices the fused weight.
    w3d = jnp.swapaxes(w.reshape(cout, n_dirs, cin), 0, 1).astype(jnp.bfloat16)

    in_specs = [pl.BlockSpec((1, cin, TL), lambda n, m: (n, 0, m))
                for _ in range(n_dirs)]
    in_specs.append(pl.BlockSpec((n_dirs, cout, cin), lambda n, m: (0, 0, 0)))
    ops = [x.astype(jnp.bfloat16) for x in xs] + [w3d]

    return pl.pallas_call(
        _make_pw_kernel(n_dirs, act),
        out_shape=jax.ShapeDtypeStruct((N, cout, S), out_dtype),
        grid=grid,
        in_specs=in_specs,
        out_specs=pl.BlockSpec((1, cout, TL), lambda n, m: (n, 0, m)),
        compiler_params=pltpu.CompilerParams(
            dimension_semantics=("parallel", "parallel"),
            vmem_limit_bytes=VMEM_LIMIT),
    )(*ops)


# -----------------------------------------------------------------------------
# Kernel 2: 3x3 conv on a haloed, 2-D zero-padded, flattened spatial layout.
# Taps are 9 static shifted slices; no im2col, no per-tap masks.  The output
# keeps the padded-flat layout (halo shrinks by P per layer) so the chained
# second 3x3 conv consumes it directly.
# -----------------------------------------------------------------------------
def _conv3x3_kernel(x_ref, w_ref, b_ref, m_ref, o_ref, *, P, Wp):
    cout = o_ref.shape[1]
    wout = o_ref.shape[2]
    acc = jnp.zeros((cout, wout), jnp.float32)
    for t in range(9):
        dy = t // 3 - 1
        dx = t % 3 - 1
        start = P + dy * Wp + dx                         # static lane offset
        # TODO(synk): replace the unaligned slice with a pltpu.roll (XLU slot)
        # once roll on non-128-multiple lane widths is validated.
        xs = x_ref[0, :, start:start + wout]             # (Cin, wout) bf16
        acc = acc + jnp.dot(w_ref[t], xs, preferred_element_type=jnp.float32)
    acc = jnp.maximum(acc + b_ref[...], 0.0)
    # Zero halo / 2-D-pad positions so the chained 3x3 conv reading this
    # output sees exact zero padding (single precomputed-mask multiply).
    o_ref[0] = (acc * m_ref[...]).astype(o_ref.dtype)


def conv3x3_relu(x_haloed, w, b, mask, *, P, Wp, out_dtype=jnp.bfloat16):
    """3x3 conv + bias + relu on the haloed padded-flat layout."""
    N, cin, win = x_haloed.shape
    cout = w.shape[0]
    wout = win - 2 * P
    wt = jnp.transpose(w, (2, 3, 0, 1)).reshape(9, cout, cin).astype(jnp.bfloat16)
    bv = b.reshape(cout, 1).astype(jnp.float32)
    # Tile the output channels so the f32 accumulator stays small for big Cout.
    # TODO(synk): also tile the spatial axis (with halos) for very large H*W.
    tco = cout if (cout <= 128 or cout % 128 != 0) else 128
    grid = (N, cout // tco)

    return pl.pallas_call(
        functools.partial(_conv3x3_kernel, P=P, Wp=Wp),
        out_shape=jax.ShapeDtypeStruct((N, cout, wout), out_dtype),
        grid=grid,
        in_specs=[
            pl.BlockSpec((1, cin, win), lambda n, co: (n, 0, 0)),
            pl.BlockSpec((9, tco, cin), lambda n, co: (0, co, 0)),
            pl.BlockSpec((tco, 1), lambda n, co: (co, 0)),
            pl.BlockSpec((1, wout), lambda n, co: (0, 0)),
        ],
        out_specs=pl.BlockSpec((1, tco, wout), lambda n, co: (n, co, 0)),
        compiler_params=pltpu.CompilerParams(
            dimension_semantics=("parallel", "parallel"),
            vmem_limit_bytes=VMEM_LIMIT),
    )(x_haloed, wt, bv, mask)


# Second 3x3 conv + relu with the tiny 1x1 (Cout=4) + sigmoid fused into the
# epilogue: the mid-channel activation `a2` never touches HBM.
def _att_tail_kernel(x_ref, w2_ref, b2_ref, w3_ref, b3_ref, o_ref, *, P, Wp):
    mid = x_ref.shape[1]
    wout = o_ref.shape[2]
    acc = jnp.zeros((mid, wout), jnp.float32)
    for t in range(9):
        dy = t // 3 - 1
        dx = t % 3 - 1
        start = P + dy * Wp + dx
        xs = x_ref[0, :, start:start + wout]
        acc = acc + jnp.dot(w2_ref[t], xs, preferred_element_type=jnp.float32)
    a2 = jnp.maximum(acc + b2_ref[...], 0.0)             # (mid, wout) f32
    att = jnp.dot(w3_ref[...], a2.astype(jnp.bfloat16),
                  preferred_element_type=jnp.float32) + b3_ref[...]
    o_ref[0] = jax.nn.sigmoid(att).astype(o_ref.dtype)


def attention_branch(p, x_bf16, H, W):
    """relu(conv3x3) -> relu(conv3x3) -> sigmoid(conv1x1): (N,C,H,W)->(N,4,H,W)."""
    N, C = x_bf16.shape[0], x_bf16.shape[1]
    mid = p["att_w1"].shape[0]
    Hp, Wp = H + 2, W + 2
    Sp = Hp * Wp
    P = Wp + 1                                   # max |tap shift| on the flat axis

    # One 2-D zero pad + flatten + 2P halo feeds BOTH chained 3x3 convs; the
    # intermediate a1 stays in the padded-flat layout (no reshape / re-pad).
    xp = jnp.pad(x_bf16, ((0, 0), (0, 0), (1, 1), (1, 1))).reshape(N, C, Sp)
    x0 = jnp.pad(xp, ((0, 0), (0, 0), (2 * P, 2 * P)))          # (N, C, Sp+4P)

    # Interior-validity mask in conv1-output coordinates (halo P), precomputed
    # once outside the kernel: no per-tap iota / div / mod / select inside.
    wout1 = Sp + 2 * P
    q = jnp.arange(wout1)
    pos = q - P
    hp, wp = pos // Wp, pos % Wp
    mask1 = ((pos >= 0) & (pos < Sp) & (hp >= 1) & (hp <= H)
             & (wp >= 1) & (wp <= W)).astype(jnp.float32).reshape(1, wout1)

    a1 = conv3x3_relu(x0, p["att_w1"], p["att_b1"], mask1, P=P, Wp=Wp)

    w2t = jnp.transpose(p["att_w2"], (2, 3, 0, 1)).reshape(9, mid, mid)
    att_flat = pl.pallas_call(
        functools.partial(_att_tail_kernel, P=P, Wp=Wp),
        out_shape=jax.ShapeDtypeStruct((N, 4, Sp), jnp.float32),
        grid=(N,),
        in_specs=[
            pl.BlockSpec((1, mid, wout1), lambda n: (n, 0, 0)),
            pl.BlockSpec((9, mid, mid), lambda n: (0, 0, 0)),
            pl.BlockSpec((mid, 1), lambda n: (0, 0)),
            pl.BlockSpec((4, mid), lambda n: (0, 0)),
            pl.BlockSpec((4, 1), lambda n: (0, 0)),
        ],
        out_specs=pl.BlockSpec((1, 4, Sp), lambda n: (n, 0, 0)),
        compiler_params=pltpu.CompilerParams(
            dimension_semantics=("parallel",), vmem_limit_bytes=VMEM_LIMIT),
    )(a1, w2t.astype(jnp.bfloat16),
      p["att_b2"].reshape(mid, 1).astype(jnp.float32),
      p["att_w3"].astype(jnp.bfloat16),
      p["att_b3"].reshape(4, 1).astype(jnp.float32))

    # Extract the true-image interior (tiny 4-channel tensor).
    return att_flat.reshape(N, 4, Hp, Wp)[:, :, 1:H + 1, 1:W + 1]


# -----------------------------------------------------------------------------
# Kernel 3: IRNN directional scan.  x is (N, C, L, S); recurrence along L with
# h[i] = relu(w*h[i-1] + x[i] + b); the boundary row passes x through.
# Forward and mirrored-backward sweeps run in the same pass.
# TODO(synk): irnn() in the reference is an external CUDA op; boundary-row
# semantics here are raw pass-through (validate against the CUDA op).
# TODO(synk): when S < 128 (small W/H) re-layout to a lane-dense (N, L, C*S)
# operand (per-channel w/b broadcast to the lane axis) to avoid masked stores.
# -----------------------------------------------------------------------------
def _irnn_kernel(xf_ref, xb_ref, wf_ref, bf_ref, wb_ref, bb_ref,
                 of_ref, ob_ref, hf_sc, hb_sc, *, rows):
    i = pl.program_id(1)

    @pl.when(i == 0)
    def _init():
        hf_sc[...] = jnp.zeros_like(hf_sc)
        hb_sc[...] = jnp.zeros_like(hb_sc)

    wf = wf_ref[...]
    bf = bf_ref[...]
    wb = wb_ref[...]
    bb = bb_ref[...]

    # Forward sweep over this row-block (global rows i*rows + j).
    carry = hf_sc[...]
    for j in range(rows):
        xj = xf_ref[0, :, j, :].astype(jnp.float32)      # (C, S)
        h = jnp.maximum(carry * wf + xj + bf, 0.0)
        if j == 0:
            h = jnp.where(i == 0, xj, h)                 # boundary row
        of_ref[0, :, j, :] = h.astype(of_ref.dtype)
        carry = h
    hf_sc[...] = carry

    # Backward sweep: this step sees the mirrored row-block; iterate in reverse.
    carry = hb_sc[...]
    for j in range(rows - 1, -1, -1):
        xj = xb_ref[0, :, j, :].astype(jnp.float32)
        h = jnp.maximum(carry * wb + xj + bb, 0.0)
        if j == rows - 1:
            h = jnp.where(i == 0, xj, h)                 # boundary row
        ob_ref[0, :, j, :] = h.astype(ob_ref.dtype)
        carry = h
    hb_sc[...] = carry


def _pick_row_block(L):
    # Larger blocks amortize the ~0.35us/step grid overhead of the serial scan.
    for rb in (32, 16, 8):
        if L % rb == 0:
            return rb
    return L


def irnn_scan(x4d, wf, bf, wb, bb):
    """x4d: (N, C, L, S); returns (forward_out, backward_out), same shape."""
    N, C, L, S = x4d.shape
    RB = _pick_row_block(L)
    nb = L // RB

    row_block = (1, C, RB, S)
    fwd_map = lambda n, i: (n, 0, i, 0)
    bwd_map = lambda n, i: (n, 0, nb - 1 - i, 0)
    wspec = pl.BlockSpec((C, 1), lambda n, i: (0, 0))

    out_fwd, out_bwd = pl.pallas_call(
        functools.partial(_irnn_kernel, rows=RB),
        out_shape=(jax.ShapeDtypeStruct((N, C, L, S), x4d.dtype),
                   jax.ShapeDtypeStruct((N, C, L, S), x4d.dtype)),
        grid=(N, nb),
        in_specs=[
            pl.BlockSpec(row_block, fwd_map),
            pl.BlockSpec(row_block, bwd_map),
            wspec, wspec, wspec, wspec,
        ],
        out_specs=(
            pl.BlockSpec(row_block, fwd_map),
            pl.BlockSpec(row_block, bwd_map),
        ),
        scratch_shapes=[pltpu.VMEM((C, S), jnp.float32),
                        pltpu.VMEM((C, S), jnp.float32)],
        compiler_params=pltpu.CompilerParams(
            dimension_semantics=("parallel", "arbitrary"),
            vmem_limit_bytes=VMEM_LIMIT),
    )(x4d, x4d,
      wf.reshape(C, 1).astype(jnp.float32), bf.reshape(C, 1).astype(jnp.float32),
      wb.reshape(C, 1).astype(jnp.float32), bb.reshape(C, 1).astype(jnp.float32))
    return out_fwd, out_bwd


def irnn_apply(x4d, p):
    """x4d: (N, C, H, W) -> (up, right, down, left), each (N, C, H, W)."""
    # Vertical sweeps (recurrence over H): forward = down, backward = up.
    down, up = irnn_scan(x4d, p["w_down"], p["b_down"], p["w_up"], p["b_up"])
    # Horizontal sweeps (recurrence over W): forward = right, backward = left.
    # TODO(synk): fuse these H<->W transposes into the producing / consuming
    # pw_conv kernels (tile-level transpose in out_specs) to drop 6 HBM passes.
    xt = jnp.swapaxes(x4d, 2, 3)
    right_t, left_t = irnn_scan(xt, p["w_right"], p["b_right"],
                                p["w_left"], p["b_left"])
    right = jnp.swapaxes(right_t, 2, 3)
    left = jnp.swapaxes(left_t, 2, 3)
    return up, right, down, left


# -----------------------------------------------------------------------------
# Deterministic synthetic parameters (PyTorch conv weight layouts).
# -----------------------------------------------------------------------------
def init_params(key, channels, alpha=1.0):
    c = channels
    mid = c // 2
    keys = jax.random.split(key, 12)

    def u(k, shape, scale=0.1):
        return jax.random.uniform(k, shape, jnp.float32, -scale, scale)

    params = {
        # Attention: conv1 3x3 (c->c/2), conv2 3x3 (c/2->c/2), conv3 1x1 (c/2->4)
        "att_w1": u(keys[0], (mid, c, 3, 3)),
        "att_b1": u(keys[1], (mid,)),
        "att_w2": u(keys[2], (mid, mid, 3, 3)),
        "att_b2": u(keys[3], (mid,)),
        "att_w3": u(keys[4], (4, mid)),
        "att_b3": u(keys[5], (4,)),
        # conv_in / conv2 / conv3: 1x1, bias=False
        "w_in": u(keys[6], (c, c)),
        "w2": u(keys[7], (c, 4 * c)),
        "w3": u(keys[8], (c, 4 * c)),
    }
    for idx, name in enumerate(["irnn1", "irnn2"]):
        bkeys = jax.random.split(keys[9 + idx], 4)
        p = {}
        for d, bk in zip(["up", "right", "down", "left"], bkeys):
            # groups=in_channels 1x1 conv -> per-channel scalar weight = alpha
            p[f"w_{d}"] = jnp.full((c,), alpha, jnp.float32)
            p[f"b_{d}"] = jax.random.uniform(bk, (c,), jnp.float32, -1.0, 1.0)
        params[name] = p
    return params


# -----------------------------------------------------------------------------
# DSC_Module forward.
# -----------------------------------------------------------------------------
def dsc_forward(params, x_nchw):
    x = x_nchw.astype(jnp.bfloat16)                      # bf16 MXU operands
    N, C, H, W = x.shape
    S = H * W

    # Attention branch.  NOTE: the reference calls the NON-in-place Tensor.mul
    # and discards the result, so the attention map never modifies `out`; it is
    # computed (same work as the reference) and returned alongside `out`.
    att = attention_branch(params, x, H, W)

    # conv_in (1x1, bias-free)
    out = pw_conv([x.reshape(N, C, S)], params["w_in"]).reshape(N, C, H, W)

    # irnn1 + fused concat + conv2 (bias-free)
    up, right, down, left = irnn_apply(out, params["irnn1"])
    out = pw_conv([t.reshape(N, C, S) for t in (up, right, down, left)],
                  params["w2"]).reshape(N, C, H, W)

    # irnn2 + fused concat + conv3 (bias-free) + relu.  Final output kept f32
    # at the module boundary (switch out_dtype to bf16 if consumers allow).
    up, right, down, left = irnn_apply(out, params["irnn2"])
    out = pw_conv([t.reshape(N, C, S) for t in (up, right, down, left)],
                  params["w3"], act="relu", out_dtype=jnp.float32)
    return out.reshape(N, C, H, W), att


if __name__ == "__main__":
    key = jax.random.PRNGKey(0)
    kp, kx = jax.random.split(key)
    C = 8
    params = init_params(kp, C, alpha=1.0)
    x = jax.random.normal(kx, (2, C, 16, 16), jnp.float32)   # NCHW, like PyTorch

    fwd = jax.jit(dsc_forward)
    out, att = fwd(params, x)
    jax.block_until_ready((out, att))

    assert out.shape == (2, C, 16, 16)
    assert att.shape == (2, 4, 16, 16)
    assert bool(jnp.all(jnp.isfinite(out)))
    assert bool(jnp.all(jnp.isfinite(att)))
    print("KERNEL_OK")
</pallas_src>

<mosaic_0001>
module attributes {stable_mosaic.version = 11 : i64} {
  func.func @kernel(%arg0: i32, %arg1: i32, %arg2: memref<1x8x256xbf16, #tpu.memory_space<vmem>>, %arg3: memref<1x8x8xbf16, #tpu.memory_space<vmem>>, %arg4: memref<1x8x256xbf16, #tpu.memory_space<vmem>>) attributes {dimension_semantics = [#tpu.dimension_semantics<parallel>, #tpu.dimension_semantics<parallel>], iteration_bounds = array<i64: 2, 1>, scalar_prefetch = 0 : i64, scratch_operands = 0 : i64, tpu.core_type = #tpu.core_type<tc>, window_params = [{transform_indices = @transform_0, window_bounds = array<i64: 1, 8, 256>}, {pipeline_mode = #tpu.pipeline_mode<synchronous>, transform_indices = @transform_1, window_bounds = array<i64: 1, 8, 8>}, {transform_indices = @transform_2, window_bounds = array<i64: 1, 8, 256>}]} {
    %c0 = arith.constant 0 : index
    %c0_0 = arith.constant 0 : index
    %c0_1 = arith.constant 0 : index
    %0 = vector.load %arg3[%c0, %c0_0, %c0_1] : memref<1x8x8xbf16, #tpu.memory_space<vmem>>, vector<1x8x8xbf16>
    %1 = vector.shape_cast %0 : vector<1x8x8xbf16> to vector<8x8xbf16>
    %c0_2 = arith.constant 0 : index
    %c0_3 = arith.constant 0 : index
    %c0_4 = arith.constant 0 : index
    %2 = vector.load %arg2[%c0_2, %c0_3, %c0_4] : memref<1x8x256xbf16, #tpu.memory_space<vmem>>, vector<1x8x256xbf16>
    %3 = vector.shape_cast %2 : vector<1x8x256xbf16> to vector<8x256xbf16>
    %cst = arith.constant dense<0.000000e+00> : vector<8x256xf32>
    %4 = tpu.matmul %1, %3, %cst {dimension_numbers = #tpu.dot_dimension_numbers<[1], [0], [0], [1], [0, 0, 1, 1], [], []>} : vector<8x8xbf16>, vector<8x256xbf16>, vector<8x256xf32> -> vector<8x256xf32>
    %5 = arith.truncf %4 : vector<8x256xf32> to vector<8x256xbf16>
    %c0_5 = arith.constant 0 : index
    %c0_6 = arith.constant 0 : index
    %c0_7 = arith.constant 0 : index
    %6 = vector.load %arg4[%c0_5, %c0_6, %c0_7] : memref<1x8x256xbf16, #tpu.memory_space<vmem>>, vector<1x8x256xbf16>
    %7 = vector.shape_cast %6 : vector<1x8x256xbf16> to vector<8x256xbf16>
    %8 = vector.shape_cast %5 : vector<8x256xbf16> to vector<1x8x256xbf16>
    tpu.vector_store %arg4[%c0_5, %c0_6, %c0_7], %8 {strides = array<i32>} : memref<1x8x256xbf16, #tpu.memory_space<vmem>>, vector<1x8x256xbf16>,
    return
  }
  func.func @transform_0(%arg0: i32, %arg1: i32) -> (i32, i32, i32) {
    %c0_i32 = arith.constant 0 : i32
    %c0_i32_0 = arith.constant 0 : i32
    return %arg0, %c0_i32, %arg1 : i32, i32, i32
  }
  func.func @transform_1(%arg0: i32, %arg1: i32) -> (i32, i32, i32) {
    %c0_i32 = arith.constant 0 : i32
    %c0_i32_0 = arith.constant 0 : i32
    %c0_i32_1 = arith.constant 0 : i32
    %c0_i32_2 = arith.constant 0 : i32
    return %c0_i32, %c0_i32_0, %c0_i32_1 : i32, i32, i32
  }
  func.func @transform_2(%arg0: i32, %arg1: i32) -> (i32, i32, i32) {
    %c0_i32 = arith.constant 0 : i32
    %c0_i32_0 = arith.constant 0 : i32
    return %arg0, %c0_i32, %arg1 : i32, i32, i32
  }
}

module attributes {stable_mosaic.version = 11 : i64} {
  func.func @_irnn_kernel(%arg0: i32, %arg1: i32, %arg2: memref<1x8x16x16xbf16, #tpu.memory_space<vmem>>, %arg3: memref<1x8x16x16xbf16, #tpu.memory_space<vmem>>, %arg4: memref<8x1xf32, #tpu.memory_space<vmem>>, %arg5: memref<8x1xf32, #tpu.memory_space<vmem>>, %arg6: memref<8x1xf32, #tpu.memory_space<vmem>>, %arg7: memref<8x1xf32, #tpu.memory_space<vmem>>, %arg8: memref<1x8x16x16xbf16, #tpu.memory_space<vmem>>, %arg9: memref<1x8x16x16xbf16, #tpu.memory_space<vmem>>, %arg10: memref<8x16xf32, #tpu.memory_space<vmem>>, %arg11: memref<8x16xf32, #tpu.memory_space<vmem>>) attributes {dimension_semantics = [#tpu.dimension_semantics<parallel>, #tpu.dimension_semantics<arbitrary>], iteration_bounds = array<i64: 2, 1>, scalar_prefetch = 0 : i64, scratch_operands = 2 : i64, tpu.core_type = #tpu.core_type<tc>, window_params = [{transform_indices = @transform_0, window_bounds = array<i64: 1, 8, 16, 16>}, {transform_indices = @transform_1, window_bounds = array<i64: 1, 8, 16, 16>}, {pipeline_mode = #tpu.pipeline_mode<synchronous>, transform_indices = @transform_2, window_bounds = array<i64: 8, 1>}, {pipeline_mode = #tpu.pipeline_mode<synchronous>, transform_indices = @transform_3, window_bounds = array<i64: 8, 1>}, {pipeline_mode = #tpu.pipeline_mode<synchronous>, transform_indices = @transform_4, window_bounds = array<i64: 8, 1>}, {pipeline_mode = #tpu.pipeline_mode<synchronous>, transform_indices = @transform_5, window_bounds = array<i64: 8, 1>}, {transform_indices = @transform_6, window_bounds = array<i64: 1, 8, 16, 16>}, {transform_indices = @transform_7, window_bounds = array<i64: 1, 8, 16, 16>}]} {
    %c0_i32 = arith.constant 0 : i32
    %0 = arith.cmpi eq, %arg1, %c0_i32 : i32
    %1 = arith.extui %0 : i1 to i32
    %c0_i32_0 = arith.constant 0 : i32
    %2 = arith.cmpi ne, %1, %c0_i32_0 : i32
    scf.if %2 {
      %cst_290 = arith.constant 0.000000e+00 : f32
      %463 = vector.broadcast %cst_290 : f32 to vector<8x16xf32>
      %c0_291 = arith.constant 0 : index
      %c0_292 = arith.constant 0 : index
      %464 = vector.load %arg10[%c0_291, %c0_292] : memref<8x16xf32, #tpu.memory_space<vmem>>, vector<8x16xf32>
      tpu.vector_store %arg10[%c0_291, %c0_292], %463 {strides = array<i32>} : memref<8x16xf32, #tpu.memory_space<vmem>>, vector<8x16xf32>,
      %cst_293 = arith.constant 0.000000e+00 : f32
      %465 = vector.broadcast %cst_293 : f32 to vector<8x16xf32>
      %c0_294 = arith.constant 0 : index
      %c0_295 = arith.constant 0 : index
      %466 = vector.load %arg11[%c0_294, %c0_295] : memref<8x16xf32, #tpu.memory_space<vmem>>, vector<8x16xf32>
      tpu.vector_store %arg11[%c0_294, %c0_295], %465 {strides = array<i32>} : memref<8x16xf32, #tpu.memory_space<vmem>>, vector<8x16xf32>,
    } else {
    }
    %c0 = arith.constant 0 : index
    %c0_1 = arith.constant 0 : index
    %3 = vector.load %arg4[%c0, %c0_1] : memref<8x1xf32, #tpu.memory_space<vmem>>, vector<8x1xf32>
    %c0_2 = arith.constant 0 : index
    %c0_3 = arith.constant 0 : index
    %4 = vector.load %arg5[%c0_2, %c0_3] : memref<8x1xf32, #tpu.memory_space<vmem>>, vector<8x1xf32>
    %c0_4 = arith.constant 0 : index
    %c0_5 = arith.constant 0 : index
    %5 = vector.load %arg6[%c0_4, %c0_5] : memref<8x1xf32, #tpu.memory_space<vmem>>, vector<8x1xf32>
    %c0_6 = arith.constant 0 : index
    %c0_7 = arith.constant 0 : index
    %6 = vector.load %arg7[%c0_6, %c0_7] : memref<8x1xf32, #tpu.memory_space<vmem>>, vector<8x1xf32>
    %c0_8 = arith.constant 0 : index
    %c0_9 = arith.constant 0 : index
    %7 = vector.load %arg10[%c0_8, %c0_9] : memref<8x16xf32, #tpu.memory_space<vmem>>, vector<8x16xf32>
    %c0_10 = arith.constant 0 : index
    %c0_11 = arith.constant 0 : index
    %c0_12 = arith.constant 0 : index
    %c0_13 = arith.constant 0 : index
    %8 = vector.load %arg2[%c0_10, %c0_11, %c0_12, %c0_13] : memref<1x8x16x16xbf16, #tpu.memory_space<vmem>>, vector<1x8x1x16xbf16>
    %9 = vector.shape_cast %8 : vector<1x8x1x16xbf16> to vector<8x16xbf16>
    %10 = arith.extf %9 : vector<8x16xbf16> to vector<8x16xf32>
    %11 = vector.broadcast %3 : vector<8x1xf32> to vector<8x16xf32>
    %12 = arith.mulf %7, %11 : vector<8x16xf32>
    %13 = arith.addf %12, %10 : vector<8x16xf32>
    %14 = vector.broadcast %4 : vector<8x1xf32> to vector<8x16xf32>
    %15 = arith.addf %13, %14 : vector<8x16xf32>
    %cst = arith.constant 0.000000e+00 : f32
    %16 = vector.broadcast %cst : f32 to vector<8x16xf32>
    %17 = arith.maximumf %15, %16 : vector<8x16xf32>
    %c0_i32_14 = arith.constant 0 : i32
    %18 = arith.cmpi eq, %arg1, %c0_i32_14 : i32
    %19 = arith.select %18, %10, %17 : vector<8x16xf32>
    %20 = arith.truncf %19 : vector<8x16xf32> to vector<8x16xbf16>
    %c0_15 = arith.constant 0 : index
    %c0_16 = arith.constant 0 : index
    %c0_17 = arith.constant 0 : index
    %c0_18 = arith.constant 0 : index
    %21 = vector.load %arg8[%c0_15, %c0_16, %c0_17, %c0_18] : memref<1x8x16x16xbf16, #tpu.memory_space<vmem>>, vector<1x8x1x16xbf16>
    %22 = vector.shape_cast %21 : vector<1x8x1x16xbf16> to vector<8x16xbf16>
    %23 = vector.shape_cast %20 : vector<8x16xbf16> to vector<1x8x1x16xbf16>
    tpu.vector_store %arg8[%c0_15, %c0_16, %c0_17, %c0_18], %23 {strides = array<i32>} : memref<1x8x16x16xbf16, #tpu.memory_space<vmem>>, vector<1x8x1x16xbf16>,
    %c0_19 = arith.constant 0 : index
    %c0_20 = arith.constant 0 : index
    %c1 = arith.constant 1 : index
    %c0_21 = arith.constant 0 : index
    %24 = vector.load %arg2[%c0_19, %c0_20, %c1, %c0_21] : memref<1x8x16x16xbf16, #tpu.memory_space<vmem>>, vector<1x8x1x16xbf16>
    %25 = vector.shape_cast %24 : vector<1x8x1x16xbf16> to vector<8x16xbf16>
    %26 = arith.extf %25 : vector<8x16xbf16> to vector<8x16xf32>
    %27 = vector.broadcast %3 : vector<8x1xf32> to vector<8x16xf32>
    %28 = arith.mulf %19, %27 : vector<8x16xf32>
    %29 = arith.addf %28, %26 : vector<8x16xf32>
    %30 = vector.broadcast %4 : vector<8x1xf32> to vector<8x16xf32>
    %31 = arith.addf %29, %30 : vector<8x16xf32>
    %cst_22 = arith.constant 0.000000e+00 : f32
    %32 = vector.broadcast %cst_22 : f32 to vector<8x16xf32>
    %33 = arith.maximumf %31, %32 : vector<8x16xf32>
    %34 = arith.truncf %33 : vector<8x16xf32> to vector<8x16xbf16>
    %c0_23 = arith.constant 0 : index
    %c0_24 = arith.constant 0 : index
    %c1_25 = arith.constant 1 : index
    %c0_26 = arith.constant 0 : index
    %35 = vector.load %arg8[%c0_23, %c0_24, %c1_25, %c0_26] : memref<1x8x16x16xbf16, #tpu.memory_space<vmem>>, vector<1x8x1x16xbf16>
    %36 = vector.shape_cast %35 : vector<1x8x1x16xbf16> to vector<8x16xbf16>
    %37 = vector.shape_cast %34 : vector<8x16xbf16> to vector<1x8x1x16xbf16>
    tpu.vector_store %arg8[%c0_23, %c0_24, %c1_25, %c0_26], %37 {strides = array<i32>} : memref<1x8x16x16xbf16, #tpu.memory_space<vmem>>, vector<1x8x1x16xbf16>,
    %c0_27 = arith.constant 0 : index
    %c0_28 = arith.constant 0 : index
    %c2 = arith.constant 2 : index
    %c0_29 = arith.constant 0 : index
    %38 = vector.load %arg2[%c0_27, %c0_28, %c2, %c0_29] : memref<1x8x16x16xbf16, #tpu.memory_space<vmem>>, vector<1x8x1x16xbf16>
    %39 = vector.shape_cast %38 : vector<1x8x1x16xbf16> to vector<8x16xbf16>
    %40 = arith.extf %39 : vector<8x16xbf16> to vector<8x16xf32>
    %41 = vector.broadcast %3 : vector<8x1xf32> to vector<8x16xf32>
    %42 = arith.mulf %33, %41 : vector<8x16xf32>
    %43 = arith.addf %42, %40 : vector<8x16xf32>
    %44 = vector.broadcast %4 : vector<8x1xf32> to vector<8x16xf32>
    %45 = arith.addf %43, %44 : vector<8x16xf32>
    %cst_30 = arith.constant 0.000000e+00 : f32
    %46 = vector.broadcast %cst_30 : f32 to vector<8x16xf32>
    %47 = arith.maximumf %45, %46 : vector<8x16xf32>
    %48 = arith.truncf %47 : vector<8x16xf32> to vector<8x16xbf16>
    %c0_31 = arith.constant 0 : index
    %c0_32 = arith.constant 0 : index
    %c2_33 = arith.constant 2 : index
    %c0_34 = arith.constant 0 : index
    %49 = vector.load %arg8[%c0_31, %c0_32, %c2_33, %c0_34] : memref<1x8x16x16xbf16, #tpu.memory_space<vmem>>, vector<1x8x1x16xbf16>
    %50 = vector.shape_cast %49 : vector<1x8x1x16xbf16> to vector<8x16xbf16>
    %51 = vector.shape_cast %48 : vector<8x16xbf16> to vector<1x8x1x16xbf16>
    tpu.vector_store %arg8[%c0_31, %c0_32, %c2_33, %c0_34], %51 {strides = array<i32>} : memref<1x8x16x16xbf16, #tpu.memory_space<vmem>>, vector<1x8x1x16xbf16>,
    %c0_35 = arith.constant 0 : index
    %c0_36 = arith.constant 0 : index
    %c3 = arith.constant 3 : index
    %c0_37 = arith.constant 0 : index
    %52 = vector.load %arg2[%c0_35, %c0_36, %c3, %c0_37] : memref<1x8x16x16xbf16, #tpu.memory_space<vmem>>, vector<1x8x1x16xbf16>
    %53 = vector.shape_cast %52 : vector<1x8x1x16xbf16> to vector<8x16xbf16>
    %54 = arith.extf %53 : vector<8x16xbf16> to vector<8x16xf32>
    %55 = vector.broadcast %3 : vector<8x1xf32> to vector<8x16xf32>
    %56 = arith.mulf %47, %55 : vector<8x16xf32>
    %57 = arith.addf %56, %54 : vector<8x16xf32>
    %58 = vector.broadcast %4 : vector<8x1xf32> to vector<8x16xf32>
    %59 = arith.addf %57, %58 : vector<8x16xf32>
    %cst_38 = arith.constant 0.000000e+00 : f32
    %60 = vector.broadcast %cst_38 : f32 to vector<8x16xf32>
    %61 = arith.maximumf %59, %60 : vector<8x16xf32>
    %62 = arith.truncf %61 : vector<8x16xf32> to vector<8x16xbf16>
    %c0_39 = arith.constant 0 : index
    %c0_40 = arith.constant 0 : index
    %c3_41 = arith.constant 3 : index
    %c0_42 = arith.constant 0 : index
    %63 = vector.load %arg8[%c0_39, %c0_40, %c3_41, %c0_42] : memref<1x8x16x16xbf16, #tpu.memory_space<vmem>>, vector<1x8x1x16xbf16>
    %64 = vector.shape_cast %63 : vector<1x8x1x16xbf16> to vector<8x16xbf16>
    %65 = vector.shape_cast %62 : vector<8x16xbf16> to vector<1x8x1x16xbf16>
    tpu.vector_store %arg8[%c0_39, %c0_40, %c3_41, %c0_42], %65 {strides = array<i32>} : memref<1x8x16x16xbf16, #tpu.memory_space<vmem>>, vector<1x8x1x16xbf16>,
    %c0_43 = arith.constant 0 : index
    %c0_44 = arith.constant 0 : index
    %c4 = arith.constant 4 : index
    %c0_45 = arith.constant 0 : index
    %66 = vector.load %arg2[%c0_43, %c0_44, %c4, %c0_45] : memref<1x8x16x16xbf16, #tpu.memory_space<vmem>>, vector<1x8x1x16xbf16>
    %67 = vector.shape_cast %66 : vector<1x8x1x16xbf16> to vector<8x16xbf16>
    %68 = arith.extf %67 : vector<8x16xbf16> to vector<8x16xf32>
    %69 = vector.broadcast %3 : vector<8x1xf32> to vector<8x16xf32>
    %70 = arith.mulf %61, %69 : vector<8x16xf32>
    %71 = arith.addf %70, %68 : vector<8x16xf32>
    %72 = vector.broadcast %4 : vector<8x1xf32> to vector<8x16xf32>
    %73 = arith.addf %71, %72 : vector<8x16xf32>
    %cst_46 = arith.constant 0.000000e+00 : f32
    %74 = vector.broadcast %cst_46 : f32 to vector<8x16xf32>
    %75 = arith.maximumf %73, %74 : vector<8x16xf32>
    %76 = arith.truncf %75 : vector<8x16xf32> to vector<8x16xbf16>
    %c0_47 = arith.constant 0 : index
    %c0_48 = arith.constant 0 : index
    %c4_49 = arith.constant 4 : index
    %c0_50 = arith.constant 0 : index
    %77 = vector.load %arg8[%c0_47, %c0_48, %c4_49, %c0_50] : memref<1x8x16x16xbf16, #tpu.memory_space<vmem>>, vector<1x8x1x16xbf16>
    %78 = vector.shape_cast %77 : vector<1x8x1x16xbf16> to vector<8x16xbf16>
    %79 = vector.shape_cast %76 : vector<8x16xbf16> to vector<1x8x1x16xbf16>
    tpu.vector_store %arg8[%c0_47, %c0_48, %c4_49, %c0_50], %79 {strides = array<i32>} : memref<1x8x16x16xbf16, #tpu.memory_space<vmem>>, vector<1x8x1x16xbf16>,
    %c0_51 = arith.constant 0 : index
    %c0_52 = arith.constant 0 : index
    %c5 = arith.constant 5 : index
    %c0_53 = arith.constant 0 : index
    %80 = vector.load %arg2[%c0_51, %c0_52, %c5, %c0_53] : memref<1x8x16x16xbf16, #tpu.memory_space<vmem>>, vector<1x8x1x16xbf16>
    %81 = vector.shape_cast %80 : vector<1x8x1x16xbf16> to vector<8x16xbf16>
    %82 = arith.extf %81 : vector<8x16xbf16> to vector<8x16xf32>
    %83 = vector.broadcast %3 : vector<8x1xf32> to vector<8x16xf32>
    %84 = arith.mulf %75, %83 : vector<8x16xf32>
    %85 = arith.addf %84, %82 : vector<8x16xf32>
    %86 = vector.broadcast %4 : vector<8x1xf32> to vector<8x16xf32>
    %87 = arith.addf %85, %86 : vector<8x16xf32>
    %cst_54 = arith.constant 0.000000e+00 : f32
    %88 = vector.broadcast %cst_54 : f32 to vector<8x16xf32>
    %89 = arith.maximumf %87, %88 : vector<8x16xf32>
    %90 = arith.truncf %89 : vector<8x16xf32> to vector<8x16xbf16>
    %c0_55 = arith.constant 0 : index
    %c0_56 = arith.constant 0 : index
    %c5_57 = arith.constant 5 : index
    %c0_58 = arith.constant 0 : index
    %91 = vector.load %arg8[%c0_55, %c0_56, %c5_57, %c0_58] : memref<1x8x16x16xbf16, #tpu.memory_space<vmem>>, vector<1x8x1x16xbf16>
    %92 = vector.shape_cast %91 : vector<1x8x1x16xbf16> to vector<8x16xbf16>
    %93 = vector.shape_cast %90 : vector<8x16xbf16> to vector<1x8x1x16xbf16>
    tpu.vector_store %arg8[%c0_55, %c0_56, %c5_57, %c0_58], %93 {strides = array<i32>} : memref<1x8x16x16xbf16, #tpu.memory_space<vmem>>, vector<1x8x1x16xbf16>,
    %c0_59 = arith.constant 0 : index
    %c0_60 = arith.constant 0 : index
    %c6 = arith.constant 6 : index
    %c0_61 = arith.constant 0 : index
    %94 = vector.load %arg2[%c0_59, %c0_60, %c6, %c0_61] : memref<1x8x16x16xbf16, #tpu.memory_space<vmem>>, vector<1x8x1x16xbf16>
    %95 = vector.shape_cast %94 : vector<1x8x1x16xbf16> to vector<8x16xbf16>
    %96 = arith.extf %95 : vector<8x16xbf16> to vector<8x16xf32>
    %97 = vector.broadcast %3 : vector<8x1xf32> to vector<8x16xf32>
    %98 = arith.mulf %89, %97 : vector<8x16xf32>
    %99 = arith.addf %98, %96 : vector<8x16xf32>
    %100 = vector.broadcast %4 : vector<8x1xf32> to vector<8x16xf32>
    %101 = arith.addf %99, %100 : vector<8x16xf32>
    %cst_62 = arith.constant 0.000000e+00 : f32
    %102 = vector.broadcast %cst_62 : f32 to vector<8x16xf32>
    %103 = arith.maximumf %101, %102 : vector<8x16xf32>
    %104 = arith.truncf %103 : vector<8x16xf32> to vector<8x16xbf16>
    %c0_63 = arith.constant 0 : index
    %c0_64 = arith.constant 0 : index
    %c6_65 = arith.constant 6 : index
    %c0_66 = arith.constant 0 : index
    %105 = vector.load %arg8[%c0_63, %c0_64, %c6_65, %c0_66] : memref<1x8x16x16xbf16, #tpu.memory_space<vmem>>, vector<1x8x1x16xbf16>
    %106 = vector.shape_cast %105 : vector<1x8x1x16xbf16> to vector<8x16xbf16>
    %107 = vector.shape_cast %104 : vector<8x16xbf16> to vector<1x8x1x16xbf16>
    tpu.vector_store %arg8[%c0_63, %c0_64, %c6_65, %c0_66], %107 {strides = array<i32>} : memref<1x8x16x16xbf16, #tpu.memory_space<vmem>>, vector<1x8x1x16xbf16>,
    %c0_67 = arith.constant 0 : index
    %c0_68 = arith.constant 0 : index
    %c7 = arith.constant 7 : index
    %c0_69 = arith.constant 0 : index
    %108 = vector.load %arg2[%c0_67, %c0_68, %c7, %c0_69] : memref<1x8x16x16xbf16, #tpu.memory_space<vmem>>, vector<1x8x1x16xbf16>
    %109 = vector.shape_cast %108 : vector<1x8x1x16xbf16> to vector<8x16xbf16>
    %110 = arith.extf %109 : vector<8x16xbf16> to vector<8x16xf32>
    %111 = vector.broadcast %3 : vector<8x1xf32> to vector<8x16xf32>
    %112 = arith.mulf %103, %111 : vector<8x16xf32>
    %113 = arith.addf %112, %110 : vector<8x16xf32>
    %114 = vector.broadcast %4 : vector<8x1xf32> to vector<8x16xf32>
    %115 = arith.addf %113, %114 : vector<8x16xf32>
    %cst_70 = arith.constant 0.000000e+00 : f32
    %116 = vector.broadcast %cst_70 : f32 to vector<8x16xf32>
    %117 = arith.maximumf %115, %116 : vector<8x16xf32>
    %118 = arith.truncf %117 : vector<8x16xf32> to vector<8x16xbf16>
    %c0_71 = arith.constant 0 : index
    %c0_72 = arith.constant 0 : index
    %c7_73 = arith.constant 7 : index
    %c0_74 = arith.constant 0 : index
    %119 = vector.load %arg8[%c0_71, %c0_72, %c7_73, %c0_74] : memref<1x8x16x16xbf16, #tpu.memory_space<vmem>>, vector<1x8x1x16xbf16>
    %120 = vector.shape_cast %119 : vector<1x8x1x16xbf16> to vector<8x16xbf16>
    %121 = vector.shape_cast %118 : vector<8x16xbf16> to vector<1x8x1x16xbf16>
    tpu.vector_store %arg8[%c0_71, %c0_72, %c7_73, %c0_74], %121 {strides = array<i32>} : memref<1x8x16x16xbf16, #tpu.memory_space<vmem>>, vector<1x8x1x16xbf16>,
    %c0_75 = arith.constant 0 : index
    %c0_76 = arith.constant 0 : index
    %c8 = arith.constant 8 : index
    %c0_77 = arith.constant 0 : index
    %122 = vector.load %arg2[%c0_75, %c0_76, %c8, %c0_77] : memref<1x8x16x16xbf16, #tpu.memory_space<vmem>>, vector<1x8x1x16xbf16>
    %123 = vector.shape_cast %122 : vector<1x8x1x16xbf16> to vector<8x16xbf16>
    %124 = arith.extf %123 : vector<8x16xbf16> to vector<8x16xf32>
    %125 = vector.broadcast %3 : vector<8x1xf32> to vector<8x16xf32>
    %126 = arith.mulf %117, %125 : vector<8x16xf32>
    %127 = arith.addf %126, %124 : vector<8x16xf32>
    %128 = vector.broadcast %4 : vector<8x1xf32> to vector<8x16xf32>
    %129 = arith.addf %127, %128 : vector<8x16xf32>
    %cst_78 = arith.constant 0.000000e+00 : f32
    %130 = vector.broadcast %cst_78 : f32 to vector<8x16xf32>
    %131 = arith.maximumf %129, %130 : vector<8x16xf32>
    %132 = arith.truncf %131 : vector<8x16xf32> to vector<8x16xbf16>
    %c0_79 = arith.constant 0 : index
    %c0_80 = arith.constant 0 : index
    %c8_81 = arith.constant 8 : index
    %c0_82 = arith.constant 0 : index
    %133 = vector.load %arg8[%c0_79, %c0_80, %c8_81, %c0_82] : memref<1x8x16x16xbf16, #tpu.memory_space<vmem>>, vector<1x8x1x16xbf16>
    %134 = vector.shape_cast %133 : vector<1x8x1x16xbf16> to vector<8x16xbf16>
    %135 = vector.shape_cast %132 : vector<8x16xbf16> to vector<1x8x1x16xbf16>
    tpu.vector_store %arg8[%c0_79, %c0_80, %c8_81, %c0_82], %135 {strides = array<i32>} : memref<1x8x16x16xbf16, #tpu.memory_space<vmem>>, vector<1x8x1x16xbf16>,
    %c0_83 = arith.constant 0 : index
    %c0_84 = arith.constant 0 : index
    %c9 = arith.constant 9 : index
    %c0_85 = arith.constant 0 : index
    %136 = vector.load %arg2[%c0_83, %c0_84, %c9, %c0_85] : memref<1x8x16x16xbf16, #tpu.memory_space<vmem>>, vector<1x8x1x16xbf16>
    %137 = vector.shape_cast %136 : vector<1x8x1x16xbf16> to vector<8x16xbf16>
    %138 = arith.extf %137 : vector<8x16xbf16> to vector<8x16xf32>
    %139 = vector.broadcast %3 : vector<8x1xf32> to vector<8x16xf32>
    %140 = arith.mulf %131, %139 : vector<8x16xf32>
    %141 = arith.addf %140, %138 : vector<8x16xf32>
    %142 = vector.broadcast %4 : vector<8x1xf32> to vector<8x16xf32>
    %143 = arith.addf %141, %142 : vector<8x16xf32>
    %cst_86 = arith.constant 0.000000e+00 : f32
    %144 = vector.broadcast %cst_86 : f32 to vector<8x16xf32>
    %145 = arith.maximumf %143, %144 : vector<8x16xf32>
    %146 = arith.truncf %145 : vector<8x16xf32> to vector<8x16xbf16>
    %c0_87 = arith.constant 0 : index
    %c0_88 = arith.constant 0 : index
    %c9_89 = arith.constant 9 : index
    %c0_90 = arith.constant 0 : index
    %147 = vector.load %arg8[%c0_87, %c0_88, %c9_89, %c0_90] : memref<1x8x16x16xbf16, #tpu.memory_space<vmem>>, vector<1x8x1x16xbf16>
    %148 = vector.shape_cast %147 : vector<1x8x1x16xbf16> to vector<8x16xbf16>
    %149 = vector.shape_cast %146 : vector<8x16xbf16> to vector<1x8x1x16xbf16>
    tpu.vector_store %arg8[%c0_87, %c0_88, %c9_89, %c0_90], %149 {strides = array<i32>} : memref<1x8x16x16xbf16, #tpu.memory_space<vmem>>, vector<1x8x1x16xbf16>,
    %c0_91 = arith.constant 0 : index
    %c0_92 = arith.constant 0 : index
    %c10 = arith.constant 10 : index
    %c0_93 = arith.constant 0 : index
    %150 = vector.load %arg2[%c0_91, %c0_92, %c10, %c0_93] : memref<1x8x16x16xbf16, #tpu.memory_space<vmem>>, vector<1x8x1x16xbf16>
    %151 = vector.shape_cast %150 : vector<1x8x1x16xbf16> to vector<8x16xbf16>
    %152 = arith.extf %151 : vector<8x16xbf16> to vector<8x16xf32>
    %153 = vector.broadcast %3 : vector<8x1xf32> to vector<8x16xf32>
    %154 = arith.mulf %145, %153 : vector<8x16xf32>
    %155 = arith.addf %154, %152 : vector<8x16xf32>
    %156 = vector.broadcast %4 : vector<8x1xf32> to vector<8x16xf32>
    %157 = arith.addf %155, %156 : vector<8x16xf32>
    %cst_94 = arith.constant 0.000000e+00 : f32
    %158 = vector.broadcast %cst_94 : f32 to vector<8x16xf32>
    %159 = arith.maximumf %157, %158 : vector<8x16xf32>
    %160 = arith.truncf %159 : vector<8x16xf32> to vector<8x16xbf16>
    %c0_95 = arith.constant 0 : index
    %c0_96 = arith.constant 0 : index
    %c10_97 = arith.constant 10 : index
    %c0_98 = arith.constant 0 : index
    %161 = vector.load %arg8[%c0_95, %c0_96, %c10_97, %c0_98] : memref<1x8x16x16xbf16, #tpu.memory_space<vmem>>, vector<1x8x1x16xbf16>
    %162 = vector.shape_cast %161 : vector<1x8x1x16xbf16> to vector<8x16xbf16>
    %163 = vector.shape_cast %160 : vector<8x16xbf16> to vector<1x8x1x16xbf16>
    tpu.vector_store %arg8[%c0_95, %c0_96, %c10_97, %c0_98], %163 {strides = array<i32>} : memref<1x8x16x16xbf16, #tpu.memory_space<vmem>>, vector<1x8x1x16xbf16>,
    %c0_99 = arith.constant 0 : index
    %c0_100 = arith.constant 0 : index
    %c11 = arith.constant 11 : index
    %c0_101 = arith.constant 0 : index
    %164 = vector.load %arg2[%c0_99, %c0_100, %c11, %c0_101] : memref<1x8x16x16xbf16, #tpu.memory_space<vmem>>, vector<1x8x1x16xbf16>
    %165 = vector.shape_cast %164 : vector<1x8x1x16xbf16> to vector<8x16xbf16>
    %166 = arith.extf %165 : vector<8x16xbf16> to vector<8x16xf32>
    %167 = vector.broadcast %3 : vector<8x1xf32> to vector<8x16xf32>
    %168 = arith.mulf %159, %167 : vector<8x16xf32>
    %169 = arith.addf %168, %166 : vector<8x16xf32>
    %170 = vector.broadcast %4 : vector<8x1xf32> to vector<8x16xf32>
    %171 = arith.addf %169, %170 : vector<8x16xf32>
    %cst_102 = arith.constant 0.000000e+00 : f32
    %172 = vector.broadcast %cst_102 : f32 to vector<8x16xf32>
    %173 = arith.maximumf %171, %172 : vector<8x16xf32>
    %174 = arith.truncf %173 : vector<8x16xf32> to vector<8x16xbf16>
    %c0_103 = arith.constant 0 : index
    %c0_104 = arith.constant 0 : index
    %c11_105 = arith.constant 11 : index
    %c0_106 = arith.constant 0 : index
    %175 = vector.load %arg8[%c0_103, %c0_104, %c11_105, %c0_106] : memref<1x8x16x16xbf16, #tpu.memory_space<vmem>>, vector<1x8x1x16xbf16>
    %176 = vector.shape_cast %175 : vector<1x8x1x16xbf16> to vector<8x16xbf16>
    %177 = vector.shape_cast %174 : vector<8x16xbf16> to vector<1x8x1x16xbf16>
    tpu.vector_store %arg8[%c0_103, %c0_104, %c11_105, %c0_106], %177 {strides = array<i32>} : memref<1x8x16x16xbf16, #tpu.memory_space<vmem>>, vector<1x8x1x16xbf16>,
    %c0_107 = arith.constant 0 : index
    %c0_108 = arith.constant 0 : index
    %c12 = arith.constant 12 : index
    %c0_109 = arith.constant 0 : index
    %178 = vector.load %arg2[%c0_107, %c0_108, %c12, %c0_109] : memref<1x8x16x16xbf16, #tpu.memory_space<vmem>>, vector<1x8x1x16xbf16>
    %179 = vector.shape_cast %178 : vector<1x8x1x16xbf16> to vector<8x16xbf16>
    %180 = arith.extf %179 : vector<8x16xbf16> to vector<8x16xf32>
    %181 = vector.broadcast %3 : vector<8x1xf32> to vector<8x16xf32>
    %182 = arith.mulf %173, %181 : vector<8x16xf32>
    %183 = arith.addf %182, %180 : vector<8x16xf32>
    %184 = vector.broadcast %4 : vector<8x1xf32> to vector<8x16xf32>
    %185 = arith.addf %183, %184 : vector<8x16xf32>
    %cst_110 = arith.constant 0.000000e+00 : f32
    %186 = vector.broadcast %cst_110 : f32 to vector<8x16xf32>
    %187 = arith.maximumf %185, %186 : vector<8x16xf32>
    %188 = arith.truncf %187 : vector<8x16xf32> to vector<8x16xbf16>
    %c0_111 = arith.constant 0 : index
    %c0_112 = arith.constant 0 : index
    %c12_113 = arith.constant 12 : index
    %c0_114 = arith.constant 0 : index
    %189 = vector.load %arg8[%c0_111, %c0_112, %c12_113, %c0_114] : memref<1x8x16x16xbf16, #tpu.memory_space<vmem>>, vector<1x8x1x16xbf16>
    %190 = vector.shape_cast %189 : vector<1x8x1x16xbf16> to vector<8x16xbf16>
    %191 = vector.shape_cast %188 : vector<8x16xbf16> to vector<1x8x1x16xbf16>
    tpu.vector_store %arg8[%c0_111, %c0_112, %c12_113, %c0_114], %191 {strides = array<i32>} : memref<1x8x16x16xbf16, #tpu.memory_space<vmem>>, vector<1x8x1x16xbf16>,
    %c0_115 = arith.constant 0 : index
    %c0_116 = arith.constant 0 : index
    %c13 = arith.constant 13 : index
    %c0_117 = arith.constant 0 : index
    %192 = vector.load %arg2[%c0_115, %c0_116, %c13, %c0_117] : memref<1x8x16x16xbf16, #tpu.memory_space<vmem>>, vector<1x8x1x16xbf16>
    %193 = vector.shape_cast %192 : vector<1x8x1x16xbf16> to vector<8x16xbf16>
    %194 = arith.extf %193 : vector<8x16xbf16> to vector<8x16xf32>
    %195 = vector.broadcast %3 : vector<8x1xf32> to vector<8x16xf32>
    %196 = arith.mulf %187, %195 : vector<8x16xf32>
    %197 = arith.addf %196, %194 : vector<8x16xf32>
    %198 = vector.broadcast %4 : vector<8x1xf32> to vector<8x16xf32>
    %199 = arith.addf %197, %198 : vector<8x16xf32>
    %cst_118 = arith.constant 0.000000e+00 : f32
    %200 = vector.broadcast %cst_118 : f32 to vector<8x16xf32>
    %201 = arith.maximumf %199, %200 : vector<8x16xf32>
    %202 = arith.truncf %201 : vector<8x16xf32> to vector<8x16xbf16>
    %c0_119 = arith.constant 0 : index
    %c0_120 = arith.constant 0 : index
    %c13_121 = arith.constant 13 : index
    %c0_122 = arith.constant 0 : index
    %203 = vector.load %arg8[%c0_119, %c0_120, %c13_121, %c0_122] : memref<1x8x16x16xbf16, #tpu.memory_space<vmem>>, vector<1x8x1x16xbf16>
    %204 = vector.shape_cast %203 : vector<1x8x1x16xbf16> to vector<8x16xbf16>
    %205 = vector.shape_cast %202 : vector<8x16xbf16> to vector<1x8x1x16xbf16>
    tpu.vector_store %arg8[%c0_119, %c0_120, %c13_121, %c0_122], %205 {strides = array<i32>} : memref<1x8x16x16xbf16, #tpu.memory_space<vmem>>, vector<1x8x1x16xbf16>,
    %c0_123 = arith.constant 0 : index
    %c0_124 = arith.constant 0 : index
    %c14 = arith.constant 14 : index
    %c0_125 = arith.constant 0 : index
    %206 = vector.load %arg2[%c0_123, %c0_124, %c14, %c0_125] : memref<1x8x16x16xbf16, #tpu.memory_space<vmem>>, vector<1x8x1x16xbf16>
    %207 = vector.shape_cast %206 : vector<1x8x1x16xbf16> to vector<8x16xbf16>
    %208 = arith.extf %207 : vector<8x16xbf16> to vector<8x16xf32>
    %209 = vector.broadcast %3 : vector<8x1xf32> to vector<8x16xf32>
    %210 = arith.mulf %201, %209 : vector<8x16xf32>
    %211 = arith.addf %210, %208 : vector<8x16xf32>
    %212 = vector.broadcast %4 : vector<8x1xf32> to vector<8x16xf32>
    %213 = arith.addf %211, %212 : vector<8x16xf32>
    %cst_126 = arith.constant 0.000000e+00 : f32
    %214 = vector.broadcast %cst_126 : f32 to vector<8x16xf32>
    %215 = arith.maximumf %213, %214 : vector<8x16xf32>
    %216 = arith.truncf %215 : vector<8x16xf32> to vector<8x16xbf16>
    %c0_127 = arith.constant 0 : index
    %c0_128 = arith.constant 0 : index
    %c14_129 = arith.constant 14 : index
    %c0_130 = arith.constant 0 : index
    %217 = vector.load %arg8[%c0_127, %c0_128, %c14_129, %c0_130] : memref<1x8x16x16xbf16, #tpu.memory_space<vmem>>, vector<1x8x1x16xbf16>
    %218 = vector.shape_cast %217 : vector<1x8x1x16xbf16> to vector<8x16xbf16>
    %219 = vector.shape_cast %216 : vector<8x16xbf16> to vector<1x8x1x16xbf16>
    tpu.vector_store %arg8[%c0_127, %c0_128, %c14_129, %c0_130], %219 {strides = array<i32>} : memref<1x8x16x16xbf16, #tpu.memory_space<vmem>>, vector<1x8x1x16xbf16>,
    %c0_131 = arith.constant 0 : index
    %c0_132 = arith.constant 0 : index
    %c15 = arith.constant 15 : index
    %c0_133 = arith.constant 0 : index
    %220 = vector.load %arg2[%c0_131, %c0_132, %c15, %c0_133] : memref<1x8x16x16xbf16, #tpu.memory_space<vmem>>, vector<1x8x1x16xbf16>
    %221 = vector.shape_cast %220 : vector<1x8x1x16xbf16> to vector<8x16xbf16>
    %222 = arith.extf %221 : vector<8x16xbf16> to vector<8x16xf32>
    %223 = vector.broadcast %3 : vector<8x1xf32> to vector<8x16xf32>
    %224 = arith.mulf %215, %223 : vector<8x16xf32>
    %225 = arith.addf %224, %222 : vector<8x16xf32>
    %226 = vector.broadcast %4 : vector<8x1xf32> to vector<8x16xf32>
    %227 = arith.addf %225, %226 : vector<8x16xf32>
    %cst_134 = arith.constant 0.000000e+00 : f32
    %228 = vector.broadcast %cst_134 : f32 to vector<8x16xf32>
    %229 = arith.maximumf %227, %228 : vector<8x16xf32>
    %230 = arith.truncf %229 : vector<8x16xf32> to vector<8x16xbf16>
    %c0_135 = arith.constant 0 : index
    %c0_136 = arith.constant 0 : index
    %c15_137 = arith.constant 15 : index
    %c0_138 = arith.constant 0 : index
    %231 = vector.load %arg8[%c0_135, %c0_136, %c15_137, %c0_138] : memref<1x8x16x16xbf16, #tpu.memory_space<vmem>>, vector<1x8x1x16xbf16>
    %232 = vector.shape_cast %231 : vector<1x8x1x16xbf16> to vector<8x16xbf16>
    %233 = vector.shape_cast %230 : vector<8x16xbf16> to vector<1x8x1x16xbf16>
    tpu.vector_store %arg8[%c0_135, %c0_136, %c15_137, %c0_138], %233 {strides = array<i32>} : memref<1x8x16x16xbf16, #tpu.memory_space<vmem>>, vector<1x8x1x16xbf16>,
    %c0_139 = arith.constant 0 : index
    %c0_140 = arith.constant 0 : index
    %234 = vector.load %arg10[%c0_139, %c0_140] : memref<8x16xf32, #tpu.memory_space<vmem>>, vector<8x16xf32>
    tpu.vector_store %arg10[%c0_139, %c0_140], %229 {strides = array<i32>} : memref<8x16xf32, #tpu.memory_space<vmem>>, vector<8x16xf32>,
    %c0_141 = arith.constant 0 : index
    %c0_142 = arith.constant 0 : index
    %235 = vector.load %arg11[%c0_141, %c0_142] : memref<8x16xf32, #tpu.memory_space<vmem>>, vector<8x16xf32>
    %c0_143 = arith.constant 0 : index
    %c0_144 = arith.constant 0 : index
    %c15_145 = arith.constant 15 : index
    %c0_146 = arith.constant 0 : index
    %236 = vector.load %arg3[%c0_143, %c0_144, %c15_145, %c0_146] : memref<1x8x16x16xbf16, #tpu.memory_space<vmem>>, vector<1x8x1x16xbf16>
    %237 = vector.shape_cast %236 : vector<1x8x1x16xbf16> to vector<8x16xbf16>
    %238 = arith.extf %237 : vector<8x16xbf16> to vector<8x16xf32>
    %239 = vector.broadcast %5 : vector<8x1xf32> to vector<8x16xf32>
    %240 = arith.mulf %235, %239 : vector<8x16xf32>
    %241 = arith.addf %240, %238 : vector<8x16xf32>
    %242 = vector.broadcast %6 : vector<8x1xf32> to vector<8x16xf32>
    %243 = arith.addf %241, %242 : vector<8x16xf32>
    %cst_147 = arith.constant 0.000000e+00 : f32
    %244 = vector.broadcast %cst_147 : f32 to vector<8x16xf32>
    %245 = arith.maximumf %243, %244 : vector<8x16xf32>
    %c0_i32_148 = arith.constant 0 : i32
    %246 = arith.cmpi eq, %arg1, %c0_i32_148 : i32
    %247 = arith.select %246, %238, %245 : vector<8x16xf32>
    %248 = arith.truncf %247 : vector<8x16xf32> to vector<8x16xbf16>
    %c0_149 = arith.constant 0 : index
    %c0_150 = arith.constant 0 : index
    %c15_151 = arith.constant 15 : index
    %c0_152 = arith.constant 0 : index
    %249 = vector.load %arg9[%c0_149, %c0_150, %c15_151, %c0_152] : memref<1x8x16x16xbf16, #tpu.memory_space<vmem>>, vector<1x8x1x16xbf16>
    %250 = vector.shape_cast %249 : vector<1x8x1x16xbf16> to vector<8x16xbf16>
    %251 = vector.shape_cast %248 : vector<8x16xbf16> to vector<1x8x1x16xbf16>
    tpu.vector_store %arg9[%c0_149, %c0_150, %c15_151, %c0_152], %251 {strides = array<i32>} : memref<1x8x16x16xbf16, #tpu.memory_space<vmem>>, vector<1x8x1x16xbf16>,
    %c0_153 = arith.constant 0 : index
    %c0_154 = arith.constant 0 : index
    %c14_155 = arith.constant 14 : index
    %c0_156 = arith.constant 0 : index
    %252 = vector.load %arg3[%c0_153, %c0_154, %c14_155, %c0_156] : memref<1x8x16x16xbf16, #tpu.memory_space<vmem>>, vector<1x8x1x16xbf16>
    %253 = vector.shape_cast %252 : vector<1x8x1x16xbf16> to vector<8x16xbf16>
    %254 = arith.extf %253 : vector<8x16xbf16> to vector<8x16xf32>
    %255 = vector.broadcast %5 : vector<8x1xf32> to vector<8x16xf32>
    %256 = arith.mulf %247, %255 : vector<8x16xf32>
    %257 = arith.addf %256, %254 : vector<8x16xf32>
    %258 = vector.broadcast %6 : vector<8x1xf32> to vector<8x16xf32>
    %259 = arith.addf %257, %258 : vector<8x16xf32>
    %cst_157 = arith.constant 0.000000e+00 : f32
    %260 = vector.broadcast %cst_157 : f32 to vector<8x16xf32>
    %261 = arith.maximumf %259, %260 : vector<8x16xf32>
    %262 = arith.truncf %261 : vector<8x16xf32> to vector<8x16xbf16>
    %c0_158 = arith.constant 0 : index
    %c0_159 = arith.constant 0 : index
    %c14_160 = arith.constant 14 : index
    %c0_161 = arith.constant 0 : index
    %263 = vector.load %arg9[%c0_158, %c0_159, %c14_160, %c0_161] : memref<1x8x16x16xbf16, #tpu.memory_space<vmem>>, vector<1x8x1x16xbf16>
    %264 = vector.shape_cast %263 : vector<1x8x1x16xbf16> to vector<8x16xbf16>
    %265 = vector.shape_cast %262 : vector<8x16xbf16> to vector<1x8x1x16xbf16>
    tpu.vector_store %arg9[%c0_158, %c0_159, %c14_160, %c0_161], %265 {strides = array<i32>} : memref<1x8x16x16xbf16, #tpu.memory_space<vmem>>, vector<1x8x1x16xbf16>,
    %c0_162 = arith.constant 0 : index
    %c0_163 = arith.constant 0 : index
    %c13_164 = arith.constant 13 : index
    %c0_165 = arith.constant 0 : index
    %266 = vector.load %arg3[%c0_162, %c0_163, %c13_164, %c0_165] : memref<1x8x16x16xbf16, #tpu.memory_space<vmem>>, vector<1x8x1x16xbf16>
    %267 = vector.shape_cast %266 : vector<1x8x1x16xbf16> to vector<8x16xbf16>
    %268 = arith.extf %267 : vector<8x16xbf16> to vector<8x16xf32>
    %269 = vector.broadcast %5 : vector<8x1xf32> to vector<8x16xf32>
    %270 = arith.mulf %261, %269 : vector<8x16xf32>
    %271 = arith.addf %270, %268 : vector<8x16xf32>
    %272 = vector.broadcast %6 : vector<8x1xf32> to vector<8x16xf32>
    %273 = arith.addf %271, %272 : vector<8x16xf32>
    %cst_166 = arith.constant 0.000000e+00 : f32
    %274 = vector.broadcast %cst_166 : f32 to vector<8x16xf32>
    %275 = arith.maximumf %273, %274 : vector<8x16xf32>
    %276 = arith.truncf %275 : vector<8x16xf32> to vector<8x16xbf16>
    %c0_167 = arith.constant 0 : index
    %c0_168 = arith.constant 0 : index
    %c13_169 = arith.constant 13 : index
    %c0_170 = arith.constant 0 : index
    %277 = vector.load %arg9[%c0_167, %c0_168, %c13_169, %c0_170] : memref<1x8x16x16xbf16, #tpu.memory_space<vmem>>, vector<1x8x1x16xbf16>
    %278 = vector.shape_cast %277 : vector<1x8x1x16xbf16> to vector<8x16xbf16>
    %279 = vector.shape_cast %276 : vector<8x16xbf16> to vector<1x8x1x16xbf16>
    tpu.vector_store %arg9[%c0_167, %c0_168, %c13_169, %c0_170], %279 {strides = array<i32>} : memref<1x8x16x16xbf16, #tpu.memory_space<vmem>>, vector<1x8x1x16xbf16>,
    %c0_171 = arith.constant 0 : index
    %c0_172 = arith.constant 0 : index
    %c12_173 = arith.constant 12 : index
    %c0_174 = arith.constant 0 : index
    %280 = vector.load %arg3[%c0_171, %c0_172, %c12_173, %c0_174] : memref<1x8x16x16xbf16, #tpu.memory_space<vmem>>, vector<1x8x1x16xbf16>
    %281 = vector.shape_cast %280 : vector<1x8x1x16xbf16> to vector<8x16xbf16>
    %282 = arith.extf %281 : vector<8x16xbf16> to vector<8x16xf32>
    %283 = vector.broadcast %5 : vector<8x1xf32> to vector<8x16xf32>
    %284 = arith.mulf %275, %283 : vector<8x16xf32>
    %285 = arith.addf %284, %282 : vector<8x16xf32>
    %286 = vector.broadcast %6 : vector<8x1xf32> to vector<8x16xf32>
    %287 = arith.addf %285, %286 : vector<8x16xf32>
    %cst_175 = arith.constant 0.000000e+00 : f32
    %288 = vector.broadcast %cst_175 : f32 to vector<8x16xf32>
    %289 = arith.maximumf %287, %288 : vector<8x16xf32>
    %290 = arith.truncf %289 : vector<8x16xf32> to vector<8x16xbf16>
    %c0_176 = arith.constant 0 : index
    %c0_177 = arith.constant 0 : index
    %c12_178 = arith.constant 12 : index
    %c0_179 = arith.constant 0 : index
    %291 = vector.load %arg9[%c0_176, %c0_177, %c12_178, %c0_179] : memref<1x8x16x16xbf16, #tpu.memory_space<vmem>>, vector<1x8x1x16xbf16>
    %292 = vector.shape_cast %291 : vector<1x8x1x16xbf16> to vector<8x16xbf16>
    %293 = vector.shape_cast %290 : vector<8x16xbf16> to vector<1x8x1x16xbf16>
    tpu.vector_store %arg9[%c0_176, %c0_177, %c12_178, %c0_179], %293 {strides = array<i32>} : memref<1x8x16x16xbf16, #tpu.memory_space<vmem>>, vector<1x8x1x16xbf16>,
    %c0_180 = arith.constant 0 : index
    %c0_181 = arith.constant 0 : index
    %c11_182 = arith.constant 11 : index
    %c0_183 = arith.constant 0 : index
    %294 = vector.load %arg3[%c0_180, %c0_181, %c11_182, %c0_183] : memref<1x8x16x16xbf16, #tpu.memory_space<vmem>>, vector<1x8x1x16xbf16>
    %295 = vector.shape_cast %294 : vector<1x8x1x16xbf16> to vector<8x16xbf16>
    %296 = arith.extf %295 : vector<8x16xbf16> to vector<8x16xf32>
    %297 = vector.broadcast %5 : vector<8x1xf32> to vector<8x16xf32>
    %298 = arith.mulf %289, %297 : vector<8x16xf32>
    %299 = arith.addf %298, %296 : vector<8x16xf32>
    %300 = vector.broadcast %6 : vector<8x1xf32> to vector<8x16xf32>
    %301 = arith.addf %299, %300 : vector<8x16xf32>
    %cst_184 = arith.constant 0.000000e+00 : f32
    %302 = vector.broadcast %cst_184 : f32 to vector<8x16xf32>
    %303 = arith.maximumf %301, %302 : vector<8x16xf32>
    %304 = arith.truncf %303 : vector<8x16xf32> to vector<8x16xbf16>
    %c0_185 = arith.constant 0 : index
    %c0_186 = arith.constant 0 : index
    %c11_187 = arith.constant 11 : index
    %c0_188 = arith.constant 0 : index
    %305 = vector.load %arg9[%c0_185, %c0_186, %c11_187, %c0_188] : memref<1x8x16x16xbf16, #tpu.memory_space<vmem>>, vector<1x8x1x16xbf16>
    %306 = vector.shape_cast %305 : vector<1x8x1x16xbf16> to vector<8x16xbf16>
    %307 = vector.shape_cast %304 : vector<8x16xbf16> to vector<1x8x1x16xbf16>
    tpu.vector_store %arg9[%c0_185, %c0_186, %c11_187, %c0_188], %307 {strides = array<i32>} : memref<1x8x16x16xbf16, #tpu.memory_space<vmem>>, vector<1x8x1x16xbf16>,
    %c0_189 = arith.constant 0 : index
    %c0_190 = arith.constant 0 : index
    %c10_191 = arith.constant 10 : index
    %c0_192 = arith.constant 0 : index
    %308 = vector.load %arg3[%c0_189, %c0_190, %c10_191, %c0_192] : memref<1x8x16x16xbf16, #tpu.memory_space<vmem>>, vector<1x8x1x16xbf16>
    %309 = vector.shape_cast %308 : vector<1x8x1x16xbf16> to vector<8x16xbf16>
    %310 = arith.extf %309 : vector<8x16xbf16> to vector<8x16xf32>
    %311 = vector.broadcast %5 : vector<8x1xf32> to vector<8x16xf32>
    %312 = arith.mulf %303, %311 : vector<8x16xf32>
    %313 = arith.addf %312, %310 : vector<8x16xf32>
    %314 = vector.broadcast %6 : vector<8x1xf32> to vector<8x16xf32>
    %315 = arith.addf %313, %314 : vector<8x16xf32>
    %cst_193 = arith.constant 0.000000e+00 : f32
    %316 = vector.broadcast %cst_193 : f32 to vector<8x16xf32>
    %317 = arith.maximumf %315, %316 : vector<8x16xf32>
    %318 = arith.truncf %317 : vector<8x16xf32> to vector<8x16xbf16>
    %c0_194 = arith.constant 0 : index
    %c0_195 = arith.constant 0 : index
    %c10_196 = arith.constant 10 : index
    %c0_197 = arith.constant 0 : index
    %319 = vector.load %arg9[%c0_194, %c0_195, %c10_196, %c0_197] : memref<1x8x16x16xbf16, #tpu.memory_space<vmem>>, vector<1x8x1x16xbf16>
    %320 = vector.shape_cast %319 : vector<1x8x1x16xbf16> to vector<8x16xbf16>
    %321 = vector.shape_cast %318 : vector<8x16xbf16> to vector<1x8x1x16xbf16>
    tpu.vector_store %arg9[%c0_194, %c0_195, %c10_196, %c0_197], %321 {strides = array<i32>} : memref<1x8x16x16xbf16, #tpu.memory_space<vmem>>, vector<1x8x1x16xbf16>,
    %c0_198 = arith.constant 0 : index
    %c0_199 = arith.constant 0 : index
    %c9_200 = arith.constant 9 : index
    %c0_201 = arith.constant 0 : index
    %322 = vector.load %arg3[%c0_198, %c0_199, %c9_200, %c0_201] : memref<1x8x16x16xbf16, #tpu.memory_space<vmem>>, vector<1x8x1x16xbf16>
    %323 = vector.shape_cast %322 : vector<1x8x1x16xbf16> to vector<8x16xbf16>
    %324 = arith.extf %323 : vector<8x16xbf16> to vector<8x16xf32>
    %325 = vector.broadcast %5 : vector<8x1xf32> to vector<8x16xf32>
    %326 = arith.mulf %317, %325 : vector<8x16xf32>
    %327 = arith.addf %326, %324 : vector<8x16xf32>
    %328 = vector.broadcast %6 : vector<8x1xf32> to vector<8x16xf32>
    %329 = arith.addf %327, %328 : vector<8x16xf32>
    %cst_202 = arith.constant 0.000000e+00 : f32
    %330 = vector.broadcast %cst_202 : f32 to vector<8x16xf32>
    %331 = arith.maximumf %329, %330 : vector<8x16xf32>
    %332 = arith.truncf %331 : vector<8x16xf32> to vector<8x16xbf16>
    %c0_203 = arith.constant 0 : index
    %c0_204 = arith.constant 0 : index
    %c9_205 = arith.constant 9 : index
    %c0_206 = arith.constant 0 : index
    %333 = vector.load %arg9[%c0_203, %c0_204, %c9_205, %c0_206] : memref<1x8x16x16xbf16, #tpu.memory_space<vmem>>, vector<1x8x1x16xbf16>
    %334 = vector.shape_cast %333 : vector<1x8x1x16xbf16> to vector<8x16xbf16>
    %335 = vector.shape_cast %332 : vector<8x16xbf16> to vector<1x8x1x16xbf16>
    tpu.vector_store %arg9[%c0_203, %c0_204, %c9_205, %c0_206], %335 {strides = array<i32>} : memref<1x8x16x16xbf16, #tpu.memory_space<vmem>>, vector<1x8x1x16xbf16>,
    %c0_207 = arith.constant 0 : index
    %c0_208 = arith.constant 0 : index
    %c8_209 = arith.constant 8 : index
    %c0_210 = arith.constant 0 : index
    %336 = vector.load %arg3[%c0_207, %c0_208, %c8_209, %c0_210] : memref<1x8x16x16xbf16, #tpu.memory_space<vmem>>, vector<1x8x1x16xbf16>
    %337 = vector.shape_cast %336 : vector<1x8x1x16xbf16> to vector<8x16xbf16>
    %338 = arith.extf %337 : vector<8x16xbf16> to vector<8x16xf32>
    %339 = vector.broadcast %5 : vector<8x1xf32> to vector<8x16xf32>
    %340 = arith.mulf %331, %339 : vector<8x16xf32>
    %341 = arith.addf %340, %338 : vector<8x16xf32>
    %342 = vector.broadcast %6 : vector<8x1xf32> to vector<8x16xf32>
    %343 = arith.addf %341, %342 : vector<8x16xf32>
    %cst_211 = arith.constant 0.000000e+00 : f32
    %344 = vector.broadcast %cst_211 : f32 to vector<8x16xf32>
    %345 = arith.maximumf %343, %344 : vector<8x16xf32>
    %346 = arith.truncf %345 : vector<8x16xf32> to vector<8x16xbf16>
    %c0_212 = arith.constant 0 : index
    %c0_213 = arith.constant 0 : index
    %c8_214 = arith.constant 8 : index
    %c0_215 = arith.constant 0 : index
    %347 = vector.load %arg9[%c0_212, %c0_213, %c8_214, %c0_215] : memref<1x8x16x16xbf16, #tpu.memory_space<vmem>>, vector<1x8x1x16xbf16>
    %348 = vector.shape_cast %347 : vector<1x8x1x16xbf16> to vector<8x16xbf16>
    %349 = vector.shape_cast %346 : vector<8x16xbf16> to vector<1x8x1x16xbf16>
    tpu.vector_store %arg9[%c0_212, %c0_213, %c8_214, %c0_215], %349 {strides = array<i32>} : memref<1x8x16x16xbf16, #tpu.memory_space<vmem>>, vector<1x8x1x16xbf16>,
    %c0_216 = arith.constant 0 : index
    %c0_217 = arith.constant 0 : index
    %c7_218 = arith.constant 7 : index
    %c0_219 = arith.constant 0 : index
    %350 = vector.load %arg3[%c0_216, %c0_217, %c7_218, %c0_219] : memref<1x8x16x16xbf16, #tpu.memory_space<vmem>>, vector<1x8x1x16xbf16>
    %351 = vector.shape_cast %350 : vector<1x8x1x16xbf16> to vector<8x16xbf16>
    %352 = arith.extf %351 : vector<8x16xbf16> to vector<8x16xf32>
    %353 = vector.broadcast %5 : vector<8x1xf32> to vector<8x16xf32>
    %354 = arith.mulf %345, %353 : vector<8x16xf32>
    %355 = arith.addf %354, %352 : vector<8x16xf32>
    %356 = vector.broadcast %6 : vector<8x1xf32> to vector<8x16xf32>
    %357 = arith.addf %355, %356 : vector<8x16xf32>
    %cst_220 = arith.constant 0.000000e+00 : f32
    %358 = vector.broadcast %cst_220 : f32 to vector<8x16xf32>
    %359 = arith.maximumf %357, %358 : vector<8x16xf32>
    %360 = arith.truncf %359 : vector<8x16xf32> to vector<8x16xbf16>
    %c0_221 = arith.constant 0 : index
    %c0_222 = arith.constant 0 : index
    %c7_223 = arith.constant 7 : index
    %c0_224 = arith.constant 0 : index
    %361 = vector.load %arg9[%c0_221, %c0_222, %c7_223, %c0_224] : memref<1x8x16x16xbf16, #tpu.memory_space<vmem>>, vector<1x8x1x16xbf16>
    %362 = vector.shape_cast %361 : vector<1x8x1x16xbf16> to vector<8x16xbf16>
    %363 = vector.shape_cast %360 : vector<8x16xbf16> to vector<1x8x1x16xbf16>
    tpu.vector_store %arg9[%c0_221, %c0_222, %c7_223, %c0_224], %363 {strides = array<i32>} : memref<1x8x16x16xbf16, #tpu.memory_space<vmem>>, vector<1x8x1x16xbf16>,
    %c0_225 = arith.constant 0 : index
    %c0_226 = arith.constant 0 : index
    %c6_227 = arith.constant 6 : index
    %c0_228 = arith.constant 0 : index
    %364 = vector.load %arg3[%c0_225, %c0_226, %c6_227, %c0_228] : memref<1x8x16x16xbf16, #tpu.memory_space<vmem>>, vector<1x8x1x16xbf16>
    %365 = vector.shape_cast %364 : vector<1x8x1x16xbf16> to vector<8x16xbf16>
    %366 = arith.extf %365 : vector<8x16xbf16> to vector<8x16xf32>
    %367 = vector.broadcast %5 : vector<8x1xf32> to vector<8x16xf32>
    %368 = arith.mulf %359, %367 : vector<8x16xf32>
    %369 = arith.addf %368, %366 : vector<8x16xf32>
    %370 = vector.broadcast %6 : vector<8x1xf32> to vector<8x16xf32>
    %371 = arith.addf %369, %370 : vector<8x16xf32>
    %cst_229 = arith.constant 0.000000e+00 : f32
    %372 = vector.broadcast %cst_229 : f32 to vector<8x16xf32>
    %373 = arith.maximumf %371, %372 : vector<8x16xf32>
    %374 = arith.truncf %373 : vector<8x16xf32> to vector<8x16xbf16>
    %c0_230 = arith.constant 0 : index
    %c0_231 = arith.constant 0 : index
    %c6_232 = arith.constant 6 : index
    %c0_233 = arith.constant 0 : index
    %375 = vector.load %arg9[%c0_230, %c0_231, %c6_232, %c0_233] : memref<1x8x16x16xbf16, #tpu.memory_space<vmem>>, vector<1x8x1x16xbf16>
    %376 = vector.shape_cast %375 : vector<1x8x1x16xbf16> to vector<8x16xbf16>
    %377 = vector.shape_cast %374 : vector<8x16xbf16> to vector<1x8x1x16xbf16>
    tpu.vector_store %arg9[%c0_230, %c0_231, %c6_232, %c0_233], %377 {strides = array<i32>} : memref<1x8x16x16xbf16, #tpu.memory_space<vmem>>, vector<1x8x1x16xbf16>,
    %c0_234 = arith.constant 0 : index
    %c0_235 = arith.constant 0 : index
    %c5_236 = arith.constant 5 : index
    %c0_237 = arith.constant 0 : index
    %378 = vector.load %arg3[%c0_234, %c0_235, %c5_236, %c0_237] : memref<1x8x16x16xbf16, #tpu.memory_space<vmem>>, vector<1x8x1x16xbf16>
    %379 = vector.shape_cast %378 : vector<1x8x1x16xbf16> to vector<8x16xbf16>
    %380 = arith.extf %379 : vector<8x16xbf16> to vector<8x16xf32>
    %381 = vector.broadcast %5 : vector<8x1xf32> to vector<8x16xf32>
    %382 = arith.mulf %373, %381 : vector<8x16xf32>
    %383 = arith.addf %382, %380 : vector<8x16xf32>
    %384 = vector.broadcast %6 : vector<8x1xf32> to vector<8x16xf32>
    %385 = arith.addf %383, %384 : vector<8x16xf32>
    %cst_238 = arith.constant 0.000000e+00 : f32
    %386 = vector.broadcast %cst_238 : f32 to vector<8x16xf32>
    %387 = arith.maximumf %385, %386 : vector<8x16xf32>
    %388 = arith.truncf %387 : vector<8x16xf32> to vector<8x16xbf16>
    %c0_239 = arith.constant 0 : index
    %c0_240 = arith.constant 0 : index
    %c5_241 = arith.constant 5 : index
    %c0_242 = arith.constant 0 : index
    %389 = vector.load %arg9[%c0_239, %c0_240, %c5_241, %c0_242] : memref<1x8x16x16xbf16, #tpu.memory_space<vmem>>, vector<1x8x1x16xbf16>
    %390 = vector.shape_cast %389 : vector<1x8x1x16xbf16> to vector<8x16xbf16>
    %391 = vector.shape_cast %388 : vector<8x16xbf16> to vector<1x8x1x16xbf16>
    tpu.vector_store %arg9[%c0_239, %c0_240, %c5_241, %c0_242], %391 {strides = array<i32>} : memref<1x8x16x16xbf16, #tpu.memory_space<vmem>>, vector<1x8x1x16xbf16>,
    %c0_243 = arith.constant 0 : index
    %c0_244 = arith.constant 0 : index
    %c4_245 = arith.constant 4 : index
    %c0_246 = arith.constant 0 : index
    %392 = vector.load %arg3[%c0_243, %c0_244, %c4_245, %c0_246] : memref<1x8x16x16xbf16, #tpu.memory_space<vmem>>, vector<1x8x1x16xbf16>
    %393 = vector.shape_cast %392 : vector<1x8x1x16xbf16> to vector<8x16xbf16>
    %394 = arith.extf %393 : vector<8x16xbf16> to vector<8x16xf32>
    %395 = vector.broadcast %5 : vector<8x1xf32> to vector<8x16xf32>
    %396 = arith.mulf %387, %395 : vector<8x16xf32>
    %397 = arith.addf %396, %394 : vector<8x16xf32>
    %398 = vector.broadcast %6 : vector<8x1xf32> to vector<8x16xf32>
    %399 = arith.addf %397, %398 : vector<8x16xf32>
    %cst_247 = arith.constant 0.000000e+00 : f32
    %400 = vector.broadcast %cst_247 : f32 to vector<8x16xf32>
    %401 = arith.maximumf %399, %400 : vector<8x16xf32>
    %402 = arith.truncf %401 : vector<8x16xf32> to vector<8x16xbf16>
    %c0_248 = arith.constant 0 : index
    %c0_249 = arith.constant 0 : index
    %c4_250 = arith.constant 4 : index
    %c0_251 = arith.constant 0 : index
    %403 = vector.load %arg9[%c0_248, %c0_249, %c4_250, %c0_251] : memref<1x8x16x16xbf16, #tpu.memory_space<vmem>>, vector<1x8x1x16xbf16>
    %404 = vector.shape_cast %403 : vector<1x8x1x16xbf16> to vector<8x16xbf16>
    %405 = vector.shape_cast %402 : vector<8x16xbf16> to vector<1x8x1x16xbf16>
    tpu.vector_store %arg9[%c0_248, %c0_249, %c4_250, %c0_251], %405 {strides = array<i32>} : memref<1x8x16x16xbf16, #tpu.memory_space<vmem>>, vector<1x8x1x16xbf16>,
    %c0_252 = arith.constant 0 : index
    %c0_253 = arith.constant 0 : index
    %c3_254 = arith.constant 3 : index
    %c0_255 = arith.constant 0 : index
    %406 = vector.load %arg3[%c0_252, %c0_253, %c3_254, %c0_255] : memref<1x8x16x16xbf16, #tpu.memory_space<vmem>>, vector<1x8x1x16xbf16>
    %407 = vector.shape_cast %406 : vector<1x8x1x16xbf16> to vector<8x16xbf16>
    %408 = arith.extf %407 : vector<8x16xbf16> to vector<8x16xf32>
    %409 = vector.broadcast %5 : vector<8x1xf32> to vector<8x16xf32>
    %410 = arith.mulf %401, %409 : vector<8x16xf32>
    %411 = arith.addf %410, %408 : vector<8x16xf32>
    %412 = vector.broadcast %6 : vector<8x1xf32> to vector<8x16xf32>
    %413 = arith.addf %411, %412 : vector<8x16xf32>
    %cst_256 = arith.constant 0.000000e+00 : f32
    %414 = vector.broadcast %cst_256 : f32 to vector<8x16xf32>
    %415 = arith.maximumf %413, %414 : vector<8x16xf32>
    %416 = arith.truncf %415 : vector<8x16xf32> to vector<8x16xbf16>
    %c0_257 = arith.constant 0 : index
    %c0_258 = arith.constant 0 : index
    %c3_259 = arith.constant 3 : index
    %c0_260 = arith.constant 0 : index
    %417 = vector.load %arg9[%c0_257, %c0_258, %c3_259, %c0_260] : memref<1x8x16x16xbf16, #tpu.memory_space<vmem>>, vector<1x8x1x16xbf16>
    %418 = vector.shape_cast %417 : vector<1x8x1x16xbf16> to vector<8x16xbf16>
    %419 = vector.shape_cast %416 : vector<8x16xbf16> to vector<1x8x1x16xbf16>
    tpu.vector_store %arg9[%c0_257, %c0_258, %c3_259, %c0_260], %419 {strides = array<i32>} : memref<1x8x16x16xbf16, #tpu.memory_space<vmem>>, vector<1x8x1x16xbf16>,
    %c0_261 = arith.constant 0 : index
    %c0_262 = arith.constant 0 : index
    %c2_263 = arith.constant 2 : index
    %c0_264 = arith.constant 0 : index
    %420 = vector.load %arg3[%c0_261, %c0_262, %c2_263, %c0_264] : memref<1x8x16x16xbf16, #tpu.memory_space<vmem>>, vector<1x8x1x16xbf16>
    %421 = vector.shape_cast %420 : vector<1x8x1x16xbf16> to vector<8x16xbf16>
    %422 = arith.extf %421 : vector<8x16xbf16> to vector<8x16xf32>
    %423 = vector.broadcast %5 : vector<8x1xf32> to vector<8x16xf32>
    %424 = arith.mulf %415, %423 : vector<8x16xf32>
    %425 = arith.addf %424, %422 : vector<8x16xf32>
    %426 = vector.broadcast %6 : vector<8x1xf32> to vector<8x16xf32>
    %427 = arith.addf %425, %426 : vector<8x16xf32>
    %cst_265 = arith.constant 0.000000e+00 : f32
    %428 = vector.broadcast %cst_265 : f32 to vector<8x16xf32>
    %429 = arith.maximumf %427, %428 : vector<8x16xf32>
    %430 = arith.truncf %429 : vector<8x16xf32> to vector<8x16xbf16>
    %c0_266 = arith.constant 0 : index
    %c0_267 = arith.constant 0 : index
    %c2_268 = arith.constant 2 : index
    %c0_269 = arith.constant 0 : index
    %431 = vector.load %arg9[%c0_266, %c0_267, %c2_268, %c0_269] : memref<1x8x16x16xbf16, #tpu.memory_space<vmem>>, vector<1x8x1x16xbf16>
    %432 = vector.shape_cast %431 : vector<1x8x1x16xbf16> to vector<8x16xbf16>
    %433 = vector.shape_cast %430 : vector<8x16xbf16> to vector<1x8x1x16xbf16>
    tpu.vector_store %arg9[%c0_266, %c0_267, %c2_268, %c0_269], %433 {strides = array<i32>} : memref<1x8x16x16xbf16, #tpu.memory_space<vmem>>, vector<1x8x1x16xbf16>,
    %c0_270 = arith.constant 0 : index
    %c0_271 = arith.constant 0 : index
    %c1_272 = arith.constant 1 : index
    %c0_273 = arith.constant 0 : index
    %434 = vector.load %arg3[%c0_270, %c0_271, %c1_272, %c0_273] : memref<1x8x16x16xbf16, #tpu.memory_space<vmem>>, vector<1x8x1x16xbf16>
    %435 = vector.shape_cast %434 : vector<1x8x1x16xbf16> to vector<8x16xbf16>
    %436 = arith.extf %435 : vector<8x16xbf16> to vector<8x16xf32>
    %437 = vector.broadcast %5 : vector<8x1xf32> to vector<8x16xf32>
    %438 = arith.mulf %429, %437 : vector<8x16xf32>
    %439 = arith.addf %438, %436 : vector<8x16xf32>
    %440 = vector.broadcast %6 : vector<8x1xf32> to vector<8x16xf32>
    %441 = arith.addf %439, %440 : vector<8x16xf32>
    %cst_274 = arith.constant 0.000000e+00 : f32
    %442 = vector.broadcast %cst_274 : f32 to vector<8x16xf32>
    %443 = arith.maximumf %441, %442 : vector<8x16xf32>
    %444 = arith.truncf %443 : vector<8x16xf32> to vector<8x16xbf16>
    %c0_275 = arith.constant 0 : index
    %c0_276 = arith.constant 0 : index
    %c1_277 = arith.constant 1 : index
    %c0_278 = arith.constant 0 : index
    %445 = vector.load %arg9[%c0_275, %c0_276, %c1_277, %c0_278] : memref<1x8x16x16xbf16, #tpu.memory_space<vmem>>, vector<1x8x1x16xbf16>
    %446 = vector.shape_cast %445 : vector<1x8x1x16xbf16> to vector<8x16xbf16>
    %447 = vector.shape_cast %444 : vector<8x16xbf16> to vector<1x8x1x16xbf16>
    tpu.vector_store %arg9[%c0_275, %c0_276, %c1_277, %c0_278], %447 {strides = array<i32>} : memref<1x8x16x16xbf16, #tpu.memory_space<vmem>>, vector<1x8x1x16xbf16>,
    %c0_279 = arith.constant 0 : index
    %c0_280 = arith.constant 0 : index
    %c0_281 = arith.constant 0 : index
    %c0_282 = arith.constant 0 : index
    %448 = vector.load %arg3[%c0_279, %c0_280, %c0_281, %c0_282] : memref<1x8x16x16xbf16, #tpu.memory_space<vmem>>, vector<1x8x1x16xbf16>
    %449 = vector.shape_cast %448 : vector<1x8x1x16xbf16> to vector<8x16xbf16>
    %450 = arith.extf %449 : vector<8x16xbf16> to vector<8x16xf32>
    %451 = vector.broadcast %5 : vector<8x1xf32> to vector<8x16xf32>
    %452 = arith.mulf %443, %451 : vector<8x16xf32>
    %453 = arith.addf %452, %450 : vector<8x16xf32>
    %454 = vector.broadcast %6 : vector<8x1xf32> to vector<8x16xf32>
    %455 = arith.addf %453, %454 : vector<8x16xf32>
    %cst_283 = arith.constant 0.000000e+00 : f32
    %456 = vector.broadcast %cst_283 : f32 to vector<8x16xf32>
    %457 = arith.maximumf %455, %456 : vector<8x16xf32>
    %458 = arith.truncf %457 : vector<8x16xf32> to vector<8x16xbf16>
    %c0_284 = arith.constant 0 : index
    %c0_285 = arith.constant 0 : index
    %c0_286 = arith.constant 0 : index
    %c0_287 = arith.constant 0 : index
    %459 = vector.load %arg9[%c0_284, %c0_285, %c0_286, %c0_287] : memref<1x8x16x16xbf16, #tpu.memory_space<vmem>>, vector<1x8x1x16xbf16>
    %460 = vector.shape_cast %459 : vector<1x8x1x16xbf16> to vector<8x16xbf16>
    %461 = vector.shape_cast %458 : vector<8x16xbf16> to vector<1x8x1x16xbf16>
    tpu.vector_store %arg9[%c0_284, %c0_285, %c0_286, %c0_287], %461 {strides = array<i32>} : memref<1x8x16x16xbf16, #tpu.memory_space<vmem>>, vector<1x8x1x16xbf16>,
    %c0_288 = arith.constant 0 : index
    %c0_289 = arith.constant 0 : index
    %462 = vector.load %arg11[%c0_288, %c0_289] : memref<8x16xf32, #tpu.memory_space<vmem>>, vector<8x16xf32>
    tpu.vector_store %arg11[%c0_288, %c0_289], %457 {strides = array<i32>} : memref<8x16xf32, #tpu.memory_space<vmem>>, vector<8x16xf32>,
    return
  }
  func.func @transform_0(%arg0: i32, %arg1: i32) -> (i32, i32, i32, i32) {
    %c0_i32 = arith.constant 0 : i32
    %c0_i32_0 = arith.constant 0 : i32
    %c0_i32_1 = arith.constant 0 : i32
    return %arg0, %c0_i32, %arg1, %c0_i32_0 : i32, i32, i32, i32
  }
  func.func @transform_1(%arg0: i32, %arg1: i32) -> (i32, i32, i32, i32) {
    %c0_i32 = arith.constant 0 : i32
    %0 = arith.subi %c0_i32, %arg1 : i32
    %c0_i32_0 = arith.constant 0 : i32
    %c0_i32_1 = arith.constant 0 : i32
    %c0_i32_2 = arith.constant 0 : i32
    return %arg0, %c0_i32_0, %0, %c0_i32_1 : i32, i32, i32, i32
  }
  func.func @transform_2(%arg0: i32, %arg1: i32) -> (i32, i32) {
    %c0_i32 = arith.constant 0 : i32
    %c0_i32_0 = arith.constant 0 : i32
    %c0_i32_1 = arith.constant 0 : i32
    return %c0_i32, %c0_i32_0 : i32, i32
  }
  func.func @transform_3(%arg0: i32, %arg1: i32) -> (i32, i32) {
    %c0_i32 = arith.constant 0 : i32
    %c0_i32_0 = arith.constant 0 : i32
    %c0_i32_1 = arith.constant 0 : i32
    return %c0_i32, %c0_i32_0 : i32, i32
  }
  func.func @transform_4(%arg0: i32, %arg1: i32) -> (i32, i32) {
    %c0_i32 = arith.constant 0 : i32
    %c0_i32_0 = arith.constant 0 : i32
    %c0_i32_1 = arith.constant 0 : i32
    return %c0_i32, %c0_i32_0 : i32, i32
  }
  func.func @transform_5(%arg0: i32, %arg1: i32) -> (i32, i32) {
    %c0_i32 = arith.constant 0 : i32
    %c0_i32_0 = arith.constant 0 : i32
    %c0_i32_1 = arith.constant 0 : i32
    return %c0_i32, %c0_i32_0 : i32, i32
  }
  func.func @transform_6(%arg0: i32, %arg1: i32) -> (i32, i32, i32, i32) {
    %c0_i32 = arith.constant 0 : i32
    %c0_i32_0 = arith.constant 0 : i32
    %c0_i32_1 = arith.constant 0 : i32
    return %arg0, %c0_i32, %arg1, %c0_i32_0 : i32, i32, i32, i32
  }
  func.func @transform_7(%arg0: i32, %arg1: i32) -> (i32, i32, i32, i32) {
    %c0_i32 = arith.constant 0 : i32
    %0 = arith.subi %c0_i32, %arg1 : i32
    %c0_i32_0 = arith.constant 0 : i32
    %c0_i32_1 = arith.constant 0 : i32
    %c0_i32_2 = arith.constant 0 : i32
    return %arg0, %c0_i32_0, %0, %c0_i32_1 : i32, i32, i32, i32
  }
}

module attributes {stable_mosaic.version = 11 : i64} {
  func.func @kernel(%arg0: i32, %arg1: i32, %arg2: memref<1x8x256xbf16, #tpu.memory_space<vmem>>, %arg3: memref<1x8x256xbf16, #tpu.memory_space<vmem>>, %arg4: memref<1x8x256xbf16, #tpu.memory_space<vmem>>, %arg5: memref<1x8x256xbf16, #tpu.memory_space<vmem>>, %arg6: memref<4x8x8xbf16, #tpu.memory_space<vmem>>, %arg7: memref<1x8x256xbf16, #tpu.memory_space<vmem>>) attributes {dimension_semantics = [#tpu.dimension_semantics<parallel>, #tpu.dimension_semantics<parallel>], iteration_bounds = array<i64: 2, 1>, scalar_prefetch = 0 : i64, scratch_operands = 0 : i64, tpu.core_type = #tpu.core_type<tc>, window_params = [{transform_indices = @transform_0, window_bounds = array<i64: 1, 8, 256>}, {transform_indices = @transform_1, window_bounds = array<i64: 1, 8, 256>}, {transform_indices = @transform_2, window_bounds = array<i64: 1, 8, 256>}, {transform_indices = @transform_3, window_bounds = array<i64: 1, 8, 256>}, {pipeline_mode = #tpu.pipeline_mode<synchronous>, transform_indices = @transform_4, window_bounds = array<i64: 4, 8, 8>}, {transform_indices = @transform_5, window_bounds = array<i64: 1, 8, 256>}]} {
    %c0 = arith.constant 0 : index
    %c0_0 = arith.constant 0 : index
    %c0_1 = arith.constant 0 : index
    %0 = vector.load %arg6[%c0, %c0_0, %c0_1] : memref<4x8x8xbf16, #tpu.memory_space<vmem>>, vector<1x8x8xbf16>
    %1 = vector.shape_cast %0 : vector<1x8x8xbf16> to vector<8x8xbf16>
    %c0_2 = arith.constant 0 : index
    %c0_3 = arith.constant 0 : index
    %c0_4 = arith.constant 0 : index
    %2 = vector.load %arg2[%c0_2, %c0_3, %c0_4] : memref<1x8x256xbf16, #tpu.memory_space<vmem>>, vector<1x8x256xbf16>
    %3 = vector.shape_cast %2 : vector<1x8x256xbf16> to vector<8x256xbf16>
    %cst = arith.constant dense<0.000000e+00> : vector<8x256xf32>
    %4 = tpu.matmul %1, %3, %cst {dimension_numbers = #tpu.dot_dimension_numbers<[1], [0], [0], [1], [0, 0, 1, 1], [], []>} : vector<8x8xbf16>, vector<8x256xbf16>, vector<8x256xf32> -> vector<8x256xf32>
    %c1 = arith.constant 1 : index
    %c0_5 = arith.constant 0 : index
    %c0_6 = arith.constant 0 : index
    %5 = vector.load %arg6[%c1, %c0_5, %c0_6] : memref<4x8x8xbf16, #tpu.memory_space<vmem>>, vector<1x8x8xbf16>
    %6 = vector.shape_cast %5 : vector<1x8x8xbf16> to vector<8x8xbf16>
    %c0_7 = arith.constant 0 : index
    %c0_8 = arith.constant 0 : index
    %c0_9 = arith.constant 0 : index
    %7 = vector.load %arg3[%c0_7, %c0_8, %c0_9] : memref<1x8x256xbf16, #tpu.memory_space<vmem>>, vector<1x8x256xbf16>
    %8 = vector.shape_cast %7 : vector<1x8x256xbf16> to vector<8x256xbf16>
    %cst_10 = arith.constant dense<0.000000e+00> : vector<8x256xf32>
    %9 = tpu.matmul %6, %8, %cst_10 {dimension_numbers = #tpu.dot_dimension_numbers<[1], [0], [0], [1], [0, 0, 1, 1], [], []>} : vector<8x8xbf16>, vector<8x256xbf16>, vector<8x256xf32> -> vector<8x256xf32>
    %10 = arith.addf %4, %9 : vector<8x256xf32>
    %c2 = arith.constant 2 : index
    %c0_11 = arith.constant 0 : index
    %c0_12 = arith.constant 0 : index
    %11 = vector.load %arg6[%c2, %c0_11, %c0_12] : memref<4x8x8xbf16, #tpu.memory_space<vmem>>, vector<1x8x8xbf16>
    %12 = vector.shape_cast %11 : vector<1x8x8xbf16> to vector<8x8xbf16>
    %c0_13 = arith.constant 0 : index
    %c0_14 = arith.constant 0 : index
    %c0_15 = arith.constant 0 : index
    %13 = vector.load %arg4[%c0_13, %c0_14, %c0_15] : memref<1x8x256xbf16, #tpu.memory_space<vmem>>, vector<1x8x256xbf16>
    %14 = vector.shape_cast %13 : vector<1x8x256xbf16> to vector<8x256xbf16>
    %cst_16 = arith.constant dense<0.000000e+00> : vector<8x256xf32>
    %15 = tpu.matmul %12, %14, %cst_16 {dimension_numbers = #tpu.dot_dimension_numbers<[1], [0], [0], [1], [0, 0, 1, 1], [], []>} : vector<8x8xbf16>, vector<8x256xbf16>, vector<8x256xf32> -> vector<8x256xf32>
    %16 = arith.addf %10, %15 : vector<8x256xf32>
    %c3 = arith.constant 3 : index
    %c0_17 = arith.constant 0 : index
    %c0_18 = arith.constant 0 : index
    %17 = vector.load %arg6[%c3, %c0_17, %c0_18] : memref<4x8x8xbf16, #tpu.memory_space<vmem>>, vector<1x8x8xbf16>
    %18 = vector.shape_cast %17 : vector<1x8x8xbf16> to vector<8x8xbf16>
    %c0_19 = arith.constant 0 : index
    %c0_20 = arith.constant 0 : index
    %c0_21 = arith.constant 0 : index
    %19 = vector.load %arg5[%c0_19, %c0_20, %c0_21] : memref<1x8x256xbf16, #tpu.memory_space<vmem>>, vector<1x8x256xbf16>
    %20 = vector.shape_cast %19 : vector<1x8x256xbf16> to vector<8x256xbf16>
    %cst_22 = arith.constant dense<0.000000e+00> : vector<8x256xf32>
    %21 = tpu.matmul %18, %20, %cst_22 {dimension_numbers = #tpu.dot_dimension_numbers<[1], [0], [0], [1], [0, 0, 1, 1], [], []>} : vector<8x8xbf16>, vector<8x256xbf16>, vector<8x256xf32> -> vector<8x256xf32>
    %22 = arith.addf %16, %21 : vector<8x256xf32>
    %23 = arith.truncf %22 : vector<8x256xf32> to vector<8x256xbf16>
    %c0_23 = arith.constant 0 : index
    %c0_24 = arith.constant 0 : index
    %c0_25 = arith.constant 0 : index
    %24 = vector.load %arg7[%c0_23, %c0_24, %c0_25] : memref<1x8x256xbf16, #tpu.memory_space<vmem>>, vector<1x8x256xbf16>
    %25 = vector.shape_cast %24 : vector<1x8x256xbf16> to vector<8x256xbf16>
    %26 = vector.shape_cast %23 : vector<8x256xbf16> to vector<1x8x256xbf16>
    tpu.vector_store %arg7[%c0_23, %c0_24, %c0_25], %26 {strides = array<i32>} : memref<1x8x256xbf16, #tpu.memory_space<vmem>>, vector<1x8x256xbf16>,
    return
  }
  func.func @transform_0(%arg0: i32, %arg1: i32) -> (i32, i32, i32) {
    %c0_i32 = arith.constant 0 : i32
    %c0_i32_0 = arith.constant 0 : i32
    return %arg0, %c0_i32, %arg1 : i32, i32, i32
  }
  func.func @transform_1(%arg0: i32, %arg1: i32) -> (i32, i32, i32) {
    %c0_i32 = arith.constant 0 : i32
    %c0_i32_0 = arith.constant 0 : i32
    return %arg0, %c0_i32, %arg1 : i32, i32, i32
  }
  func.func @transform_2(%arg0: i32, %arg1: i32) -> (i32, i32, i32) {
    %c0_i32 = arith.constant 0 : i32
    %c0_i32_0 = arith.constant 0 : i32
    return %arg0, %c0_i32, %arg1 : i32, i32, i32
  }
  func.func @transform_3(%arg0: i32, %arg1: i32) -> (i32, i32, i32) {
    %c0_i32 = arith.constant 0 : i32
    %c0_i32_0 = arith.constant 0 : i32
    return %arg0, %c0_i32, %arg1 : i32, i32, i32
  }
  func.func @transform_4(%arg0: i32, %arg1: i32) -> (i32, i32, i32) {
    %c0_i32 = arith.constant 0 : i32
    %c0_i32_0 = arith.constant 0 : i32
    %c0_i32_1 = arith.constant 0 : i32
    %c0_i32_2 = arith.constant 0 : i32
    return %c0_i32, %c0_i32_0, %c0_i32_1 : i32, i32, i32
  }
  func.func @transform_5(%arg0: i32, %arg1: i32) -> (i32, i32, i32) {
    %c0_i32 = arith.constant 0 : i32
    %c0_i32_0 = arith.constant 0 : i32
    return %arg0, %c0_i32, %arg1 : i32, i32, i32
  }
}

module attributes {stable_mosaic.version = 11 : i64} {
  func.func @kernel(%arg0: i32, %arg1: i32, %arg2: memref<1x8x256xbf16, #tpu.memory_space<vmem>>, %arg3: memref<1x8x256xbf16, #tpu.memory_space<vmem>>, %arg4: memref<1x8x256xbf16, #tpu.memory_space<vmem>>, %arg5: memref<1x8x256xbf16, #tpu.memory_space<vmem>>, %arg6: memref<4x8x8xbf16, #tpu.memory_space<vmem>>, %arg7: memref<1x8x256xf32, #tpu.memory_space<vmem>>) attributes {dimension_semantics = [#tpu.dimension_semantics<parallel>, #tpu.dimension_semantics<parallel>], iteration_bounds = array<i64: 2, 1>, scalar_prefetch = 0 : i64, scratch_operands = 0 : i64, tpu.core_type = #tpu.core_type<tc>, window_params = [{transform_indices = @transform_0, window_bounds = array<i64: 1, 8, 256>}, {transform_indices = @transform_1, window_bounds = array<i64: 1, 8, 256>}, {transform_indices = @transform_2, window_bounds = array<i64: 1, 8, 256>}, {transform_indices = @transform_3, window_bounds = array<i64: 1, 8, 256>}, {pipeline_mode = #tpu.pipeline_mode<synchronous>, transform_indices = @transform_4, window_bounds = array<i64: 4, 8, 8>}, {transform_indices = @transform_5, window_bounds = array<i64: 1, 8, 256>}]} {
    %c0 = arith.constant 0 : index
    %c0_0 = arith.constant 0 : index
    %c0_1 = arith.constant 0 : index
    %0 = vector.load %arg6[%c0, %c0_0, %c0_1] : memref<4x8x8xbf16, #tpu.memory_space<vmem>>, vector<1x8x8xbf16>
    %1 = vector.shape_cast %0 : vector<1x8x8xbf16> to vector<8x8xbf16>
    %c0_2 = arith.constant 0 : index
    %c0_3 = arith.constant 0 : index
    %c0_4 = arith.constant 0 : index
    %2 = vector.load %arg2[%c0_2, %c0_3, %c0_4] : memref<1x8x256xbf16, #tpu.memory_space<vmem>>, vector<1x8x256xbf16>
    %3 = vector.shape_cast %2 : vector<1x8x256xbf16> to vector<8x256xbf16>
    %cst = arith.constant dense<0.000000e+00> : vector<8x256xf32>
    %4 = tpu.matmul %1, %3, %cst {dimension_numbers = #tpu.dot_dimension_numbers<[1], [0], [0], [1], [0, 0, 1, 1], [], []>} : vector<8x8xbf16>, vector<8x256xbf16>, vector<8x256xf32> -> vector<8x256xf32>
    %c1 = arith.constant 1 : index
    %c0_5 = arith.constant 0 : index
    %c0_6 = arith.constant 0 : index
    %5 = vector.load %arg6[%c1, %c0_5, %c0_6] : memref<4x8x8xbf16, #tpu.memory_space<vmem>>, vector<1x8x8xbf16>
    %6 = vector.shape_cast %5 : vector<1x8x8xbf16> to vector<8x8xbf16>
    %c0_7 = arith.constant 0 : index
    %c0_8 = arith.constant 0 : index
    %c0_9 = arith.constant 0 : index
    %7 = vector.load %arg3[%c0_7, %c0_8, %c0_9] : memref<1x8x256xbf16, #tpu.memory_space<vmem>>, vector<1x8x256xbf16>
    %8 = vector.shape_cast %7 : vector<1x8x256xbf16> to vector<8x256xbf16>
    %cst_10 = arith.constant dense<0.000000e+00> : vector<8x256xf32>
    %9 = tpu.matmul %6, %8, %cst_10 {dimension_numbers = #tpu.dot_dimension_numbers<[1], [0], [0], [1], [0, 0, 1, 1], [], []>} : vector<8x8xbf16>, vector<8x256xbf16>, vector<8x256xf32> -> vector<8x256xf32>
    %10 = arith.addf %4, %9 : vector<8x256xf32>
    %c2 = arith.constant 2 : index
    %c0_11 = arith.constant 0 : index
    %c0_12 = arith.constant 0 : index
    %11 = vector.load %arg6[%c2, %c0_11, %c0_12] : memref<4x8x8xbf16, #tpu.memory_space<vmem>>, vector<1x8x8xbf16>
    %12 = vector.shape_cast %11 : vector<1x8x8xbf16> to vector<8x8xbf16>
    %c0_13 = arith.constant 0 : index
    %c0_14 = arith.constant 0 : index
    %c0_15 = arith.constant 0 : index
    %13 = vector.load %arg4[%c0_13, %c0_14, %c0_15] : memref<1x8x256xbf16, #tpu.memory_space<vmem>>, vector<1x8x256xbf16>
    %14 = vector.shape_cast %13 : vector<1x8x256xbf16> to vector<8x256xbf16>
    %cst_16 = arith.constant dense<0.000000e+00> : vector<8x256xf32>
    %15 = tpu.matmul %12, %14, %cst_16 {dimension_numbers = #tpu.dot_dimension_numbers<[1], [0], [0], [1], [0, 0, 1, 1], [], []>} : vector<8x8xbf16>, vector<8x256xbf16>, vector<8x256xf32> -> vector<8x256xf32>
    %16 = arith.addf %10, %15 : vector<8x256xf32>
    %c3 = arith.constant 3 : index
    %c0_17 = arith.constant 0 : index
    %c0_18 = arith.constant 0 : index
    %17 = vector.load %arg6[%c3, %c0_17, %c0_18] : memref<4x8x8xbf16, #tpu.memory_space<vmem>>, vector<1x8x8xbf16>
    %18 = vector.shape_cast %17 : vector<1x8x8xbf16> to vector<8x8xbf16>
    %c0_19 = arith.constant 0 : index
    %c0_20 = arith.constant 0 : index
    %c0_21 = arith.constant 0 : index
    %19 = vector.load %arg5[%c0_19, %c0_20, %c0_21] : memref<1x8x256xbf16, #tpu.memory_space<vmem>>, vector<1x8x256xbf16>
    %20 = vector.shape_cast %19 : vector<1x8x256xbf16> to vector<8x256xbf16>
    %cst_22 = arith.constant dense<0.000000e+00> : vector<8x256xf32>
    %21 = tpu.matmul %18, %20, %cst_22 {dimension_numbers = #tpu.dot_dimension_numbers<[1], [0], [0], [1], [0, 0, 1, 1], [], []>} : vector<8x8xbf16>, vector<8x256xbf16>, vector<8x256xf32> -> vector<8x256xf32>
    %22 = arith.addf %16, %21 : vector<8x256xf32>
    %cst_23 = arith.constant 0.000000e+00 : f32
    %23 = vector.broadcast %cst_23 : f32 to vector<8x256xf32>
    %24 = arith.maximumf %22, %23 : vector<8x256xf32>
    %c0_24 = arith.constant 0 : index
    %c0_25 = arith.constant 0 : index
    %c0_26 = arith.constant 0 : index
    %25 = vector.load %arg7[%c0_24, %c0_25, %c0_26] : memref<1x8x256xf32, #tpu.memory_space<vmem>>, vector<1x8x256xf32>
    %26 = vector.shape_cast %25 : vector<1x8x256xf32> to vector<8x256xf32>
    %27 = vector.shape_cast %24 : vector<8x256xf32> to vector<1x8x256xf32>
    tpu.vector_store %arg7[%c0_24, %c0_25, %c0_26], %27 {strides = array<i32>} : memref<1x8x256xf32, #tpu.memory_space<vmem>>, vector<1x8x256xf32>,
    return
  }
  func.func @transform_0(%arg0: i32, %arg1: i32) -> (i32, i32, i32) {
    %c0_i32 = arith.constant 0 : i32
    %c0_i32_0 = arith.constant 0 : i32
    return %arg0, %c0_i32, %arg1 : i32, i32, i32
  }
  func.func @transform_1(%arg0: i32, %arg1: i32) -> (i32, i32, i32) {
    %c0_i32 = arith.constant 0 : i32
    %c0_i32_0 = arith.constant 0 : i32
    return %arg0, %c0_i32, %arg1 : i32, i32, i32
  }
  func.func @transform_2(%arg0: i32, %arg1: i32) -> (i32, i32, i32) {
    %c0_i32 = arith.constant 0 : i32
    %c0_i32_0 = arith.constant 0 : i32
    return %arg0, %c0_i32, %arg1 : i32, i32, i32
  }
  func.func @transform_3(%arg0: i32, %arg1: i32) -> (i32, i32, i32) {
    %c0_i32 = arith.constant 0 : i32
    %c0_i32_0 = arith.constant 0 : i32
    return %arg0, %c0_i32, %arg1 : i32, i32, i32
  }
  func.func @transform_4(%arg0: i32, %arg1: i32) -> (i32, i32, i32) {
    %c0_i32 = arith.constant 0 : i32
    %c0_i32_0 = arith.constant 0 : i32
    %c0_i32_1 = arith.constant 0 : i32
    %c0_i32_2 = arith.constant 0 : i32
    return %c0_i32, %c0_i32_0, %c0_i32_1 : i32, i32, i32
  }
  func.func @transform_5(%arg0: i32, %arg1: i32) -> (i32, i32, i32) {
    %c0_i32 = arith.constant 0 : i32
    %c0_i32_0 = arith.constant 0 : i32
    return %arg0, %c0_i32, %arg1 : i32, i32, i32
  }
}

module attributes {stable_mosaic.version = 11 : i64} {
  func.func @_conv3x3_kernel(%arg0: i32, %arg1: i32, %arg2: memref<1x8x400xbf16, #tpu.memory_space<vmem>>, %arg3: memref<9x4x8xbf16, #tpu.memory_space<vmem>>, %arg4: memref<4x1xf32, #tpu.memory_space<vmem>>, %arg5: memref<1x362xf32, #tpu.memory_space<vmem>>, %arg6: memref<1x4x362xbf16, #tpu.memory_space<vmem>>) attributes {dimension_semantics = [#tpu.dimension_semantics<parallel>, #tpu.dimension_semantics<parallel>], iteration_bounds = array<i64: 2, 1>, scalar_prefetch = 0 : i64, scratch_operands = 0 : i64, tpu.core_type = #tpu.core_type<tc>, window_params = [{transform_indices = @transform_0, window_bounds = array<i64: 1, 8, 400>}, {transform_indices = @transform_1, window_bounds = array<i64: 9, 4, 8>}, {transform_indices = @transform_2, window_bounds = array<i64: 4, 1>}, {pipeline_mode = #tpu.pipeline_mode<synchronous>, transform_indices = @transform_3, window_bounds = array<i64: 1, 362>}, {transform_indices = @transform_4, window_bounds = array<i64: 1, 4, 362>}]} {
    %cst = arith.constant 0.000000e+00 : f32
    %0 = vector.broadcast %cst : f32 to vector<4x362xf32>
    %c0 = arith.constant 0 : index
    %c0_0 = arith.constant 0 : index
    %c0_1 = arith.constant 0 : index
    %1 = vector.load %arg2[%c0, %c0_0, %c0_1] : memref<1x8x400xbf16, #tpu.memory_space<vmem>>, vector<1x8x362xbf16>
    %2 = vector.shape_cast %1 : vector<1x8x362xbf16> to vector<8x362xbf16>
    %c0_2 = arith.constant 0 : index
    %c0_3 = arith.constant 0 : index
    %c0_4 = arith.constant 0 : index
    %3 = vector.load %arg3[%c0_2, %c0_3, %c0_4] : memref<9x4x8xbf16, #tpu.memory_space<vmem>>, vector<1x4x8xbf16>
    %4 = vector.shape_cast %3 : vector<1x4x8xbf16> to vector<4x8xbf16>
    %cst_5 = arith.constant dense<0.000000e+00> : vector<4x362xf32>
    %5 = tpu.matmul %4, %2, %cst_5 {dimension_numbers = #tpu.dot_dimension_numbers<[1], [0], [0], [1], [0, 0, 1, 1], [], []>} : vector<4x8xbf16>, vector<8x362xbf16>, vector<4x362xf32> -> vector<4x362xf32>
    %6 = arith.addf %0, %5 : vector<4x362xf32>
    %c0_6 = arith.constant 0 : index
    %c0_7 = arith.constant 0 : index
    %c1 = arith.constant 1 : index
    %7 = vector.load %arg2[%c0_6, %c0_7, %c1] : memref<1x8x400xbf16, #tpu.memory_space<vmem>>, vector<1x8x362xbf16>
    %8 = vector.shape_cast %7 : vector<1x8x362xbf16> to vector<8x362xbf16>
    %c1_8 = arith.constant 1 : index
    %c0_9 = arith.constant 0 : index
    %c0_10 = arith.constant 0 : index
    %9 = vector.load %arg3[%c1_8, %c0_9, %c0_10] : memref<9x4x8xbf16, #tpu.memory_space<vmem>>, vector<1x4x8xbf16>
    %10 = vector.shape_cast %9 : vector<1x4x8xbf16> to vector<4x8xbf16>
    %cst_11 = arith.constant dense<0.000000e+00> : vector<4x362xf32>
    %11 = tpu.matmul %10, %8, %cst_11 {dimension_numbers = #tpu.dot_dimension_numbers<[1], [0], [0], [1], [0, 0, 1, 1], [], []>} : vector<4x8xbf16>, vector<8x362xbf16>, vector<4x362xf32> -> vector<4x362xf32>
    %12 = arith.addf %6, %11 : vector<4x362xf32>
    %c0_12 = arith.constant 0 : index
    %c0_13 = arith.constant 0 : index
    %c2 = arith.constant 2 : index
    %13 = vector.load %arg2[%c0_12, %c0_13, %c2] : memref<1x8x400xbf16, #tpu.memory_space<vmem>>, vector<1x8x362xbf16>
    %14 = vector.shape_cast %13 : vector<1x8x362xbf16> to vector<8x362xbf16>
    %c2_14 = arith.constant 2 : index
    %c0_15 = arith.constant 0 : index
    %c0_16 = arith.constant 0 : index
    %15 = vector.load %arg3[%c2_14, %c0_15, %c0_16] : memref<9x4x8xbf16, #tpu.memory_space<vmem>>, vector<1x4x8xbf16>
    %16 = vector.shape_cast %15 : vector<1x4x8xbf16> to vector<4x8xbf16>
    %cst_17 = arith.constant dense<0.000000e+00> : vector<4x362xf32>
    %17 = tpu.matmul %16, %14, %cst_17 {dimension_numbers = #tpu.dot_dimension_numbers<[1], [0], [0], [1], [0, 0, 1, 1], [], []>} : vector<4x8xbf16>, vector<8x362xbf16>, vector<4x362xf32> -> vector<4x362xf32>
    %18 = arith.addf %12, %17 : vector<4x362xf32>
    %c0_18 = arith.constant 0 : index
    %c0_19 = arith.constant 0 : index
    %c18 = arith.constant 18 : index
    %19 = vector.load %arg2[%c0_18, %c0_19, %c18] : memref<1x8x400xbf16, #tpu.memory_space<vmem>>, vector<1x8x362xbf16>
    %20 = vector.shape_cast %19 : vector<1x8x362xbf16> to vector<8x362xbf16>
    %c3 = arith.constant 3 : index
    %c0_20 = arith.constant 0 : index
    %c0_21 = arith.constant 0 : index
    %21 = vector.load %arg3[%c3, %c0_20, %c0_21] : memref<9x4x8xbf16, #tpu.memory_space<vmem>>, vector<1x4x8xbf16>
    %22 = vector.shape_cast %21 : vector<1x4x8xbf16> to vector<4x8xbf16>
    %cst_22 = arith.constant dense<0.000000e+00> : vector<4x362xf32>
    %23 = tpu.matmul %22, %20, %cst_22 {dimension_numbers = #tpu.dot_dimension_numbers<[1], [0], [0], [1], [0, 0, 1, 1], [], []>} : vector<4x8xbf16>, vector<8x362xbf16>, vector<4x362xf32> -> vector<4x362xf32>
    %24 = arith.addf %18, %23 : vector<4x362xf32>
    %c0_23 = arith.constant 0 : index
    %c0_24 = arith.constant 0 : index
    %c19 = arith.constant 19 : index
    %25 = vector.load %arg2[%c0_23, %c0_24, %c19] : memref<1x8x400xbf16, #tpu.memory_space<vmem>>, vector<1x8x362xbf16>
    %26 = vector.shape_cast %25 : vector<1x8x362xbf16> to vector<8x362xbf16>
    %c4 = arith.constant 4 : index
    %c0_25 = arith.constant 0 : index
    %c0_26 = arith.constant 0 : index
    %27 = vector.load %arg3[%c4, %c0_25, %c0_26] : memref<9x4x8xbf16, #tpu.memory_space<vmem>>, vector<1x4x8xbf16>
    %28 = vector.shape_cast %27 : vector<1x4x8xbf16> to vector<4x8xbf16>
    %cst_27 = arith.constant dense<0.000000e+00> : vector<4x362xf32>
    %29 = tpu.matmul %28, %26, %cst_27 {dimension_numbers = #tpu.dot_dimension_numbers<[1], [0], [0], [1], [0, 0, 1, 1], [], []>} : vector<4x8xbf16>, vector<8x362xbf16>, vector<4x362xf32> -> vector<4x362xf32>
    %30 = arith.addf %24, %29 : vector<4x362xf32>
    %c0_28 = arith.constant 0 : index
    %c0_29 = arith.constant 0 : index
    %c20 = arith.constant 20 : index
    %31 = vector.load %arg2[%c0_28, %c0_29, %c20] : memref<1x8x400xbf16, #tpu.memory_space<vmem>>, vector<1x8x362xbf16>
    %32 = vector.shape_cast %31 : vector<1x8x362xbf16> to vector<8x362xbf16>
    %c5 = arith.constant 5 : index
    %c0_30 = arith.constant 0 : index
    %c0_31 = arith.constant 0 : index
    %33 = vector.load %arg3[%c5, %c0_30, %c0_31] : memref<9x4x8xbf16, #tpu.memory_space<vmem>>, vector<1x4x8xbf16>
    %34 = vector.shape_cast %33 : vector<1x4x8xbf16> to vector<4x8xbf16>
    %cst_32 = arith.constant dense<0.000000e+00> : vector<4x362xf32>
    %35 = tpu.matmul %34, %32, %cst_32 {dimension_numbers = #tpu.dot_dimension_numbers<[1], [0], [0], [1], [0, 0, 1, 1], [], []>} : vector<4x8xbf16>, vector<8x362xbf16>, vector<4x362xf32> -> vector<4x362xf32>
    %36 = arith.addf %30, %35 : vector<4x362xf32>
    %c0_33 = arith.constant 0 : index
    %c0_34 = arith.constant 0 : index
    %c36 = arith.constant 36 : index
    %37 = vector.load %arg2[%c0_33, %c0_34, %c36] : memref<1x8x400xbf16, #tpu.memory_space<vmem>>, vector<1x8x362xbf16>
    %38 = vector.shape_cast %37 : vector<1x8x362xbf16> to vector<8x362xbf16>
    %c6 = arith.constant 6 : index
    %c0_35 = arith.constant 0 : index
    %c0_36 = arith.constant 0 : index
    %39 = vector.load %arg3[%c6, %c0_35, %c0_36] : memref<9x4x8xbf16, #tpu.memory_space<vmem>>, vector<1x4x8xbf16>
    %40 = vector.shape_cast %39 : vector<1x4x8xbf16> to vector<4x8xbf16>
    %cst_37 = arith.constant dense<0.000000e+00> : vector<4x362xf32>
    %41 = tpu.matmul %40, %38, %cst_37 {dimension_numbers = #tpu.dot_dimension_numbers<[1], [0], [0], [1], [0, 0, 1, 1], [], []>} : vector<4x8xbf16>, vector<8x362xbf16>, vector<4x362xf32> -> vector<4x362xf32>
    %42 = arith.addf %36, %41 : vector<4x362xf32>
    %c0_38 = arith.constant 0 : index
    %c0_39 = arith.constant 0 : index
    %c37 = arith.constant 37 : index
    %43 = vector.load %arg2[%c0_38, %c0_39, %c37] : memref<1x8x400xbf16, #tpu.memory_space<vmem>>, vector<1x8x362xbf16>
    %44 = vector.shape_cast %43 : vector<1x8x362xbf16> to vector<8x362xbf16>
    %c7 = arith.constant 7 : index
    %c0_40 = arith.constant 0 : index
    %c0_41 = arith.constant 0 : index
    %45 = vector.load %arg3[%c7, %c0_40, %c0_41] : memref<9x4x8xbf16, #tpu.memory_space<vmem>>, vector<1x4x8xbf16>
    %46 = vector.shape_cast %45 : vector<1x4x8xbf16> to vector<4x8xbf16>
    %cst_42 = arith.constant dense<0.000000e+00> : vector<4x362xf32>
    %47 = tpu.matmul %46, %44, %cst_42 {dimension_numbers = #tpu.dot_dimension_numbers<[1], [0], [0], [1], [0, 0, 1, 1], [], []>} : vector<4x8xbf16>, vector<8x362xbf16>, vector<4x362xf32> -> vector<4x362xf32>
    %48 = arith.addf %42, %47 : vector<4x362xf32>
    %c0_43 = arith.constant 0 : index
    %c0_44 = arith.constant 0 : index
    %c38 = arith.constant 38 : index
    %49 = vector.load %arg2[%c0_43, %c0_44, %c38] : memref<1x8x400xbf16, #tpu.memory_space<vmem>>, vector<1x8x362xbf16>
    %50 = vector.shape_cast %49 : vector<1x8x362xbf16> to vector<8x362xbf16>
    %c8 = arith.constant 8 : index
    %c0_45 = arith.constant 0 : index
    %c0_46 = arith.constant 0 : index
    %51 = vector.load %arg3[%c8, %c0_45, %c0_46] : memref<9x4x8xbf16, #tpu.memory_space<vmem>>, vector<1x4x8xbf16>
    %52 = vector.shape_cast %51 : vector<1x4x8xbf16> to vector<4x8xbf16>
    %cst_47 = arith.constant dense<0.000000e+00> : vector<4x362xf32>
    %53 = tpu.matmul %52, %50, %cst_47 {dimension_numbers = #tpu.dot_dimension_numbers<[1], [0], [0], [1], [0, 0, 1, 1], [], []>} : vector<4x8xbf16>, vector<8x362xbf16>, vector<4x362xf32> -> vector<4x362xf32>
    %54 = arith.addf %48, %53 : vector<4x362xf32>
    %c0_48 = arith.constant 0 : index
    %c0_49 = arith.constant 0 : index
    %55 = vector.load %arg4[%c0_48, %c0_49] : memref<4x1xf32, #tpu.memory_space<vmem>>, vector<4x1xf32>
    %56 = vector.broadcast %55 : vector<4x1xf32> to vector<4x362xf32>
    %57 = arith.addf %54, %56 : vector<4x362xf32>
    %cst_50 = arith.constant 0.000000e+00 : f32
    %58 = vector.broadcast %cst_50 : f32 to vector<4x362xf32>
    %59 = arith.maximumf %57, %58 : vector<4x362xf32>
    %c0_51 = arith.constant 0 : index
    %c0_52 = arith.constant 0 : index
    %60 = vector.load %arg5[%c0_51, %c0_52] : memref<1x362xf32, #tpu.memory_space<vmem>>, vector<1x362xf32>
    %61 = vector.broadcast %60 : vector<1x362xf32> to vector<4x362xf32>
    %62 = arith.mulf %59, %61 : vector<4x362xf32>
    %63 = arith.truncf %62 : vector<4x362xf32> to vector<4x362xbf16>
    %c0_53 = arith.constant 0 : index
    %c0_54 = arith.constant 0 : index
    %c0_55 = arith.constant 0 : index
    %64 = vector.load %arg6[%c0_53, %c0_54, %c0_55] : memref<1x4x362xbf16, #tpu.memory_space<vmem>>, vector<1x4x362xbf16>
    %65 = vector.shape_cast %64 : vector<1x4x362xbf16> to vector<4x362xbf16>
    %66 = vector.shape_cast %63 : vector<4x362xbf16> to vector<1x4x362xbf16>
    tpu.vector_store %arg6[%c0_53, %c0_54, %c0_55], %66 {strides = array<i32>} : memref<1x4x362xbf16, #tpu.memory_space<vmem>>, vector<1x4x362xbf16>,
    return
  }
  func.func @transform_0(%arg0: i32, %arg1: i32) -> (i32, i32, i32) {
    %c0_i32 = arith.constant 0 : i32
    %c0_i32_0 = arith.constant 0 : i32
    %c0_i32_1 = arith.constant 0 : i32
    return %arg0, %c0_i32, %c0_i32_0 : i32, i32, i32
  }
  func.func @transform_1(%arg0: i32, %arg1: i32) -> (i32, i32, i32) {
    %c0_i32 = arith.constant 0 : i32
    %c0_i32_0 = arith.constant 0 : i32
    %c0_i32_1 = arith.constant 0 : i32
    return %c0_i32, %arg1, %c0_i32_0 : i32, i32, i32
  }
  func.func @transform_2(%arg0: i32, %arg1: i32) -> (i32, i32) {
    %c0_i32 = arith.constant 0 : i32
    %c0_i32_0 = arith.constant 0 : i32
    return %arg1, %c0_i32 : i32, i32
  }
  func.func @transform_3(%arg0: i32, %arg1: i32) -> (i32, i32) {
    %c0_i32 = arith.constant 0 : i32
    %c0_i32_0 = arith.constant 0 : i32
    %c0_i32_1 = arith.constant 0 : i32
    return %c0_i32, %c0_i32_0 : i32, i32
  }
  func.func @transform_4(%arg0: i32, %arg1: i32) -> (i32, i32, i32) {
    %c0_i32 = arith.constant 0 : i32
    %c0_i32_0 = arith.constant 0 : i32
    return %arg0, %arg1, %c0_i32 : i32, i32, i32
  }
}

module attributes {stable_mosaic.version = 11 : i64} {
  func.func @_att_tail_kernel(%arg0: i32, %arg1: memref<1x4x362xbf16, #tpu.memory_space<vmem>>, %arg2: memref<9x4x4xbf16, #tpu.memory_space<vmem>>, %arg3: memref<4x1xf32, #tpu.memory_space<vmem>>, %arg4: memref<4x4xbf16, #tpu.memory_space<vmem>>, %arg5: memref<4x1xf32, #tpu.memory_space<vmem>>, %arg6: memref<1x4x324xf32, #tpu.memory_space<vmem>>) attributes {dimension_semantics = [#tpu.dimension_semantics<parallel>], iteration_bounds = array<i64: 2>, scalar_prefetch = 0 : i64, scratch_operands = 0 : i64, tpu.core_type = #tpu.core_type<tc>, window_params = [{transform_indices = @transform_0, window_bounds = array<i64: 1, 4, 362>}, {pipeline_mode = #tpu.pipeline_mode<synchronous>, transform_indices = @transform_1, window_bounds = array<i64: 9, 4, 4>}, {pipeline_mode = #tpu.pipeline_mode<synchronous>, transform_indices = @transform_2, window_bounds = array<i64: 4, 1>}, {pipeline_mode = #tpu.pipeline_mode<synchronous>, transform_indices = @transform_3, window_bounds = array<i64: 4, 4>}, {pipeline_mode = #tpu.pipeline_mode<synchronous>, transform_indices = @transform_4, window_bounds = array<i64: 4, 1>}, {transform_indices = @transform_5, window_bounds = array<i64: 1, 4, 324>}]} {
    %cst = arith.constant 0.000000e+00 : f32
    %0 = vector.broadcast %cst : f32 to vector<4x324xf32>
    %c0 = arith.constant 0 : index
    %c0_0 = arith.constant 0 : index
    %c0_1 = arith.constant 0 : index
    %1 = vector.load %arg1[%c0, %c0_0, %c0_1] : memref<1x4x362xbf16, #tpu.memory_space<vmem>>, vector<1x4x324xbf16>
    %2 = vector.shape_cast %1 : vector<1x4x324xbf16> to vector<4x324xbf16>
    %c0_2 = arith.constant 0 : index
    %c0_3 = arith.constant 0 : index
    %c0_4 = arith.constant 0 : index
    %3 = vector.load %arg2[%c0_2, %c0_3, %c0_4] : memref<9x4x4xbf16, #tpu.memory_space<vmem>>, vector<1x4x4xbf16>
    %4 = vector.shape_cast %3 : vector<1x4x4xbf16> to vector<4x4xbf16>
    %cst_5 = arith.constant dense<0.000000e+00> : vector<4x324xf32>
    %5 = tpu.matmul %4, %2, %cst_5 {dimension_numbers = #tpu.dot_dimension_numbers<[1], [0], [0], [1], [0, 0, 1, 1], [], []>} : vector<4x4xbf16>, vector<4x324xbf16>, vector<4x324xf32> -> vector<4x324xf32>
    %6 = arith.addf %0, %5 : vector<4x324xf32>
    %c0_6 = arith.constant 0 : index
    %c0_7 = arith.constant 0 : index
    %c1 = arith.constant 1 : index
    %7 = vector.load %arg1[%c0_6, %c0_7, %c1] : memref<1x4x362xbf16, #tpu.memory_space<vmem>>, vector<1x4x324xbf16>
    %8 = vector.shape_cast %7 : vector<1x4x324xbf16> to vector<4x324xbf16>
    %c1_8 = arith.constant 1 : index
    %c0_9 = arith.constant 0 : index
    %c0_10 = arith.constant 0 : index
    %9 = vector.load %arg2[%c1_8, %c0_9, %c0_10] : memref<9x4x4xbf16, #tpu.memory_space<vmem>>, vector<1x4x4xbf16>
    %10 = vector.shape_cast %9 : vector<1x4x4xbf16> to vector<4x4xbf16>
    %cst_11 = arith.constant dense<0.000000e+00> : vector<4x324xf32>
    %11 = tpu.matmul %10, %8, %cst_11 {dimension_numbers = #tpu.dot_dimension_numbers<[1], [0], [0], [1], [0, 0, 1, 1], [], []>} : vector<4x4xbf16>, vector<4x324xbf16>, vector<4x324xf32> -> vector<4x324xf32>
    %12 = arith.addf %6, %11 : vector<4x324xf32>
    %c0_12 = arith.constant 0 : index
    %c0_13 = arith.constant 0 : index
    %c2 = arith.constant 2 : index
    %13 = vector.load %arg1[%c0_12, %c0_13, %c2] : memref<1x4x362xbf16, #tpu.memory_space<vmem>>, vector<1x4x324xbf16>
    %14 = vector.shape_cast %13 : vector<1x4x324xbf16> to vector<4x324xbf16>
    %c2_14 = arith.constant 2 : index
    %c0_15 = arith.constant 0 : index
    %c0_16 = arith.constant 0 : index
    %15 = vector.load %arg2[%c2_14, %c0_15, %c0_16] : memref<9x4x4xbf16, #tpu.memory_space<vmem>>, vector<1x4x4xbf16>
    %16 = vector.shape_cast %15 : vector<1x4x4xbf16> to vector<4x4xbf16>
    %cst_17 = arith.constant dense<0.000000e+00> : vector<4x324xf32>
    %17 = tpu.matmul %16, %14, %cst_17 {dimension_numbers = #tpu.dot_dimension_numbers<[1], [0], [0], [1], [0, 0, 1, 1], [], []>} : vector<4x4xbf16>, vector<4x324xbf16>, vector<4x324xf32> -> vector<4x324xf32>
    %18 = arith.addf %12, %17 : vector<4x324xf32>
    %c0_18 = arith.constant 0 : index
    %c0_19 = arith.constant 0 : index
    %c18 = arith.constant 18 : index
    %19 = vector.load %arg1[%c0_18, %c0_19, %c18] : memref<1x4x362xbf16, #tpu.memory_space<vmem>>, vector<1x4x324xbf16>
    %20 = vector.shape_cast %19 : vector<1x4x324xbf16> to vector<4x324xbf16>
    %c3 = arith.constant 3 : index
    %c0_20 = arith.constant 0 : index
    %c0_21 = arith.constant 0 : index
    %21 = vector.load %arg2[%c3, %c0_20, %c0_21] : memref<9x4x4xbf16, #tpu.memory_space<vmem>>, vector<1x4x4xbf16>
    %22 = vector.shape_cast %21 : vector<1x4x4xbf16> to vector<4x4xbf16>
    %cst_22 = arith.constant dense<0.000000e+00> : vector<4x324xf32>
    %23 = tpu.matmul %22, %20, %cst_22 {dimension_numbers = #tpu.dot_dimension_numbers<[1], [0], [0], [1], [0, 0, 1, 1], [], []>} : vector<4x4xbf16>, vector<4x324xbf16>, vector<4x324xf32> -> vector<4x324xf32>
    %24 = arith.addf %18, %23 : vector<4x324xf32>
    %c0_23 = arith.constant 0 : index
    %c0_24 = arith.constant 0 : index
    %c19 = arith.constant 19 : index
    %25 = vector.load %arg1[%c0_23, %c0_24, %c19] : memref<1x4x362xbf16, #tpu.memory_space<vmem>>, vector<1x4x324xbf16>
    %26 = vector.shape_cast %25 : vector<1x4x324xbf16> to vector<4x324xbf16>
    %c4 = arith.constant 4 : index
    %c0_25 = arith.constant 0 : index
    %c0_26 = arith.constant 0 : index
    %27 = vector.load %arg2[%c4, %c0_25, %c0_26] : memref<9x4x4xbf16, #tpu.memory_space<vmem>>, vector<1x4x4xbf16>
    %28 = vector.shape_cast %27 : vector<1x4x4xbf16> to vector<4x4xbf16>
    %cst_27 = arith.constant dense<0.000000e+00> : vector<4x324xf32>
    %29 = tpu.matmul %28, %26, %cst_27 {dimension_numbers = #tpu.dot_dimension_numbers<[1], [0], [0], [1], [0, 0, 1, 1], [], []>} : vector<4x4xbf16>, vector<4x324xbf16>, vector<4x324xf32> -> vector<4x324xf32>
    %30 = arith.addf %24, %29 : vector<4x324xf32>
    %c0_28 = arith.constant 0 : index
    %c0_29 = arith.constant 0 : index
    %c20 = arith.constant 20 : index
    %31 = vector.load %arg1[%c0_28, %c0_29, %c20] : memref<1x4x362xbf16, #tpu.memory_space<vmem>>, vector<1x4x324xbf16>
    %32 = vector.shape_cast %31 : vector<1x4x324xbf16> to vector<4x324xbf16>
    %c5 = arith.constant 5 : index
    %c0_30 = arith.constant 0 : index
    %c0_31 = arith.constant 0 : index
    %33 = vector.load %arg2[%c5, %c0_30, %c0_31] : memref<9x4x4xbf16, #tpu.memory_space<vmem>>, vector<1x4x4xbf16>
    %34 = vector.shape_cast %33 : vector<1x4x4xbf16> to vector<4x4xbf16>
    %cst_32 = arith.constant dense<0.000000e+00> : vector<4x324xf32>
    %35 = tpu.matmul %34, %32, %cst_32 {dimension_numbers = #tpu.dot_dimension_numbers<[1], [0], [0], [1], [0, 0, 1, 1], [], []>} : vector<4x4xbf16>, vector<4x324xbf16>, vector<4x324xf32> -> vector<4x324xf32>
    %36 = arith.addf %30, %35 : vector<4x324xf32>
    %c0_33 = arith.constant 0 : index
    %c0_34 = arith.constant 0 : index
    %c36 = arith.constant 36 : index
    %37 = vector.load %arg1[%c0_33, %c0_34, %c36] : memref<1x4x362xbf16, #tpu.memory_space<vmem>>, vector<1x4x324xbf16>
    %38 = vector.shape_cast %37 : vector<1x4x324xbf16> to vector<4x324xbf16>
    %c6 = arith.constant 6 : index
    %c0_35 = arith.constant 0 : index
    %c0_36 = arith.constant 0 : index
    %39 = vector.load %arg2[%c6, %c0_35, %c0_36] : memref<9x4x4xbf16, #tpu.memory_space<vmem>>, vector<1x4x4xbf16>
    %40 = vector.shape_cast %39 : vector<1x4x4xbf16> to vector<4x4xbf16>
    %cst_37 = arith.constant dense<0.000000e+00> : vector<4x324xf32>
    %41 = tpu.matmul %40, %38, %cst_37 {dimension_numbers = #tpu.dot_dimension_numbers<[1], [0], [0], [1], [0, 0, 1, 1], [], []>} : vector<4x4xbf16>, vector<4x324xbf16>, vector<4x324xf32> -> vector<4x324xf32>
    %42 = arith.addf %36, %41 : vector<4x324xf32>
    %c0_38 = arith.constant 0 : index
    %c0_39 = arith.constant 0 : index
    %c37 = arith.constant 37 : index
    %43 = vector.load %arg1[%c0_38, %c0_39, %c37] : memref<1x4x362xbf16, #tpu.memory_space<vmem>>, vector<1x4x324xbf16>
    %44 = vector.shape_cast %43 : vector<1x4x324xbf16> to vector<4x324xbf16>
    %c7 = arith.constant 7 : index
    %c0_40 = arith.constant 0 : index
    %c0_41 = arith.constant 0 : index
    %45 = vector.load %arg2[%c7, %c0_40, %c0_41] : memref<9x4x4xbf16, #tpu.memory_space<vmem>>, vector<1x4x4xbf16>
    %46 = vector.shape_cast %45 : vector<1x4x4xbf16> to vector<4x4xbf16>
    %cst_42 = arith.constant dense<0.000000e+00> : vector<4x324xf32>
    %47 = tpu.matmul %46, %44, %cst_42 {dimension_numbers = #tpu.dot_dimension_numbers<[1], [0], [0], [1], [0, 0, 1, 1], [], []>} : vector<4x4xbf16>, vector<4x324xbf16>, vector<4x324xf32> -> vector<4x324xf32>
    %48 = arith.addf %42, %47 : vector<4x324xf32>
    %c0_43 = arith.constant 0 : index
    %c0_44 = arith.constant 0 : index
    %c38 = arith.constant 38 : index
    %49 = vector.load %arg1[%c0_43, %c0_44, %c38] : memref<1x4x362xbf16, #tpu.memory_space<vmem>>, vector<1x4x324xbf16>
    %50 = vector.shape_cast %49 : vector<1x4x324xbf16> to vector<4x324xbf16>
    %c8 = arith.constant 8 : index
    %c0_45 = arith.constant 0 : index
    %c0_46 = arith.constant 0 : index
    %51 = vector.load %arg2[%c8, %c0_45, %c0_46] : memref<9x4x4xbf16, #tpu.memory_space<vmem>>, vector<1x4x4xbf16>
    %52 = vector.shape_cast %51 : vector<1x4x4xbf16> to vector<4x4xbf16>
    %cst_47 = arith.constant dense<0.000000e+00> : vector<4x324xf32>
    %53 = tpu.matmul %52, %50, %cst_47 {dimension_numbers = #tpu.dot_dimension_numbers<[1], [0], [0], [1], [0, 0, 1, 1], [], []>} : vector<4x4xbf16>, vector<4x324xbf16>, vector<4x324xf32> -> vector<4x324xf32>
    %54 = arith.addf %48, %53 : vector<4x324xf32>
    %c0_48 = arith.constant 0 : index
    %c0_49 = arith.constant 0 : index
    %55 = vector.load %arg3[%c0_48, %c0_49] : memref<4x1xf32, #tpu.memory_space<vmem>>, vector<4x1xf32>
    %56 = vector.broadcast %55 : vector<4x1xf32> to vector<4x324xf32>
    %57 = arith.addf %54, %56 : vector<4x324xf32>
    %cst_50 = arith.constant 0.000000e+00 : f32
    %58 = vector.broadcast %cst_50 : f32 to vector<4x324xf32>
    %59 = arith.maximumf %57, %58 : vector<4x324xf32>
    %c0_51 = arith.constant 0 : index
    %c0_52 = arith.constant 0 : index
    %60 = vector.load %arg4[%c0_51, %c0_52] : memref<4x4xbf16, #tpu.memory_space<vmem>>, vector<4x4xbf16>
    %61 = arith.truncf %59 : vector<4x324xf32> to vector<4x324xbf16>
    %cst_53 = arith.constant dense<0.000000e+00> : vector<4x324xf32>
    %62 = tpu.matmul %60, %61, %cst_53 {dimension_numbers = #tpu.dot_dimension_numbers<[1], [0], [0], [1], [0, 0, 1, 1], [], []>} : vector<4x4xbf16>, vector<4x324xbf16>, vector<4x324xf32> -> vector<4x324xf32>
    %c0_54 = arith.constant 0 : index
    %c0_55 = arith.constant 0 : index
    %63 = vector.load %arg5[%c0_54, %c0_55] : memref<4x1xf32, #tpu.memory_space<vmem>>, vector<4x1xf32>
    %64 = vector.broadcast %63 : vector<4x1xf32> to vector<4x324xf32>
    %65 = arith.addf %62, %64 : vector<4x324xf32>
    %66 = arith.negf %65 : vector<4x324xf32>
    %67 = math.exp %66 : vector<4x324xf32>
    %cst_56 = arith.constant 1.000000e+00 : f32
    %68 = vector.broadcast %cst_56 : f32 to vector<4x324xf32>
    %69 = arith.addf %68, %67 : vector<4x324xf32>
    %70 = arith.divf %68, %69 : vector<4x324xf32>
    %c0_57 = arith.constant 0 : index
    %c0_58 = arith.constant 0 : index
    %c0_59 = arith.constant 0 : index
    %71 = vector.load %arg6[%c0_57, %c0_58, %c0_59] : memref<1x4x324xf32, #tpu.memory_space<vmem>>, vector<1x4x324xf32>
    %72 = vector.shape_cast %71 : vector<1x4x324xf32> to vector<4x324xf32>
    %73 = vector.shape_cast %70 : vector<4x324xf32> to vector<1x4x324xf32>
    tpu.vector_store %arg6[%c0_57, %c0_58, %c0_59], %73 {strides = array<i32>} : memref<1x4x324xf32, #tpu.memory_space<vmem>>, vector<1x4x324xf32>,
    return
  }
  func.func @transform_0(%arg0: i32) -> (i32, i32, i32) {
    %c0_i32 = arith.constant 0 : i32
    %c0_i32_0 = arith.constant 0 : i32
    %c0_i32_1 = arith.constant 0 : i32
    return %arg0, %c0_i32, %c0_i32_0 : i32, i32, i32
  }
  func.func @transform_1(%arg0: i32) -> (i32, i32, i32) {
    %c0_i32 = arith.constant 0 : i32
    %c0_i32_0 = arith.constant 0 : i32
    %c0_i32_1 = arith.constant 0 : i32
    %c0_i32_2 = arith.constant 0 : i32
    return %c0_i32, %c0_i32_0, %c0_i32_1 : i32, i32, i32
  }
  func.func @transform_2(%arg0: i32) -> (i32, i32) {
    %c0_i32 = arith.constant 0 : i32
    %c0_i32_0 = arith.constant 0 : i32
    %c0_i32_1 = arith.constant 0 : i32
    return %c0_i32, %c0_i32_0 : i32, i32
  }
  func.func @transform_3(%arg0: i32) -> (i32, i32) {
    %c0_i32 = arith.constant 0 : i32
    %c0_i32_0 = arith.constant 0 : i32
    %c0_i32_1 = arith.constant 0 : i32
    return %c0_i32, %c0_i32_0 : i32, i32
  }
  func.func @transform_4(%arg0: i32) -> (i32, i32) {
    %c0_i32 = arith.constant 0 : i32
    %c0_i32_0 = arith.constant 0 : i32
    %c0_i32_1 = arith.constant 0 : i32
    return %c0_i32, %c0_i32_0 : i32, i32
  }
  func.func @transform_5(%arg0: i32) -> (i32, i32, i32) {
    %c0_i32 = arith.constant 0 : i32
    %c0_i32_0 = arith.constant 0 : i32
    %c0_i32_1 = arith.constant 0 : i32
    return %arg0, %c0_i32, %c0_i32_0 : i32, i32, i32
  }
}

</mosaic_0001>

<llo_original>
// kernel: dsc_forward.11
$region0: #{dsc_forward.11}
  #allocation0 [shape = 'u32[]', space=smem, size = 0x4, offset = 0x4, fixed_abs, tag = 'smem constant byte address 0x4 - core index']
  #allocation1 [shape = 'u32[144,128]{1,0:T(1,128)}', space=vmem, size = 0x12000, scoped, tag = 'internal scratch']
  %s0 = inlined_call_operand.vmem [shape: bf16[2,8,256], index: 0, kind: input, shape index: {}]
  %s1 = inlined_call_operand.vmem [shape: bf16[1,8,8], index: 1, kind: input, shape index: {}]
  %s2 = inlined_call_operand.vmem [shape: bf16[2,8,256], index: 2, kind: output, shape index: {}]
  %s3 = sld [smem:[#allocation0]]
  $region41: #{dsc_forward.11} parent=0
    _
  %s5 = ssub.s32 1, %s3
  %s6 = scalar_select 0, %s5, %s3
  loop: start=0, step=1, limit=4
  $region2: #{dsc_forward.11} parent=0 // loop_pre_header
    _
  $region3: #{dsc_forward.11} parent=0 // loop_header
    %s8 = sphi 0, %s12
    %p9 = scmp.ge.s32.totalorder %s8, 4
    %s15 = sphi 0, %s27
    %s16 = sphi 0, %s23
    %s17 = sphi 0, %s15
    %s18 = sphi 0, %s16
    %s19 = sphi 0, %s17
    %s20 = sphi 0, %s18
    %s32 = sphi 0, %s34
    %s35 = sphi 0, %s32
    %s36 = sphi 0, %s35
    %s52 = sphi 0, %s36
    %s56 = sphi 0, %s56
    %s58 = sphi 0, %s56
    %s59 = sphi 0, %s58
    %s73 = sphi 0, %s59
    %s81 = sphi 0, %s83
    %s84 = sphi 0, %s81
    %s85 = sphi 0, %s84
    %s101 = sphi 0, %s85
  $region4: #{dsc_forward.11} parent=0 // loop_header_branch
    %11 = sbr.rel (%p9) target = $region8
  $region5: #{dsc_forward.11} parent=0 // loop_body
    %s13 = ssub.s32 %s8, 1
    %s14 = ssub.s32 %s8, 2
    %s21 = sadd.s32 1, %s16
    %p22 = scmp.ge.s32.totalorder %s21, 1
    %s23 = scalar_select %p22, 0, %s21
    %s24 = sadd.s32 1, %s15
    %s25 = scalar_select %p22, %s24, %s15
    %p26 = scmp.ge.s32.totalorder %s25, 2
    %s27 = scalar_select %p26, 0, %s25
    %s28 = ssub.s32 %s15, %s27
    %s29 = ssub.s32 %s16, %s23
    %s30 = sor.u32 %s28, %s29
    %p31 = scmp.eq.s32.totalorder %s30, 0
    %s33 = sadd.s32 %s32, 1
    %s34 = scalar_select %p31, %s32, %s33
    %p37 = pneg %p31
    %p38 = scmp.eq.s32.totalorder %s8, 1
    %p39 = por %p37, %p38
    %p40 = scmp.ne.s32.totalorder %s32, %s35
    %p41 = scmp.eq.s32.totalorder %s8, 0
    %p42 = por %p40, %p41
    %p43 = scmp.ne.s32.totalorder %s32, %s35
    %p44 = scmp.eq.s32.totalorder %s13, 1
    %p45 = por %p43, %p44
    %p46 = scmp.ne.s32.totalorder %s35, %s36
    %p47 = scmp.eq.s32.totalorder %s13, 0
    %p48 = por %p46, %p47
    %p49 = scmp.ne.s32.totalorder %s35, %s36
    %p50 = scmp.eq.s32.totalorder %s14, 1
    %p51 = por %p49, %p50
    %p53 = scmp.ne.s32.totalorder %s36, %s52
    %p54 = scmp.eq.s32.totalorder %s14, 0
    %p55 = por %p53, %p54
    %s57 = sadd.s32 %s56, 1
    %p60 = scmp.eq.s32.totalorder %s8, 1
    %p61 = scmp.ne.s32.totalorder %s56, %s58
    %p62 = scmp.eq.s32.totalorder %s8, 0
    %p63 = por %p61, %p62
    %p64 = scmp.ne.s32.totalorder %s56, %s58
    %p65 = scmp.eq.s32.totalorder %s13, 1
    %p66 = por %p64, %p65
    %p67 = scmp.ne.s32.totalorder %s58, %s59
    %p68 = scmp.eq.s32.totalorder %s13, 0
    %p69 = por %p67, %p68
    %p70 = scmp.ne.s32.totalorder %s58, %s59
    %p71 = scmp.eq.s32.totalorder %s14, 1
    %p72 = por %p70, %p71
    %p74 = scmp.ne.s32.totalorder %s59, %s73
    %p75 = scmp.eq.s32.totalorder %s14, 0
    %p76 = por %p74, %p75
    %s77 = ssub.s32 %s15, %s27
    %s78 = ssub.s32 %s16, %s23
    %s79 = sor.u32 %s77, %s78
    %p80 = scmp.eq.s32.totalorder %s79, 0
    %s82 = sadd.s32 %s81, 1
    %s83 = scalar_select %p80, %s81, %s82
    %p86 = pneg %p80
    %p87 = scmp.eq.s32.totalorder %s8, 1
    %p88 = por %p86, %p87
    %p89 = scmp.ne.s32.totalorder %s81, %s84
    %p90 = scmp.eq.s32.totalorder %s8, 0
    %p91 = por %p89, %p90
    %p92 = scmp.ne.s32.totalorder %s81, %s84
    %p93 = scmp.eq.s32.totalorder %s13, 1
    %p94 = por %p92, %p93
    %p95 = scmp.ne.s32.totalorder %s84, %s85
    %p96 = scmp.eq.s32.totalorder %s13, 0
    %p97 = por %p95, %p96
    %p98 = scmp.ne.s32.totalorder %s84, %s85
    %p99 = scmp.eq.s32.totalorder %s14, 1
    %p100 = por %p98, %p99
    %p102 = scmp.ne.s32.totalorder %s85, %s101
    %p103 = scmp.eq.s32.totalorder %s14, 0
    %p104 = por %p102, %p103
    %p105 = scmp.le.s32.totalorder 1, %s8
    %p106 = scmp.lt.s32.totalorder %s8, 3
    %p107 = pnand %p105, %p106
    %p108 = pneg %p107
    // Predicated region
    $region9: #{dsc_forward.11} parent=5 // pred_check
      _
    $region10: #{dsc_forward.11} parent=5 // pred_check_branch
      %110 = sbr.rel (%p107) target = $region12
    $region11: #{dsc_forward.11} parent=5 // pred_region
      %s111 = ssub.s32 %s8, 1
      // Predicated region
      $region13: #{dsc_forward.11} parent=11 // pred_check
        %p112 = pneg %p69
      $region14: #{dsc_forward.11} parent=11 // pred_check_branch
        %114 = sbr.rel (%p112) target = $region16
      $region15: #{dsc_forward.11} parent=11 // pred_region
        _
      $region16: #{dsc_forward.11} parent=11 // pred_fallthru
        _
    $region12: #{dsc_forward.11} parent=5 // pred_fallthru
      _
    %p115 = scmp.lt.s32.totalorder %s8, 2
    // Predicated region
    $region17: #{dsc_forward.11} parent=5 // pred_check
      %p116 = pneg %p115
    $region18: #{dsc_forward.11} parent=5 // pred_check_branch
      %118 = sbr.rel (%p116) target = $region20
    $region19: #{dsc_forward.11} parent=5 // pred_region
      // Predicated region
      $region21: #{dsc_forward.11} parent=19 // pred_check
        %p119 = pneg %p42
      $region22: #{dsc_forward.11} parent=19 // pred_check_branch
        %121 = sbr.rel (%p119) target = $region24
      $region23: #{dsc_forward.11} parent=19 // pred_region
        %s122 = smul.u32 2, %s16
        %p123 = scmp.lt.s32.totalorder %s15, 1
        %s124 = scalar_select %p123, %s15, 1
        %p125 = scmp.lt.s32.totalorder %s122, 1
        %s126 = scalar_select %p125, %s122, 1
        %s127 = smul.addr %s124, 2
        %s128 = sadd.s32 %s126, %s127
        %s129 = smul.addr %s128, 4
        %s130 = scalar_lea.vmem %s0, %s129
        %s131 = smul.u32 2, %s16
      $region24: #{dsc_forward.11} parent=19 // pred_fallthru
        _
    $region20: #{dsc_forward.11} parent=5 // pred_fallthru
      _
    %p132 = scmp.le.s32.totalorder 1, %s8
    %p133 = scmp.lt.s32.totalorder %s8, 3
    %p134 = pnand %p132, %p133
    %p135 = pneg %p134
    // Predicated region
    $region25: #{dsc_forward.11} parent=5 // pred_check
      _
    $region26: #{dsc_forward.11} parent=5 // pred_check_branch
      %137 = sbr.rel (%p134) target = $region28
    $region27: #{dsc_forward.11} parent=5 // pred_region
      %s138 = ssub.s32 %s8, 1
      %s139 = smul.u32 2, %s18
      %p140 = scmp.lt.s32.totalorder %s17, 1
      %s141 = scalar_select %p140, %s17, 1
      %p142 = scmp.lt.s32.totalorder %s139, 1
      %s143 = scalar_select %p142, %s139, 1
      %s144 = smul.addr %s141, 2
      %s145 = sadd.s32 %s143, %s144
      %s146 = smul.addr %s145, 4
      %s147 = scalar_lea.vmem %s0, %s146
      %p148 = pneg %p48
      %p149 = pneg %p45
      %p150 = pneg %p69
      %p151 = pneg %p66
      %p152 = pneg %p97
      %p153 = pneg %p94
      %s154 = smul.u32 2, %s18
      %p155 = scmp.lt.s32.totalorder %s17, 1
      %s156 = scalar_select %p155, %s17, 1
      %p157 = scmp.lt.s32.totalorder %s154, 1
      %s158 = scalar_select %p157, %s154, 1
      %s159 = smul.addr %s156, 2
      %s160 = sadd.s32 %s158, %s159
      %s161 = smul.addr %s160, 4
      %s162 = scalar_lea.vmem %s2, %s161
      %s163 = smul.u32 2, %s18
      %p164 = scmp.lt.s32.totalorder %s17, 1
      %s165 = scalar_select %p164, %s17, 1
      %p166 = scmp.lt.s32.totalorder %s163, 1
      %s167 = scalar_select %p166, %s163, 1
      %s168 = smul.addr %s165, 2
      %s169 = sadd.s32 %s167, %s168
      %s170 = smul.addr %s169, 4
      %s171 = scalar_lea.vmem %s0, %s170
      %s172 = smul.u32 2, %s18
      %s173 = smul.u32 2, %s18
      %p174 = scmp.lt.s32.totalorder %s17, 1
      %s175 = scalar_select %p174, %s17, 1
      %p176 = scmp.lt.s32.totalorder %s173, 1
      %s177 = scalar_select %p176, %s173, 1
      %s178 = smul.addr %s175, 2
      %s179 = sadd.s32 %s177, %s178
      %s180 = smul.addr %s179, 4
      %s181 = scalar_lea.vmem %s2, %s180
      %s182 = smul.u32 2, %s18
      %v184 = vld [vmem:[%s1] sm:$0xf]
      %v185 = vld [vmem:[%s171] sm:$0xff]
      %v187 = vunpack.c.l.b16 %v185
      %v188 = vunpack.c.h.b16 %v185
      %v189 = vpack.c.b16 %v187, %v187
      %v190 = vpack.c.b16 %v188, %v188
      %vm191 = vcmask 64512
      %v193 = vsel %vm191, %v184, 0
      %vm195 = vcmask 1043456
      %v197 = vsel %vm195, %v189, 0
      %v200 = vsel %vm195, %v190, 0
      %202 = vmatprep.subr.bf16.mxu0 0
      %203 = vmatpush1.bf16.msra.mxu0 0
      %204 = vmatprep.subr.bf16.mxu0 0
      %205 = vmatpush1.bf16.msra.mxu0 0
      %206 = vmatprep.subr.bf16.mxu0 0
      %207 = vmatpush1.bf16.msra.mxu0 0
      %208 = vmatprep.subr.bf16.mxu0 0
      %209 = vmatpush1.bf16.msra.mxu0 0
      %210 = vmatprep.subr.bf16.mxu0 0
      %211 = vmatpush1.bf16.msra.mxu0 0
      %212 = vmatprep.subr.bf16.mxu0 0
      %213 = vmatpush1.bf16.msra.mxu0 0
      %214 = vmatprep.subr.bf16.mxu0 0
      %215 = vmatpush1.bf16.msra.mxu0 0
      %216 = vmatprep.subr.bf16.mxu0 %v200
      %217 = vmatpush1.bf16.msra.mxu0 %v197
      %218 = vmatprep.subr.bf16.mxu0 0
      %219 = vmatpush2.bf16.msra.mxu0 0
      %220 = vmatprep.subr.bf16.mxu0 0
      %221 = vmatpush2.bf16.msra.mxu0 0
      %222 = vmatprep.subr.bf16.mxu0 0
      %223 = vmatpush2.bf16.msra.mxu0 0
      %224 = vmatprep.subr.bf16.mxu0 0
      %225 = vmatpush2.bf16.msra.mxu0 0
      %226 = vmatprep.subr.bf16.mxu0 0
      %227 = vmatpush2.bf16.msra.mxu0 0
      %228 = vmatprep.subr.bf16.mxu0 0
      %229 = vmatpush2.bf16.msra.mxu0 0
      %230 = vmatprep.subr.bf16.mxu0 0
      %231 = vmatpush2.bf16.msra.mxu0 0
      %232 = vmatprep.subr.bf16.mxu0 0
      %233 = vmatpush2.bf16.msra.mxu0 0
      %234 = vmatprep.mubr.bf16.mxu0 0
      %235 = vmatmul.mubr.bf16.gmra.mxu0 %v193
      %v236 = vpop.f32.mrf.mxu0
      %v237 = vadd.f32 0.0, %v236
      %v238 = vpop.f32.mrf.mxu0
      %v239 = vadd.f32 0.0, %v238
      %v240 = vpop.f32.mrf.mxu0
      %v241 = vpop.f32.mrf.mxu0
      %242 = vdwg.mxu0
      %v243 = vpack.c.bf16 %v237, %v237
      %v244 = vpack.c.bf16 %v239, %v239
      %v247 = vunpack.c.l.b16 %v243
      %v248 = vunpack.c.l.b16 %v244
      %v249 = vpack.c.b16 %v248, %v247
      %251 = vst [vmem:[%s181] sm:$0xff] %v249
      %s252 = smul.u32 2, %s18
      %p253 = scmp.lt.s32.totalorder %s17, 1
      %s254 = scalar_select %p253, %s17, 1
      %p255 = scmp.lt.s32.totalorder %s252, 1
      %s256 = scalar_select %p255, %s252, 1
      %s257 = smul.addr %s254, 2
      %s258 = sadd.s32 %s256, %s257
      %s259 = smul.addr %s258, 4
      %s260 = scalar_lea.vmem %s2, %s259
      // Predicated region
      $region29: #{dsc_forward.11} parent=27 // pred_check
        %p261 = pneg %p94
      $region30: #{dsc_forward.11} parent=27 // pred_check_branch
        %263 = sbr.rel (%p261) target = $region32
      $region31: #{dsc_forward.11} parent=27 // pred_region
        %s264 = smul.u32 2, %s18
      $region32: #{dsc_forward.11} parent=27 // pred_fallthru
        _
    $region28: #{dsc_forward.11} parent=5 // pred_fallthru
      _
    %p265 = scmp.le.s32.totalorder 2, %s8
    // Predicated region
    $region33: #{dsc_forward.11} parent=5 // pred_check
      %p266 = pneg %p265
    $region34: #{dsc_forward.11} parent=5 // pred_check_branch
      %268 = sbr.rel (%p266) target = $region36
    $region35: #{dsc_forward.11} parent=5 // pred_region
      %s269 = ssub.s32 %s8, 2
      // Predicated region
      $region37: #{dsc_forward.11} parent=35 // pred_check
        %p270 = pneg %p100
      $region38: #{dsc_forward.11} parent=35 // pred_check_branch
        %272 = sbr.rel (%p270) target = $region40
      $region39: #{dsc_forward.11} parent=35 // pred_region
        %s273 = smul.u32 2, %s20
        %p274 = scmp.lt.s32.totalorder %s19, 1
        %s275 = scalar_select %p274, %s19, 1
        %p276 = scmp.lt.s32.totalorder %s273, 1
        %s277 = scalar_select %p276, %s273, 1
        %s278 = smul.addr %s275, 2
        %s279 = sadd.s32 %s277, %s278
        %s280 = smul.addr %s279, 4
        %s281 = scalar_lea.vmem %s2, %s280
      $region40: #{dsc_forward.11} parent=35 // pred_fallthru
        _
    $region36: #{dsc_forward.11} parent=5 // pred_fallthru
      _
  $region6: #{dsc_forward.11} parent=0 // loop_footer
    %s12 = sadd.s32 1, %s8
  $region7: #{dsc_forward.11} parent=0 // loop_footer_branch
    %7 = sbr.rel target = $region3
  $region8: #{dsc_forward.11} parent=0 // loop_exit
    _

// kernel: dsc_forward.17
$region0: #{dsc_forward.17}
  #allocation0 [shape = 'u32[]', space=smem, size = 0x4, offset = 0x4, fixed_abs, tag = 'smem constant byte address 0x4 - core index']
  #allocation1 [shape = 'u32[144,128]{1,0:T(1,128)}', space=vmem, size = 0x12000, scoped, tag = 'internal scratch']
  %s0 = inlined_call_operand.vmem [shape: bf16[2,8,256], index: 0, kind: input, shape index: {}]
  %s1 = inlined_call_operand.vmem [shape: bf16[2,8,256], index: 1, kind: input, shape index: {}]
  %s2 = inlined_call_operand.vmem [shape: bf16[2,8,256], index: 2, kind: input, shape index: {}]
  %s3 = inlined_call_operand.vmem [shape: bf16[2,8,256], index: 3, kind: input, shape index: {}]
  %s4 = inlined_call_operand.vmem [shape: bf16[4,8,8], index: 4, kind: input, shape index: {}]
  %s5 = inlined_call_operand.vmem [shape: f32[2,8,256], index: 5, kind: output, shape index: {}]
  %s6 = sld [smem:[#allocation0]]
  $region53: #{dsc_forward.17} parent=0
    _
  %s8 = ssub.s32 1, %s6
  %s9 = scalar_select 0, %s8, %s6
  loop: start=0, step=1, limit=4
  $region2: #{dsc_forward.17} parent=0 // loop_pre_header
    _
  $region3: #{dsc_forward.17} parent=0 // loop_header
    %s11 = sphi 0, %s15
    %p12 = scmp.ge.s32.totalorder %s11, 4
    %s18 = sphi 0, %s30
    %s19 = sphi 0, %s26
    %s20 = sphi 0, %s18
    %s21 = sphi 0, %s19
    %s22 = sphi 0, %s20
    %s23 = sphi 0, %s21
    %s35 = sphi 0, %s37
    %s38 = sphi 0, %s35
    %s39 = sphi 0, %s38
    %s55 = sphi 0, %s39
    %s63 = sphi 0, %s65
    %s66 = sphi 0, %s63
    %s67 = sphi 0, %s66
    %s83 = sphi 0, %s67
    %s91 = sphi 0, %s93
    %s94 = sphi 0, %s91
    %s95 = sphi 0, %s94
    %s111 = sphi 0, %s95
    %s119 = sphi 0, %s121
    %s122 = sphi 0, %s119
    %s123 = sphi 0, %s122
    %s139 = sphi 0, %s123
    %s143 = sphi 0, %s143
    %s145 = sphi 0, %s143
    %s146 = sphi 0, %s145
    %s160 = sphi 0, %s146
    %s168 = sphi 0, %s170
    %s171 = sphi 0, %s168
    %s172 = sphi 0, %s171
    %s188 = sphi 0, %s172
  $region4: #{dsc_forward.17} parent=0 // loop_header_branch
    %14 = sbr.rel (%p12) target = $region8
  $region5: #{dsc_forward.17} parent=0 // loop_body
    %s16 = ssub.s32 %s11, 1
    %s17 = ssub.s32 %s11, 2
    %s24 = sadd.s32 1, %s19
    %p25 = scmp.ge.s32.totalorder %s24, 1
    %s26 = scalar_select %p25, 0, %s24
    %s27 = sadd.s32 1, %s18
    %s28 = scalar_select %p25, %s27, %s18
    %p29 = scmp.ge.s32.totalorder %s28, 2
    %s30 = scalar_select %p29, 0, %s28
    %s31 = ssub.s32 %s18, %s30
    %s32 = ssub.s32 %s19, %s26
    %s33 = sor.u32 %s31, %s32
    %p34 = scmp.eq.s32.totalorder %s33, 0
    %s36 = sadd.s32 %s35, 1
    %s37 = scalar_select %p34, %s35, %s36
    %p40 = pneg %p34
    %p41 = scmp.eq.s32.totalorder %s11, 1
    %p42 = por %p40, %p41
    %p43 = scmp.ne.s32.totalorder %s35, %s38
    %p44 = scmp.eq.s32.totalorder %s11, 0
    %p45 = por %p43, %p44
    %p46 = scmp.ne.s32.totalorder %s35, %s38
    %p47 = scmp.eq.s32.totalorder %s16, 1
    %p48 = por %p46, %p47
    %p49 = scmp.ne.s32.totalorder %s38, %s39
    %p50 = scmp.eq.s32.totalorder %s16, 0
    %p51 = por %p49, %p50
    %p52 = scmp.ne.s32.totalorder %s38, %s39
    %p53 = scmp.eq.s32.totalorder %s17, 1
    %p54 = por %p52, %p53
    %p56 = scmp.ne.s32.totalorder %s39, %s55
    %p57 = scmp.eq.s32.totalorder %s17, 0
    %p58 = por %p56, %p57
    %s59 = ssub.s32 %s18, %s30
    %s60 = ssub.s32 %s19, %s26
    %s61 = sor.u32 %s59, %s60
    %p62 = scmp.eq.s32.totalorder %s61, 0
    %s64 = sadd.s32 %s63, 1
    %s65 = scalar_select %p62, %s63, %s64
    %p68 = pneg %p62
    %p69 = scmp.eq.s32.totalorder %s11, 1
    %p70 = por %p68, %p69
    %p71 = scmp.ne.s32.totalorder %s63, %s66
    %p72 = scmp.eq.s32.totalorder %s11, 0
    %p73 = por %p71, %p72
    %p74 = scmp.ne.s32.totalorder %s63, %s66
    %p75 = scmp.eq.s32.totalorder %s16, 1
    %p76 = por %p74, %p75
    %p77 = scmp.ne.s32.totalorder %s66, %s67
    %p78 = scmp.eq.s32.totalorder %s16, 0
    %p79 = por %p77, %p78
    %p80 = scmp.ne.s32.totalorder %s66, %s67
    %p81 = scmp.eq.s32.totalorder %s17, 1
    %p82 = por %p80, %p81
    %p84 = scmp.ne.s32.totalorder %s67, %s83
    %p85 = scmp.eq.s32.totalorder %s17, 0
    %p86 = por %p84, %p85
    %s87 = ssub.s32 %s18, %s30
    %s88 = ssub.s32 %s19, %s26
    %s89 = sor.u32 %s87, %s88
    %p90 = scmp.eq.s32.totalorder %s89, 0
    %s92 = sadd.s32 %s91, 1
    %s93 = scalar_select %p90, %s91, %s92
    %p96 = pneg %p90
    %p97 = scmp.eq.s32.totalorder %s11, 1
    %p98 = por %p96, %p97
    %p99 = scmp.ne.s32.totalorder %s91, %s94
    %p100 = scmp.eq.s32.totalorder %s11, 0
    %p101 = por %p99, %p100
    %p102 = scmp.ne.s32.totalorder %s91, %s94
    %p103 = scmp.eq.s32.totalorder %s16, 1
    %p104 = por %p102, %p103
    %p105 = scmp.ne.s32.totalorder %s94, %s95
    %p106 = scmp.eq.s32.totalorder %s16, 0
    %p107 = por %p105, %p106
    %p108 = scmp.ne.s32.totalorder %s94, %s95
    %p109 = scmp.eq.s32.totalorder %s17, 1
    %p110 = por %p108, %p109
    %p112 = scmp.ne.s32.totalorder %s95, %s111
    %p113 = scmp.eq.s32.totalorder %s17, 0
    %p114 = por %p112, %p113
    %s115 = ssub.s32 %s18, %s30
    %s116 = ssub.s32 %s19, %s26
    %s117 = sor.u32 %s115, %s116
    %p118 = scmp.eq.s32.totalorder %s117, 0
    %s120 = sadd.s32 %s119, 1
    %s121 = scalar_select %p118, %s119, %s120
    %p124 = pneg %p118
    %p125 = scmp.eq.s32.totalorder %s11, 1
    %p126 = por %p124, %p125
    %p127 = scmp.ne.s32.totalorder %s119, %s122
    %p128 = scmp.eq.s32.totalorder %s11, 0
    %p129 = por %p127, %p128
    %p130 = scmp.ne.s32.totalorder %s119, %s122
    %p131 = scmp.eq.s32.totalorder %s16, 1
    %p132 = por %p130, %p131
    %p133 = scmp.ne.s32.totalorder %s122, %s123
    %p134 = scmp.eq.s32.totalorder %s16, 0
    %p135 = por %p133, %p134
    %p136 = scmp.ne.s32.totalorder %s122, %s123
    %p137 = scmp.eq.s32.totalorder %s17, 1
    %p138 = por %p136, %p137
    %p140 = scmp.ne.s32.totalorder %s123, %s139
    %p141 = scmp.eq.s32.totalorder %s17, 0
    %p142 = por %p140, %p141
    %s144 = sadd.s32 %s143, 1
    %p147 = scmp.eq.s32.totalorder %s11, 1
    %p148 = scmp.ne.s32.totalorder %s143, %s145
    %p149 = scmp.eq.s32.totalorder %s11, 0
    %p150 = por %p148, %p149
    %p151 = scmp.ne.s32.totalorder %s143, %s145
    %p152 = scmp.eq.s32.totalorder %s16, 1
    %p153 = por %p151, %p152
    %p154 = scmp.ne.s32.totalorder %s145, %s146
    %p155 = scmp.eq.s32.totalorder %s16, 0
    %p156 = por %p154, %p155
    %p157 = scmp.ne.s32.totalorder %s145, %s146
    %p158 = scmp.eq.s32.totalorder %s17, 1
    %p159 = por %p157, %p158
    %p161 = scmp.ne.s32.totalorder %s146, %s160
    %p162 = scmp.eq.s32.totalorder %s17, 0
    %p163 = por %p161, %p162
    %s164 = ssub.s32 %s18, %s30
    %s165 = ssub.s32 %s19, %s26
    %s166 = sor.u32 %s164, %s165
    %p167 = scmp.eq.s32.totalorder %s166, 0
    %s169 = sadd.s32 %s168, 1
    %s170 = scalar_select %p167, %s168, %s169
    %p173 = pneg %p167
    %p174 = scmp.eq.s32.totalorder %s11, 1
    %p175 = por %p173, %p174
    %p176 = scmp.ne.s32.totalorder %s168, %s171
    %p177 = scmp.eq.s32.totalorder %s11, 0
    %p178 = por %p176, %p177
    %p179 = scmp.ne.s32.totalorder %s168, %s171
    %p180 = scmp.eq.s32.totalorder %s16, 1
    %p181 = por %p179, %p180
    %p182 = scmp.ne.s32.totalorder %s171, %s172
    %p183 = scmp.eq.s32.totalorder %s16, 0
    %p184 = por %p182, %p183
    %p185 = scmp.ne.s32.totalorder %s171, %s172
    %p186 = scmp.eq.s32.totalorder %s17, 1
    %p187 = por %p185, %p186
    %p189 = scmp.ne.s32.totalorder %s172, %s188
    %p190 = scmp.eq.s32.totalorder %s17, 0
    %p191 = por %p189, %p190
    %p192 = scmp.le.s32.totalorder 1, %s11
    %p193 = scmp.lt.s32.totalorder %s11, 3
    %p194 = pnand %p192, %p193
    %p195 = pneg %p194
    // Predicated region
    $region9: #{dsc_forward.17} parent=5 // pred_check
      _
    $region10: #{dsc_forward.17} parent=5 // pred_check_branch
      %197 = sbr.rel (%p194) target = $region12
    $region11: #{dsc_forward.17} parent=5 // pred_region
      %s198 = ssub.s32 %s11, 1
      // Predicated region
      $region13: #{dsc_forward.17} parent=11 // pred_check
        %p199 = pneg %p156
      $region14: #{dsc_forward.17} parent=11 // pred_check_branch
        %201 = sbr.rel (%p199) target = $region16
      $region15: #{dsc_forward.17} parent=11 // pred_region
        _
      $region16: #{dsc_forward.17} parent=11 // pred_fallthru
        _
    $region12: #{dsc_forward.17} parent=5 // pred_fallthru
      _
    %p202 = scmp.lt.s32.totalorder %s11, 2
    // Predicated region
    $region17: #{dsc_forward.17} parent=5 // pred_check
      %p203 = pneg %p202
    $region18: #{dsc_forward.17} parent=5 // pred_check_branch
      %205 = sbr.rel (%p203) target = $region20
    $region19: #{dsc_forward.17} parent=5 // pred_region
      // Predicated region
      $region21: #{dsc_forward.17} parent=19 // pred_check
        %p206 = pneg %p45
      $region22: #{dsc_forward.17} parent=19 // pred_check_branch
        %208 = sbr.rel (%p206) target = $region24
      $region23: #{dsc_forward.17} parent=19 // pred_region
        %s209 = smul.u32 2, %s19
        %p210 = scmp.lt.s32.totalorder %s18, 1
        %s211 = scalar_select %p210, %s18, 1
        %p212 = scmp.lt.s32.totalorder %s209, 1
        %s213 = scalar_select %p212, %s209, 1
        %s214 = smul.addr %s211, 2
        %s215 = sadd.s32 %s213, %s214
        %s216 = smul.addr %s215, 4
        %s217 = scalar_lea.vmem %s0, %s216
        %s218 = smul.u32 2, %s19
      $region24: #{dsc_forward.17} parent=19 // pred_fallthru
        _
      // Predicated region
      $region25: #{dsc_forward.17} parent=19 // pred_check
        %p219 = pneg %p73
      $region26: #{dsc_forward.17} parent=19 // pred_check_branch
        %221 = sbr.rel (%p219) target = $region28
      $region27: #{dsc_forward.17} parent=19 // pred_region
        %s222 = smul.u32 2, %s19
        %p223 = scmp.lt.s32.totalorder %s18, 1
        %s224 = scalar_select %p223, %s18, 1
        %p225 = scmp.lt.s32.totalorder %s222, 1
        %s226 = scalar_select %p225, %s222, 1
        %s227 = smul.addr %s224, 2
        %s228 = sadd.s32 %s226, %s227
        %s229 = smul.addr %s228, 4
        %s230 = scalar_lea.vmem %s1, %s229
        %s231 = smul.u32 2, %s19
      $region28: #{dsc_forward.17} parent=19 // pred_fallthru
        _
      // Predicated region
      $region29: #{dsc_forward.17} parent=19 // pred_check
        %p232 = pneg %p101
      $region30: #{dsc_forward.17} parent=19 // pred_check_branch
        %234 = sbr.rel (%p232) target = $region32
      $region31: #{dsc_forward.17} parent=19 // pred_region
        %s235 = smul.u32 2, %s19
        %p236 = scmp.lt.s32.totalorder %s18, 1
        %s237 = scalar_select %p236, %s18, 1
        %p238 = scmp.lt.s32.totalorder %s235, 1
        %s239 = scalar_select %p238, %s235, 1
        %s240 = smul.addr %s237, 2
        %s241 = sadd.s32 %s239, %s240
        %s242 = smul.addr %s241, 4
        %s243 = scalar_lea.vmem %s2, %s242
        %s244 = smul.u32 2, %s19
      $region32: #{dsc_forward.17} parent=19 // pred_fallthru
        _
      // Predicated region
      $region33: #{dsc_forward.17} parent=19 // pred_check
        %p245 = pneg %p129
      $region34: #{dsc_forward.17} parent=19 // pred_check_branch
        %247 = sbr.rel (%p245) target = $region36
      $region35: #{dsc_forward.17} parent=19 // pred_region
        %s248 = smul.u32 2, %s19
        %p249 = scmp.lt.s32.totalorder %s18, 1
        %s250 = scalar_select %p249, %s18, 1
        %p251 = scmp.lt.s32.totalorder %s248, 1
        %s252 = scalar_select %p251, %s248, 1
        %s253 = smul.addr %s250, 2
        %s254 = sadd.s32 %s252, %s253
        %s255 = smul.addr %s254, 4
        %s256 = scalar_lea.vmem %s3, %s255
        %s257 = smul.u32 2, %s19
      $region36: #{dsc_forward.17} parent=19 // pred_fallthru
        _
    $region20: #{dsc_forward.17} parent=5 // pred_fallthru
      _
    %p258 = scmp.le.s32.totalorder 1, %s11
    %p259 = scmp.lt.s32.totalorder %s11, 3
    %p260 = pnand %p258, %p259
    %p261 = pneg %p260
    // Predicated region
    $region37: #{dsc_forward.17} parent=5 // pred_check
      _
    $region38: #{dsc_forward.17} parent=5 // pred_check_branch
      %263 = sbr.rel (%p260) target = $region40
    $region39: #{dsc_forward.17} parent=5 // pred_region
      %s264 = ssub.s32 %s11, 1
      %s265 = smul.u32 2, %s21
      %p266 = scmp.lt.s32.totalorder %s20, 1
      %s267 = scalar_select %p266, %s20, 1
      %p268 = scmp.lt.s32.totalorder %s265, 1
      %s269 = scalar_select %p268, %s265, 1
      %s270 = smul.addr %s267, 2
      %s271 = sadd.s32 %s269, %s270
      %s272 = smul.addr %s271, 4
      %s273 = scalar_lea.vmem %s0, %s272
      %p274 = pneg %p51
      %p275 = pneg %p48
      %s276 = smul.u32 2, %s21
      %p277 = scmp.lt.s32.totalorder %s20, 1
      %s278 = scalar_select %p277, %s20, 1
      %p279 = scmp.lt.s32.totalorder %s276, 1
      %s280 = scalar_select %p279, %s276, 1
      %s281 = smul.addr %s278, 2
      %s282 = sadd.s32 %s280, %s281
      %s283 = smul.addr %s282, 4
      %s284 = scalar_lea.vmem %s1, %s283
      %p285 = pneg %p79
      %p286 = pneg %p76
      %s287 = smul.u32 2, %s21
      %p288 = scmp.lt.s32.totalorder %s20, 1
      %s289 = scalar_select %p288, %s20, 1
      %p290 = scmp.lt.s32.totalorder %s287, 1
      %s291 = scalar_select %p290, %s287, 1
      %s292 = smul.addr %s289, 2
      %s293 = sadd.s32 %s291, %s292
      %s294 = smul.addr %s293, 4
      %s295 = scalar_lea.vmem %s2, %s294
      %p296 = pneg %p107
      %p297 = pneg %p104
      %s298 = smul.u32 2, %s21
      %p299 = scmp.lt.s32.totalorder %s20, 1
      %s300 = scalar_select %p299, %s20, 1
      %p301 = scmp.lt.s32.totalorder %s298, 1
      %s302 = scalar_select %p301, %s298, 1
      %s303 = smul.addr %s300, 2
      %s304 = sadd.s32 %s302, %s303
      %s305 = smul.addr %s304, 4
      %s306 = scalar_lea.vmem %s3, %s305
      %p307 = pneg %p135
      %p308 = pneg %p132
      %p309 = pneg %p156
      %p310 = pneg %p153
      %p311 = pneg %p184
      %p312 = pneg %p181
      %s313 = smul.u32 2, %s21
      %p314 = scmp.lt.s32.totalorder %s20, 1
      %s315 = scalar_select %p314, %s20, 1
      %p316 = scmp.lt.s32.totalorder %s313, 1
      %s317 = scalar_select %p316, %s313, 1
      %s318 = smul.addr %s315, 2
      %s319 = sadd.s32 %s317, %s318
      %s320 = smul.addr %s319, 8
      %s321 = scalar_lea.vmem %s5, %s320
      %s322 = smul.u32 2, %s21
      %p323 = scmp.lt.s32.totalorder %s20, 1
      %s324 = scalar_select %p323, %s20, 1
      %p325 = scmp.lt.s32.totalorder %s322, 1
      %s326 = scalar_select %p325, %s322, 1
      %s327 = smul.addr %s324, 2
      %s328 = sadd.s32 %s326, %s327
      %s329 = smul.addr %s328, 4
      %s330 = scalar_lea.vmem %s0, %s329
      %s331 = smul.u32 2, %s21
      %s332 = smul.u32 2, %s21
      %p333 = scmp.lt.s32.totalorder %s20, 1
      %s334 = scalar_select %p333, %s20, 1
      %p335 = scmp.lt.s32.totalorder %s332, 1
      %s336 = scalar_select %p335, %s332, 1
      %s337 = smul.addr %s334, 2
      %s338 = sadd.s32 %s336, %s337
      %s339 = smul.addr %s338, 4
      %s340 = scalar_lea.vmem %s1, %s339
      %s341 = smul.u32 2, %s21
      %s342 = smul.u32 2, %s21
      %p343 = scmp.lt.s32.totalorder %s20, 1
      %s344 = scalar_select %p343, %s20, 1
      %p345 = scmp.lt.s32.totalorder %s342, 1
      %s346 = scalar_select %p345, %s342, 1
      %s347 = smul.addr %s344, 2
      %s348 = sadd.s32 %s346, %s347
      %s349 = smul.addr %s348, 4
      %s350 = scalar_lea.vmem %s2, %s349
      %s351 = smul.u32 2, %s21
      %s352 = smul.u32 2, %s21
      %p353 = scmp.lt.s32.totalorder %s20, 1
      %s354 = scalar_select %p353, %s20, 1
      %p355 = scmp.lt.s32.totalorder %s352, 1
      %s356 = scalar_select %p355, %s352, 1
      %s357 = smul.addr %s354, 2
      %s358 = sadd.s32 %s356, %s357
      %s359 = smul.addr %s358, 4
      %s360 = scalar_lea.vmem %s3, %s359
      %s361 = smul.u32 2, %s21
      %s362 = smul.u32 2, %s21
      %p363 = scmp.lt.s32.totalorder %s20, 1
      %s364 = scalar_select %p363, %s20, 1
      %p365 = scmp.lt.s32.totalorder %s362, 1
      %s366 = scalar_select %p365, %s362, 1
      %s367 = smul.addr %s364, 2
      %s368 = sadd.s32 %s366, %s367
      %s369 = smul.addr %s368, 8
      %s370 = scalar_lea.vmem %s5, %s369
      %s371 = smul.u32 2, %s21
      %v373 = vld [vmem:[%s4] sm:$0xf]
      %v374 = vld [vmem:[%s330] sm:$0xff]
      %s375 = scalar_lea.vmem %s4, 4
      %v376 = vld [vmem:[%s375] sm:$0xf]
      %v377 = vld [vmem:[%s340] sm:$0xff]
      %v379 = vunpack.c.l.b16 %v377
      %v380 = vunpack.c.h.b16 %v377
      %v381 = vpack.c.b16 %v379, %v379
      %v382 = vpack.c.b16 %v380, %v380
      %vm383 = vcmask 64512
      %v385 = vsel %vm383, %v376, 0
      %vm387 = vcmask 1043456
      %v389 = vsel %vm387, %v381, 0
      %v392 = vsel %vm387, %v382, 0
      %394 = vmatprep.subr.bf16.mxu0 0
      %395 = vmatpush1.bf16.msra.mxu0 0
      %396 = vmatprep.subr.bf16.mxu0 0
      %397 = vmatpush1.bf16.msra.mxu0 0
      %398 = vmatprep.subr.bf16.mxu0 0
      %399 = vmatpush1.bf16.msra.mxu0 0
      %400 = vmatprep.subr.bf16.mxu0 0
      %401 = vmatpush1.bf16.msra.mxu0 0
      %402 = vmatprep.subr.bf16.mxu0 0
      %403 = vmatpush1.bf16.msra.mxu0 0
      %404 = vmatprep.subr.bf16.mxu0 0
      %405 = vmatpush1.bf16.msra.mxu0 0
      %406 = vmatprep.subr.bf16.mxu0 0
      %407 = vmatpush1.bf16.msra.mxu0 0
      %408 = vmatprep.subr.bf16.mxu0 %v392
      %409 = vmatpush1.bf16.msra.mxu0 %v389
      %410 = vmatprep.subr.bf16.mxu0 0
      %411 = vmatpush2.bf16.msra.mxu0 0
      %412 = vmatprep.subr.bf16.mxu0 0
      %413 = vmatpush2.bf16.msra.mxu0 0
      %414 = vmatprep.subr.bf16.mxu0 0
      %415 = vmatpush2.bf16.msra.mxu0 0
      %416 = vmatprep.subr.bf16.mxu0 0
      %417 = vmatpush2.bf16.msra.mxu0 0
      %418 = vmatprep.subr.bf16.mxu0 0
      %419 = vmatpush2.bf16.msra.mxu0 0
      %420 = vmatprep.subr.bf16.mxu0 0
      %421 = vmatpush2.bf16.msra.mxu0 0
      %422 = vmatprep.subr.bf16.mxu0 0
      %423 = vmatpush2.bf16.msra.mxu0 0
      %424 = vmatprep.subr.bf16.mxu0 0
      %425 = vmatpush2.bf16.msra.mxu0 0
      %426 = vmatprep.mubr.bf16.mxu0 0
      %427 = vmatmul.mubr.bf16.gmra.mxu0 %v385
      %v428 = vpop.f32.mrf.mxu0
      %v429 = vadd.f32 0.0, %v428
      %v430 = vpop.f32.mrf.mxu0
      %v431 = vadd.f32 0.0, %v430
      %v432 = vpop.f32.mrf.mxu0
      %v433 = vpop.f32.mrf.mxu0
      %434 = vdwg.mxu0
      %v436 = vunpack.c.l.b16 %v374
      %v437 = vunpack.c.h.b16 %v374
      %v438 = vpack.c.b16 %v436, %v436
      %v439 = vpack.c.b16 %v437, %v437
      %v441 = vsel %vm383, %v373, 0
      %v444 = vsel %vm387, %v438, 0
      %v447 = vsel %vm387, %v439, 0
      %449 = vmatprep.subr.bf16.mxu0 0
      %450 = vmatpush1.bf16.msra.mxu0 0
      %451 = vmatprep.subr.bf16.mxu0 0
      %452 = vmatpush1.bf16.msra.mxu0 0
      %453 = vmatprep.subr.bf16.mxu0 0
      %454 = vmatpush1.bf16.msra.mxu0 0
      %455 = vmatprep.subr.bf16.mxu0 0
      %456 = vmatpush1.bf16.msra.mxu0 0
      %457 = vmatprep.subr.bf16.mxu0 0
      %458 = vmatpush1.bf16.msra.mxu0 0
      %459 = vmatprep.subr.bf16.mxu0 0
      %460 = vmatpush1.bf16.msra.mxu0 0
      %461 = vmatprep.subr.bf16.mxu0 0
      %462 = vmatpush1.bf16.msra.mxu0 0
      %463 = vmatprep.subr.bf16.mxu0 %v447
      %464 = vmatpush1.bf16.msra.mxu0 %v444
      %465 = vmatprep.subr.bf16.mxu0 0
      %466 = vmatpush2.bf16.msra.mxu0 0
      %467 = vmatprep.subr.bf16.mxu0 0
      %468 = vmatpush2.bf16.msra.mxu0 0
      %469 = vmatprep.subr.bf16.mxu0 0
      %470 = vmatpush2.bf16.msra.mxu0 0
      %471 = vmatprep.subr.bf16.mxu0 0
      %472 = vmatpush2.bf16.msra.mxu0 0
      %473 = vmatprep.subr.bf16.mxu0 0
      %474 = vmatpush2.bf16.msra.mxu0 0
      %475 = vmatprep.subr.bf16.mxu0 0
      %476 = vmatpush2.bf16.msra.mxu0 0
      %477 = vmatprep.subr.bf16.mxu0 0
      %478 = vmatpush2.bf16.msra.mxu0 0
      %479 = vmatprep.subr.bf16.mxu0 0
      %480 = vmatpush2.bf16.msra.mxu0 0
      %481 = vmatprep.mubr.bf16.mxu0 0
      %482 = vmatmul.mubr.bf16.gmra.mxu0 %v441
      %v483 = vpop.f32.mrf.mxu0
      %v484 = vadd.f32 %v429, %v483
      %v485 = vpop.f32.mrf.mxu0
      %v486 = vadd.f32 %v431, %v485
      %v487 = vpop.f32.mrf.mxu0
      %v488 = vpop.f32.mrf.mxu0
      %489 = vdwg.mxu0
      %s490 = scalar_lea.vmem %s4, 8
      %v491 = vld [vmem:[%s490] sm:$0xf]
      %v492 = vld [vmem:[%s350] sm:$0xff]
      %v494 = vunpack.c.l.b16 %v492
      %v495 = vunpack.c.h.b16 %v492
      %v496 = vpack.c.b16 %v494, %v494
      %v497 = vpack.c.b16 %v495, %v495
      %v499 = vsel %vm383, %v491, 0
      %v502 = vsel %vm387, %v496, 0
      %v505 = vsel %vm387, %v497, 0
      %507 = vmatprep.subr.bf16.mxu0 0
      %508 = vmatpush1.bf16.msra.mxu0 0
      %509 = vmatprep.subr.bf16.mxu0 0
      %510 = vmatpush1.bf16.msra.mxu0 0
      %511 = vmatprep.subr.bf16.mxu0 0
      %512 = vmatpush1.bf16.msra.mxu0 0
      %513 = vmatprep.subr.bf16.mxu0 0
      %514 = vmatpush1.bf16.msra.mxu0 0
      %515 = vmatprep.subr.bf16.mxu0 0
      %516 = vmatpush1.bf16.msra.mxu0 0
      %517 = vmatprep.subr.bf16.mxu0 0
      %518 = vmatpush1.bf16.msra.mxu0 0
      %519 = vmatprep.subr.bf16.mxu0 0
      %520 = vmatpush1.bf16.msra.mxu0 0
      %521 = vmatprep.subr.bf16.mxu0 %v505
      %522 = vmatpush1.bf16.msra.mxu0 %v502
      %523 = vmatprep.subr.bf16.mxu0 0
      %524 = vmatpush2.bf16.msra.mxu0 0
      %525 = vmatprep.subr.bf16.mxu0 0
      %526 = vmatpush2.bf16.msra.mxu0 0
      %527 = vmatprep.subr.bf16.mxu0 0
      %528 = vmatpush2.bf16.msra.mxu0 0
      %529 = vmatprep.subr.bf16.mxu0 0
      %530 = vmatpush2.bf16.msra.mxu0 0
      %531 = vmatprep.subr.bf16.mxu0 0
      %532 = vmatpush2.bf16.msra.mxu0 0
      %533 = vmatprep.subr.bf16.mxu0 0
      %534 = vmatpush2.bf16.msra.mxu0 0
      %535 = vmatprep.subr.bf16.mxu0 0
      %536 = vmatpush2.bf16.msra.mxu0 0
      %537 = vmatprep.subr.bf16.mxu0 0
      %538 = vmatpush2.bf16.msra.mxu0 0
      %539 = vmatprep.mubr.bf16.mxu0 0
      %540 = vmatmul.mubr.bf16.gmra.mxu0 %v499
      %v541 = vpop.f32.mrf.mxu0
      %v542 = vadd.f32 0.0, %v541
      %v543 = vpop.f32.mrf.mxu0
      %v544 = vadd.f32 0.0, %v543
      %v545 = vpop.f32.mrf.mxu0
      %v546 = vpop.f32.mrf.mxu0
      %547 = vdwg.mxu0
      %v548 = vadd.f32 %v484, %v542
      %v549 = vadd.f32 %v486, %v544
      %s550 = scalar_lea.vmem %s4, 12
      %v551 = vld [vmem:[%s550] sm:$0xf]
      %v552 = vld [vmem:[%s360] sm:$0xff]
      %v554 = vunpack.c.l.b16 %v552
      %v555 = vunpack.c.h.b16 %v552
      %v556 = vpack.c.b16 %v554, %v554
      %v557 = vpack.c.b16 %v555, %v555
      %v559 = vsel %vm383, %v551, 0
      %v562 = vsel %vm387, %v556, 0
      %v565 = vsel %vm387, %v557, 0
      %567 = vmatprep.subr.bf16.mxu0 0
      %568 = vmatpush1.bf16.msra.mxu0 0
      %569 = vmatprep.subr.bf16.mxu0 0
      %570 = vmatpush1.bf16.msra.mxu0 0
      %571 = vmatprep.subr.bf16.mxu0 0
      %572 = vmatpush1.bf16.msra.mxu0 0
      %573 = vmatprep.subr.bf16.mxu0 0
      %574 = vmatpush1.bf16.msra.mxu0 0
      %575 = vmatprep.subr.bf16.mxu0 0
      %576 = vmatpush1.bf16.msra.mxu0 0
      %577 = vmatprep.subr.bf16.mxu0 0
      %578 = vmatpush1.bf16.msra.mxu0 0
      %579 = vmatprep.subr.bf16.mxu0 0
      %580 = vmatpush1.bf16.msra.mxu0 0
      %581 = vmatprep.subr.bf16.mxu0 %v565
      %582 = vmatpush1.bf16.msra.mxu0 %v562
      %583 = vmatprep.subr.bf16.mxu0 0
      %584 = vmatpush2.bf16.msra.mxu0 0
      %585 = vmatprep.subr.bf16.mxu0 0
      %586 = vmatpush2.bf16.msra.mxu0 0
      %587 = vmatprep.subr.bf16.mxu0 0
      %588 = vmatpush2.bf16.msra.mxu0 0
      %589 = vmatprep.subr.bf16.mxu0 0
      %590 = vmatpush2.bf16.msra.mxu0 0
      %591 = vmatprep.subr.bf16.mxu0 0
      %592 = vmatpush2.bf16.msra.mxu0 0
      %593 = vmatprep.subr.bf16.mxu0 0
      %594 = vmatpush2.bf16.msra.mxu0 0
      %595 = vmatprep.subr.bf16.mxu0 0
      %596 = vmatpush2.bf16.msra.mxu0 0
      %597 = vmatprep.subr.bf16.mxu0 0
      %598 = vmatpush2.bf16.msra.mxu0 0
      %599 = vmatprep.mubr.bf16.mxu0 0
      %600 = vmatmul.mubr.bf16.gmra.mxu0 %v559
      %v601 = vpop.f32.mrf.mxu0
      %v602 = vadd.f32 0.0, %v601
      %v603 = vpop.f32.mrf.mxu0
      %v604 = vadd.f32 0.0, %v603
      %v605 = vpop.f32.mrf.mxu0
      %v606 = vpop.f32.mrf.mxu0
      %607 = vdwg.mxu0
      %v608 = vadd.f32 %v548, %v602
      %v609 = vadd.f32 %v549, %v604
      %v610 = vmax.f32 %v608, 0.0
      %v611 = vmax.f32 %v609, 0.0
      %612 = vst [vmem:[%s370] sm:$0xff] %v610
      %613 = vst [vmem:[%s370 + $0x8] sm:$0xff] %v611
      %s614 = smul.u32 2, %s21
      %p615 = scmp.lt.s32.totalorder %s20, 1
      %s616 = scalar_select %p615, %s20, 1
      %p617 = scmp.lt.s32.totalorder %s614, 1
      %s618 = scalar_select %p617, %s614, 1
      %s619 = smul.addr %s616, 2
      %s620 = sadd.s32 %s618, %s619
      %s621 = smul.addr %s620, 8
      %s622 = scalar_lea.vmem %s5, %s621
      // Predicated region
      $region41: #{dsc_forward.17} parent=39 // pred_check
        %p623 = pneg %p181
      $region42: #{dsc_forward.17} parent=39 // pred_check_branch
        %625 = sbr.rel (%p623) target = $region44
      $region43: #{dsc_forward.17} parent=39 // pred_region
        %s626 = smul.u32 2, %s21
      $region44: #{dsc_forward.17} parent=39 // pred_fallthru
        _
    $region40: #{dsc_forward.17} parent=5 // pred_fallthru
      _
    %p627 = scmp.le.s32.totalorder 2, %s11
    // Predicated region
    $region45: #{dsc_forward.17} parent=5 // pred_check
      %p628 = pneg %p627
    $region46: #{dsc_forward.17} parent=5 // pred_check_branch
      %630 = sbr.rel (%p628) target = $region48
    $region47: #{dsc_forward.17} parent=5 // pred_region
      %s631 = ssub.s32 %s11, 2
      // Predicated region
      $region49: #{dsc_forward.17} parent=47 // pred_check
        %p632 = pneg %p187
      $region50: #{dsc_forward.17} parent=47 // pred_check_branch
        %634 = sbr.rel (%p632) target = $region52
      $region51: #{dsc_forward.17} parent=47 // pred_region
        %s635 = smul.u32 2, %s23
        %p636 = scmp.lt.s32.totalorder %s22, 1
        %s637 = scalar_select %p636, %s22, 1
        %p638 = scmp.lt.s32.totalorder %s635, 1
        %s639 = scalar_select %p638, %s635, 1
        %s640 = smul.addr %s637, 2
        %s641 = sadd.s32 %s639, %s640
        %s642 = smul.addr %s641, 8
        %s643 = scalar_lea.vmem %s5, %s642
      $region52: #{dsc_forward.17} parent=47 // pred_fallthru
        _
    $region48: #{dsc_forward.17} parent=5 // pred_fallthru
      _
  $region6: #{dsc_forward.17} parent=0 // loop_footer
    %s15 = sadd.s32 1, %s11
  $region7: #{dsc_forward.17} parent=0 // loop_footer_branch
    %10 = sbr.rel target = $region3
  $region8: #{dsc_forward.17} parent=0 // loop_exit
    _

// kernel: dsc_forward.14
$region0: #{dsc_forward.14}
  #allocation0 [shape = 'u32[]', space=smem, size = 0x4, offset = 0x4, fixed_abs, tag = 'smem constant byte address 0x4 - core index']
  #allocation1 [shape = 'u32[144,128]{1,0:T(1,128)}', space=vmem, size = 0x12000, scoped, tag = 'internal scratch']
  %s0 = inlined_call_operand.vmem [shape: bf16[2,8,256], index: 0, kind: input, shape index: {}]
  %s1 = inlined_call_operand.vmem [shape: bf16[2,8,256], index: 1, kind: input, shape index: {}]
  %s2 = inlined_call_operand.vmem [shape: bf16[2,8,256], index: 2, kind: input, shape index: {}]
  %s3 = inlined_call_operand.vmem [shape: bf16[2,8,256], index: 3, kind: input, shape index: {}]
  %s4 = inlined_call_operand.vmem [shape: bf16[4,8,8], index: 4, kind: input, shape index: {}]
  %s5 = inlined_call_operand.vmem [shape: bf16[2,8,256], index: 5, kind: output, shape index: {}]
  %s6 = sld [smem:[#allocation0]]
  $region53: #{dsc_forward.14} parent=0
    _
  %s8 = ssub.s32 1, %s6
  %s9 = scalar_select 0, %s8, %s6
  loop: start=0, step=1, limit=4
  $region2: #{dsc_forward.14} parent=0 // loop_pre_header
    _
  $region3: #{dsc_forward.14} parent=0 // loop_header
    %s11 = sphi 0, %s15
    %p12 = scmp.ge.s32.totalorder %s11, 4
    %s18 = sphi 0, %s30
    %s19 = sphi 0, %s26
    %s20 = sphi 0, %s18
    %s21 = sphi 0, %s19
    %s22 = sphi 0, %s20
    %s23 = sphi 0, %s21
    %s35 = sphi 0, %s37
    %s38 = sphi 0, %s35
    %s39 = sphi 0, %s38
    %s55 = sphi 0, %s39
    %s63 = sphi 0, %s65
    %s66 = sphi 0, %s63
    %s67 = sphi 0, %s66
    %s83 = sphi 0, %s67
    %s91 = sphi 0, %s93
    %s94 = sphi 0, %s91
    %s95 = sphi 0, %s94
    %s111 = sphi 0, %s95
    %s119 = sphi 0, %s121
    %s122 = sphi 0, %s119
    %s123 = sphi 0, %s122
    %s139 = sphi 0, %s123
    %s143 = sphi 0, %s143
    %s145 = sphi 0, %s143
    %s146 = sphi 0, %s145
    %s160 = sphi 0, %s146
    %s168 = sphi 0, %s170
    %s171 = sphi 0, %s168
    %s172 = sphi 0, %s171
    %s188 = sphi 0, %s172
  $region4: #{dsc_forward.14} parent=0 // loop_header_branch
    %14 = sbr.rel (%p12) target = $region8
  $region5: #{dsc_forward.14} parent=0 // loop_body
    %s16 = ssub.s32 %s11, 1
    %s17 = ssub.s32 %s11, 2
    %s24 = sadd.s32 1, %s19
    %p25 = scmp.ge.s32.totalorder %s24, 1
    %s26 = scalar_select %p25, 0, %s24
    %s27 = sadd.s32 1, %s18
    %s28 = scalar_select %p25, %s27, %s18
    %p29 = scmp.ge.s32.totalorder %s28, 2
    %s30 = scalar_select %p29, 0, %s28
    %s31 = ssub.s32 %s18, %s30
    %s32 = ssub.s32 %s19, %s26
    %s33 = sor.u32 %s31, %s32
    %p34 = scmp.eq.s32.totalorder %s33, 0
    %s36 = sadd.s32 %s35, 1
    %s37 = scalar_select %p34, %s35, %s36
    %p40 = pneg %p34
    %p41 = scmp.eq.s32.totalorder %s11, 1
    %p42 = por %p40, %p41
    %p43 = scmp.ne.s32.totalorder %s35, %s38
    %p44 = scmp.eq.s32.totalorder %s11, 0
    %p45 = por %p43, %p44
    %p46 = scmp.ne.s32.totalorder %s35, %s38
    %p47 = scmp.eq.s32.totalorder %s16, 1
    %p48 = por %p46, %p47
    %p49 = scmp.ne.s32.totalorder %s38, %s39
    %p50 = scmp.eq.s32.totalorder %s16, 0
    %p51 = por %p49, %p50
    %p52 = scmp.ne.s32.totalorder %s38, %s39
    %p53 = scmp.eq.s32.totalorder %s17, 1
    %p54 = por %p52, %p53
    %p56 = scmp.ne.s32.totalorder %s39, %s55
    %p57 = scmp.eq.s32.totalorder %s17, 0
    %p58 = por %p56, %p57
    %s59 = ssub.s32 %s18, %s30
    %s60 = ssub.s32 %s19, %s26
    %s61 = sor.u32 %s59, %s60
    %p62 = scmp.eq.s32.totalorder %s61, 0
    %s64 = sadd.s32 %s63, 1
    %s65 = scalar_select %p62, %s63, %s64
    %p68 = pneg %p62
    %p69 = scmp.eq.s32.totalorder %s11, 1
    %p70 = por %p68, %p69
    %p71 = scmp.ne.s32.totalorder %s63, %s66
    %p72 = scmp.eq.s32.totalorder %s11, 0
    %p73 = por %p71, %p72
    %p74 = scmp.ne.s32.totalorder %s63, %s66
    %p75 = scmp.eq.s32.totalorder %s16, 1
    %p76 = por %p74, %p75
    %p77 = scmp.ne.s32.totalorder %s66, %s67
    %p78 = scmp.eq.s32.totalorder %s16, 0
    %p79 = por %p77, %p78
    %p80 = scmp.ne.s32.totalorder %s66, %s67
    %p81 = scmp.eq.s32.totalorder %s17, 1
    %p82 = por %p80, %p81
    %p84 = scmp.ne.s32.totalorder %s67, %s83
    %p85 = scmp.eq.s32.totalorder %s17, 0
    %p86 = por %p84, %p85
    %s87 = ssub.s32 %s18, %s30
    %s88 = ssub.s32 %s19, %s26
    %s89 = sor.u32 %s87, %s88
    %p90 = scmp.eq.s32.totalorder %s89, 0
    %s92 = sadd.s32 %s91, 1
    %s93 = scalar_select %p90, %s91, %s92
    %p96 = pneg %p90
    %p97 = scmp.eq.s32.totalorder %s11, 1
    %p98 = por %p96, %p97
    %p99 = scmp.ne.s32.totalorder %s91, %s94
    %p100 = scmp.eq.s32.totalorder %s11, 0
    %p101 = por %p99, %p100
    %p102 = scmp.ne.s32.totalorder %s91, %s94
    %p103 = scmp.eq.s32.totalorder %s16, 1
    %p104 = por %p102, %p103
    %p105 = scmp.ne.s32.totalorder %s94, %s95
    %p106 = scmp.eq.s32.totalorder %s16, 0
    %p107 = por %p105, %p106
    %p108 = scmp.ne.s32.totalorder %s94, %s95
    %p109 = scmp.eq.s32.totalorder %s17, 1
    %p110 = por %p108, %p109
    %p112 = scmp.ne.s32.totalorder %s95, %s111
    %p113 = scmp.eq.s32.totalorder %s17, 0
    %p114 = por %p112, %p113
    %s115 = ssub.s32 %s18, %s30
    %s116 = ssub.s32 %s19, %s26
    %s117 = sor.u32 %s115, %s116
    %p118 = scmp.eq.s32.totalorder %s117, 0
    %s120 = sadd.s32 %s119, 1
    %s121 = scalar_select %p118, %s119, %s120
    %p124 = pneg %p118
    %p125 = scmp.eq.s32.totalorder %s11, 1
    %p126 = por %p124, %p125
    %p127 = scmp.ne.s32.totalorder %s119, %s122
    %p128 = scmp.eq.s32.totalorder %s11, 0
    %p129 = por %p127, %p128
    %p130 = scmp.ne.s32.totalorder %s119, %s122
    %p131 = scmp.eq.s32.totalorder %s16, 1
    %p132 = por %p130, %p131
    %p133 = scmp.ne.s32.totalorder %s122, %s123
    %p134 = scmp.eq.s32.totalorder %s16, 0
    %p135 = por %p133, %p134
    %p136 = scmp.ne.s32.totalorder %s122, %s123
    %p137 = scmp.eq.s32.totalorder %s17, 1
    %p138 = por %p136, %p137
    %p140 = scmp.ne.s32.totalorder %s123, %s139
    %p141 = scmp.eq.s32.totalorder %s17, 0
    %p142 = por %p140, %p141
    %s144 = sadd.s32 %s143, 1
    %p147 = scmp.eq.s32.totalorder %s11, 1
    %p148 = scmp.ne.s32.totalorder %s143, %s145
    %p149 = scmp.eq.s32.totalorder %s11, 0
    %p150 = por %p148, %p149
    %p151 = scmp.ne.s32.totalorder %s143, %s145
    %p152 = scmp.eq.s32.totalorder %s16, 1
    %p153 = por %p151, %p152
    %p154 = scmp.ne.s32.totalorder %s145, %s146
    %p155 = scmp.eq.s32.totalorder %s16, 0
    %p156 = por %p154, %p155
    %p157 = scmp.ne.s32.totalorder %s145, %s146
    %p158 = scmp.eq.s32.totalorder %s17, 1
    %p159 = por %p157, %p158
    %p161 = scmp.ne.s32.totalorder %s146, %s160
    %p162 = scmp.eq.s32.totalorder %s17, 0
    %p163 = por %p161, %p162
    %s164 = ssub.s32 %s18, %s30
    %s165 = ssub.s32 %s19, %s26
    %s166 = sor.u32 %s164, %s165
    %p167 = scmp.eq.s32.totalorder %s166, 0
    %s169 = sadd.s32 %s168, 1
    %s170 = scalar_select %p167, %s168, %s169
    %p173 = pneg %p167
    %p174 = scmp.eq.s32.totalorder %s11, 1
    %p175 = por %p173, %p174
    %p176 = scmp.ne.s32.totalorder %s168, %s171
    %p177 = scmp.eq.s32.totalorder %s11, 0
    %p178 = por %p176, %p177
    %p179 = scmp.ne.s32.totalorder %s168, %s171
    %p180 = scmp.eq.s32.totalorder %s16, 1
    %p181 = por %p179, %p180
    %p182 = scmp.ne.s32.totalorder %s171, %s172
    %p183 = scmp.eq.s32.totalorder %s16, 0
    %p184 = por %p182, %p183
    %p185 = scmp.ne.s32.totalorder %s171, %s172
    %p186 = scmp.eq.s32.totalorder %s17, 1
    %p187 = por %p185, %p186
    %p189 = scmp.ne.s32.totalorder %s172, %s188
    %p190 = scmp.eq.s32.totalorder %s17, 0
    %p191 = por %p189, %p190
    %p192 = scmp.le.s32.totalorder 1, %s11
    %p193 = scmp.lt.s32.totalorder %s11, 3
    %p194 = pnand %p192, %p193
    %p195 = pneg %p194
    // Predicated region
    $region9: #{dsc_forward.14} parent=5 // pred_check
      _
    $region10: #{dsc_forward.14} parent=5 // pred_check_branch
      %197 = sbr.rel (%p194) target = $region12
    $region11: #{dsc_forward.14} parent=5 // pred_region
      %s198 = ssub.s32 %s11, 1
      // Predicated region
      $region13: #{dsc_forward.14} parent=11 // pred_check
        %p199 = pneg %p156
      $region14: #{dsc_forward.14} parent=11 // pred_check_branch
        %201 = sbr.rel (%p199) target = $region16
      $region15: #{dsc_forward.14} parent=11 // pred_region
        _
      $region16: #{dsc_forward.14} parent=11 // pred_fallthru
        _
    $region12: #{dsc_forward.14} parent=5 // pred_fallthru
      _
    %p202 = scmp.lt.s32.totalorder %s11, 2
    // Predicated region
    $region17: #{dsc_forward.14} parent=5 // pred_check
      %p203 = pneg %p202
    $region18: #{dsc_forward.14} parent=5 // pred_check_branch
      %205 = sbr.rel (%p203) target = $region20
    $region19: #{dsc_forward.14} parent=5 // pred_region
      // Predicated region
      $region21: #{dsc_forward.14} parent=19 // pred_check
        %p206 = pneg %p45
      $region22: #{dsc_forward.14} parent=19 // pred_check_branch
        %208 = sbr.rel (%p206) target = $region24
      $region23: #{dsc_forward.14} parent=19 // pred_region
        %s209 = smul.u32 2, %s19
        %p210 = scmp.lt.s32.totalorder %s18, 1
        %s211 = scalar_select %p210, %s18, 1
        %p212 = scmp.lt.s32.totalorder %s209, 1
        %s213 = scalar_select %p212, %s209, 1
        %s214 = smul.addr %s211, 2
        %s215 = sadd.s32 %s213, %s214
        %s216 = smul.addr %s215, 4
        %s217 = scalar_lea.vmem %s0, %s216
        %s218 = smul.u32 2, %s19
      $region24: #{dsc_forward.14} parent=19 // pred_fallthru
        _
      // Predicated region
      $region25: #{dsc_forward.14} parent=19 // pred_check
        %p219 = pneg %p73
      $region26: #{dsc_forward.14} parent=19 // pred_check_branch
        %221 = sbr.rel (%p219) target = $region28
      $region27: #{dsc_forward.14} parent=19 // pred_region
        %s222 = smul.u32 2, %s19
        %p223 = scmp.lt.s32.totalorder %s18, 1
        %s224 = scalar_select %p223, %s18, 1
        %p225 = scmp.lt.s32.totalorder %s222, 1
        %s226 = scalar_select %p225, %s222, 1
        %s227 = smul.addr %s224, 2
        %s228 = sadd.s32 %s226, %s227
        %s229 = smul.addr %s228, 4
        %s230 = scalar_lea.vmem %s1, %s229
        %s231 = smul.u32 2, %s19
      $region28: #{dsc_forward.14} parent=19 // pred_fallthru
        _
      // Predicated region
      $region29: #{dsc_forward.14} parent=19 // pred_check
        %p232 = pneg %p101
      $region30: #{dsc_forward.14} parent=19 // pred_check_branch
        %234 = sbr.rel (%p232) target = $region32
      $region31: #{dsc_forward.14} parent=19 // pred_region
        %s235 = smul.u32 2, %s19
        %p236 = scmp.lt.s32.totalorder %s18, 1
        %s237 = scalar_select %p236, %s18, 1
        %p238 = scmp.lt.s32.totalorder %s235, 1
        %s239 = scalar_select %p238, %s235, 1
        %s240 = smul.addr %s237, 2
        %s241 = sadd.s32 %s239, %s240
        %s242 = smul.addr %s241, 4
        %s243 = scalar_lea.vmem %s2, %s242
        %s244 = smul.u32 2, %s19
      $region32: #{dsc_forward.14} parent=19 // pred_fallthru
        _
      // Predicated region
      $region33: #{dsc_forward.14} parent=19 // pred_check
        %p245 = pneg %p129
      $region34: #{dsc_forward.14} parent=19 // pred_check_branch
        %247 = sbr.rel (%p245) target = $region36
      $region35: #{dsc_forward.14} parent=19 // pred_region
        %s248 = smul.u32 2, %s19
        %p249 = scmp.lt.s32.totalorder %s18, 1
        %s250 = scalar_select %p249, %s18, 1
        %p251 = scmp.lt.s32.totalorder %s248, 1
        %s252 = scalar_select %p251, %s248, 1
        %s253 = smul.addr %s250, 2
        %s254 = sadd.s32 %s252, %s253
        %s255 = smul.addr %s254, 4
        %s256 = scalar_lea.vmem %s3, %s255
        %s257 = smul.u32 2, %s19
      $region36: #{dsc_forward.14} parent=19 // pred_fallthru
        _
    $region20: #{dsc_forward.14} parent=5 // pred_fallthru
      _
    %p258 = scmp.le.s32.totalorder 1, %s11
    %p259 = scmp.lt.s32.totalorder %s11, 3
    %p260 = pnand %p258, %p259
    %p261 = pneg %p260
    // Predicated region
    $region37: #{dsc_forward.14} parent=5 // pred_check
      _
    $region38: #{dsc_forward.14} parent=5 // pred_check_branch
      %263 = sbr.rel (%p260) target = $region40
    $region39: #{dsc_forward.14} parent=5 // pred_region
      %s264 = ssub.s32 %s11, 1
      %s265 = smul.u32 2, %s21
      %p266 = scmp.lt.s32.totalorder %s20, 1
      %s267 = scalar_select %p266, %s20, 1
      %p268 = scmp.lt.s32.totalorder %s265, 1
      %s269 = scalar_select %p268, %s265, 1
      %s270 = smul.addr %s267, 2
      %s271 = sadd.s32 %s269, %s270
      %s272 = smul.addr %s271, 4
      %s273 = scalar_lea.vmem %s0, %s272
      %p274 = pneg %p51
      %p275 = pneg %p48
      %s276 = smul.u32 2, %s21
      %p277 = scmp.lt.s32.totalorder %s20, 1
      %s278 = scalar_select %p277, %s20, 1
      %p279 = scmp.lt.s32.totalorder %s276, 1
      %s280 = scalar_select %p279, %s276, 1
      %s281 = smul.addr %s278, 2
      %s282 = sadd.s32 %s280, %s281
      %s283 = smul.addr %s282, 4
      %s284 = scalar_lea.vmem %s1, %s283
      %p285 = pneg %p79
      %p286 = pneg %p76
      %s287 = smul.u32 2, %s21
      %p288 = scmp.lt.s32.totalorder %s20, 1
      %s289 = scalar_select %p288, %s20, 1
      %p290 = scmp.lt.s32.totalorder %s287, 1
      %s291 = scalar_select %p290, %s287, 1
      %s292 = smul.addr %s289, 2
      %s293 = sadd.s32 %s291, %s292
      %s294 = smul.addr %s293, 4
      %s295 = scalar_lea.vmem %s2, %s294
      %p296 = pneg %p107
      %p297 = pneg %p104
      %s298 = smul.u32 2, %s21
      %p299 = scmp.lt.s32.totalorder %s20, 1
      %s300 = scalar_select %p299, %s20, 1
      %p301 = scmp.lt.s32.totalorder %s298, 1
      %s302 = scalar_select %p301, %s298, 1
      %s303 = smul.addr %s300, 2
      %s304 = sadd.s32 %s302, %s303
      %s305 = smul.addr %s304, 4
      %s306 = scalar_lea.vmem %s3, %s305
      %p307 = pneg %p135
      %p308 = pneg %p132
      %p309 = pneg %p156
      %p310 = pneg %p153
      %p311 = pneg %p184
      %p312 = pneg %p181
      %s313 = smul.u32 2, %s21
      %p314 = scmp.lt.s32.totalorder %s20, 1
      %s315 = scalar_select %p314, %s20, 1
      %p316 = scmp.lt.s32.totalorder %s313, 1
      %s317 = scalar_select %p316, %s313, 1
      %s318 = smul.addr %s315, 2
      %s319 = sadd.s32 %s317, %s318
      %s320 = smul.addr %s319, 4
      %s321 = scalar_lea.vmem %s5, %s320
      %s322 = smul.u32 2, %s21
      %p323 = scmp.lt.s32.totalorder %s20, 1
      %s324 = scalar_select %p323, %s20, 1
      %p325 = scmp.lt.s32.totalorder %s322, 1
      %s326 = scalar_select %p325, %s322, 1
      %s327 = smul.addr %s324, 2
      %s328 = sadd.s32 %s326, %s327
      %s329 = smul.addr %s328, 4
      %s330 = scalar_lea.vmem %s0, %s329
      %s331 = smul.u32 2, %s21
      %s332 = smul.u32 2, %s21
      %p333 = scmp.lt.s32.totalorder %s20, 1
      %s334 = scalar_select %p333, %s20, 1
      %p335 = scmp.lt.s32.totalorder %s332, 1
      %s336 = scalar_select %p335, %s332, 1
      %s337 = smul.addr %s334, 2
      %s338 = sadd.s32 %s336, %s337
      %s339 = smul.addr %s338, 4
      %s340 = scalar_lea.vmem %s1, %s339
      %s341 = smul.u32 2, %s21
      %s342 = smul.u32 2, %s21
      %p343 = scmp.lt.s32.totalorder %s20, 1
      %s344 = scalar_select %p343, %s20, 1
      %p345 = scmp.lt.s32.totalorder %s342, 1
      %s346 = scalar_select %p345, %s342, 1
      %s347 = smul.addr %s344, 2
      %s348 = sadd.s32 %s346, %s347
      %s349 = smul.addr %s348, 4
      %s350 = scalar_lea.vmem %s2, %s349
      %s351 = smul.u32 2, %s21
      %s352 = smul.u32 2, %s21
      %p353 = scmp.lt.s32.totalorder %s20, 1
      %s354 = scalar_select %p353, %s20, 1
      %p355 = scmp.lt.s32.totalorder %s352, 1
      %s356 = scalar_select %p355, %s352, 1
      %s357 = smul.addr %s354, 2
      %s358 = sadd.s32 %s356, %s357
      %s359 = smul.addr %s358, 4
      %s360 = scalar_lea.vmem %s3, %s359
      %s361 = smul.u32 2, %s21
      %s362 = smul.u32 2, %s21
      %p363 = scmp.lt.s32.totalorder %s20, 1
      %s364 = scalar_select %p363, %s20, 1
      %p365 = scmp.lt.s32.totalorder %s362, 1
      %s366 = scalar_select %p365, %s362, 1
      %s367 = smul.addr %s364, 2
      %s368 = sadd.s32 %s366, %s367
      %s369 = smul.addr %s368, 4
      %s370 = scalar_lea.vmem %s5, %s369
      %s371 = smul.u32 2, %s21
      %v373 = vld [vmem:[%s4] sm:$0xf]
      %v374 = vld [vmem:[%s330] sm:$0xff]
      %s375 = scalar_lea.vmem %s4, 4
      %v376 = vld [vmem:[%s375] sm:$0xf]
      %v377 = vld [vmem:[%s340] sm:$0xff]
      %v379 = vunpack.c.l.b16 %v377
      %v380 = vunpack.c.h.b16 %v377
      %v381 = vpack.c.b16 %v379, %v379
      %v382 = vpack.c.b16 %v380, %v380
      %vm383 = vcmask 64512
      %v385 = vsel %vm383, %v376, 0
      %vm387 = vcmask 1043456
      %v389 = vsel %vm387, %v381, 0
      %v392 = vsel %vm387, %v382, 0
      %394 = vmatprep.subr.bf16.mxu0 0
      %395 = vmatpush1.bf16.msra.mxu0 0
      %396 = vmatprep.subr.bf16.mxu0 0
      %397 = vmatpush1.bf16.msra.mxu0 0
      %398 = vmatprep.subr.bf16.mxu0 0
      %399 = vmatpush1.bf16.msra.mxu0 0
      %400 = vmatprep.subr.bf16.mxu0 0
      %401 = vmatpush1.bf16.msra.mxu0 0
      %402 = vmatprep.subr.bf16.mxu0 0
      %403 = vmatpush1.bf16.msra.mxu0 0
      %404 = vmatprep.subr.bf16.mxu0 0
      %405 = vmatpush1.bf16.msra.mxu0 0
      %406 = vmatprep.subr.bf16.mxu0 0
      %407 = vmatpush1.bf16.msra.mxu0 0
      %408 = vmatprep.subr.bf16.mxu0 %v392
      %409 = vmatpush1.bf16.msra.mxu0 %v389
      %410 = vmatprep.subr.bf16.mxu0 0
      %411 = vmatpush2.bf16.msra.mxu0 0
      %412 = vmatprep.subr.bf16.mxu0 0
      %413 = vmatpush2.bf16.msra.mxu0 0
      %414 = vmatprep.subr.bf16.mxu0 0
      %415 = vmatpush2.bf16.msra.mxu0 0
      %416 = vmatprep.subr.bf16.mxu0 0
      %417 = vmatpush2.bf16.msra.mxu0 0
      %418 = vmatprep.subr.bf16.mxu0 0
      %419 = vmatpush2.bf16.msra.mxu0 0
      %420 = vmatprep.subr.bf16.mxu0 0
      %421 = vmatpush2.bf16.msra.mxu0 0
      %422 = vmatprep.subr.bf16.mxu0 0
      %423 = vmatpush2.bf16.msra.mxu0 0
      %424 = vmatprep.subr.bf16.mxu0 0
      %425 = vmatpush2.bf16.msra.mxu0 0
      %426 = vmatprep.mubr.bf16.mxu0 0
      %427 = vmatmul.mubr.bf16.gmra.mxu0 %v385
      %v428 = vpop.f32.mrf.mxu0
      %v429 = vadd.f32 0.0, %v428
      %v430 = vpop.f32.mrf.mxu0
      %v431 = vadd.f32 0.0, %v430
      %v432 = vpop.f32.mrf.mxu0
      %v433 = vpop.f32.mrf.mxu0
      %434 = vdwg.mxu0
      %v436 = vunpack.c.l.b16 %v374
      %v437 = vunpack.c.h.b16 %v374
      %v438 = vpack.c.b16 %v436, %v436
      %v439 = vpack.c.b16 %v437, %v437
      %v441 = vsel %vm383, %v373, 0
      %v444 = vsel %vm387, %v438, 0
      %v447 = vsel %vm387, %v439, 0
      %449 = vmatprep.subr.bf16.mxu0 0
      %450 = vmatpush1.bf16.msra.mxu0 0
      %451 = vmatprep.subr.bf16.mxu0 0
      %452 = vmatpush1.bf16.msra.mxu0 0
      %453 = vmatprep.subr.bf16.mxu0 0
      %454 = vmatpush1.bf16.msra.mxu0 0
      %455 = vmatprep.subr.bf16.mxu0 0
      %456 = vmatpush1.bf16.msra.mxu0 0
      %457 = vmatprep.subr.bf16.mxu0 0
      %458 = vmatpush1.bf16.msra.mxu0 0
      %459 = vmatprep.subr.bf16.mxu0 0
      %460 = vmatpush1.bf16.msra.mxu0 0
      %461 = vmatprep.subr.bf16.mxu0 0
      %462 = vmatpush1.bf16.msra.mxu0 0
      %463 = vmatprep.subr.bf16.mxu0 %v447
      %464 = vmatpush1.bf16.msra.mxu0 %v444
      %465 = vmatprep.subr.bf16.mxu0 0
      %466 = vmatpush2.bf16.msra.mxu0 0
      %467 = vmatprep.subr.bf16.mxu0 0
      %468 = vmatpush2.bf16.msra.mxu0 0
      %469 = vmatprep.subr.bf16.mxu0 0
      %470 = vmatpush2.bf16.msra.mxu0 0
      %471 = vmatprep.subr.bf16.mxu0 0
      %472 = vmatpush2.bf16.msra.mxu0 0
      %473 = vmatprep.subr.bf16.mxu0 0
      %474 = vmatpush2.bf16.msra.mxu0 0
      %475 = vmatprep.subr.bf16.mxu0 0
      %476 = vmatpush2.bf16.msra.mxu0 0
      %477 = vmatprep.subr.bf16.mxu0 0
      %478 = vmatpush2.bf16.msra.mxu0 0
      %479 = vmatprep.subr.bf16.mxu0 0
      %480 = vmatpush2.bf16.msra.mxu0 0
      %481 = vmatprep.mubr.bf16.mxu0 0
      %482 = vmatmul.mubr.bf16.gmra.mxu0 %v441
      %v483 = vpop.f32.mrf.mxu0
      %v484 = vadd.f32 %v429, %v483
      %v485 = vpop.f32.mrf.mxu0
      %v486 = vadd.f32 %v431, %v485
      %v487 = vpop.f32.mrf.mxu0
      %v488 = vpop.f32.mrf.mxu0
      %489 = vdwg.mxu0
      %s490 = scalar_lea.vmem %s4, 8
      %v491 = vld [vmem:[%s490] sm:$0xf]
      %v492 = vld [vmem:[%s350] sm:$0xff]
      %v494 = vunpack.c.l.b16 %v492
      %v495 = vunpack.c.h.b16 %v492
      %v496 = vpack.c.b16 %v494, %v494
      %v497 = vpack.c.b16 %v495, %v495
      %v499 = vsel %vm383, %v491, 0
      %v502 = vsel %vm387, %v496, 0
      %v505 = vsel %vm387, %v497, 0
      %507 = vmatprep.subr.bf16.mxu0 0
      %508 = vmatpush1.bf16.msra.mxu0 0
      %509 = vmatprep.subr.bf16.mxu0 0
      %510 = vmatpush1.bf16.msra.mxu0 0
      %511 = vmatprep.subr.bf16.mxu0 0
      %512 = vmatpush1.bf16.msra.mxu0 0
      %513 = vmatprep.subr.bf16.mxu0 0
      %514 = vmatpush1.bf16.msra.mxu0 0
      %515 = vmatprep.subr.bf16.mxu0 0
      %516 = vmatpush1.bf16.msra.mxu0 0
      %517 = vmatprep.subr.bf16.mxu0 0
      %518 = vmatpush1.bf16.msra.mxu0 0
      %519 = vmatprep.subr.bf16.mxu0 0
      %520 = vmatpush1.bf16.msra.mxu0 0
      %521 = vmatprep.subr.bf16.mxu0 %v505
      %522 = vmatpush1.bf16.msra.mxu0 %v502
      %523 = vmatprep.subr.bf16.mxu0 0
      %524 = vmatpush2.bf16.msra.mxu0 0
      %525 = vmatprep.subr.bf16.mxu0 0
      %526 = vmatpush2.bf16.msra.mxu0 0
      %527 = vmatprep.subr.bf16.mxu0 0
      %528 = vmatpush2.bf16.msra.mxu0 0
      %529 = vmatprep.subr.bf16.mxu0 0
      %530 = vmatpush2.bf16.msra.mxu0 0
      %531 = vmatprep.subr.bf16.mxu0 0
      %532 = vmatpush2.bf16.msra.mxu0 0
      %533 = vmatprep.subr.bf16.mxu0 0
      %534 = vmatpush2.bf16.msra.mxu0 0
      %535 = vmatprep.subr.bf16.mxu0 0
      %536 = vmatpush2.bf16.msra.mxu0 0
      %537 = vmatprep.subr.bf16.mxu0 0
      %538 = vmatpush2.bf16.msra.mxu0 0
      %539 = vmatprep.mubr.bf16.mxu0 0
      %540 = vmatmul.mubr.bf16.gmra.mxu0 %v499
      %v541 = vpop.f32.mrf.mxu0
      %v542 = vadd.f32 0.0, %v541
      %v543 = vpop.f32.mrf.mxu0
      %v544 = vadd.f32 0.0, %v543
      %v545 = vpop.f32.mrf.mxu0
      %v546 = vpop.f32.mrf.mxu0
      %547 = vdwg.mxu0
      %v548 = vadd.f32 %v484, %v542
      %v549 = vadd.f32 %v486, %v544
      %s550 = scalar_lea.vmem %s4, 12
      %v551 = vld [vmem:[%s550] sm:$0xf]
      %v552 = vld [vmem:[%s360] sm:$0xff]
      %v554 = vunpack.c.l.b16 %v552
      %v555 = vunpack.c.h.b16 %v552
      %v556 = vpack.c.b16 %v554, %v554
      %v557 = vpack.c.b16 %v555, %v555
      %v559 = vsel %vm383, %v551, 0
      %v562 = vsel %vm387, %v556, 0
      %v565 = vsel %vm387, %v557, 0
      %567 = vmatprep.subr.bf16.mxu0 0
      %568 = vmatpush1.bf16.msra.mxu0 0
      %569 = vmatprep.subr.bf16.mxu0 0
      %570 = vmatpush1.bf16.msra.mxu0 0
      %571 = vmatprep.subr.bf16.mxu0 0
      %572 = vmatpush1.bf16.msra.mxu0 0
      %573 = vmatprep.subr.bf16.mxu0 0
      %574 = vmatpush1.bf16.msra.mxu0 0
      %575 = vmatprep.subr.bf16.mxu0 0
      %576 = vmatpush1.bf16.msra.mxu0 0
      %577 = vmatprep.subr.bf16.mxu0 0
      %578 = vmatpush1.bf16.msra.mxu0 0
      %579 = vmatprep.subr.bf16.mxu0 0
      %580 = vmatpush1.bf16.msra.mxu0 0
      %581 = vmatprep.subr.bf16.mxu0 %v565
      %582 = vmatpush1.bf16.msra.mxu0 %v562
      %583 = vmatprep.subr.bf16.mxu0 0
      %584 = vmatpush2.bf16.msra.mxu0 0
      %585 = vmatprep.subr.bf16.mxu0 0
      %586 = vmatpush2.bf16.msra.mxu0 0
      %587 = vmatprep.subr.bf16.mxu0 0
      %588 = vmatpush2.bf16.msra.mxu0 0
      %589 = vmatprep.subr.bf16.mxu0 0
      %590 = vmatpush2.bf16.msra.mxu0 0
      %591 = vmatprep.subr.bf16.mxu0 0
      %592 = vmatpush2.bf16.msra.mxu0 0
      %593 = vmatprep.subr.bf16.mxu0 0
      %594 = vmatpush2.bf16.msra.mxu0 0
      %595 = vmatprep.subr.bf16.mxu0 0
      %596 = vmatpush2.bf16.msra.mxu0 0
      %597 = vmatprep.subr.bf16.mxu0 0
      %598 = vmatpush2.bf16.msra.mxu0 0
      %599 = vmatprep.mubr.bf16.mxu0 0
      %600 = vmatmul.mubr.bf16.gmra.mxu0 %v559
      %v601 = vpop.f32.mrf.mxu0
      %v602 = vadd.f32 0.0, %v601
      %v603 = vpop.f32.mrf.mxu0
      %v604 = vadd.f32 0.0, %v603
      %v605 = vpop.f32.mrf.mxu0
      %v606 = vpop.f32.mrf.mxu0
      %607 = vdwg.mxu0
      %v608 = vadd.f32 %v548, %v602
      %v609 = vadd.f32 %v549, %v604
      %v610 = vpack.c.bf16 %v608, %v608
      %v611 = vpack.c.bf16 %v609, %v609
      %v614 = vunpack.c.l.b16 %v610
      %v615 = vunpack.c.l.b16 %v611
      %v616 = vpack.c.b16 %v615, %v614
      %618 = vst [vmem:[%s370] sm:$0xff] %v616
      %s619 = smul.u32 2, %s21
      %p620 = scmp.lt.s32.totalorder %s20, 1
      %s621 = scalar_select %p620, %s20, 1
      %p622 = scmp.lt.s32.totalorder %s619, 1
      %s623 = scalar_select %p622, %s619, 1
      %s624 = smul.addr %s621, 2
      %s625 = sadd.s32 %s623, %s624
      %s626 = smul.addr %s625, 4
      %s627 = scalar_lea.vmem %s5, %s626
      // Predicated region
      $region41: #{dsc_forward.14} parent=39 // pred_check
        %p628 = pneg %p181
      $region42: #{dsc_forward.14} parent=39 // pred_check_branch
        %630 = sbr.rel (%p628) target = $region44
      $region43: #{dsc_forward.14} parent=39 // pred_region
        %s631 = smul.u32 2, %s21
      $region44: #{dsc_forward.14} parent=39 // pred_fallthru
        _
    $region40: #{dsc_forward.14} parent=5 // pred_fallthru
      _
    %p632 = scmp.le.s32.totalorder 2, %s11
    // Predicated region
    $region45: #{dsc_forward.14} parent=5 // pred_check
      %p633 = pneg %p632
    $region46: #{dsc_forward.14} parent=5 // pred_check_branch
      %635 = sbr.rel (%p633) target = $region48
    $region47: #{dsc_forward.14} parent=5 // pred_region
      %s636 = ssub.s32 %s11, 2
      // Predicated region
      $region49: #{dsc_forward.14} parent=47 // pred_check
        %p637 = pneg %p187
      $region50: #{dsc_forward.14} parent=47 // pred_check_branch
        %639 = sbr.rel (%p637) target = $region52
      $region51: #{dsc_forward.14} parent=47 // pred_region
        %s640 = smul.u32 2, %s23
        %p641 = scmp.lt.s32.totalorder %s22, 1
        %s642 = scalar_select %p641, %s22, 1
        %p643 = scmp.lt.s32.totalorder %s640, 1
        %s644 = scalar_select %p643, %s640, 1
        %s645 = smul.addr %s642, 2
        %s646 = sadd.s32 %s644, %s645
        %s647 = smul.addr %s646, 4
        %s648 = scalar_lea.vmem %s5, %s647
      $region52: #{dsc_forward.14} parent=47 // pred_fallthru
        _
    $region48: #{dsc_forward.14} parent=5 // pred_fallthru
      _
  $region6: #{dsc_forward.14} parent=0 // loop_footer
    %s15 = sadd.s32 1, %s11
  $region7: #{dsc_forward.14} parent=0 // loop_footer_branch
    %10 = sbr.rel target = $region3
  $region8: #{dsc_forward.14} parent=0 // loop_exit
    _

// kernel: dsc_forward.9
$region0: #{dsc_forward.9}
  #allocation0 [shape = 'u32[]', space=smem, size = 0x4, offset = 0x4, fixed_abs, tag = 'smem constant byte address 0x4 - core index']
  #allocation1 [shape = 'u32[144,128]{1,0:T(1,128)}', space=vmem, size = 0x12000, scoped, tag = 'internal scratch']
  %s0 = inlined_call_operand.vmem [shape: bf16[2,8,400], index: 0, kind: input, shape index: {}]
  %s1 = inlined_call_operand.vmem [shape: bf16[9,4,8], index: 1, kind: input, shape index: {}]
  %s2 = inlined_call_operand.vmem [shape: f32[4,1], index: 2, kind: input, shape index: {}]
  %s3 = inlined_call_operand.vmem [shape: f32[1,362], index: 3, kind: input, shape index: {}]
  %s4 = inlined_call_operand.vmem [shape: bf16[2,4,362], index: 4, kind: output, shape index: {}]
  %s5 = sld [smem:[#allocation0]]
  $region49: #{dsc_forward.9} parent=0
    _
  %s7 = ssub.s32 1, %s5
  %s8 = scalar_select 0, %s7, %s5
  loop: start=0, step=1, limit=4
  $region2: #{dsc_forward.9} parent=0 // loop_pre_header
    _
  $region3: #{dsc_forward.9} parent=0 // loop_header
    %s10 = sphi 0, %s14
    %p11 = scmp.ge.s32.totalorder %s10, 4
    %s17 = sphi 0, %s29
    %s18 = sphi 0, %s25
    %s19 = sphi 0, %s17
    %s20 = sphi 0, %s18
    %s21 = sphi 0, %s19
    %s22 = sphi 0, %s20
    %s32 = sphi 0, %s34
    %s35 = sphi 0, %s32
    %s36 = sphi 0, %s35
    %s52 = sphi 0, %s36
    %s58 = sphi 0, %s60
    %s61 = sphi 0, %s58
    %s62 = sphi 0, %s61
    %s78 = sphi 0, %s62
    %s84 = sphi 0, %s86
    %s87 = sphi 0, %s84
    %s88 = sphi 0, %s87
    %s104 = sphi 0, %s88
    %s108 = sphi 0, %s108
    %s110 = sphi 0, %s108
    %s111 = sphi 0, %s110
    %s125 = sphi 0, %s111
    %s133 = sphi 0, %s135
    %s136 = sphi 0, %s133
    %s137 = sphi 0, %s136
    %s153 = sphi 0, %s137
  $region4: #{dsc_forward.9} parent=0 // loop_header_branch
    %13 = sbr.rel (%p11) target = $region8
  $region5: #{dsc_forward.9} parent=0 // loop_body
    %s15 = ssub.s32 %s10, 1
    %s16 = ssub.s32 %s10, 2
    %s23 = sadd.s32 1, %s18
    %p24 = scmp.ge.s32.totalorder %s23, 1
    %s25 = scalar_select %p24, 0, %s23
    %s26 = sadd.s32 1, %s17
    %s27 = scalar_select %p24, %s26, %s17
    %p28 = scmp.ge.s32.totalorder %s27, 2
    %s29 = scalar_select %p28, 0, %s27
    %s30 = ssub.s32 %s17, %s29
    %p31 = scmp.eq.s32.totalorder %s30, 0
    %s33 = sadd.s32 %s32, 1
    %s34 = scalar_select %p31, %s32, %s33
    %p37 = pneg %p31
    %p38 = scmp.eq.s32.totalorder %s10, 1
    %p39 = por %p37, %p38
    %p40 = scmp.ne.s32.totalorder %s32, %s35
    %p41 = scmp.eq.s32.totalorder %s10, 0
    %p42 = por %p40, %p41
    %p43 = scmp.ne.s32.totalorder %s32, %s35
    %p44 = scmp.eq.s32.totalorder %s15, 1
    %p45 = por %p43, %p44
    %p46 = scmp.ne.s32.totalorder %s35, %s36
    %p47 = scmp.eq.s32.totalorder %s15, 0
    %p48 = por %p46, %p47
    %p49 = scmp.ne.s32.totalorder %s35, %s36
    %p50 = scmp.eq.s32.totalorder %s16, 1
    %p51 = por %p49, %p50
    %p53 = scmp.ne.s32.totalorder %s36, %s52
    %p54 = scmp.eq.s32.totalorder %s16, 0
    %p55 = por %p53, %p54
    %s56 = ssub.s32 %s18, %s25
    %p57 = scmp.eq.s32.totalorder %s56, 0
    %s59 = sadd.s32 %s58, 1
    %s60 = scalar_select %p57, %s58, %s59
    %p63 = pneg %p57
    %p64 = scmp.eq.s32.totalorder %s10, 1
    %p65 = por %p63, %p64
    %p66 = scmp.ne.s32.totalorder %s58, %s61
    %p67 = scmp.eq.s32.totalorder %s10, 0
    %p68 = por %p66, %p67
    %p69 = scmp.ne.s32.totalorder %s58, %s61
    %p70 = scmp.eq.s32.totalorder %s15, 1
    %p71 = por %p69, %p70
    %p72 = scmp.ne.s32.totalorder %s61, %s62
    %p73 = scmp.eq.s32.totalorder %s15, 0
    %p74 = por %p72, %p73
    %p75 = scmp.ne.s32.totalorder %s61, %s62
    %p76 = scmp.eq.s32.totalorder %s16, 1
    %p77 = por %p75, %p76
    %p79 = scmp.ne.s32.totalorder %s62, %s78
    %p80 = scmp.eq.s32.totalorder %s16, 0
    %p81 = por %p79, %p80
    %s82 = ssub.s32 %s18, %s25
    %p83 = scmp.eq.s32.totalorder %s82, 0
    %s85 = sadd.s32 %s84, 1
    %s86 = scalar_select %p83, %s84, %s85
    %p89 = pneg %p83
    %p90 = scmp.eq.s32.totalorder %s10, 1
    %p91 = por %p89, %p90
    %p92 = scmp.ne.s32.totalorder %s84, %s87
    %p93 = scmp.eq.s32.totalorder %s10, 0
    %p94 = por %p92, %p93
    %p95 = scmp.ne.s32.totalorder %s84, %s87
    %p96 = scmp.eq.s32.totalorder %s15, 1
    %p97 = por %p95, %p96
    %p98 = scmp.ne.s32.totalorder %s87, %s88
    %p99 = scmp.eq.s32.totalorder %s15, 0
    %p100 = por %p98, %p99
    %p101 = scmp.ne.s32.totalorder %s87, %s88
    %p102 = scmp.eq.s32.totalorder %s16, 1
    %p103 = por %p101, %p102
    %p105 = scmp.ne.s32.totalorder %s88, %s104
    %p106 = scmp.eq.s32.totalorder %s16, 0
    %p107 = por %p105, %p106
    %s109 = sadd.s32 %s108, 1
    %p112 = scmp.eq.s32.totalorder %s10, 1
    %p113 = scmp.ne.s32.totalorder %s108, %s110
    %p114 = scmp.eq.s32.totalorder %s10, 0
    %p115 = por %p113, %p114
    %p116 = scmp.ne.s32.totalorder %s108, %s110
    %p117 = scmp.eq.s32.totalorder %s15, 1
    %p118 = por %p116, %p117
    %p119 = scmp.ne.s32.totalorder %s110, %s111
    %p120 = scmp.eq.s32.totalorder %s15, 0
    %p121 = por %p119, %p120
    %p122 = scmp.ne.s32.totalorder %s110, %s111
    %p123 = scmp.eq.s32.totalorder %s16, 1
    %p124 = por %p122, %p123
    %p126 = scmp.ne.s32.totalorder %s111, %s125
    %p127 = scmp.eq.s32.totalorder %s16, 0
    %p128 = por %p126, %p127
    %s129 = ssub.s32 %s17, %s29
    %s130 = ssub.s32 %s18, %s25
    %s131 = sor.u32 %s129, %s130
    %p132 = scmp.eq.s32.totalorder %s131, 0
    %s134 = sadd.s32 %s133, 1
    %s135 = scalar_select %p132, %s133, %s134
    %p138 = pneg %p132
    %p139 = scmp.eq.s32.totalorder %s10, 1
    %p140 = por %p138, %p139
    %p141 = scmp.ne.s32.totalorder %s133, %s136
    %p142 = scmp.eq.s32.totalorder %s10, 0
    %p143 = por %p141, %p142
    %p144 = scmp.ne.s32.totalorder %s133, %s136
    %p145 = scmp.eq.s32.totalorder %s15, 1
    %p146 = por %p144, %p145
    %p147 = scmp.ne.s32.totalorder %s136, %s137
    %p148 = scmp.eq.s32.totalorder %s15, 0
    %p149 = por %p147, %p148
    %p150 = scmp.ne.s32.totalorder %s136, %s137
    %p151 = scmp.eq.s32.totalorder %s16, 1
    %p152 = por %p150, %p151
    %p154 = scmp.ne.s32.totalorder %s137, %s153
    %p155 = scmp.eq.s32.totalorder %s16, 0
    %p156 = por %p154, %p155
    %p157 = scmp.le.s32.totalorder 1, %s10
    %p158 = scmp.lt.s32.totalorder %s10, 3
    %p159 = pnand %p157, %p158
    %p160 = pneg %p159
    // Predicated region
    $region9: #{dsc_forward.9} parent=5 // pred_check
      _
    $region10: #{dsc_forward.9} parent=5 // pred_check_branch
      %162 = sbr.rel (%p159) target = $region12
    $region11: #{dsc_forward.9} parent=5 // pred_region
      %s163 = ssub.s32 %s10, 1
      // Predicated region
      $region13: #{dsc_forward.9} parent=11 // pred_check
        %p164 = pneg %p74
      $region14: #{dsc_forward.9} parent=11 // pred_check_branch
        %166 = sbr.rel (%p164) target = $region16
      $region15: #{dsc_forward.9} parent=11 // pred_region
        %p167 = scmp.lt.s32.totalorder %s20, 0
        %s168 = scalar_select %p167, %s20, 0
        %s169 = smul.addr %s168, 2
        %s170 = scalar_lea.vmem %s1, %s169
      $region16: #{dsc_forward.9} parent=11 // pred_fallthru
        _
      // Predicated region
      $region17: #{dsc_forward.9} parent=11 // pred_check
        %p171 = pneg %p100
      $region18: #{dsc_forward.9} parent=11 // pred_check_branch
        %173 = sbr.rel (%p171) target = $region20
      $region19: #{dsc_forward.9} parent=11 // pred_region
        %p174 = scmp.lt.s32.totalorder %s20, 0
        %s175 = scalar_select %p174, %s20, 0
        %s176 = smul.addr %s175, 4
        %s177 = scalar_lea.vmem %s2, %s176
      $region20: #{dsc_forward.9} parent=11 // pred_fallthru
        _
      // Predicated region
      $region21: #{dsc_forward.9} parent=11 // pred_check
        %p178 = pneg %p121
      $region22: #{dsc_forward.9} parent=11 // pred_check_branch
        %180 = sbr.rel (%p178) target = $region24
      $region23: #{dsc_forward.9} parent=11 // pred_region
        _
      $region24: #{dsc_forward.9} parent=11 // pred_fallthru
        _
    $region12: #{dsc_forward.9} parent=5 // pred_fallthru
      _
    %p181 = scmp.lt.s32.totalorder %s10, 2
    // Predicated region
    $region25: #{dsc_forward.9} parent=5 // pred_check
      %p182 = pneg %p181
    $region26: #{dsc_forward.9} parent=5 // pred_check_branch
      %184 = sbr.rel (%p182) target = $region28
    $region27: #{dsc_forward.9} parent=5 // pred_region
      // Predicated region
      $region29: #{dsc_forward.9} parent=27 // pred_check
        %p185 = pneg %p42
      $region30: #{dsc_forward.9} parent=27 // pred_check_branch
        %187 = sbr.rel (%p185) target = $region32
      $region31: #{dsc_forward.9} parent=27 // pred_region
        %p188 = scmp.lt.s32.totalorder %s17, 1
        %s189 = scalar_select %p188, %s17, 1
        %s190 = smul.addr %s189, 4
        %s191 = smul.addr %s190, 4
        %s192 = scalar_lea.vmem %s0, %s191
      $region32: #{dsc_forward.9} parent=27 // pred_fallthru
        _
    $region28: #{dsc_forward.9} parent=5 // pred_fallthru
      _
    %p193 = scmp.le.s32.totalorder 1, %s10
    %p194 = scmp.lt.s32.totalorder %s10, 3
    %p195 = pnand %p193, %p194
    %p196 = pneg %p195
    // Predicated region
    $region33: #{dsc_forward.9} parent=5 // pred_check
      _
    $region34: #{dsc_forward.9} parent=5 // pred_check_branch
      %198 = sbr.rel (%p195) target = $region36
    $region35: #{dsc_forward.9} parent=5 // pred_region
      %s199 = ssub.s32 %s10, 1
      %p200 = scmp.lt.s32.totalorder %s19, 1
      %s201 = scalar_select %p200, %s19, 1
      %s202 = smul.addr %s201, 4
      %s203 = smul.addr %s202, 4
      %s204 = scalar_lea.vmem %s0, %s203
      %p205 = pneg %p48
      %p206 = pneg %p45
      %p207 = scmp.lt.s32.totalorder %s20, 0
      %s208 = scalar_select %p207, %s20, 0
      %s209 = smul.addr %s208, 2
      %s210 = scalar_lea.vmem %s1, %s209
      %p211 = pneg %p74
      %p212 = pneg %p71
      %p213 = scmp.lt.s32.totalorder %s20, 0
      %s214 = scalar_select %p213, %s20, 0
      %s215 = smul.addr %s214, 4
      %s216 = scalar_lea.vmem %s2, %s215
      %p217 = pneg %p100
      %p218 = pneg %p97
      %p219 = pneg %p121
      %p220 = pneg %p118
      %p221 = pneg %p149
      %p222 = pneg %p146
      %p223 = scmp.lt.s32.totalorder %s19, 1
      %s224 = scalar_select %p223, %s19, 1
      %p225 = scmp.lt.s32.totalorder %s20, 0
      %s226 = scalar_select %p225, %s20, 0
      %s227 = smul.addr %s226, 3
      %s228 = smul.addr %s224, 3
      %s229 = sadd.s32 %s227, %s228
      %s230 = smul.addr %s229, 2
      %s231 = scalar_lea.vmem %s4, %s230
      %p232 = scmp.lt.s32.totalorder %s19, 1
      %s233 = scalar_select %p232, %s19, 1
      %s234 = smul.addr %s233, 4
      %s235 = smul.addr %s234, 4
      %s236 = scalar_lea.vmem %s0, %s235
      %p237 = scmp.lt.s32.totalorder %s20, 0
      %s238 = scalar_select %p237, %s20, 0
      %s239 = smul.addr %s238, 2
      %s240 = scalar_lea.vmem %s1, %s239
      %p241 = scmp.lt.s32.totalorder %s20, 0
      %s242 = scalar_select %p241, %s20, 0
      %s243 = smul.addr %s242, 4
      %s244 = scalar_lea.vmem %s2, %s243
      %p245 = scmp.lt.s32.totalorder %s19, 1
      %s246 = scalar_select %p245, %s19, 1
      %p247 = scmp.lt.s32.totalorder %s20, 0
      %s248 = scalar_select %p247, %s20, 0
      %s249 = smul.addr %s248, 3
      %s250 = smul.addr %s246, 3
      %s251 = sadd.s32 %s249, %s250
      %s252 = smul.addr %s251, 2
      %s253 = scalar_lea.vmem %s4, %s252
      %v255 = vld [vmem:[%s236] sm:$0xff]
      %v256 = vld [vmem:[%s236 + $0x8] sm:$0xf]
      %v257 = vld [vmem:[%s240] sm:$0x3]
      %s258 = scalar_lea.vmem %s240, 2
      %v259 = vld [vmem:[%s258] sm:$0x3]
      %v262 = vunpack.c.l.b16 %v255
      %v263 = vunpack.c.h.b16 %v255
      %v264 = vunpack.c.l.b16 %v256
      %v265 = vpack.c.b16 %v262, %v262
      %v266 = vpack.c.b16 %v263, %v263
      %v267 = vpack.c.b16 %v264, %v264
      %268 = vrot.lane.b32.xlu0 %v265, 127
      %v269 = vpop.permute.xlu0 %268
      %270 = vrot.lane.b32.xlu0 %v266, 127
      %v271 = vpop.permute.xlu0 %270
      %272 = vrot.lane.b32.xlu0 %v267, 127
      %v273 = vpop.permute.xlu0 %272
      %vm274 = vcmask 1039360
      %v275 = vsel %vm274, %v269, %v271
      %v276 = vsel %vm274, %v271, %v273
      %vm277 = vcmask 64512
      %v279 = vsel %vm277, %v259, 0
      %vm281 = vcmask 1043456
      %v283 = vsel %vm281, %v275, 0
      %v286 = vsel %vm281, %v276, 0
      %v289 = vsel %vm281, %v273, 0
      %291 = vmatprep.subr.bf16.mxu0 0
      %292 = vmatpush1.bf16.msra.mxu0 0
      %293 = vmatprep.subr.bf16.mxu0 0
      %294 = vmatpush1.bf16.msra.mxu0 0
      %295 = vmatprep.subr.bf16.mxu0 0
      %296 = vmatpush1.bf16.msra.mxu0 0
      %297 = vmatprep.subr.bf16.mxu0 0
      %298 = vmatpush1.bf16.msra.mxu0 0
      %299 = vmatprep.subr.bf16.mxu0 0
      %300 = vmatpush1.bf16.msra.mxu0 0
      %301 = vmatprep.subr.bf16.mxu0 0
      %302 = vmatpush1.bf16.msra.mxu0 0
      %303 = vmatprep.subr.bf16.mxu0 0
      %304 = vmatpush1.bf16.msra.mxu0 0
      %305 = vmatprep.subr.bf16.mxu0 %v286
      %306 = vmatpush1.bf16.msra.mxu0 %v283
      %307 = vmatprep.subr.bf16.mxu0 0
      %308 = vmatpush2.bf16.msra.mxu0 0
      %309 = vmatprep.subr.bf16.mxu0 0
      %310 = vmatpush2.bf16.msra.mxu0 0
      %311 = vmatprep.subr.bf16.mxu0 0
      %312 = vmatpush2.bf16.msra.mxu0 0
      %313 = vmatprep.subr.bf16.mxu0 0
      %314 = vmatpush2.bf16.msra.mxu0 0
      %315 = vmatprep.subr.bf16.mxu0 0
      %316 = vmatpush2.bf16.msra.mxu0 0
      %317 = vmatprep.subr.bf16.mxu0 0
      %318 = vmatpush2.bf16.msra.mxu0 0
      %319 = vmatprep.subr.bf16.mxu0 0
      %320 = vmatpush2.bf16.msra.mxu0 0
      %321 = vmatprep.subr.bf16.mxu0 0
      %322 = vmatpush2.bf16.msra.mxu0 0
      %323 = vmatprep.mubr.bf16.mxu0 0
      %324 = vmatmul.mubr.bf16.gmra.mxu0 %v279
      %v325 = vpop.f32.mrf.mxu0
      %v326 = vadd.f32 0.0, %v325
      %v327 = vpop.f32.mrf.mxu0
      %v328 = vadd.f32 0.0, %v327
      %v329 = vpop.f32.mrf.mxu0
      %v330 = vpop.f32.mrf.mxu0
      %331 = vdwg.mxu0
      %332 = vmatprep.subr.bf16.mxu0 0
      %333 = vmatpush1.bf16.msra.mxu0 0
      %334 = vmatprep.subr.bf16.mxu0 0
      %335 = vmatpush1.bf16.msra.mxu0 0
      %336 = vmatprep.subr.bf16.mxu0 0
      %337 = vmatpush1.bf16.msra.mxu0 0
      %338 = vmatprep.subr.bf16.mxu0 0
      %339 = vmatpush1.bf16.msra.mxu0 0
      %340 = vmatprep.subr.bf16.mxu0 0
      %341 = vmatpush1.bf16.msra.mxu0 0
      %342 = vmatprep.subr.bf16.mxu0 0
      %343 = vmatpush1.bf16.msra.mxu0 0
      %344 = vmatprep.subr.bf16.mxu0 0
      %345 = vmatpush1.bf16.msra.mxu0 0
      %346 = vmatprep.subr.bf16.mxu0 0
      %347 = vmatpush1.bf16.msra.mxu0 %v289
      %348 = vmatprep.subr.bf16.mxu0 0
      %349 = vmatpush2.bf16.msra.mxu0 0
      %350 = vmatprep.subr.bf16.mxu0 0
      %351 = vmatpush2.bf16.msra.mxu0 0
      %352 = vmatprep.subr.bf16.mxu0 0
      %353 = vmatpush2.bf16.msra.mxu0 0
      %354 = vmatprep.subr.bf16.mxu0 0
      %355 = vmatpush2.bf16.msra.mxu0 0
      %356 = vmatprep.subr.bf16.mxu0 0
      %357 = vmatpush2.bf16.msra.mxu0 0
      %358 = vmatprep.subr.bf16.mxu0 0
      %359 = vmatpush2.bf16.msra.mxu0 0
      %360 = vmatprep.subr.bf16.mxu0 0
      %361 = vmatpush2.bf16.msra.mxu0 0
      %362 = vmatprep.subr.bf16.mxu0 0
      %363 = vmatpush2.bf16.msra.mxu0 0
      %364 = vmatprep.mubr.bf16.mxu0 0
      %365 = vmatmul.mubr.bf16.gmra.mxu0 %v279
      %v366 = vpop.f32.mrf.mxu0
      %v367 = vadd.f32 0.0, %v366
      %v368 = vpop.f32.mrf.mxu0
      %v369 = vpop.f32.mrf.mxu0
      %v370 = vpop.f32.mrf.mxu0
      %371 = vdwg.mxu0
      %v373 = vsel %vm277, %v257, 0
      %v376 = vsel %vm281, %v265, 0
      %v379 = vsel %vm281, %v266, 0
      %v382 = vsel %vm281, %v267, 0
      %384 = vmatprep.subr.bf16.mxu0 0
      %385 = vmatpush1.bf16.msra.mxu0 0
      %386 = vmatprep.subr.bf16.mxu0 0
      %387 = vmatpush1.bf16.msra.mxu0 0
      %388 = vmatprep.subr.bf16.mxu0 0
      %389 = vmatpush1.bf16.msra.mxu0 0
      %390 = vmatprep.subr.bf16.mxu0 0
      %391 = vmatpush1.bf16.msra.mxu0 0
      %392 = vmatprep.subr.bf16.mxu0 0
      %393 = vmatpush1.bf16.msra.mxu0 0
      %394 = vmatprep.subr.bf16.mxu0 0
      %395 = vmatpush1.bf16.msra.mxu0 0
      %396 = vmatprep.subr.bf16.mxu0 0
      %397 = vmatpush1.bf16.msra.mxu0 0
      %398 = vmatprep.subr.bf16.mxu0 %v379
      %399 = vmatpush1.bf16.msra.mxu0 %v376
      %400 = vmatprep.subr.bf16.mxu0 0
      %401 = vmatpush2.bf16.msra.mxu0 0
      %402 = vmatprep.subr.bf16.mxu0 0
      %403 = vmatpush2.bf16.msra.mxu0 0
      %404 = vmatprep.subr.bf16.mxu0 0
      %405 = vmatpush2.bf16.msra.mxu0 0
      %406 = vmatprep.subr.bf16.mxu0 0
      %407 = vmatpush2.bf16.msra.mxu0 0
      %408 = vmatprep.subr.bf16.mxu0 0
      %409 = vmatpush2.bf16.msra.mxu0 0
      %410 = vmatprep.subr.bf16.mxu0 0
      %411 = vmatpush2.bf16.msra.mxu0 0
      %412 = vmatprep.subr.bf16.mxu0 0
      %413 = vmatpush2.bf16.msra.mxu0 0
      %414 = vmatprep.subr.bf16.mxu0 0
      %415 = vmatpush2.bf16.msra.mxu0 0
      %416 = vmatprep.mubr.bf16.mxu0 0
      %417 = vmatmul.mubr.bf16.gmra.mxu0 %v373
      %v418 = vpop.f32.mrf.mxu0
      %v419 = vadd.f32 %v326, %v418
      %v420 = vpop.f32.mrf.mxu0
      %v421 = vadd.f32 %v328, %v420
      %v422 = vpop.f32.mrf.mxu0
      %v423 = vpop.f32.mrf.mxu0
      %424 = vdwg.mxu0
      %425 = vmatprep.subr.bf16.mxu0 0
      %426 = vmatpush1.bf16.msra.mxu0 0
      %427 = vmatprep.subr.bf16.mxu0 0
      %428 = vmatpush1.bf16.msra.mxu0 0
      %429 = vmatprep.subr.bf16.mxu0 0
      %430 = vmatpush1.bf16.msra.mxu0 0
      %431 = vmatprep.subr.bf16.mxu0 0
      %432 = vmatpush1.bf16.msra.mxu0 0
      %433 = vmatprep.subr.bf16.mxu0 0
      %434 = vmatpush1.bf16.msra.mxu0 0
      %435 = vmatprep.subr.bf16.mxu0 0
      %436 = vmatpush1.bf16.msra.mxu0 0
      %437 = vmatprep.subr.bf16.mxu0 0
      %438 = vmatpush1.bf16.msra.mxu0 0
      %439 = vmatprep.subr.bf16.mxu0 0
      %440 = vmatpush1.bf16.msra.mxu0 %v382
      %441 = vmatprep.subr.bf16.mxu0 0
      %442 = vmatpush2.bf16.msra.mxu0 0
      %443 = vmatprep.subr.bf16.mxu0 0
      %444 = vmatpush2.bf16.msra.mxu0 0
      %445 = vmatprep.subr.bf16.mxu0 0
      %446 = vmatpush2.bf16.msra.mxu0 0
      %447 = vmatprep.subr.bf16.mxu0 0
      %448 = vmatpush2.bf16.msra.mxu0 0
      %449 = vmatprep.subr.bf16.mxu0 0
      %450 = vmatpush2.bf16.msra.mxu0 0
      %451 = vmatprep.subr.bf16.mxu0 0
      %452 = vmatpush2.bf16.msra.mxu0 0
      %453 = vmatprep.subr.bf16.mxu0 0
      %454 = vmatpush2.bf16.msra.mxu0 0
      %455 = vmatprep.subr.bf16.mxu0 0
      %456 = vmatpush2.bf16.msra.mxu0 0
      %457 = vmatprep.mubr.bf16.mxu0 0
      %458 = vmatmul.mubr.bf16.gmra.mxu0 %v373
      %v459 = vpop.f32.mrf.mxu0
      %v460 = vadd.f32 %v367, %v459
      %v461 = vpop.f32.mrf.mxu0
      %v462 = vpop.f32.mrf.mxu0
      %v463 = vpop.f32.mrf.mxu0
      %464 = vdwg.mxu0
      %s465 = scalar_lea.vmem %s240, 4
      %v466 = vld [vmem:[%s465] sm:$0x3]
      %467 = vrot.lane.b32.xlu0 %v265, 126
      %v468 = vpop.permute.xlu0 %467
      %469 = vrot.lane.b32.xlu0 %v266, 126
      %v470 = vpop.permute.xlu0 %469
      %471 = vrot.lane.b32.xlu0 %v267, 126
      %v472 = vpop.permute.xlu0 %471
      %vm473 = vcmask 1031168
      %v474 = vsel %vm473, %v468, %v470
      %v475 = vsel %vm473, %v470, %v472
      %v477 = vsel %vm277, %v466, 0
      %v480 = vsel %vm281, %v474, 0
      %v483 = vsel %vm281, %v475, 0
      %v486 = vsel %vm281, %v472, 0
      %488 = vmatprep.subr.bf16.mxu0 0
      %489 = vmatpush1.bf16.msra.mxu0 0
      %490 = vmatprep.subr.bf16.mxu0 0
      %491 = vmatpush1.bf16.msra.mxu0 0
      %492 = vmatprep.subr.bf16.mxu0 0
      %493 = vmatpush1.bf16.msra.mxu0 0
      %494 = vmatprep.subr.bf16.mxu0 0
      %495 = vmatpush1.bf16.msra.mxu0 0
      %496 = vmatprep.subr.bf16.mxu0 0
      %497 = vmatpush1.bf16.msra.mxu0 0
      %498 = vmatprep.subr.bf16.mxu0 0
      %499 = vmatpush1.bf16.msra.mxu0 0
      %500 = vmatprep.subr.bf16.mxu0 0
      %501 = vmatpush1.bf16.msra.mxu0 0
      %502 = vmatprep.subr.bf16.mxu0 %v483
      %503 = vmatpush1.bf16.msra.mxu0 %v480
      %504 = vmatprep.subr.bf16.mxu0 0
      %505 = vmatpush2.bf16.msra.mxu0 0
      %506 = vmatprep.subr.bf16.mxu0 0
      %507 = vmatpush2.bf16.msra.mxu0 0
      %508 = vmatprep.subr.bf16.mxu0 0
      %509 = vmatpush2.bf16.msra.mxu0 0
      %510 = vmatprep.subr.bf16.mxu0 0
      %511 = vmatpush2.bf16.msra.mxu0 0
      %512 = vmatprep.subr.bf16.mxu0 0
      %513 = vmatpush2.bf16.msra.mxu0 0
      %514 = vmatprep.subr.bf16.mxu0 0
      %515 = vmatpush2.bf16.msra.mxu0 0
      %516 = vmatprep.subr.bf16.mxu0 0
      %517 = vmatpush2.bf16.msra.mxu0 0
      %518 = vmatprep.subr.bf16.mxu0 0
      %519 = vmatpush2.bf16.msra.mxu0 0
      %520 = vmatprep.mubr.bf16.mxu0 0
      %521 = vmatmul.mubr.bf16.gmra.mxu0 %v477
      %v522 = vpop.f32.mrf.mxu0
      %v523 = vadd.f32 0.0, %v522
      %v524 = vpop.f32.mrf.mxu0
      %v525 = vadd.f32 0.0, %v524
      %v526 = vpop.f32.mrf.mxu0
      %v527 = vpop.f32.mrf.mxu0
      %528 = vdwg.mxu0
      %529 = vmatprep.subr.bf16.mxu0 0
      %530 = vmatpush1.bf16.msra.mxu0 0
      %531 = vmatprep.subr.bf16.mxu0 0
      %532 = vmatpush1.bf16.msra.mxu0 0
      %533 = vmatprep.subr.bf16.mxu0 0
      %534 = vmatpush1.bf16.msra.mxu0 0
      %535 = vmatprep.subr.bf16.mxu0 0
      %536 = vmatpush1.bf16.msra.mxu0 0
      %537 = vmatprep.subr.bf16.mxu0 0
      %538 = vmatpush1.bf16.msra.mxu0 0
      %539 = vmatprep.subr.bf16.mxu0 0
      %540 = vmatpush1.bf16.msra.mxu0 0
      %541 = vmatprep.subr.bf16.mxu0 0
      %542 = vmatpush1.bf16.msra.mxu0 0
      %543 = vmatprep.subr.bf16.mxu0 0
      %544 = vmatpush1.bf16.msra.mxu0 %v486
      %545 = vmatprep.subr.bf16.mxu0 0
      %546 = vmatpush2.bf16.msra.mxu0 0
      %547 = vmatprep.subr.bf16.mxu0 0
      %548 = vmatpush2.bf16.msra.mxu0 0
      %549 = vmatprep.subr.bf16.mxu0 0
      %550 = vmatpush2.bf16.msra.mxu0 0
      %551 = vmatprep.subr.bf16.mxu0 0
      %552 = vmatpush2.bf16.msra.mxu0 0
      %553 = vmatprep.subr.bf16.mxu0 0
      %554 = vmatpush2.bf16.msra.mxu0 0
      %555 = vmatprep.subr.bf16.mxu0 0
      %556 = vmatpush2.bf16.msra.mxu0 0
      %557 = vmatprep.subr.bf16.mxu0 0
      %558 = vmatpush2.bf16.msra.mxu0 0
      %559 = vmatprep.subr.bf16.mxu0 0
      %560 = vmatpush2.bf16.msra.mxu0 0
      %561 = vmatprep.mubr.bf16.mxu0 0
      %562 = vmatmul.mubr.bf16.gmra.mxu0 %v477
      %v563 = vpop.f32.mrf.mxu0
      %v564 = vadd.f32 0.0, %v563
      %v565 = vpop.f32.mrf.mxu0
      %v566 = vpop.f32.mrf.mxu0
      %v567 = vpop.f32.mrf.mxu0
      %568 = vdwg.mxu0
      %v569 = vadd.f32 %v419, %v523
      %v570 = vadd.f32 %v421, %v525
      %v571 = vadd.f32 %v460, %v564
      %s572 = scalar_lea.vmem %s240, 6
      %v573 = vld [vmem:[%s572] sm:$0x3]
      %574 = vrot.lane.b32.xlu0 %v265, 110
      %v575 = vpop.permute.xlu0 %574
      %576 = vrot.lane.b32.xlu0 %v266, 110
      %v577 = vpop.permute.xlu0 %576
      %578 = vrot.lane.b32.xlu0 %v267, 110
      %v579 = vpop.permute.xlu0 %578
      %vm580 = vcmask 900096
      %v581 = vsel %vm580, %v575, %v577
      %v582 = vsel %vm580, %v577, %v579
      %v584 = vsel %vm277, %v573, 0
      %v587 = vsel %vm281, %v581, 0
      %v590 = vsel %vm281, %v582, 0
      %v593 = vsel %vm281, %v579, 0
      %595 = vmatprep.subr.bf16.mxu0 0
      %596 = vmatpush1.bf16.msra.mxu0 0
      %597 = vmatprep.subr.bf16.mxu0 0
      %598 = vmatpush1.bf16.msra.mxu0 0
      %599 = vmatprep.subr.bf16.mxu0 0
      %600 = vmatpush1.bf16.msra.mxu0 0
      %601 = vmatprep.subr.bf16.mxu0 0
      %602 = vmatpush1.bf16.msra.mxu0 0
      %603 = vmatprep.subr.bf16.mxu0 0
      %604 = vmatpush1.bf16.msra.mxu0 0
      %605 = vmatprep.subr.bf16.mxu0 0
      %606 = vmatpush1.bf16.msra.mxu0 0
      %607 = vmatprep.subr.bf16.mxu0 0
      %608 = vmatpush1.bf16.msra.mxu0 0
      %609 = vmatprep.subr.bf16.mxu0 %v590
      %610 = vmatpush1.bf16.msra.mxu0 %v587
      %611 = vmatprep.subr.bf16.mxu0 0
      %612 = vmatpush2.bf16.msra.mxu0 0
      %613 = vmatprep.subr.bf16.mxu0 0
      %614 = vmatpush2.bf16.msra.mxu0 0
      %615 = vmatprep.subr.bf16.mxu0 0
      %616 = vmatpush2.bf16.msra.mxu0 0
      %617 = vmatprep.subr.bf16.mxu0 0
      %618 = vmatpush2.bf16.msra.mxu0 0
      %619 = vmatprep.subr.bf16.mxu0 0
      %620 = vmatpush2.bf16.msra.mxu0 0
      %621 = vmatprep.subr.bf16.mxu0 0
      %622 = vmatpush2.bf16.msra.mxu0 0
      %623 = vmatprep.subr.bf16.mxu0 0
      %624 = vmatpush2.bf16.msra.mxu0 0
      %625 = vmatprep.subr.bf16.mxu0 0
      %626 = vmatpush2.bf16.msra.mxu0 0
      %627 = vmatprep.mubr.bf16.mxu0 0
      %628 = vmatmul.mubr.bf16.gmra.mxu0 %v584
      %v629 = vpop.f32.mrf.mxu0
      %v630 = vadd.f32 0.0, %v629
      %v631 = vpop.f32.mrf.mxu0
      %v632 = vadd.f32 0.0, %v631
      %v633 = vpop.f32.mrf.mxu0
      %v634 = vpop.f32.mrf.mxu0
      %635 = vdwg.mxu0
      %636 = vmatprep.subr.bf16.mxu0 0
      %637 = vmatpush1.bf16.msra.mxu0 0
      %638 = vmatprep.subr.bf16.mxu0 0
      %639 = vmatpush1.bf16.msra.mxu0 0
      %640 = vmatprep.subr.bf16.mxu0 0
      %641 = vmatpush1.bf16.msra.mxu0 0
      %642 = vmatprep.subr.bf16.mxu0 0
      %643 = vmatpush1.bf16.msra.mxu0 0
      %644 = vmatprep.subr.bf16.mxu0 0
      %645 = vmatpush1.bf16.msra.mxu0 0
      %646 = vmatprep.subr.bf16.mxu0 0
      %647 = vmatpush1.bf16.msra.mxu0 0
      %648 = vmatprep.subr.bf16.mxu0 0
      %649 = vmatpush1.bf16.msra.mxu0 0
      %650 = vmatprep.subr.bf16.mxu0 0
      %651 = vmatpush1.bf16.msra.mxu0 %v593
      %652 = vmatprep.subr.bf16.mxu0 0
      %653 = vmatpush2.bf16.msra.mxu0 0
      %654 = vmatprep.subr.bf16.mxu0 0
      %655 = vmatpush2.bf16.msra.mxu0 0
      %656 = vmatprep.subr.bf16.mxu0 0
      %657 = vmatpush2.bf16.msra.mxu0 0
      %658 = vmatprep.subr.bf16.mxu0 0
      %659 = vmatpush2.bf16.msra.mxu0 0
      %660 = vmatprep.subr.bf16.mxu0 0
      %661 = vmatpush2.bf16.msra.mxu0 0
      %662 = vmatprep.subr.bf16.mxu0 0
      %663 = vmatpush2.bf16.msra.mxu0 0
      %664 = vmatprep.subr.bf16.mxu0 0
      %665 = vmatpush2.bf16.msra.mxu0 0
      %666 = vmatprep.subr.bf16.mxu0 0
      %667 = vmatpush2.bf16.msra.mxu0 0
      %668 = vmatprep.mubr.bf16.mxu0 0
      %669 = vmatmul.mubr.bf16.gmra.mxu0 %v584
      %v670 = vpop.f32.mrf.mxu0
      %v671 = vadd.f32 0.0, %v670
      %v672 = vpop.f32.mrf.mxu0
      %v673 = vpop.f32.mrf.mxu0
      %v674 = vpop.f32.mrf.mxu0
      %675 = vdwg.mxu0
      %v676 = vadd.f32 %v569, %v630
      %v677 = vadd.f32 %v570, %v632
      %v678 = vadd.f32 %v571, %v671
      %s679 = scalar_lea.vmem %s240, 8
      %v680 = vld [vmem:[%s679] sm:$0x3]
      %681 = vrot.lane.b32.xlu0 %v265, 109
      %v682 = vpop.permute.xlu0 %681
      %683 = vrot.lane.b32.xlu0 %v266, 109
      %v684 = vpop.permute.xlu0 %683
      %685 = vrot.lane.b32.xlu0 %v267, 109
      %v686 = vpop.permute.xlu0 %685
      %vm687 = vcmask 891904
      %v688 = vsel %vm687, %v682, %v684
      %v689 = vsel %vm687, %v684, %v686
      %v691 = vsel %vm277, %v680, 0
      %v694 = vsel %vm281, %v688, 0
      %v697 = vsel %vm281, %v689, 0
      %v700 = vsel %vm281, %v686, 0
      %702 = vmatprep.subr.bf16.mxu0 0
      %703 = vmatpush1.bf16.msra.mxu0 0
      %704 = vmatprep.subr.bf16.mxu0 0
      %705 = vmatpush1.bf16.msra.mxu0 0
      %706 = vmatprep.subr.bf16.mxu0 0
      %707 = vmatpush1.bf16.msra.mxu0 0
      %708 = vmatprep.subr.bf16.mxu0 0
      %709 = vmatpush1.bf16.msra.mxu0 0
      %710 = vmatprep.subr.bf16.mxu0 0
      %711 = vmatpush1.bf16.msra.mxu0 0
      %712 = vmatprep.subr.bf16.mxu0 0
      %713 = vmatpush1.bf16.msra.mxu0 0
      %714 = vmatprep.subr.bf16.mxu0 0
      %715 = vmatpush1.bf16.msra.mxu0 0
      %716 = vmatprep.subr.bf16.mxu0 %v697
      %717 = vmatpush1.bf16.msra.mxu0 %v694
      %718 = vmatprep.subr.bf16.mxu0 0
      %719 = vmatpush2.bf16.msra.mxu0 0
      %720 = vmatprep.subr.bf16.mxu0 0
      %721 = vmatpush2.bf16.msra.mxu0 0
      %722 = vmatprep.subr.bf16.mxu0 0
      %723 = vmatpush2.bf16.msra.mxu0 0
      %724 = vmatprep.subr.bf16.mxu0 0
      %725 = vmatpush2.bf16.msra.mxu0 0
      %726 = vmatprep.subr.bf16.mxu0 0
      %727 = vmatpush2.bf16.msra.mxu0 0
      %728 = vmatprep.subr.bf16.mxu0 0
      %729 = vmatpush2.bf16.msra.mxu0 0
      %730 = vmatprep.subr.bf16.mxu0 0
      %731 = vmatpush2.bf16.msra.mxu0 0
      %732 = vmatprep.subr.bf16.mxu0 0
      %733 = vmatpush2.bf16.msra.mxu0 0
      %734 = vmatprep.mubr.bf16.mxu0 0
      %735 = vmatmul.mubr.bf16.gmra.mxu0 %v691
      %v736 = vpop.f32.mrf.mxu0
      %v737 = vadd.f32 0.0, %v736
      %v738 = vpop.f32.mrf.mxu0
      %v739 = vadd.f32 0.0, %v738
      %v740 = vpop.f32.mrf.mxu0
      %v741 = vpop.f32.mrf.mxu0
      %742 = vdwg.mxu0
      %743 = vmatprep.subr.bf16.mxu0 0
      %744 = vmatpush1.bf16.msra.mxu0 0
      %745 = vmatprep.subr.bf16.mxu0 0
      %746 = vmatpush1.bf16.msra.mxu0 0
      %747 = vmatprep.subr.bf16.mxu0 0
      %748 = vmatpush1.bf16.msra.mxu0 0
      %749 = vmatprep.subr.bf16.mxu0 0
      %750 = vmatpush1.bf16.msra.mxu0 0
      %751 = vmatprep.subr.bf16.mxu0 0
      %752 = vmatpush1.bf16.msra.mxu0 0
      %753 = vmatprep.subr.bf16.mxu0 0
      %754 = vmatpush1.bf16.msra.mxu0 0
      %755 = vmatprep.subr.bf16.mxu0 0
      %756 = vmatpush1.bf16.msra.mxu0 0
      %757 = vmatprep.subr.bf16.mxu0 0
      %758 = vmatpush1.bf16.msra.mxu0 %v700
      %759 = vmatprep.subr.bf16.mxu0 0
      %760 = vmatpush2.bf16.msra.mxu0 0
      %761 = vmatprep.subr.bf16.mxu0 0
      %762 = vmatpush2.bf16.msra.mxu0 0
      %763 = vmatprep.subr.bf16.mxu0 0
      %764 = vmatpush2.bf16.msra.mxu0 0
      %765 = vmatprep.subr.bf16.mxu0 0
      %766 = vmatpush2.bf16.msra.mxu0 0
      %767 = vmatprep.subr.bf16.mxu0 0
      %768 = vmatpush2.bf16.msra.mxu0 0
      %769 = vmatprep.subr.bf16.mxu0 0
      %770 = vmatpush2.bf16.msra.mxu0 0
      %771 = vmatprep.subr.bf16.mxu0 0
      %772 = vmatpush2.bf16.msra.mxu0 0
      %773 = vmatprep.subr.bf16.mxu0 0
      %774 = vmatpush2.bf16.msra.mxu0 0
      %775 = vmatprep.mubr.bf16.mxu0 0
      %776 = vmatmul.mubr.bf16.gmra.mxu0 %v691
      %v777 = vpop.f32.mrf.mxu0
      %v778 = vadd.f32 0.0, %v777
      %v779 = vpop.f32.mrf.mxu0
      %v780 = vpop.f32.mrf.mxu0
      %v781 = vpop.f32.mrf.mxu0
      %782 = vdwg.mxu0
      %v783 = vadd.f32 %v676, %v737
      %v784 = vadd.f32 %v677, %v739
      %v785 = vadd.f32 %v678, %v778
      %s786 = scalar_lea.vmem %s240, 10
      %v787 = vld [vmem:[%s786] sm:$0x3]
      %788 = vrot.lane.b32.xlu0 %v265, 108
      %v789 = vpop.permute.xlu0 %788
      %790 = vrot.lane.b32.xlu0 %v266, 108
      %v791 = vpop.permute.xlu0 %790
      %792 = vrot.lane.b32.xlu0 %v267, 108
      %v793 = vpop.permute.xlu0 %792
      %vm794 = vcmask 883712
      %v795 = vsel %vm794, %v789, %v791
      %v796 = vsel %vm794, %v791, %v793
      %v798 = vsel %vm277, %v787, 0
      %v801 = vsel %vm281, %v795, 0
      %v804 = vsel %vm281, %v796, 0
      %v807 = vsel %vm281, %v793, 0
      %809 = vmatprep.subr.bf16.mxu0 0
      %810 = vmatpush1.bf16.msra.mxu0 0
      %811 = vmatprep.subr.bf16.mxu0 0
      %812 = vmatpush1.bf16.msra.mxu0 0
      %813 = vmatprep.subr.bf16.mxu0 0
      %814 = vmatpush1.bf16.msra.mxu0 0
      %815 = vmatprep.subr.bf16.mxu0 0
      %816 = vmatpush1.bf16.msra.mxu0 0
      %817 = vmatprep.subr.bf16.mxu0 0
      %818 = vmatpush1.bf16.msra.mxu0 0
      %819 = vmatprep.subr.bf16.mxu0 0
      %820 = vmatpush1.bf16.msra.mxu0 0
      %821 = vmatprep.subr.bf16.mxu0 0
      %822 = vmatpush1.bf16.msra.mxu0 0
      %823 = vmatprep.subr.bf16.mxu0 %v804
      %824 = vmatpush1.bf16.msra.mxu0 %v801
      %825 = vmatprep.subr.bf16.mxu0 0
      %826 = vmatpush2.bf16.msra.mxu0 0
      %827 = vmatprep.subr.bf16.mxu0 0
      %828 = vmatpush2.bf16.msra.mxu0 0
      %829 = vmatprep.subr.bf16.mxu0 0
      %830 = vmatpush2.bf16.msra.mxu0 0
      %831 = vmatprep.subr.bf16.mxu0 0
      %832 = vmatpush2.bf16.msra.mxu0 0
      %833 = vmatprep.subr.bf16.mxu0 0
      %834 = vmatpush2.bf16.msra.mxu0 0
      %835 = vmatprep.subr.bf16.mxu0 0
      %836 = vmatpush2.bf16.msra.mxu0 0
      %837 = vmatprep.subr.bf16.mxu0 0
      %838 = vmatpush2.bf16.msra.mxu0 0
      %839 = vmatprep.subr.bf16.mxu0 0
      %840 = vmatpush2.bf16.msra.mxu0 0
      %841 = vmatprep.mubr.bf16.mxu0 0
      %842 = vmatmul.mubr.bf16.gmra.mxu0 %v798
      %v843 = vpop.f32.mrf.mxu0
      %v844 = vadd.f32 0.0, %v843
      %v845 = vpop.f32.mrf.mxu0
      %v846 = vadd.f32 0.0, %v845
      %v847 = vpop.f32.mrf.mxu0
      %v848 = vpop.f32.mrf.mxu0
      %849 = vdwg.mxu0
      %850 = vmatprep.subr.bf16.mxu0 0
      %851 = vmatpush1.bf16.msra.mxu0 0
      %852 = vmatprep.subr.bf16.mxu0 0
      %853 = vmatpush1.bf16.msra.mxu0 0
      %854 = vmatprep.subr.bf16.mxu0 0
      %855 = vmatpush1.bf16.msra.mxu0 0
      %856 = vmatprep.subr.bf16.mxu0 0
      %857 = vmatpush1.bf16.msra.mxu0 0
      %858 = vmatprep.subr.bf16.mxu0 0
      %859 = vmatpush1.bf16.msra.mxu0 0
      %860 = vmatprep.subr.bf16.mxu0 0
      %861 = vmatpush1.bf16.msra.mxu0 0
      %862 = vmatprep.subr.bf16.mxu0 0
      %863 = vmatpush1.bf16.msra.mxu0 0
      %864 = vmatprep.subr.bf16.mxu0 0
      %865 = vmatpush1.bf16.msra.mxu0 %v807
      %866 = vmatprep.subr.bf16.mxu0 0
      %867 = vmatpush2.bf16.msra.mxu0 0
      %868 = vmatprep.subr.bf16.mxu0 0
      %869 = vmatpush2.bf16.msra.mxu0 0
      %870 = vmatprep.subr.bf16.mxu0 0
      %871 = vmatpush2.bf16.msra.mxu0 0
      %872 = vmatprep.subr.bf16.mxu0 0
      %873 = vmatpush2.bf16.msra.mxu0 0
      %874 = vmatprep.subr.bf16.mxu0 0
      %875 = vmatpush2.bf16.msra.mxu0 0
      %876 = vmatprep.subr.bf16.mxu0 0
      %877 = vmatpush2.bf16.msra.mxu0 0
      %878 = vmatprep.subr.bf16.mxu0 0
      %879 = vmatpush2.bf16.msra.mxu0 0
      %880 = vmatprep.subr.bf16.mxu0 0
      %881 = vmatpush2.bf16.msra.mxu0 0
      %882 = vmatprep.mubr.bf16.mxu0 0
      %883 = vmatmul.mubr.bf16.gmra.mxu0 %v798
      %v884 = vpop.f32.mrf.mxu0
      %v885 = vadd.f32 0.0, %v884
      %v886 = vpop.f32.mrf.mxu0
      %v887 = vpop.f32.mrf.mxu0
      %v888 = vpop.f32.mrf.mxu0
      %889 = vdwg.mxu0
      %v890 = vadd.f32 %v783, %v844
      %v891 = vadd.f32 %v784, %v846
      %v892 = vadd.f32 %v785, %v885
      %v893 = vld [vmem:[%s236] sm:$0xff]
      %v894 = vld [vmem:[%s236 + $0x8] sm:$0xff]
      %s895 = scalar_lea.vmem %s240, 12
      %v896 = vld [vmem:[%s895] sm:$0x3]
      %v899 = vunpack.c.l.b16 %v893
      %v900 = vunpack.c.h.b16 %v893
      %v901 = vunpack.c.l.b16 %v894
      %v902 = vunpack.c.h.b16 %v894
      %v903 = vpack.c.b16 %v899, %v899
      %v904 = vpack.c.b16 %v900, %v900
      %v905 = vpack.c.b16 %v901, %v901
      %v906 = vpack.c.b16 %v902, %v902
      %907 = vrot.lane.b32.xlu0 %v903, 92
      %v908 = vpop.permute.xlu0 %907
      %909 = vrot.lane.b32.xlu0 %v904, 92
      %v910 = vpop.permute.xlu0 %909
      %911 = vrot.lane.b32.xlu0 %v905, 92
      %v912 = vpop.permute.xlu0 %911
      %913 = vrot.lane.b32.xlu0 %v906, 92
      %v914 = vpop.permute.xlu0 %913
      %vm915 = vcmask 752640
      %v916 = vsel %vm915, %v908, %v910
      %v917 = vsel %vm915, %v910, %v912
      %v918 = vsel %vm915, %v912, %v914
      %v920 = vsel %vm277, %v896, 0
      %v923 = vsel %vm281, %v916, 0
      %v926 = vsel %vm281, %v917, 0
      %v929 = vsel %vm281, %v918, 0
      %931 = vmatprep.subr.bf16.mxu0 0
      %932 = vmatpush1.bf16.msra.mxu0 0
      %933 = vmatprep.subr.bf16.mxu0 0
      %934 = vmatpush1.bf16.msra.mxu0 0
      %935 = vmatprep.subr.bf16.mxu0 0
      %936 = vmatpush1.bf16.msra.mxu0 0
      %937 = vmatprep.subr.bf16.mxu0 0
      %938 = vmatpush1.bf16.msra.mxu0 0
      %939 = vmatprep.subr.bf16.mxu0 0
      %940 = vmatpush1.bf16.msra.mxu0 0
      %941 = vmatprep.subr.bf16.mxu0 0
      %942 = vmatpush1.bf16.msra.mxu0 0
      %943 = vmatprep.subr.bf16.mxu0 0
      %944 = vmatpush1.bf16.msra.mxu0 0
      %945 = vmatprep.subr.bf16.mxu0 %v926
      %946 = vmatpush1.bf16.msra.mxu0 %v923
      %947 = vmatprep.subr.bf16.mxu0 0
      %948 = vmatpush2.bf16.msra.mxu0 0
      %949 = vmatprep.subr.bf16.mxu0 0
      %950 = vmatpush2.bf16.msra.mxu0 0
      %951 = vmatprep.subr.bf16.mxu0 0
      %952 = vmatpush2.bf16.msra.mxu0 0
      %953 = vmatprep.subr.bf16.mxu0 0
      %954 = vmatpush2.bf16.msra.mxu0 0
      %955 = vmatprep.subr.bf16.mxu0 0
      %956 = vmatpush2.bf16.msra.mxu0 0
      %957 = vmatprep.subr.bf16.mxu0 0
      %958 = vmatpush2.bf16.msra.mxu0 0
      %959 = vmatprep.subr.bf16.mxu0 0
      %960 = vmatpush2.bf16.msra.mxu0 0
      %961 = vmatprep.subr.bf16.mxu0 0
      %962 = vmatpush2.bf16.msra.mxu0 0
      %963 = vmatprep.mubr.bf16.mxu0 0
      %964 = vmatmul.mubr.bf16.gmra.mxu0 %v920
      %v965 = vpop.f32.mrf.mxu0
      %v966 = vadd.f32 0.0, %v965
      %v967 = vpop.f32.mrf.mxu0
      %v968 = vadd.f32 0.0, %v967
      %v969 = vpop.f32.mrf.mxu0
      %v970 = vpop.f32.mrf.mxu0
      %971 = vdwg.mxu0
      %972 = vmatprep.subr.bf16.mxu0 0
      %973 = vmatpush1.bf16.msra.mxu0 0
      %974 = vmatprep.subr.bf16.mxu0 0
      %975 = vmatpush1.bf16.msra.mxu0 0
      %976 = vmatprep.subr.bf16.mxu0 0
      %977 = vmatpush1.bf16.msra.mxu0 0
      %978 = vmatprep.subr.bf16.mxu0 0
      %979 = vmatpush1.bf16.msra.mxu0 0
      %980 = vmatprep.subr.bf16.mxu0 0
      %981 = vmatpush1.bf16.msra.mxu0 0
      %982 = vmatprep.subr.bf16.mxu0 0
      %983 = vmatpush1.bf16.msra.mxu0 0
      %984 = vmatprep.subr.bf16.mxu0 0
      %985 = vmatpush1.bf16.msra.mxu0 0
      %986 = vmatprep.subr.bf16.mxu0 0
      %987 = vmatpush1.bf16.msra.mxu0 %v929
      %988 = vmatprep.subr.bf16.mxu0 0
      %989 = vmatpush2.bf16.msra.mxu0 0
      %990 = vmatprep.subr.bf16.mxu0 0
      %991 = vmatpush2.bf16.msra.mxu0 0
      %992 = vmatprep.subr.bf16.mxu0 0
      %993 = vmatpush2.bf16.msra.mxu0 0
      %994 = vmatprep.subr.bf16.mxu0 0
      %995 = vmatpush2.bf16.msra.mxu0 0
      %996 = vmatprep.subr.bf16.mxu0 0
      %997 = vmatpush2.bf16.msra.mxu0 0
      %998 = vmatprep.subr.bf16.mxu0 0
      %999 = vmatpush2.bf16.msra.mxu0 0
      %1000 = vmatprep.subr.bf16.mxu0 0
      %1001 = vmatpush2.bf16.msra.mxu0 0
      %1002 = vmatprep.subr.bf16.mxu0 0
      %1003 = vmatpush2.bf16.msra.mxu0 0
      %1004 = vmatprep.mubr.bf16.mxu0 0
      %1005 = vmatmul.mubr.bf16.gmra.mxu0 %v920
      %v1006 = vpop.f32.mrf.mxu0
      %v1007 = vadd.f32 0.0, %v1006
      %v1008 = vpop.f32.mrf.mxu0
      %v1009 = vpop.f32.mrf.mxu0
      %v1010 = vpop.f32.mrf.mxu0
      %1011 = vdwg.mxu0
      %v1012 = vadd.f32 %v890, %v966
      %v1013 = vadd.f32 %v891, %v968
      %v1014 = vadd.f32 %v892, %v1007
      %s1015 = scalar_lea.vmem %s240, 14
      %v1016 = vld [vmem:[%s1015] sm:$0x3]
      %1017 = vrot.lane.b32.xlu0 %v903, 91
      %v1018 = vpop.permute.xlu0 %1017
      %1019 = vrot.lane.b32.xlu0 %v904, 91
      %v1020 = vpop.permute.xlu0 %1019
      %1021 = vrot.lane.b32.xlu0 %v905, 91
      %v1022 = vpop.permute.xlu0 %1021
      %1023 = vrot.lane.b32.xlu0 %v906, 91
      %v1024 = vpop.permute.xlu0 %1023
      %vm1025 = vcmask 744448
      %v1026 = vsel %vm1025, %v1018, %v1020
      %v1027 = vsel %vm1025, %v1020, %v1022
      %v1028 = vsel %vm1025, %v1022, %v1024
      %v1030 = vsel %vm277, %v1016, 0
      %v1033 = vsel %vm281, %v1026, 0
      %v1036 = vsel %vm281, %v1027, 0
      %v1039 = vsel %vm281, %v1028, 0
      %1041 = vmatprep.subr.bf16.mxu0 0
      %1042 = vmatpush1.bf16.msra.mxu0 0
      %1043 = vmatprep.subr.bf16.mxu0 0
      %1044 = vmatpush1.bf16.msra.mxu0 0
      %1045 = vmatprep.subr.bf16.mxu0 0
      %1046 = vmatpush1.bf16.msra.mxu0 0
      %1047 = vmatprep.subr.bf16.mxu0 0
      %1048 = vmatpush1.bf16.msra.mxu0 0
      %1049 = vmatprep.subr.bf16.mxu0 0
      %1050 = vmatpush1.bf16.msra.mxu0 0
      %1051 = vmatprep.subr.bf16.mxu0 0
      %1052 = vmatpush1.bf16.msra.mxu0 0
      %1053 = vmatprep.subr.bf16.mxu0 0
      %1054 = vmatpush1.bf16.msra.mxu0 0
      %1055 = vmatprep.subr.bf16.mxu0 %v1036
      %1056 = vmatpush1.bf16.msra.mxu0 %v1033
      %1057 = vmatprep.subr.bf16.mxu0 0
      %1058 = vmatpush2.bf16.msra.mxu0 0
      %1059 = vmatprep.subr.bf16.mxu0 0
      %1060 = vmatpush2.bf16.msra.mxu0 0
      %1061 = vmatprep.subr.bf16.mxu0 0
      %1062 = vmatpush2.bf16.msra.mxu0 0
      %1063 = vmatprep.subr.bf16.mxu0 0
      %1064 = vmatpush2.bf16.msra.mxu0 0
      %1065 = vmatprep.subr.bf16.mxu0 0
      %1066 = vmatpush2.bf16.msra.mxu0 0
      %1067 = vmatprep.subr.bf16.mxu0 0
      %1068 = vmatpush2.bf16.msra.mxu0 0
      %1069 = vmatprep.subr.bf16.mxu0 0
      %1070 = vmatpush2.bf16.msra.mxu0 0
      %1071 = vmatprep.subr.bf16.mxu0 0
      %1072 = vmatpush2.bf16.msra.mxu0 0
      %1073 = vmatprep.mubr.bf16.mxu0 0
      %1074 = vmatmul.mubr.bf16.gmra.mxu0 %v1030
      %v1075 = vpop.f32.mrf.mxu0
      %v1076 = vadd.f32 0.0, %v1075
      %v1077 = vpop.f32.mrf.mxu0
      %v1078 = vadd.f32 0.0, %v1077
      %v1079 = vpop.f32.mrf.mxu0
      %v1080 = vpop.f32.mrf.mxu0
      %1081 = vdwg.mxu0
      %1082 = vmatprep.subr.bf16.mxu0 0
      %1083 = vmatpush1.bf16.msra.mxu0 0
      %1084 = vmatprep.subr.bf16.mxu0 0
      %1085 = vmatpush1.bf16.msra.mxu0 0
      %1086 = vmatprep.subr.bf16.mxu0 0
      %1087 = vmatpush1.bf16.msra.mxu0 0
      %1088 = vmatprep.subr.bf16.mxu0 0
      %1089 = vmatpush1.bf16.msra.mxu0 0
      %1090 = vmatprep.subr.bf16.mxu0 0
      %1091 = vmatpush1.bf16.msra.mxu0 0
      %1092 = vmatprep.subr.bf16.mxu0 0
      %1093 = vmatpush1.bf16.msra.mxu0 0
      %1094 = vmatprep.subr.bf16.mxu0 0
      %1095 = vmatpush1.bf16.msra.mxu0 0
      %1096 = vmatprep.subr.bf16.mxu0 0
      %1097 = vmatpush1.bf16.msra.mxu0 %v1039
      %1098 = vmatprep.subr.bf16.mxu0 0
      %1099 = vmatpush2.bf16.msra.mxu0 0
      %1100 = vmatprep.subr.bf16.mxu0 0
      %1101 = vmatpush2.bf16.msra.mxu0 0
      %1102 = vmatprep.subr.bf16.mxu0 0
      %1103 = vmatpush2.bf16.msra.mxu0 0
      %1104 = vmatprep.subr.bf16.mxu0 0
      %1105 = vmatpush2.bf16.msra.mxu0 0
      %1106 = vmatprep.subr.bf16.mxu0 0
      %1107 = vmatpush2.bf16.msra.mxu0 0
      %1108 = vmatprep.subr.bf16.mxu0 0
      %1109 = vmatpush2.bf16.msra.mxu0 0
      %1110 = vmatprep.subr.bf16.mxu0 0
      %1111 = vmatpush2.bf16.msra.mxu0 0
      %1112 = vmatprep.subr.bf16.mxu0 0
      %1113 = vmatpush2.bf16.msra.mxu0 0
      %1114 = vmatprep.mubr.bf16.mxu0 0
      %1115 = vmatmul.mubr.bf16.gmra.mxu0 %v1030
      %v1116 = vpop.f32.mrf.mxu0
      %v1117 = vadd.f32 0.0, %v1116
      %v1118 = vpop.f32.mrf.mxu0
      %v1119 = vpop.f32.mrf.mxu0
      %v1120 = vpop.f32.mrf.mxu0
      %1121 = vdwg.mxu0
      %v1122 = vadd.f32 %v1012, %v1076
      %v1123 = vadd.f32 %v1013, %v1078
      %v1124 = vadd.f32 %v1014, %v1117
      %s1125 = scalar_lea.vmem %s240, 16
      %v1126 = vld [vmem:[%s1125] sm:$0x3]
      %1127 = vrot.lane.b32.xlu0 %v903, 90
      %v1128 = vpop.permute.xlu0 %1127
      %1129 = vrot.lane.b32.xlu0 %v904, 90
      %v1130 = vpop.permute.xlu0 %1129
      %1131 = vrot.lane.b32.xlu0 %v905, 90
      %v1132 = vpop.permute.xlu0 %1131
      %1133 = vrot.lane.b32.xlu0 %v906, 90
      %v1134 = vpop.permute.xlu0 %1133
      %vm1135 = vcmask 736256
      %v1136 = vsel %vm1135, %v1128, %v1130
      %v1137 = vsel %vm1135, %v1130, %v1132
      %v1138 = vsel %vm1135, %v1132, %v1134
      %v1140 = vsel %vm277, %v1126, 0
      %v1143 = vsel %vm281, %v1136, 0
      %v1146 = vsel %vm281, %v1137, 0
      %v1149 = vsel %vm281, %v1138, 0
      %1151 = vmatprep.subr.bf16.mxu0 0
      %1152 = vmatpush1.bf16.msra.mxu0 0
      %1153 = vmatprep.subr.bf16.mxu0 0
      %1154 = vmatpush1.bf16.msra.mxu0 0
      %1155 = vmatprep.subr.bf16.mxu0 0
      %1156 = vmatpush1.bf16.msra.mxu0 0
      %1157 = vmatprep.subr.bf16.mxu0 0
      %1158 = vmatpush1.bf16.msra.mxu0 0
      %1159 = vmatprep.subr.bf16.mxu0 0
      %1160 = vmatpush1.bf16.msra.mxu0 0
      %1161 = vmatprep.subr.bf16.mxu0 0
      %1162 = vmatpush1.bf16.msra.mxu0 0
      %1163 = vmatprep.subr.bf16.mxu0 0
      %1164 = vmatpush1.bf16.msra.mxu0 0
      %1165 = vmatprep.subr.bf16.mxu0 %v1146
      %1166 = vmatpush1.bf16.msra.mxu0 %v1143
      %1167 = vmatprep.subr.bf16.mxu0 0
      %1168 = vmatpush2.bf16.msra.mxu0 0
      %1169 = vmatprep.subr.bf16.mxu0 0
      %1170 = vmatpush2.bf16.msra.mxu0 0
      %1171 = vmatprep.subr.bf16.mxu0 0
      %1172 = vmatpush2.bf16.msra.mxu0 0
      %1173 = vmatprep.subr.bf16.mxu0 0
      %1174 = vmatpush2.bf16.msra.mxu0 0
      %1175 = vmatprep.subr.bf16.mxu0 0
      %1176 = vmatpush2.bf16.msra.mxu0 0
      %1177 = vmatprep.subr.bf16.mxu0 0
      %1178 = vmatpush2.bf16.msra.mxu0 0
      %1179 = vmatprep.subr.bf16.mxu0 0
      %1180 = vmatpush2.bf16.msra.mxu0 0
      %1181 = vmatprep.subr.bf16.mxu0 0
      %1182 = vmatpush2.bf16.msra.mxu0 0
      %1183 = vmatprep.mubr.bf16.mxu0 0
      %1184 = vmatmul.mubr.bf16.gmra.mxu0 %v1140
      %v1185 = vpop.f32.mrf.mxu0
      %v1186 = vadd.f32 0.0, %v1185
      %v1187 = vpop.f32.mrf.mxu0
      %v1188 = vadd.f32 0.0, %v1187
      %v1189 = vpop.f32.mrf.mxu0
      %v1190 = vpop.f32.mrf.mxu0
      %1191 = vdwg.mxu0
      %1192 = vmatprep.subr.bf16.mxu0 0
      %1193 = vmatpush1.bf16.msra.mxu0 0
      %1194 = vmatprep.subr.bf16.mxu0 0
      %1195 = vmatpush1.bf16.msra.mxu0 0
      %1196 = vmatprep.subr.bf16.mxu0 0
      %1197 = vmatpush1.bf16.msra.mxu0 0
      %1198 = vmatprep.subr.bf16.mxu0 0
      %1199 = vmatpush1.bf16.msra.mxu0 0
      %1200 = vmatprep.subr.bf16.mxu0 0
      %1201 = vmatpush1.bf16.msra.mxu0 0
      %1202 = vmatprep.subr.bf16.mxu0 0
      %1203 = vmatpush1.bf16.msra.mxu0 0
      %1204 = vmatprep.subr.bf16.mxu0 0
      %1205 = vmatpush1.bf16.msra.mxu0 0
      %1206 = vmatprep.subr.bf16.mxu0 0
      %1207 = vmatpush1.bf16.msra.mxu0 %v1149
      %1208 = vmatprep.subr.bf16.mxu0 0
      %1209 = vmatpush2.bf16.msra.mxu0 0
      %1210 = vmatprep.subr.bf16.mxu0 0
      %1211 = vmatpush2.bf16.msra.mxu0 0
      %1212 = vmatprep.subr.bf16.mxu0 0
      %1213 = vmatpush2.bf16.msra.mxu0 0
      %1214 = vmatprep.subr.bf16.mxu0 0
      %1215 = vmatpush2.bf16.msra.mxu0 0
      %1216 = vmatprep.subr.bf16.mxu0 0
      %1217 = vmatpush2.bf16.msra.mxu0 0
      %1218 = vmatprep.subr.bf16.mxu0 0
      %1219 = vmatpush2.bf16.msra.mxu0 0
      %1220 = vmatprep.subr.bf16.mxu0 0
      %1221 = vmatpush2.bf16.msra.mxu0 0
      %1222 = vmatprep.subr.bf16.mxu0 0
      %1223 = vmatpush2.bf16.msra.mxu0 0
      %1224 = vmatprep.mubr.bf16.mxu0 0
      %1225 = vmatmul.mubr.bf16.gmra.mxu0 %v1140
      %v1226 = vpop.f32.mrf.mxu0
      %v1227 = vadd.f32 0.0, %v1226
      %v1228 = vpop.f32.mrf.mxu0
      %v1229 = vpop.f32.mrf.mxu0
      %v1230 = vpop.f32.mrf.mxu0
      %1231 = vdwg.mxu0
      %v1232 = vadd.f32 %v1122, %v1186
      %v1233 = vadd.f32 %v1123, %v1188
      %v1234 = vadd.f32 %v1124, %v1227
      %v1235 = vld [vmem:[%s244] sm:$0xf]
      %1237 = vset.pattern.permute.xlu0 0
      %1238 = vperm.xlu0 %1237, %v1235
      %v1239 = vpop.permute.xlu0 %1238
      %v1241 = vadd.f32 %v1232, %v1239
      %v1242 = vadd.f32 %v1233, %v1239
      %v1243 = vadd.f32 %v1234, %v1239
      %v1244 = vmax.f32 %v1241, 0.0
      %v1245 = vmax.f32 %v1242, 0.0
      %v1246 = vmax.f32 %v1243, 0.0
      %v1247 = vld [vmem:[%s3] sm:$0x7]
      %v1249 = vlaneseq
      %v1250 = vshrl.u32 %v1249, 7
      %v1251 = vsub.s32 0, %v1250
      %v1252 = vrot.slane %v1247, %v1251
      %v1253 = vlaneseq
      %v1254 = vshrl.u32 %v1253, 7
      %v1255 = vsub.s32 1, %v1254
      %v1256 = vrot.slane %v1247, %v1255
      %v1257 = vlaneseq
      %v1258 = vshrl.u32 %v1257, 7
      %v1259 = vsub.s32 2, %v1258
      %v1260 = vrot.slane %v1247, %v1259
      %v1264 = vmul.f32 %v1244, %v1252
      %v1265 = vmul.f32 %v1245, %v1256
      %v1266 = vmul.f32 %v1246, %v1260
      %v1267 = vpack.c.bf16 %v1264, %v1264
      %v1268 = vpack.c.bf16 %v1265, %v1265
      %v1269 = vpack.c.bf16 %v1266, %v1266
      %v1273 = vcombine.low %v1267, %v1268
      %v1275 = vunpack.c.l.s4 1983009808
      %v1276 = vunpack.c.0.s8 %v1275
      %v1277 = vlaneseq
      %v1278 = vshrl.u32 %v1277, 7
      %v1279 = vsub.s32 %v1276, %v1278
      %v1280 = vrot.slane %v1273, %v1279
      %v1282 = vunpack.c.l.s4 1983009808
      %v1283 = vunpack.c.0.s8 %v1282
      %v1284 = vlaneseq
      %v1285 = vshrl.u32 %v1284, 7
      %v1286 = vsub.s32 %v1283, %v1285
      %v1287 = vrot.slane %v1269, %v1286
      %v1288 = vcombine.low %v1280, %v1287
      %vm1290 = vcmask 1041408
      %vm1291 = vcmask 1043458
      %vm1292 = vmor %vm1291, %vm1290
      %vm1293 = vcmask 865284
      %vm1294 = vmor %vm1293, %vm1292
      %1295 = vst.msk [vmem:[%s253] sm:$0x3f] %vm1294, %v1288
      %p1296 = scmp.lt.s32.totalorder %s19, 1
      %s1297 = scalar_select %p1296, %s19, 1
      %p1298 = scmp.lt.s32.totalorder %s20, 0
      %s1299 = scalar_select %p1298, %s20, 0
      %s1300 = smul.addr %s1299, 3
      %s1301 = smul.addr %s1297, 3
      %s1302 = sadd.s32 %s1300, %s1301
      %s1303 = smul.addr %s1302, 2
      %s1304 = scalar_lea.vmem %s4, %s1303
      // Predicated region
      $region37: #{dsc_forward.9} parent=35 // pred_check
        %p1305 = pneg %p146
      $region38: #{dsc_forward.9} parent=35 // pred_check_branch
        %1307 = sbr.rel (%p1305) target = $region40
      $region39: #{dsc_forward.9} parent=35 // pred_region
        _
      $region40: #{dsc_forward.9} parent=35 // pred_fallthru
        _
    $region36: #{dsc_forward.9} parent=5 // pred_fallthru
      _
    %p1308 = scmp.le.s32.totalorder 2, %s10
    // Predicated region
    $region41: #{dsc_forward.9} parent=5 // pred_check
      %p1309 = pneg %p1308
    $region42: #{dsc_forward.9} parent=5 // pred_check_branch
      %1311 = sbr.rel (%p1309) target = $region44
    $region43: #{dsc_forward.9} parent=5 // pred_region
      %s1312 = ssub.s32 %s10, 2
      // Predicated region
      $region45: #{dsc_forward.9} parent=43 // pred_check
        %p1313 = pneg %p152
      $region46: #{dsc_forward.9} parent=43 // pred_check_branch
        %1315 = sbr.rel (%p1313) target = $region48
      $region47: #{dsc_forward.9} parent=43 // pred_region
        %p1316 = scmp.lt.s32.totalorder %s21, 1
        %s1317 = scalar_select %p1316, %s21, 1
        %p1318 = scmp.lt.s32.totalorder %s22, 0
        %s1319 = scalar_select %p1318, %s22, 0
        %s1320 = smul.addr %s1319, 3
        %s1321 = smul.addr %s1317, 3
        %s1322 = sadd.s32 %s1320, %s1321
        %s1323 = smul.addr %s1322, 2
        %s1324 = scalar_lea.vmem %s4, %s1323
      $region48: #{dsc_forward.9} parent=43 // pred_fallthru
        _
    $region44: #{dsc_forward.9} parent=5 // pred_fallthru
      _
  $region6: #{dsc_forward.9} parent=0 // loop_footer
    %s14 = sadd.s32 1, %s10
  $region7: #{dsc_forward.9} parent=0 // loop_footer_branch
    %9 = sbr.rel target = $region3
  $region8: #{dsc_forward.9} parent=0 // loop_exit
    _

// kernel: dsc_forward.10
$region0: #{dsc_forward.10}
  #allocation0 [shape = 'u32[]', space=smem, size = 0x4, offset = 0x4, fixed_abs, tag = 'smem constant byte address 0x4 - core index']
  #allocation1 [shape = 'u32[144,128]{1,0:T(1,128)}', space=vmem, size = 0x12000, scoped, tag = 'internal scratch']
  %s0 = inlined_call_operand.vmem [shape: bf16[2,4,362], index: 0, kind: input, shape index: {}]
  %s1 = inlined_call_operand.vmem [shape: bf16[9,4,4], index: 1, kind: input, shape index: {}]
  %s2 = inlined_call_operand.vmem [shape: f32[4,1], index: 2, kind: input, shape index: {}]
  %s3 = inlined_call_operand.vmem [shape: bf16[4,4], index: 3, kind: input, shape index: {}]
  %s4 = inlined_call_operand.vmem [shape: f32[4,1], index: 4, kind: input, shape index: {}]
  %s5 = inlined_call_operand.vmem [shape: f32[2,4,324], index: 5, kind: output, shape index: {}]
  %s6 = sld [smem:[#allocation0]]
  $region53: #{dsc_forward.10} parent=0
    _
  %s8 = ssub.s32 1, %s6
  %s9 = scalar_select 0, %s8, %s6
  loop: start=0, step=1, limit=4
  $region2: #{dsc_forward.10} parent=0 // loop_pre_header
    _
  $region3: #{dsc_forward.10} parent=0 // loop_header
    %s11 = sphi 0, %s15
    %p12 = scmp.ge.s32.totalorder %s11, 4
    %s21 = sphi 0, %s23
    %s24 = sphi 0, %s21
    %s25 = sphi 0, %s24
    %s41 = sphi 0, %s25
    %s45 = sphi 0, %s45
    %s47 = sphi 0, %s45
    %s48 = sphi 0, %s47
    %s62 = sphi 0, %s48
    %s66 = sphi 0, %s66
    %s68 = sphi 0, %s66
    %s69 = sphi 0, %s68
    %s83 = sphi 0, %s69
    %s87 = sphi 0, %s87
    %s89 = sphi 0, %s87
    %s90 = sphi 0, %s89
    %s104 = sphi 0, %s90
    %s108 = sphi 0, %s108
    %s110 = sphi 0, %s108
    %s111 = sphi 0, %s110
    %s125 = sphi 0, %s111
    %s131 = sphi 0, %s133
    %s134 = sphi 0, %s131
    %s135 = sphi 0, %s134
    %s151 = sphi 0, %s135
  $region4: #{dsc_forward.10} parent=0 // loop_header_branch
    %14 = sbr.rel (%p12) target = $region8
  $region5: #{dsc_forward.10} parent=0 // loop_body
    %s16 = ssub.s32 %s11, 1
    %s17 = ssub.s32 %s11, 2
    %s18 = sadd.s32 %s11, 1
    %s19 = ssub.s32 %s11, %s18
    %p20 = scmp.eq.s32.totalorder %s19, 0
    %s22 = sadd.s32 %s21, 1
    %s23 = scalar_select %p20, %s21, %s22
    %p26 = pneg %p20
    %p27 = scmp.eq.s32.totalorder %s11, 1
    %p28 = por %p26, %p27
    %p29 = scmp.ne.s32.totalorder %s21, %s24
    %p30 = scmp.eq.s32.totalorder %s11, 0
    %p31 = por %p29, %p30
    %p32 = scmp.ne.s32.totalorder %s21, %s24
    %p33 = scmp.eq.s32.totalorder %s16, 1
    %p34 = por %p32, %p33
    %p35 = scmp.ne.s32.totalorder %s24, %s25
    %p36 = scmp.eq.s32.totalorder %s16, 0
    %p37 = por %p35, %p36
    %p38 = scmp.ne.s32.totalorder %s24, %s25
    %p39 = scmp.eq.s32.totalorder %s17, 1
    %p40 = por %p38, %p39
    %p42 = scmp.ne.s32.totalorder %s25, %s41
    %p43 = scmp.eq.s32.totalorder %s17, 0
    %p44 = por %p42, %p43
    %s46 = sadd.s32 %s45, 1
    %p49 = scmp.eq.s32.totalorder %s11, 1
    %p50 = scmp.ne.s32.totalorder %s45, %s47
    %p51 = scmp.eq.s32.totalorder %s11, 0
    %p52 = por %p50, %p51
    %p53 = scmp.ne.s32.totalorder %s45, %s47
    %p54 = scmp.eq.s32.totalorder %s16, 1
    %p55 = por %p53, %p54
    %p56 = scmp.ne.s32.totalorder %s47, %s48
    %p57 = scmp.eq.s32.totalorder %s16, 0
    %p58 = por %p56, %p57
    %p59 = scmp.ne.s32.totalorder %s47, %s48
    %p60 = scmp.eq.s32.totalorder %s17, 1
    %p61 = por %p59, %p60
    %p63 = scmp.ne.s32.totalorder %s48, %s62
    %p64 = scmp.eq.s32.totalorder %s17, 0
    %p65 = por %p63, %p64
    %s67 = sadd.s32 %s66, 1
    %p70 = scmp.eq.s32.totalorder %s11, 1
    %p71 = scmp.ne.s32.totalorder %s66, %s68
    %p72 = scmp.eq.s32.totalorder %s11, 0
    %p73 = por %p71, %p72
    %p74 = scmp.ne.s32.totalorder %s66, %s68
    %p75 = scmp.eq.s32.totalorder %s16, 1
    %p76 = por %p74, %p75
    %p77 = scmp.ne.s32.totalorder %s68, %s69
    %p78 = scmp.eq.s32.totalorder %s16, 0
    %p79 = por %p77, %p78
    %p80 = scmp.ne.s32.totalorder %s68, %s69
    %p81 = scmp.eq.s32.totalorder %s17, 1
    %p82 = por %p80, %p81
    %p84 = scmp.ne.s32.totalorder %s69, %s83
    %p85 = scmp.eq.s32.totalorder %s17, 0
    %p86 = por %p84, %p85
    %s88 = sadd.s32 %s87, 1
    %p91 = scmp.eq.s32.totalorder %s11, 1
    %p92 = scmp.ne.s32.totalorder %s87, %s89
    %p93 = scmp.eq.s32.totalorder %s11, 0
    %p94 = por %p92, %p93
    %p95 = scmp.ne.s32.totalorder %s87, %s89
    %p96 = scmp.eq.s32.totalorder %s16, 1
    %p97 = por %p95, %p96
    %p98 = scmp.ne.s32.totalorder %s89, %s90
    %p99 = scmp.eq.s32.totalorder %s16, 0
    %p100 = por %p98, %p99
    %p101 = scmp.ne.s32.totalorder %s89, %s90
    %p102 = scmp.eq.s32.totalorder %s17, 1
    %p103 = por %p101, %p102
    %p105 = scmp.ne.s32.totalorder %s90, %s104
    %p106 = scmp.eq.s32.totalorder %s17, 0
    %p107 = por %p105, %p106
    %s109 = sadd.s32 %s108, 1
    %p112 = scmp.eq.s32.totalorder %s11, 1
    %p113 = scmp.ne.s32.totalorder %s108, %s110
    %p114 = scmp.eq.s32.totalorder %s11, 0
    %p115 = por %p113, %p114
    %p116 = scmp.ne.s32.totalorder %s108, %s110
    %p117 = scmp.eq.s32.totalorder %s16, 1
    %p118 = por %p116, %p117
    %p119 = scmp.ne.s32.totalorder %s110, %s111
    %p120 = scmp.eq.s32.totalorder %s16, 0
    %p121 = por %p119, %p120
    %p122 = scmp.ne.s32.totalorder %s110, %s111
    %p123 = scmp.eq.s32.totalorder %s17, 1
    %p124 = por %p122, %p123
    %p126 = scmp.ne.s32.totalorder %s111, %s125
    %p127 = scmp.eq.s32.totalorder %s17, 0
    %p128 = por %p126, %p127
    %s129 = ssub.s32 %s11, %s18
    %p130 = scmp.eq.s32.totalorder %s129, 0
    %s132 = sadd.s32 %s131, 1
    %s133 = scalar_select %p130, %s131, %s132
    %p136 = pneg %p130
    %p137 = scmp.eq.s32.totalorder %s11, 1
    %p138 = por %p136, %p137
    %p139 = scmp.ne.s32.totalorder %s131, %s134
    %p140 = scmp.eq.s32.totalorder %s11, 0
    %p141 = por %p139, %p140
    %p142 = scmp.ne.s32.totalorder %s131, %s134
    %p143 = scmp.eq.s32.totalorder %s16, 1
    %p144 = por %p142, %p143
    %p145 = scmp.ne.s32.totalorder %s134, %s135
    %p146 = scmp.eq.s32.totalorder %s16, 0
    %p147 = por %p145, %p146
    %p148 = scmp.ne.s32.totalorder %s134, %s135
    %p149 = scmp.eq.s32.totalorder %s17, 1
    %p150 = por %p148, %p149
    %p152 = scmp.ne.s32.totalorder %s135, %s151
    %p153 = scmp.eq.s32.totalorder %s17, 0
    %p154 = por %p152, %p153
    %p155 = scmp.le.s32.totalorder 1, %s11
    %p156 = scmp.lt.s32.totalorder %s11, 3
    %p157 = pnand %p155, %p156
    %p158 = pneg %p157
    // Predicated region
    $region9: #{dsc_forward.10} parent=5 // pred_check
      _
    $region10: #{dsc_forward.10} parent=5 // pred_check_branch
      %160 = sbr.rel (%p157) target = $region12
    $region11: #{dsc_forward.10} parent=5 // pred_region
      %s161 = ssub.s32 %s11, 1
      // Predicated region
      $region13: #{dsc_forward.10} parent=11 // pred_check
        %p162 = pneg %p58
      $region14: #{dsc_forward.10} parent=11 // pred_check_branch
        %164 = sbr.rel (%p162) target = $region16
      $region15: #{dsc_forward.10} parent=11 // pred_region
        _
      $region16: #{dsc_forward.10} parent=11 // pred_fallthru
        _
      // Predicated region
      $region17: #{dsc_forward.10} parent=11 // pred_check
        %p165 = pneg %p79
      $region18: #{dsc_forward.10} parent=11 // pred_check_branch
        %167 = sbr.rel (%p165) target = $region20
      $region19: #{dsc_forward.10} parent=11 // pred_region
        _
      $region20: #{dsc_forward.10} parent=11 // pred_fallthru
        _
      // Predicated region
      $region21: #{dsc_forward.10} parent=11 // pred_check
        %p168 = pneg %p100
      $region22: #{dsc_forward.10} parent=11 // pred_check_branch
        %170 = sbr.rel (%p168) target = $region24
      $region23: #{dsc_forward.10} parent=11 // pred_region
        _
      $region24: #{dsc_forward.10} parent=11 // pred_fallthru
        _
      // Predicated region
      $region25: #{dsc_forward.10} parent=11 // pred_check
        %p171 = pneg %p121
      $region26: #{dsc_forward.10} parent=11 // pred_check_branch
        %173 = sbr.rel (%p171) target = $region28
      $region27: #{dsc_forward.10} parent=11 // pred_region
        _
      $region28: #{dsc_forward.10} parent=11 // pred_fallthru
        _
    $region12: #{dsc_forward.10} parent=5 // pred_fallthru
      _
    %p174 = scmp.lt.s32.totalorder %s11, 2
    // Predicated region
    $region29: #{dsc_forward.10} parent=5 // pred_check
      %p175 = pneg %p174
    $region30: #{dsc_forward.10} parent=5 // pred_check_branch
      %177 = sbr.rel (%p175) target = $region32
    $region31: #{dsc_forward.10} parent=5 // pred_region
      // Predicated region
      $region33: #{dsc_forward.10} parent=31 // pred_check
        %p178 = pneg %p31
      $region34: #{dsc_forward.10} parent=31 // pred_check_branch
        %180 = sbr.rel (%p178) target = $region36
      $region35: #{dsc_forward.10} parent=31 // pred_region
        %p181 = scmp.lt.s32.totalorder %s11, 1
        %s182 = scalar_select %p181, %s11, 1
        %s183 = smul.addr %s182, 3
        %s184 = smul.addr %s183, 2
        %s185 = scalar_lea.vmem %s0, %s184
      $region36: #{dsc_forward.10} parent=31 // pred_fallthru
        _
    $region32: #{dsc_forward.10} parent=5 // pred_fallthru
      _
    %p186 = scmp.le.s32.totalorder 1, %s11
    %p187 = scmp.lt.s32.totalorder %s11, 3
    %p188 = pnand %p186, %p187
    %p189 = pneg %p188
    // Predicated region
    $region37: #{dsc_forward.10} parent=5 // pred_check
      _
    $region38: #{dsc_forward.10} parent=5 // pred_check_branch
      %191 = sbr.rel (%p188) target = $region40
    $region39: #{dsc_forward.10} parent=5 // pred_region
      %s192 = ssub.s32 %s11, 1
      %p193 = scmp.lt.s32.totalorder %s16, 1
      %s194 = scalar_select %p193, %s16, 1
      %s195 = smul.addr %s194, 3
      %s196 = smul.addr %s195, 2
      %s197 = scalar_lea.vmem %s0, %s196
      %p198 = pneg %p37
      %p199 = pneg %p34
      %p200 = pneg %p58
      %p201 = pneg %p55
      %p202 = pneg %p79
      %p203 = pneg %p76
      %p204 = pneg %p100
      %p205 = pneg %p97
      %p206 = pneg %p121
      %p207 = pneg %p118
      %p208 = pneg %p147
      %p209 = pneg %p144
      %p210 = scmp.lt.s32.totalorder %s16, 1
      %s211 = scalar_select %p210, %s16, 1
      %s212 = smul.addr %s211, 3
      %s213 = smul.addr %s212, 4
      %s214 = scalar_lea.vmem %s5, %s213
      %p215 = scmp.lt.s32.totalorder %s16, 1
      %s216 = scalar_select %p215, %s16, 1
      %s217 = smul.addr %s216, 3
      %s218 = smul.addr %s217, 2
      %s219 = scalar_lea.vmem %s0, %s218
      %p220 = scmp.lt.s32.totalorder %s16, 1
      %s221 = scalar_select %p220, %s16, 1
      %s222 = smul.addr %s221, 3
      %s223 = smul.addr %s222, 4
      %s224 = scalar_lea.vmem %s5, %s223
      %v226 = vld [vmem:[%s219] sm:$0x3f]
      %v227 = vld [vmem:[%s1] sm:$0x3]
      %s228 = scalar_lea.vmem %s1, 2
      %v229 = vld [vmem:[%s228] sm:$0x3]
      %v231 = vcombine.high %v226, %v226
      %v233 = vunpack.c.l.s4 1983009808
      %v234 = vunpack.c.0.s8 %v233
      %v235 = vlaneseq
      %v236 = vshrl.u32 %v235, 7
      %v237 = vsub.s32 %v234, %v236
      %v238 = vrot.slane %v226, %v237
      %v240 = vunpack.c.l.s4 1983009808
      %v241 = vunpack.c.0.s8 %v240
      %v242 = vlaneseq
      %v243 = vshrl.u32 %v242, 7
      %v244 = vsub.s32 %v241, %v243
      %v245 = vrot.slane %v231, %v244
      %v246 = vcombine.high %v238, %v238
      %247 = vrot.lane.b32.xlu0 %v238, 127
      %v248 = vpop.permute.xlu0 %247
      %249 = vrot.lane.b32.xlu0 %v246, 127
      %v250 = vpop.permute.xlu0 %249
      %251 = vrot.lane.b32.xlu0 %v245, 127
      %v252 = vpop.permute.xlu0 %251
      %vm253 = vcmask 1039360
      %v254 = vsel %vm253, %v248, %v250
      %v255 = vsel %vm253, %v250, %v252
      %vm256 = vcmask 31744
      %v258 = vsel %vm256, %v229, 0
      %vm260 = vcmask 1041408
      %v262 = vsel %vm260, %v254, 0
      %v265 = vsel %vm260, %v255, 0
      %v268 = vsel %vm260, %v252, 0
      %270 = vmatprep.subr.bf16.mxu0 0
      %271 = vmatpush1.bf16.msra.mxu0 0
      %272 = vmatprep.subr.bf16.mxu0 0
      %273 = vmatpush1.bf16.msra.mxu0 0
      %274 = vmatprep.subr.bf16.mxu0 0
      %275 = vmatpush1.bf16.msra.mxu0 0
      %276 = vmatprep.subr.bf16.mxu0 0
      %277 = vmatpush1.bf16.msra.mxu0 0
      %278 = vmatprep.subr.bf16.mxu0 0
      %279 = vmatpush1.bf16.msra.mxu0 0
      %280 = vmatprep.subr.bf16.mxu0 0
      %281 = vmatpush1.bf16.msra.mxu0 0
      %282 = vmatprep.subr.bf16.mxu0 0
      %283 = vmatpush1.bf16.msra.mxu0 0
      %284 = vmatprep.subr.bf16.mxu0 %v265
      %285 = vmatpush1.bf16.msra.mxu0 %v262
      %286 = vmatprep.subr.bf16.mxu0 0
      %287 = vmatpush2.bf16.msra.mxu0 0
      %288 = vmatprep.subr.bf16.mxu0 0
      %289 = vmatpush2.bf16.msra.mxu0 0
      %290 = vmatprep.subr.bf16.mxu0 0
      %291 = vmatpush2.bf16.msra.mxu0 0
      %292 = vmatprep.subr.bf16.mxu0 0
      %293 = vmatpush2.bf16.msra.mxu0 0
      %294 = vmatprep.subr.bf16.mxu0 0
      %295 = vmatpush2.bf16.msra.mxu0 0
      %296 = vmatprep.subr.bf16.mxu0 0
      %297 = vmatpush2.bf16.msra.mxu0 0
      %298 = vmatprep.subr.bf16.mxu0 0
      %299 = vmatpush2.bf16.msra.mxu0 0
      %300 = vmatprep.subr.bf16.mxu0 0
      %301 = vmatpush2.bf16.msra.mxu0 0
      %302 = vmatprep.mubr.bf16.mxu0 0
      %303 = vmatmul.mubr.bf16.gmra.mxu0 %v258
      %v304 = vpop.f32.mrf.mxu0
      %v305 = vadd.f32 0.0, %v304
      %v306 = vpop.f32.mrf.mxu0
      %v307 = vadd.f32 0.0, %v306
      %v308 = vpop.f32.mrf.mxu0
      %v309 = vpop.f32.mrf.mxu0
      %310 = vdwg.mxu0
      %311 = vmatprep.subr.bf16.mxu0 0
      %312 = vmatpush1.bf16.msra.mxu0 0
      %313 = vmatprep.subr.bf16.mxu0 0
      %314 = vmatpush1.bf16.msra.mxu0 0
      %315 = vmatprep.subr.bf16.mxu0 0
      %316 = vmatpush1.bf16.msra.mxu0 0
      %317 = vmatprep.subr.bf16.mxu0 0
      %318 = vmatpush1.bf16.msra.mxu0 0
      %319 = vmatprep.subr.bf16.mxu0 0
      %320 = vmatpush1.bf16.msra.mxu0 0
      %321 = vmatprep.subr.bf16.mxu0 0
      %322 = vmatpush1.bf16.msra.mxu0 0
      %323 = vmatprep.subr.bf16.mxu0 0
      %324 = vmatpush1.bf16.msra.mxu0 0
      %325 = vmatprep.subr.bf16.mxu0 0
      %326 = vmatpush1.bf16.msra.mxu0 %v268
      %327 = vmatprep.subr.bf16.mxu0 0
      %328 = vmatpush2.bf16.msra.mxu0 0
      %329 = vmatprep.subr.bf16.mxu0 0
      %330 = vmatpush2.bf16.msra.mxu0 0
      %331 = vmatprep.subr.bf16.mxu0 0
      %332 = vmatpush2.bf16.msra.mxu0 0
      %333 = vmatprep.subr.bf16.mxu0 0
      %334 = vmatpush2.bf16.msra.mxu0 0
      %335 = vmatprep.subr.bf16.mxu0 0
      %336 = vmatpush2.bf16.msra.mxu0 0
      %337 = vmatprep.subr.bf16.mxu0 0
      %338 = vmatpush2.bf16.msra.mxu0 0
      %339 = vmatprep.subr.bf16.mxu0 0
      %340 = vmatpush2.bf16.msra.mxu0 0
      %341 = vmatprep.subr.bf16.mxu0 0
      %342 = vmatpush2.bf16.msra.mxu0 0
      %343 = vmatprep.mubr.bf16.mxu0 0
      %344 = vmatmul.mubr.bf16.gmra.mxu0 %v258
      %v345 = vpop.f32.mrf.mxu0
      %v346 = vadd.f32 0.0, %v345
      %v347 = vpop.f32.mrf.mxu0
      %v348 = vpop.f32.mrf.mxu0
      %v349 = vpop.f32.mrf.mxu0
      %350 = vdwg.mxu0
      %v352 = vsel %vm256, %v227, 0
      %v355 = vsel %vm260, %v238, 0
      %v358 = vsel %vm260, %v246, 0
      %v361 = vsel %vm260, %v245, 0
      %363 = vmatprep.subr.bf16.mxu0 0
      %364 = vmatpush1.bf16.msra.mxu0 0
      %365 = vmatprep.subr.bf16.mxu0 0
      %366 = vmatpush1.bf16.msra.mxu0 0
      %367 = vmatprep.subr.bf16.mxu0 0
      %368 = vmatpush1.bf16.msra.mxu0 0
      %369 = vmatprep.subr.bf16.mxu0 0
      %370 = vmatpush1.bf16.msra.mxu0 0
      %371 = vmatprep.subr.bf16.mxu0 0
      %372 = vmatpush1.bf16.msra.mxu0 0
      %373 = vmatprep.subr.bf16.mxu0 0
      %374 = vmatpush1.bf16.msra.mxu0 0
      %375 = vmatprep.subr.bf16.mxu0 0
      %376 = vmatpush1.bf16.msra.mxu0 0
      %377 = vmatprep.subr.bf16.mxu0 %v358
      %378 = vmatpush1.bf16.msra.mxu0 %v355
      %379 = vmatprep.subr.bf16.mxu0 0
      %380 = vmatpush2.bf16.msra.mxu0 0
      %381 = vmatprep.subr.bf16.mxu0 0
      %382 = vmatpush2.bf16.msra.mxu0 0
      %383 = vmatprep.subr.bf16.mxu0 0
      %384 = vmatpush2.bf16.msra.mxu0 0
      %385 = vmatprep.subr.bf16.mxu0 0
      %386 = vmatpush2.bf16.msra.mxu0 0
      %387 = vmatprep.subr.bf16.mxu0 0
      %388 = vmatpush2.bf16.msra.mxu0 0
      %389 = vmatprep.subr.bf16.mxu0 0
      %390 = vmatpush2.bf16.msra.mxu0 0
      %391 = vmatprep.subr.bf16.mxu0 0
      %392 = vmatpush2.bf16.msra.mxu0 0
      %393 = vmatprep.subr.bf16.mxu0 0
      %394 = vmatpush2.bf16.msra.mxu0 0
      %395 = vmatprep.mubr.bf16.mxu0 0
      %396 = vmatmul.mubr.bf16.gmra.mxu0 %v352
      %v397 = vpop.f32.mrf.mxu0
      %v398 = vadd.f32 %v305, %v397
      %v399 = vpop.f32.mrf.mxu0
      %v400 = vadd.f32 %v307, %v399
      %v401 = vpop.f32.mrf.mxu0
      %v402 = vpop.f32.mrf.mxu0
      %403 = vdwg.mxu0
      %404 = vmatprep.subr.bf16.mxu0 0
      %405 = vmatpush1.bf16.msra.mxu0 0
      %406 = vmatprep.subr.bf16.mxu0 0
      %407 = vmatpush1.bf16.msra.mxu0 0
      %408 = vmatprep.subr.bf16.mxu0 0
      %409 = vmatpush1.bf16.msra.mxu0 0
      %410 = vmatprep.subr.bf16.mxu0 0
      %411 = vmatpush1.bf16.msra.mxu0 0
      %412 = vmatprep.subr.bf16.mxu0 0
      %413 = vmatpush1.bf16.msra.mxu0 0
      %414 = vmatprep.subr.bf16.mxu0 0
      %415 = vmatpush1.bf16.msra.mxu0 0
      %416 = vmatprep.subr.bf16.mxu0 0
      %417 = vmatpush1.bf16.msra.mxu0 0
      %418 = vmatprep.subr.bf16.mxu0 0
      %419 = vmatpush1.bf16.msra.mxu0 %v361
      %420 = vmatprep.subr.bf16.mxu0 0
      %421 = vmatpush2.bf16.msra.mxu0 0
      %422 = vmatprep.subr.bf16.mxu0 0
      %423 = vmatpush2.bf16.msra.mxu0 0
      %424 = vmatprep.subr.bf16.mxu0 0
      %425 = vmatpush2.bf16.msra.mxu0 0
      %426 = vmatprep.subr.bf16.mxu0 0
      %427 = vmatpush2.bf16.msra.mxu0 0
      %428 = vmatprep.subr.bf16.mxu0 0
      %429 = vmatpush2.bf16.msra.mxu0 0
      %430 = vmatprep.subr.bf16.mxu0 0
      %431 = vmatpush2.bf16.msra.mxu0 0
      %432 = vmatprep.subr.bf16.mxu0 0
      %433 = vmatpush2.bf16.msra.mxu0 0
      %434 = vmatprep.subr.bf16.mxu0 0
      %435 = vmatpush2.bf16.msra.mxu0 0
      %436 = vmatprep.mubr.bf16.mxu0 0
      %437 = vmatmul.mubr.bf16.gmra.mxu0 %v352
      %v438 = vpop.f32.mrf.mxu0
      %v439 = vadd.f32 %v346, %v438
      %v440 = vpop.f32.mrf.mxu0
      %v441 = vpop.f32.mrf.mxu0
      %v442 = vpop.f32.mrf.mxu0
      %443 = vdwg.mxu0
      %v444 = vld [vmem:[%s219] sm:$0x3f]
      %s445 = scalar_lea.vmem %s1, 4
      %v446 = vld [vmem:[%s445] sm:$0x3]
      %v448 = vcombine.high %v444, %v444
      %v450 = vunpack.c.l.s4 1983009808
      %v451 = vunpack.c.0.s8 %v450
      %v452 = vlaneseq
      %v453 = vshrl.u32 %v452, 7
      %v454 = vsub.s32 %v451, %v453
      %v455 = vrot.slane %v444, %v454
      %v457 = vunpack.c.l.s4 1983009808
      %v458 = vunpack.c.0.s8 %v457
      %v459 = vlaneseq
      %v460 = vshrl.u32 %v459, 7
      %v461 = vsub.s32 %v458, %v460
      %v462 = vrot.slane %v448, %v461
      %v463 = vcombine.high %v455, %v455
      %464 = vrot.lane.b32.xlu0 %v455, 126
      %v465 = vpop.permute.xlu0 %464
      %466 = vrot.lane.b32.xlu0 %v463, 126
      %v467 = vpop.permute.xlu0 %466
      %468 = vrot.lane.b32.xlu0 %v462, 126
      %v469 = vpop.permute.xlu0 %468
      %vm470 = vcmask 1031168
      %v471 = vsel %vm470, %v465, %v467
      %v472 = vsel %vm470, %v467, %v469
      %v474 = vsel %vm256, %v446, 0
      %v477 = vsel %vm260, %v471, 0
      %v480 = vsel %vm260, %v472, 0
      %v483 = vsel %vm260, %v469, 0
      %485 = vmatprep.subr.bf16.mxu0 0
      %486 = vmatpush1.bf16.msra.mxu0 0
      %487 = vmatprep.subr.bf16.mxu0 0
      %488 = vmatpush1.bf16.msra.mxu0 0
      %489 = vmatprep.subr.bf16.mxu0 0
      %490 = vmatpush1.bf16.msra.mxu0 0
      %491 = vmatprep.subr.bf16.mxu0 0
      %492 = vmatpush1.bf16.msra.mxu0 0
      %493 = vmatprep.subr.bf16.mxu0 0
      %494 = vmatpush1.bf16.msra.mxu0 0
      %495 = vmatprep.subr.bf16.mxu0 0
      %496 = vmatpush1.bf16.msra.mxu0 0
      %497 = vmatprep.subr.bf16.mxu0 0
      %498 = vmatpush1.bf16.msra.mxu0 0
      %499 = vmatprep.subr.bf16.mxu0 %v480
      %500 = vmatpush1.bf16.msra.mxu0 %v477
      %501 = vmatprep.subr.bf16.mxu0 0
      %502 = vmatpush2.bf16.msra.mxu0 0
      %503 = vmatprep.subr.bf16.mxu0 0
      %504 = vmatpush2.bf16.msra.mxu0 0
      %505 = vmatprep.subr.bf16.mxu0 0
      %506 = vmatpush2.bf16.msra.mxu0 0
      %507 = vmatprep.subr.bf16.mxu0 0
      %508 = vmatpush2.bf16.msra.mxu0 0
      %509 = vmatprep.subr.bf16.mxu0 0
      %510 = vmatpush2.bf16.msra.mxu0 0
      %511 = vmatprep.subr.bf16.mxu0 0
      %512 = vmatpush2.bf16.msra.mxu0 0
      %513 = vmatprep.subr.bf16.mxu0 0
      %514 = vmatpush2.bf16.msra.mxu0 0
      %515 = vmatprep.subr.bf16.mxu0 0
      %516 = vmatpush2.bf16.msra.mxu0 0
      %517 = vmatprep.mubr.bf16.mxu0 0
      %518 = vmatmul.mubr.bf16.gmra.mxu0 %v474
      %v519 = vpop.f32.mrf.mxu0
      %v520 = vadd.f32 0.0, %v519
      %v521 = vpop.f32.mrf.mxu0
      %v522 = vadd.f32 0.0, %v521
      %v523 = vpop.f32.mrf.mxu0
      %v524 = vpop.f32.mrf.mxu0
      %525 = vdwg.mxu0
      %526 = vmatprep.subr.bf16.mxu0 0
      %527 = vmatpush1.bf16.msra.mxu0 0
      %528 = vmatprep.subr.bf16.mxu0 0
      %529 = vmatpush1.bf16.msra.mxu0 0
      %530 = vmatprep.subr.bf16.mxu0 0
      %531 = vmatpush1.bf16.msra.mxu0 0
      %532 = vmatprep.subr.bf16.mxu0 0
      %533 = vmatpush1.bf16.msra.mxu0 0
      %534 = vmatprep.subr.bf16.mxu0 0
      %535 = vmatpush1.bf16.msra.mxu0 0
      %536 = vmatprep.subr.bf16.mxu0 0
      %537 = vmatpush1.bf16.msra.mxu0 0
      %538 = vmatprep.subr.bf16.mxu0 0
      %539 = vmatpush1.bf16.msra.mxu0 0
      %540 = vmatprep.subr.bf16.mxu0 0
      %541 = vmatpush1.bf16.msra.mxu0 %v483
      %542 = vmatprep.subr.bf16.mxu0 0
      %543 = vmatpush2.bf16.msra.mxu0 0
      %544 = vmatprep.subr.bf16.mxu0 0
      %545 = vmatpush2.bf16.msra.mxu0 0
      %546 = vmatprep.subr.bf16.mxu0 0
      %547 = vmatpush2.bf16.msra.mxu0 0
      %548 = vmatprep.subr.bf16.mxu0 0
      %549 = vmatpush2.bf16.msra.mxu0 0
      %550 = vmatprep.subr.bf16.mxu0 0
      %551 = vmatpush2.bf16.msra.mxu0 0
      %552 = vmatprep.subr.bf16.mxu0 0
      %553 = vmatpush2.bf16.msra.mxu0 0
      %554 = vmatprep.subr.bf16.mxu0 0
      %555 = vmatpush2.bf16.msra.mxu0 0
      %556 = vmatprep.subr.bf16.mxu0 0
      %557 = vmatpush2.bf16.msra.mxu0 0
      %558 = vmatprep.mubr.bf16.mxu0 0
      %559 = vmatmul.mubr.bf16.gmra.mxu0 %v474
      %v560 = vpop.f32.mrf.mxu0
      %v561 = vadd.f32 0.0, %v560
      %v562 = vpop.f32.mrf.mxu0
      %v563 = vpop.f32.mrf.mxu0
      %v564 = vpop.f32.mrf.mxu0
      %565 = vdwg.mxu0
      %v566 = vadd.f32 %v398, %v520
      %v567 = vadd.f32 %v400, %v522
      %v568 = vadd.f32 %v439, %v561
      %v569 = vld [vmem:[%s219] sm:$0x3f]
      %s570 = scalar_lea.vmem %s1, 6
      %v571 = vld [vmem:[%s570] sm:$0x3]
      %v573 = vcombine.high %v569, %v569
      %v575 = vunpack.c.l.s4 1983009808
      %v576 = vunpack.c.0.s8 %v575
      %v577 = vlaneseq
      %v578 = vshrl.u32 %v577, 7
      %v579 = vsub.s32 %v576, %v578
      %v580 = vrot.slane %v569, %v579
      %v582 = vunpack.c.l.s4 1983009808
      %v583 = vunpack.c.0.s8 %v582
      %v584 = vlaneseq
      %v585 = vshrl.u32 %v584, 7
      %v586 = vsub.s32 %v583, %v585
      %v587 = vrot.slane %v573, %v586
      %v588 = vcombine.high %v580, %v580
      %589 = vrot.lane.b32.xlu0 %v580, 110
      %v590 = vpop.permute.xlu0 %589
      %591 = vrot.lane.b32.xlu0 %v588, 110
      %v592 = vpop.permute.xlu0 %591
      %593 = vrot.lane.b32.xlu0 %v587, 110
      %v594 = vpop.permute.xlu0 %593
      %vm595 = vcmask 900096
      %v596 = vsel %vm595, %v590, %v592
      %v597 = vsel %vm595, %v592, %v594
      %v599 = vsel %vm256, %v571, 0
      %v602 = vsel %vm260, %v596, 0
      %v605 = vsel %vm260, %v597, 0
      %v608 = vsel %vm260, %v594, 0
      %610 = vmatprep.subr.bf16.mxu0 0
      %611 = vmatpush1.bf16.msra.mxu0 0
      %612 = vmatprep.subr.bf16.mxu0 0
      %613 = vmatpush1.bf16.msra.mxu0 0
      %614 = vmatprep.subr.bf16.mxu0 0
      %615 = vmatpush1.bf16.msra.mxu0 0
      %616 = vmatprep.subr.bf16.mxu0 0
      %617 = vmatpush1.bf16.msra.mxu0 0
      %618 = vmatprep.subr.bf16.mxu0 0
      %619 = vmatpush1.bf16.msra.mxu0 0
      %620 = vmatprep.subr.bf16.mxu0 0
      %621 = vmatpush1.bf16.msra.mxu0 0
      %622 = vmatprep.subr.bf16.mxu0 0
      %623 = vmatpush1.bf16.msra.mxu0 0
      %624 = vmatprep.subr.bf16.mxu0 %v605
      %625 = vmatpush1.bf16.msra.mxu0 %v602
      %626 = vmatprep.subr.bf16.mxu0 0
      %627 = vmatpush2.bf16.msra.mxu0 0
      %628 = vmatprep.subr.bf16.mxu0 0
      %629 = vmatpush2.bf16.msra.mxu0 0
      %630 = vmatprep.subr.bf16.mxu0 0
      %631 = vmatpush2.bf16.msra.mxu0 0
      %632 = vmatprep.subr.bf16.mxu0 0
      %633 = vmatpush2.bf16.msra.mxu0 0
      %634 = vmatprep.subr.bf16.mxu0 0
      %635 = vmatpush2.bf16.msra.mxu0 0
      %636 = vmatprep.subr.bf16.mxu0 0
      %637 = vmatpush2.bf16.msra.mxu0 0
      %638 = vmatprep.subr.bf16.mxu0 0
      %639 = vmatpush2.bf16.msra.mxu0 0
      %640 = vmatprep.subr.bf16.mxu0 0
      %641 = vmatpush2.bf16.msra.mxu0 0
      %642 = vmatprep.mubr.bf16.mxu0 0
      %643 = vmatmul.mubr.bf16.gmra.mxu0 %v599
      %v644 = vpop.f32.mrf.mxu0
      %v645 = vadd.f32 0.0, %v644
      %v646 = vpop.f32.mrf.mxu0
      %v647 = vadd.f32 0.0, %v646
      %v648 = vpop.f32.mrf.mxu0
      %v649 = vpop.f32.mrf.mxu0
      %650 = vdwg.mxu0
      %651 = vmatprep.subr.bf16.mxu0 0
      %652 = vmatpush1.bf16.msra.mxu0 0
      %653 = vmatprep.subr.bf16.mxu0 0
      %654 = vmatpush1.bf16.msra.mxu0 0
      %655 = vmatprep.subr.bf16.mxu0 0
      %656 = vmatpush1.bf16.msra.mxu0 0
      %657 = vmatprep.subr.bf16.mxu0 0
      %658 = vmatpush1.bf16.msra.mxu0 0
      %659 = vmatprep.subr.bf16.mxu0 0
      %660 = vmatpush1.bf16.msra.mxu0 0
      %661 = vmatprep.subr.bf16.mxu0 0
      %662 = vmatpush1.bf16.msra.mxu0 0
      %663 = vmatprep.subr.bf16.mxu0 0
      %664 = vmatpush1.bf16.msra.mxu0 0
      %665 = vmatprep.subr.bf16.mxu0 0
      %666 = vmatpush1.bf16.msra.mxu0 %v608
      %667 = vmatprep.subr.bf16.mxu0 0
      %668 = vmatpush2.bf16.msra.mxu0 0
      %669 = vmatprep.subr.bf16.mxu0 0
      %670 = vmatpush2.bf16.msra.mxu0 0
      %671 = vmatprep.subr.bf16.mxu0 0
      %672 = vmatpush2.bf16.msra.mxu0 0
      %673 = vmatprep.subr.bf16.mxu0 0
      %674 = vmatpush2.bf16.msra.mxu0 0
      %675 = vmatprep.subr.bf16.mxu0 0
      %676 = vmatpush2.bf16.msra.mxu0 0
      %677 = vmatprep.subr.bf16.mxu0 0
      %678 = vmatpush2.bf16.msra.mxu0 0
      %679 = vmatprep.subr.bf16.mxu0 0
      %680 = vmatpush2.bf16.msra.mxu0 0
      %681 = vmatprep.subr.bf16.mxu0 0
      %682 = vmatpush2.bf16.msra.mxu0 0
      %683 = vmatprep.mubr.bf16.mxu0 0
      %684 = vmatmul.mubr.bf16.gmra.mxu0 %v599
      %v685 = vpop.f32.mrf.mxu0
      %v686 = vadd.f32 0.0, %v685
      %v687 = vpop.f32.mrf.mxu0
      %v688 = vpop.f32.mrf.mxu0
      %v689 = vpop.f32.mrf.mxu0
      %690 = vdwg.mxu0
      %v691 = vadd.f32 %v566, %v645
      %v692 = vadd.f32 %v567, %v647
      %v693 = vadd.f32 %v568, %v686
      %v694 = vld [vmem:[%s219] sm:$0x3f]
      %s695 = scalar_lea.vmem %s1, 8
      %v696 = vld [vmem:[%s695] sm:$0x3]
      %v698 = vcombine.high %v694, %v694
      %v700 = vunpack.c.l.s4 1983009808
      %v701 = vunpack.c.0.s8 %v700
      %v702 = vlaneseq
      %v703 = vshrl.u32 %v702, 7
      %v704 = vsub.s32 %v701, %v703
      %v705 = vrot.slane %v694, %v704
      %v707 = vunpack.c.l.s4 1983009808
      %v708 = vunpack.c.0.s8 %v707
      %v709 = vlaneseq
      %v710 = vshrl.u32 %v709, 7
      %v711 = vsub.s32 %v708, %v710
      %v712 = vrot.slane %v698, %v711
      %v713 = vcombine.high %v705, %v705
      %714 = vrot.lane.b32.xlu0 %v705, 109
      %v715 = vpop.permute.xlu0 %714
      %716 = vrot.lane.b32.xlu0 %v713, 109
      %v717 = vpop.permute.xlu0 %716
      %718 = vrot.lane.b32.xlu0 %v712, 109
      %v719 = vpop.permute.xlu0 %718
      %vm720 = vcmask 891904
      %v721 = vsel %vm720, %v715, %v717
      %v722 = vsel %vm720, %v717, %v719
      %v724 = vsel %vm256, %v696, 0
      %v727 = vsel %vm260, %v721, 0
      %v730 = vsel %vm260, %v722, 0
      %v733 = vsel %vm260, %v719, 0
      %735 = vmatprep.subr.bf16.mxu0 0
      %736 = vmatpush1.bf16.msra.mxu0 0
      %737 = vmatprep.subr.bf16.mxu0 0
      %738 = vmatpush1.bf16.msra.mxu0 0
      %739 = vmatprep.subr.bf16.mxu0 0
      %740 = vmatpush1.bf16.msra.mxu0 0
      %741 = vmatprep.subr.bf16.mxu0 0
      %742 = vmatpush1.bf16.msra.mxu0 0
      %743 = vmatprep.subr.bf16.mxu0 0
      %744 = vmatpush1.bf16.msra.mxu0 0
      %745 = vmatprep.subr.bf16.mxu0 0
      %746 = vmatpush1.bf16.msra.mxu0 0
      %747 = vmatprep.subr.bf16.mxu0 0
      %748 = vmatpush1.bf16.msra.mxu0 0
      %749 = vmatprep.subr.bf16.mxu0 %v730
      %750 = vmatpush1.bf16.msra.mxu0 %v727
      %751 = vmatprep.subr.bf16.mxu0 0
      %752 = vmatpush2.bf16.msra.mxu0 0
      %753 = vmatprep.subr.bf16.mxu0 0
      %754 = vmatpush2.bf16.msra.mxu0 0
      %755 = vmatprep.subr.bf16.mxu0 0
      %756 = vmatpush2.bf16.msra.mxu0 0
      %757 = vmatprep.subr.bf16.mxu0 0
      %758 = vmatpush2.bf16.msra.mxu0 0
      %759 = vmatprep.subr.bf16.mxu0 0
      %760 = vmatpush2.bf16.msra.mxu0 0
      %761 = vmatprep.subr.bf16.mxu0 0
      %762 = vmatpush2.bf16.msra.mxu0 0
      %763 = vmatprep.subr.bf16.mxu0 0
      %764 = vmatpush2.bf16.msra.mxu0 0
      %765 = vmatprep.subr.bf16.mxu0 0
      %766 = vmatpush2.bf16.msra.mxu0 0
      %767 = vmatprep.mubr.bf16.mxu0 0
      %768 = vmatmul.mubr.bf16.gmra.mxu0 %v724
      %v769 = vpop.f32.mrf.mxu0
      %v770 = vadd.f32 0.0, %v769
      %v771 = vpop.f32.mrf.mxu0
      %v772 = vadd.f32 0.0, %v771
      %v773 = vpop.f32.mrf.mxu0
      %v774 = vpop.f32.mrf.mxu0
      %775 = vdwg.mxu0
      %776 = vmatprep.subr.bf16.mxu0 0
      %777 = vmatpush1.bf16.msra.mxu0 0
      %778 = vmatprep.subr.bf16.mxu0 0
      %779 = vmatpush1.bf16.msra.mxu0 0
      %780 = vmatprep.subr.bf16.mxu0 0
      %781 = vmatpush1.bf16.msra.mxu0 0
      %782 = vmatprep.subr.bf16.mxu0 0
      %783 = vmatpush1.bf16.msra.mxu0 0
      %784 = vmatprep.subr.bf16.mxu0 0
      %785 = vmatpush1.bf16.msra.mxu0 0
      %786 = vmatprep.subr.bf16.mxu0 0
      %787 = vmatpush1.bf16.msra.mxu0 0
      %788 = vmatprep.subr.bf16.mxu0 0
      %789 = vmatpush1.bf16.msra.mxu0 0
      %790 = vmatprep.subr.bf16.mxu0 0
      %791 = vmatpush1.bf16.msra.mxu0 %v733
      %792 = vmatprep.subr.bf16.mxu0 0
      %793 = vmatpush2.bf16.msra.mxu0 0
      %794 = vmatprep.subr.bf16.mxu0 0
      %795 = vmatpush2.bf16.msra.mxu0 0
      %796 = vmatprep.subr.bf16.mxu0 0
      %797 = vmatpush2.bf16.msra.mxu0 0
      %798 = vmatprep.subr.bf16.mxu0 0
      %799 = vmatpush2.bf16.msra.mxu0 0
      %800 = vmatprep.subr.bf16.mxu0 0
      %801 = vmatpush2.bf16.msra.mxu0 0
      %802 = vmatprep.subr.bf16.mxu0 0
      %803 = vmatpush2.bf16.msra.mxu0 0
      %804 = vmatprep.subr.bf16.mxu0 0
      %805 = vmatpush2.bf16.msra.mxu0 0
      %806 = vmatprep.subr.bf16.mxu0 0
      %807 = vmatpush2.bf16.msra.mxu0 0
      %808 = vmatprep.mubr.bf16.mxu0 0
      %809 = vmatmul.mubr.bf16.gmra.mxu0 %v724
      %v810 = vpop.f32.mrf.mxu0
      %v811 = vadd.f32 0.0, %v810
      %v812 = vpop.f32.mrf.mxu0
      %v813 = vpop.f32.mrf.mxu0
      %v814 = vpop.f32.mrf.mxu0
      %815 = vdwg.mxu0
      %v816 = vadd.f32 %v691, %v770
      %v817 = vadd.f32 %v692, %v772
      %v818 = vadd.f32 %v693, %v811
      %v819 = vld [vmem:[%s219] sm:$0x3f]
      %s820 = scalar_lea.vmem %s1, 10
      %v821 = vld [vmem:[%s820] sm:$0x3]
      %v823 = vcombine.high %v819, %v819
      %v825 = vunpack.c.l.s4 1983009808
      %v826 = vunpack.c.0.s8 %v825
      %v827 = vlaneseq
      %v828 = vshrl.u32 %v827, 7
      %v829 = vsub.s32 %v826, %v828
      %v830 = vrot.slane %v819, %v829
      %v832 = vunpack.c.l.s4 1983009808
      %v833 = vunpack.c.0.s8 %v832
      %v834 = vlaneseq
      %v835 = vshrl.u32 %v834, 7
      %v836 = vsub.s32 %v833, %v835
      %v837 = vrot.slane %v823, %v836
      %v838 = vcombine.high %v830, %v830
      %839 = vrot.lane.b32.xlu0 %v830, 108
      %v840 = vpop.permute.xlu0 %839
      %841 = vrot.lane.b32.xlu0 %v838, 108
      %v842 = vpop.permute.xlu0 %841
      %843 = vrot.lane.b32.xlu0 %v837, 108
      %v844 = vpop.permute.xlu0 %843
      %vm845 = vcmask 883712
      %v846 = vsel %vm845, %v840, %v842
      %v847 = vsel %vm845, %v842, %v844
      %v849 = vsel %vm256, %v821, 0
      %v852 = vsel %vm260, %v846, 0
      %v855 = vsel %vm260, %v847, 0
      %v858 = vsel %vm260, %v844, 0
      %860 = vmatprep.subr.bf16.mxu0 0
      %861 = vmatpush1.bf16.msra.mxu0 0
      %862 = vmatprep.subr.bf16.mxu0 0
      %863 = vmatpush1.bf16.msra.mxu0 0
      %864 = vmatprep.subr.bf16.mxu0 0
      %865 = vmatpush1.bf16.msra.mxu0 0
      %866 = vmatprep.subr.bf16.mxu0 0
      %867 = vmatpush1.bf16.msra.mxu0 0
      %868 = vmatprep.subr.bf16.mxu0 0
      %869 = vmatpush1.bf16.msra.mxu0 0
      %870 = vmatprep.subr.bf16.mxu0 0
      %871 = vmatpush1.bf16.msra.mxu0 0
      %872 = vmatprep.subr.bf16.mxu0 0
      %873 = vmatpush1.bf16.msra.mxu0 0
      %874 = vmatprep.subr.bf16.mxu0 %v855
      %875 = vmatpush1.bf16.msra.mxu0 %v852
      %876 = vmatprep.subr.bf16.mxu0 0
      %877 = vmatpush2.bf16.msra.mxu0 0
      %878 = vmatprep.subr.bf16.mxu0 0
      %879 = vmatpush2.bf16.msra.mxu0 0
      %880 = vmatprep.subr.bf16.mxu0 0
      %881 = vmatpush2.bf16.msra.mxu0 0
      %882 = vmatprep.subr.bf16.mxu0 0
      %883 = vmatpush2.bf16.msra.mxu0 0
      %884 = vmatprep.subr.bf16.mxu0 0
      %885 = vmatpush2.bf16.msra.mxu0 0
      %886 = vmatprep.subr.bf16.mxu0 0
      %887 = vmatpush2.bf16.msra.mxu0 0
      %888 = vmatprep.subr.bf16.mxu0 0
      %889 = vmatpush2.bf16.msra.mxu0 0
      %890 = vmatprep.subr.bf16.mxu0 0
      %891 = vmatpush2.bf16.msra.mxu0 0
      %892 = vmatprep.mubr.bf16.mxu0 0
      %893 = vmatmul.mubr.bf16.gmra.mxu0 %v849
      %v894 = vpop.f32.mrf.mxu0
      %v895 = vadd.f32 0.0, %v894
      %v896 = vpop.f32.mrf.mxu0
      %v897 = vadd.f32 0.0, %v896
      %v898 = vpop.f32.mrf.mxu0
      %v899 = vpop.f32.mrf.mxu0
      %900 = vdwg.mxu0
      %901 = vmatprep.subr.bf16.mxu0 0
      %902 = vmatpush1.bf16.msra.mxu0 0
      %903 = vmatprep.subr.bf16.mxu0 0
      %904 = vmatpush1.bf16.msra.mxu0 0
      %905 = vmatprep.subr.bf16.mxu0 0
      %906 = vmatpush1.bf16.msra.mxu0 0
      %907 = vmatprep.subr.bf16.mxu0 0
      %908 = vmatpush1.bf16.msra.mxu0 0
      %909 = vmatprep.subr.bf16.mxu0 0
      %910 = vmatpush1.bf16.msra.mxu0 0
      %911 = vmatprep.subr.bf16.mxu0 0
      %912 = vmatpush1.bf16.msra.mxu0 0
      %913 = vmatprep.subr.bf16.mxu0 0
      %914 = vmatpush1.bf16.msra.mxu0 0
      %915 = vmatprep.subr.bf16.mxu0 0
      %916 = vmatpush1.bf16.msra.mxu0 %v858
      %917 = vmatprep.subr.bf16.mxu0 0
      %918 = vmatpush2.bf16.msra.mxu0 0
      %919 = vmatprep.subr.bf16.mxu0 0
      %920 = vmatpush2.bf16.msra.mxu0 0
      %921 = vmatprep.subr.bf16.mxu0 0
      %922 = vmatpush2.bf16.msra.mxu0 0
      %923 = vmatprep.subr.bf16.mxu0 0
      %924 = vmatpush2.bf16.msra.mxu0 0
      %925 = vmatprep.subr.bf16.mxu0 0
      %926 = vmatpush2.bf16.msra.mxu0 0
      %927 = vmatprep.subr.bf16.mxu0 0
      %928 = vmatpush2.bf16.msra.mxu0 0
      %929 = vmatprep.subr.bf16.mxu0 0
      %930 = vmatpush2.bf16.msra.mxu0 0
      %931 = vmatprep.subr.bf16.mxu0 0
      %932 = vmatpush2.bf16.msra.mxu0 0
      %933 = vmatprep.mubr.bf16.mxu0 0
      %934 = vmatmul.mubr.bf16.gmra.mxu0 %v849
      %v935 = vpop.f32.mrf.mxu0
      %v936 = vadd.f32 0.0, %v935
      %v937 = vpop.f32.mrf.mxu0
      %v938 = vpop.f32.mrf.mxu0
      %v939 = vpop.f32.mrf.mxu0
      %940 = vdwg.mxu0
      %v941 = vadd.f32 %v816, %v895
      %v942 = vadd.f32 %v817, %v897
      %v943 = vadd.f32 %v818, %v936
      %v944 = vld [vmem:[%s219] sm:$0x3f]
      %s945 = scalar_lea.vmem %s1, 12
      %v946 = vld [vmem:[%s945] sm:$0x3]
      %v948 = vcombine.high %v944, %v944
      %v950 = vunpack.c.l.s4 1983009808
      %v951 = vunpack.c.0.s8 %v950
      %v952 = vlaneseq
      %v953 = vshrl.u32 %v952, 7
      %v954 = vsub.s32 %v951, %v953
      %v955 = vrot.slane %v944, %v954
      %v957 = vunpack.c.l.s4 1983009808
      %v958 = vunpack.c.0.s8 %v957
      %v959 = vlaneseq
      %v960 = vshrl.u32 %v959, 7
      %v961 = vsub.s32 %v958, %v960
      %v962 = vrot.slane %v948, %v961
      %v963 = vcombine.high %v955, %v955
      %964 = vrot.lane.b32.xlu0 %v955, 92
      %v965 = vpop.permute.xlu0 %964
      %966 = vrot.lane.b32.xlu0 %v963, 92
      %v967 = vpop.permute.xlu0 %966
      %968 = vrot.lane.b32.xlu0 %v962, 92
      %v969 = vpop.permute.xlu0 %968
      %vm970 = vcmask 752640
      %v971 = vsel %vm970, %v965, %v967
      %v972 = vsel %vm970, %v967, %v969
      %v974 = vsel %vm256, %v946, 0
      %v977 = vsel %vm260, %v971, 0
      %v980 = vsel %vm260, %v972, 0
      %v983 = vsel %vm260, %v969, 0
      %985 = vmatprep.subr.bf16.mxu0 0
      %986 = vmatpush1.bf16.msra.mxu0 0
      %987 = vmatprep.subr.bf16.mxu0 0
      %988 = vmatpush1.bf16.msra.mxu0 0
      %989 = vmatprep.subr.bf16.mxu0 0
      %990 = vmatpush1.bf16.msra.mxu0 0
      %991 = vmatprep.subr.bf16.mxu0 0
      %992 = vmatpush1.bf16.msra.mxu0 0
      %993 = vmatprep.subr.bf16.mxu0 0
      %994 = vmatpush1.bf16.msra.mxu0 0
      %995 = vmatprep.subr.bf16.mxu0 0
      %996 = vmatpush1.bf16.msra.mxu0 0
      %997 = vmatprep.subr.bf16.mxu0 0
      %998 = vmatpush1.bf16.msra.mxu0 0
      %999 = vmatprep.subr.bf16.mxu0 %v980
      %1000 = vmatpush1.bf16.msra.mxu0 %v977
      %1001 = vmatprep.subr.bf16.mxu0 0
      %1002 = vmatpush2.bf16.msra.mxu0 0
      %1003 = vmatprep.subr.bf16.mxu0 0
      %1004 = vmatpush2.bf16.msra.mxu0 0
      %1005 = vmatprep.subr.bf16.mxu0 0
      %1006 = vmatpush2.bf16.msra.mxu0 0
      %1007 = vmatprep.subr.bf16.mxu0 0
      %1008 = vmatpush2.bf16.msra.mxu0 0
      %1009 = vmatprep.subr.bf16.mxu0 0
      %1010 = vmatpush2.bf16.msra.mxu0 0
      %1011 = vmatprep.subr.bf16.mxu0 0
      %1012 = vmatpush2.bf16.msra.mxu0 0
      %1013 = vmatprep.subr.bf16.mxu0 0
      %1014 = vmatpush2.bf16.msra.mxu0 0
      %1015 = vmatprep.subr.bf16.mxu0 0
      %1016 = vmatpush2.bf16.msra.mxu0 0
      %1017 = vmatprep.mubr.bf16.mxu0 0
      %1018 = vmatmul.mubr.bf16.gmra.mxu0 %v974
      %v1019 = vpop.f32.mrf.mxu0
      %v1020 = vadd.f32 0.0, %v1019
      %v1021 = vpop.f32.mrf.mxu0
      %v1022 = vadd.f32 0.0, %v1021
      %v1023 = vpop.f32.mrf.mxu0
      %v1024 = vpop.f32.mrf.mxu0
      %1025 = vdwg.mxu0
      %1026 = vmatprep.subr.bf16.mxu0 0
      %1027 = vmatpush1.bf16.msra.mxu0 0
      %1028 = vmatprep.subr.bf16.mxu0 0
      %1029 = vmatpush1.bf16.msra.mxu0 0
      %1030 = vmatprep.subr.bf16.mxu0 0
      %1031 = vmatpush1.bf16.msra.mxu0 0
      %1032 = vmatprep.subr.bf16.mxu0 0
      %1033 = vmatpush1.bf16.msra.mxu0 0
      %1034 = vmatprep.subr.bf16.mxu0 0
      %1035 = vmatpush1.bf16.msra.mxu0 0
      %1036 = vmatprep.subr.bf16.mxu0 0
      %1037 = vmatpush1.bf16.msra.mxu0 0
      %1038 = vmatprep.subr.bf16.mxu0 0
      %1039 = vmatpush1.bf16.msra.mxu0 0
      %1040 = vmatprep.subr.bf16.mxu0 0
      %1041 = vmatpush1.bf16.msra.mxu0 %v983
      %1042 = vmatprep.subr.bf16.mxu0 0
      %1043 = vmatpush2.bf16.msra.mxu0 0
      %1044 = vmatprep.subr.bf16.mxu0 0
      %1045 = vmatpush2.bf16.msra.mxu0 0
      %1046 = vmatprep.subr.bf16.mxu0 0
      %1047 = vmatpush2.bf16.msra.mxu0 0
      %1048 = vmatprep.subr.bf16.mxu0 0
      %1049 = vmatpush2.bf16.msra.mxu0 0
      %1050 = vmatprep.subr.bf16.mxu0 0
      %1051 = vmatpush2.bf16.msra.mxu0 0
      %1052 = vmatprep.subr.bf16.mxu0 0
      %1053 = vmatpush2.bf16.msra.mxu0 0
      %1054 = vmatprep.subr.bf16.mxu0 0
      %1055 = vmatpush2.bf16.msra.mxu0 0
      %1056 = vmatprep.subr.bf16.mxu0 0
      %1057 = vmatpush2.bf16.msra.mxu0 0
      %1058 = vmatprep.mubr.bf16.mxu0 0
      %1059 = vmatmul.mubr.bf16.gmra.mxu0 %v974
      %v1060 = vpop.f32.mrf.mxu0
      %v1061 = vadd.f32 0.0, %v1060
      %v1062 = vpop.f32.mrf.mxu0
      %v1063 = vpop.f32.mrf.mxu0
      %v1064 = vpop.f32.mrf.mxu0
      %1065 = vdwg.mxu0
      %v1066 = vadd.f32 %v941, %v1020
      %v1067 = vadd.f32 %v942, %v1022
      %v1068 = vadd.f32 %v943, %v1061
      %v1069 = vld [vmem:[%s219] sm:$0x3f]
      %s1070 = scalar_lea.vmem %s1, 14
      %v1071 = vld [vmem:[%s1070] sm:$0x3]
      %v1073 = vcombine.high %v1069, %v1069
      %v1075 = vunpack.c.l.s4 1983009808
      %v1076 = vunpack.c.0.s8 %v1075
      %v1077 = vlaneseq
      %v1078 = vshrl.u32 %v1077, 7
      %v1079 = vsub.s32 %v1076, %v1078
      %v1080 = vrot.slane %v1069, %v1079
      %v1082 = vunpack.c.l.s4 1983009808
      %v1083 = vunpack.c.0.s8 %v1082
      %v1084 = vlaneseq
      %v1085 = vshrl.u32 %v1084, 7
      %v1086 = vsub.s32 %v1083, %v1085
      %v1087 = vrot.slane %v1073, %v1086
      %v1088 = vcombine.high %v1080, %v1080
      %1089 = vrot.lane.b32.xlu0 %v1080, 91
      %v1090 = vpop.permute.xlu0 %1089
      %1091 = vrot.lane.b32.xlu0 %v1088, 91
      %v1092 = vpop.permute.xlu0 %1091
      %1093 = vrot.lane.b32.xlu0 %v1087, 91
      %v1094 = vpop.permute.xlu0 %1093
      %vm1095 = vcmask 744448
      %v1096 = vsel %vm1095, %v1090, %v1092
      %v1097 = vsel %vm1095, %v1092, %v1094
      %v1099 = vsel %vm256, %v1071, 0
      %v1102 = vsel %vm260, %v1096, 0
      %v1105 = vsel %vm260, %v1097, 0
      %v1108 = vsel %vm260, %v1094, 0
      %1110 = vmatprep.subr.bf16.mxu0 0
      %1111 = vmatpush1.bf16.msra.mxu0 0
      %1112 = vmatprep.subr.bf16.mxu0 0
      %1113 = vmatpush1.bf16.msra.mxu0 0
      %1114 = vmatprep.subr.bf16.mxu0 0
      %1115 = vmatpush1.bf16.msra.mxu0 0
      %1116 = vmatprep.subr.bf16.mxu0 0
      %1117 = vmatpush1.bf16.msra.mxu0 0
      %1118 = vmatprep.subr.bf16.mxu0 0
      %1119 = vmatpush1.bf16.msra.mxu0 0
      %1120 = vmatprep.subr.bf16.mxu0 0
      %1121 = vmatpush1.bf16.msra.mxu0 0
      %1122 = vmatprep.subr.bf16.mxu0 0
      %1123 = vmatpush1.bf16.msra.mxu0 0
      %1124 = vmatprep.subr.bf16.mxu0 %v1105
      %1125 = vmatpush1.bf16.msra.mxu0 %v1102
      %1126 = vmatprep.subr.bf16.mxu0 0
      %1127 = vmatpush2.bf16.msra.mxu0 0
      %1128 = vmatprep.subr.bf16.mxu0 0
      %1129 = vmatpush2.bf16.msra.mxu0 0
      %1130 = vmatprep.subr.bf16.mxu0 0
      %1131 = vmatpush2.bf16.msra.mxu0 0
      %1132 = vmatprep.subr.bf16.mxu0 0
      %1133 = vmatpush2.bf16.msra.mxu0 0
      %1134 = vmatprep.subr.bf16.mxu0 0
      %1135 = vmatpush2.bf16.msra.mxu0 0
      %1136 = vmatprep.subr.bf16.mxu0 0
      %1137 = vmatpush2.bf16.msra.mxu0 0
      %1138 = vmatprep.subr.bf16.mxu0 0
      %1139 = vmatpush2.bf16.msra.mxu0 0
      %1140 = vmatprep.subr.bf16.mxu0 0
      %1141 = vmatpush2.bf16.msra.mxu0 0
      %1142 = vmatprep.mubr.bf16.mxu0 0
      %1143 = vmatmul.mubr.bf16.gmra.mxu0 %v1099
      %v1144 = vpop.f32.mrf.mxu0
      %v1145 = vadd.f32 0.0, %v1144
      %v1146 = vpop.f32.mrf.mxu0
      %v1147 = vadd.f32 0.0, %v1146
      %v1148 = vpop.f32.mrf.mxu0
      %v1149 = vpop.f32.mrf.mxu0
      %1150 = vdwg.mxu0
      %1151 = vmatprep.subr.bf16.mxu0 0
      %1152 = vmatpush1.bf16.msra.mxu0 0
      %1153 = vmatprep.subr.bf16.mxu0 0
      %1154 = vmatpush1.bf16.msra.mxu0 0
      %1155 = vmatprep.subr.bf16.mxu0 0
      %1156 = vmatpush1.bf16.msra.mxu0 0
      %1157 = vmatprep.subr.bf16.mxu0 0
      %1158 = vmatpush1.bf16.msra.mxu0 0
      %1159 = vmatprep.subr.bf16.mxu0 0
      %1160 = vmatpush1.bf16.msra.mxu0 0
      %1161 = vmatprep.subr.bf16.mxu0 0
      %1162 = vmatpush1.bf16.msra.mxu0 0
      %1163 = vmatprep.subr.bf16.mxu0 0
      %1164 = vmatpush1.bf16.msra.mxu0 0
      %1165 = vmatprep.subr.bf16.mxu0 0
      %1166 = vmatpush1.bf16.msra.mxu0 %v1108
      %1167 = vmatprep.subr.bf16.mxu0 0
      %1168 = vmatpush2.bf16.msra.mxu0 0
      %1169 = vmatprep.subr.bf16.mxu0 0
      %1170 = vmatpush2.bf16.msra.mxu0 0
      %1171 = vmatprep.subr.bf16.mxu0 0
      %1172 = vmatpush2.bf16.msra.mxu0 0
      %1173 = vmatprep.subr.bf16.mxu0 0
      %1174 = vmatpush2.bf16.msra.mxu0 0
      %1175 = vmatprep.subr.bf16.mxu0 0
      %1176 = vmatpush2.bf16.msra.mxu0 0
      %1177 = vmatprep.subr.bf16.mxu0 0
      %1178 = vmatpush2.bf16.msra.mxu0 0
      %1179 = vmatprep.subr.bf16.mxu0 0
      %1180 = vmatpush2.bf16.msra.mxu0 0
      %1181 = vmatprep.subr.bf16.mxu0 0
      %1182 = vmatpush2.bf16.msra.mxu0 0
      %1183 = vmatprep.mubr.bf16.mxu0 0
      %1184 = vmatmul.mubr.bf16.gmra.mxu0 %v1099
      %v1185 = vpop.f32.mrf.mxu0
      %v1186 = vadd.f32 0.0, %v1185
      %v1187 = vpop.f32.mrf.mxu0
      %v1188 = vpop.f32.mrf.mxu0
      %v1189 = vpop.f32.mrf.mxu0
      %1190 = vdwg.mxu0
      %v1191 = vadd.f32 %v1066, %v1145
      %v1192 = vadd.f32 %v1067, %v1147
      %v1193 = vadd.f32 %v1068, %v1186
      %v1194 = vld [vmem:[%s219] sm:$0x3f]
      %s1195 = scalar_lea.vmem %s1, 16
      %v1196 = vld [vmem:[%s1195] sm:$0x3]
      %v1198 = vcombine.high %v1194, %v1194
      %v1200 = vunpack.c.l.s4 1983009808
      %v1201 = vunpack.c.0.s8 %v1200
      %v1202 = vlaneseq
      %v1203 = vshrl.u32 %v1202, 7
      %v1204 = vsub.s32 %v1201, %v1203
      %v1205 = vrot.slane %v1194, %v1204
      %v1207 = vunpack.c.l.s4 1983009808
      %v1208 = vunpack.c.0.s8 %v1207
      %v1209 = vlaneseq
      %v1210 = vshrl.u32 %v1209, 7
      %v1211 = vsub.s32 %v1208, %v1210
      %v1212 = vrot.slane %v1198, %v1211
      %v1213 = vcombine.high %v1205, %v1205
      %1214 = vrot.lane.b32.xlu0 %v1205, 90
      %v1215 = vpop.permute.xlu0 %1214
      %1216 = vrot.lane.b32.xlu0 %v1213, 90
      %v1217 = vpop.permute.xlu0 %1216
      %1218 = vrot.lane.b32.xlu0 %v1212, 90
      %v1219 = vpop.permute.xlu0 %1218
      %vm1220 = vcmask 736256
      %v1221 = vsel %vm1220, %v1215, %v1217
      %v1222 = vsel %vm1220, %v1217, %v1219
      %v1224 = vsel %vm256, %v1196, 0
      %v1227 = vsel %vm260, %v1221, 0
      %v1230 = vsel %vm260, %v1222, 0
      %v1233 = vsel %vm260, %v1219, 0
      %1235 = vmatprep.subr.bf16.mxu0 0
      %1236 = vmatpush1.bf16.msra.mxu0 0
      %1237 = vmatprep.subr.bf16.mxu0 0
      %1238 = vmatpush1.bf16.msra.mxu0 0
      %1239 = vmatprep.subr.bf16.mxu0 0
      %1240 = vmatpush1.bf16.msra.mxu0 0
      %1241 = vmatprep.subr.bf16.mxu0 0
      %1242 = vmatpush1.bf16.msra.mxu0 0
      %1243 = vmatprep.subr.bf16.mxu0 0
      %1244 = vmatpush1.bf16.msra.mxu0 0
      %1245 = vmatprep.subr.bf16.mxu0 0
      %1246 = vmatpush1.bf16.msra.mxu0 0
      %1247 = vmatprep.subr.bf16.mxu0 0
      %1248 = vmatpush1.bf16.msra.mxu0 0
      %1249 = vmatprep.subr.bf16.mxu0 %v1230
      %1250 = vmatpush1.bf16.msra.mxu0 %v1227
      %1251 = vmatprep.subr.bf16.mxu0 0
      %1252 = vmatpush2.bf16.msra.mxu0 0
      %1253 = vmatprep.subr.bf16.mxu0 0
      %1254 = vmatpush2.bf16.msra.mxu0 0
      %1255 = vmatprep.subr.bf16.mxu0 0
      %1256 = vmatpush2.bf16.msra.mxu0 0
      %1257 = vmatprep.subr.bf16.mxu0 0
      %1258 = vmatpush2.bf16.msra.mxu0 0
      %1259 = vmatprep.subr.bf16.mxu0 0
      %1260 = vmatpush2.bf16.msra.mxu0 0
      %1261 = vmatprep.subr.bf16.mxu0 0
      %1262 = vmatpush2.bf16.msra.mxu0 0
      %1263 = vmatprep.subr.bf16.mxu0 0
      %1264 = vmatpush2.bf16.msra.mxu0 0
      %1265 = vmatprep.subr.bf16.mxu0 0
      %1266 = vmatpush2.bf16.msra.mxu0 0
      %1267 = vmatprep.mubr.bf16.mxu0 0
      %1268 = vmatmul.mubr.bf16.gmra.mxu0 %v1224
      %v1269 = vpop.f32.mrf.mxu0
      %v1270 = vadd.f32 0.0, %v1269
      %v1271 = vpop.f32.mrf.mxu0
      %v1272 = vadd.f32 0.0, %v1271
      %v1273 = vpop.f32.mrf.mxu0
      %v1274 = vpop.f32.mrf.mxu0
      %1275 = vdwg.mxu0
      %1276 = vmatprep.subr.bf16.mxu0 0
      %1277 = vmatpush1.bf16.msra.mxu0 0
      %1278 = vmatprep.subr.bf16.mxu0 0
      %1279 = vmatpush1.bf16.msra.mxu0 0
      %1280 = vmatprep.subr.bf16.mxu0 0
      %1281 = vmatpush1.bf16.msra.mxu0 0
      %1282 = vmatprep.subr.bf16.mxu0 0
      %1283 = vmatpush1.bf16.msra.mxu0 0
      %1284 = vmatprep.subr.bf16.mxu0 0
      %1285 = vmatpush1.bf16.msra.mxu0 0
      %1286 = vmatprep.subr.bf16.mxu0 0
      %1287 = vmatpush1.bf16.msra.mxu0 0
      %1288 = vmatprep.subr.bf16.mxu0 0
      %1289 = vmatpush1.bf16.msra.mxu0 0
      %1290 = vmatprep.subr.bf16.mxu0 0
      %1291 = vmatpush1.bf16.msra.mxu0 %v1233
      %1292 = vmatprep.subr.bf16.mxu0 0
      %1293 = vmatpush2.bf16.msra.mxu0 0
      %1294 = vmatprep.subr.bf16.mxu0 0
      %1295 = vmatpush2.bf16.msra.mxu0 0
      %1296 = vmatprep.subr.bf16.mxu0 0
      %1297 = vmatpush2.bf16.msra.mxu0 0
      %1298 = vmatprep.subr.bf16.mxu0 0
      %1299 = vmatpush2.bf16.msra.mxu0 0
      %1300 = vmatprep.subr.bf16.mxu0 0
      %1301 = vmatpush2.bf16.msra.mxu0 0
      %1302 = vmatprep.subr.bf16.mxu0 0
      %1303 = vmatpush2.bf16.msra.mxu0 0
      %1304 = vmatprep.subr.bf16.mxu0 0
      %1305 = vmatpush2.bf16.msra.mxu0 0
      %1306 = vmatprep.subr.bf16.mxu0 0
      %1307 = vmatpush2.bf16.msra.mxu0 0
      %1308 = vmatprep.mubr.bf16.mxu0 0
      %1309 = vmatmul.mubr.bf16.gmra.mxu0 %v1224
      %v1310 = vpop.f32.mrf.mxu0
      %v1311 = vadd.f32 0.0, %v1310
      %v1312 = vpop.f32.mrf.mxu0
      %v1313 = vpop.f32.mrf.mxu0
      %v1314 = vpop.f32.mrf.mxu0
      %1315 = vdwg.mxu0
      %v1316 = vadd.f32 %v1191, %v1270
      %v1317 = vadd.f32 %v1192, %v1272
      %v1318 = vadd.f32 %v1193, %v1311
      %v1319 = vld [vmem:[%s2] sm:$0xf]
      %1321 = vset.pattern.permute.xlu0 0
      %1322 = vperm.xlu0 %1321, %v1319
      %v1323 = vpop.permute.xlu0 %1322
      %v1325 = vadd.f32 %v1316, %v1323
      %v1326 = vadd.f32 %v1317, %v1323
      %v1327 = vadd.f32 %v1318, %v1323
      %v1328 = vmax.f32 %v1325, 0.0
      %v1329 = vmax.f32 %v1326, 0.0
      %v1330 = vmax.f32 %v1327, 0.0
      %v1331 = vld [vmem:[%s3] sm:$0x3]
      %v1332 = vpack.c.bf16 %v1328, %v1328
      %v1333 = vpack.c.bf16 %v1329, %v1329
      %v1334 = vpack.c.bf16 %v1330, %v1330
      %v1335 = vld [vmem:[%s4] sm:$0xf]
      %1337 = vset.pattern.permute.xlu0 0
      %1338 = vperm.xlu0 %1337, %v1335
      %v1339 = vpop.permute.xlu0 %1338
      %v1342 = vsel %vm256, %v1331, 0
      %v1345 = vsel %vm260, %v1332, 0
      %v1348 = vsel %vm260, %v1333, 0
      %v1351 = vsel %vm260, %v1334, 0
      %1353 = vmatprep.subr.bf16.mxu0 0
      %1354 = vmatpush1.bf16.msra.mxu0 0
      %1355 = vmatprep.subr.bf16.mxu0 0
      %1356 = vmatpush1.bf16.msra.mxu0 0
      %1357 = vmatprep.subr.bf16.mxu0 0
      %1358 = vmatpush1.bf16.msra.mxu0 0
      %1359 = vmatprep.subr.bf16.mxu0 0
      %1360 = vmatpush1.bf16.msra.mxu0 0
      %1361 = vmatprep.subr.bf16.mxu0 0
      %1362 = vmatpush1.bf16.msra.mxu0 0
      %1363 = vmatprep.subr.bf16.mxu0 0
      %1364 = vmatpush1.bf16.msra.mxu0 0
      %1365 = vmatprep.subr.bf16.mxu0 0
      %1366 = vmatpush1.bf16.msra.mxu0 0
      %1367 = vmatprep.subr.bf16.mxu0 %v1348
      %1368 = vmatpush1.bf16.msra.mxu0 %v1345
      %1369 = vmatprep.subr.bf16.mxu0 0
      %1370 = vmatpush2.bf16.msra.mxu0 0
      %1371 = vmatprep.subr.bf16.mxu0 0
      %1372 = vmatpush2.bf16.msra.mxu0 0
      %1373 = vmatprep.subr.bf16.mxu0 0
      %1374 = vmatpush2.bf16.msra.mxu0 0
      %1375 = vmatprep.subr.bf16.mxu0 0
      %1376 = vmatpush2.bf16.msra.mxu0 0
      %1377 = vmatprep.subr.bf16.mxu0 0
      %1378 = vmatpush2.bf16.msra.mxu0 0
      %1379 = vmatprep.subr.bf16.mxu0 0
      %1380 = vmatpush2.bf16.msra.mxu0 0
      %1381 = vmatprep.subr.bf16.mxu0 0
      %1382 = vmatpush2.bf16.msra.mxu0 0
      %1383 = vmatprep.subr.bf16.mxu0 0
      %1384 = vmatpush2.bf16.msra.mxu0 0
      %1385 = vmatprep.mubr.bf16.mxu0 0
      %1386 = vmatmul.mubr.bf16.gmra.mxu0 %v1342
      %v1387 = vpop.f32.mrf.mxu0
      %v1388 = vadd.f32 %v1339, %v1387
      %v1389 = vpop.f32.mrf.mxu0
      %v1390 = vadd.f32 %v1339, %v1389
      %v1391 = vpop.f32.mrf.mxu0
      %v1392 = vpop.f32.mrf.mxu0
      %1393 = vdwg.mxu0
      %1394 = vmatprep.subr.bf16.mxu0 0
      %1395 = vmatpush1.bf16.msra.mxu0 0
      %1396 = vmatprep.subr.bf16.mxu0 0
      %1397 = vmatpush1.bf16.msra.mxu0 0
      %1398 = vmatprep.subr.bf16.mxu0 0
      %1399 = vmatpush1.bf16.msra.mxu0 0
      %1400 = vmatprep.subr.bf16.mxu0 0
      %1401 = vmatpush1.bf16.msra.mxu0 0
      %1402 = vmatprep.subr.bf16.mxu0 0
      %1403 = vmatpush1.bf16.msra.mxu0 0
      %1404 = vmatprep.subr.bf16.mxu0 0
      %1405 = vmatpush1.bf16.msra.mxu0 0
      %1406 = vmatprep.subr.bf16.mxu0 0
      %1407 = vmatpush1.bf16.msra.mxu0 0
      %1408 = vmatprep.subr.bf16.mxu0 0
      %1409 = vmatpush1.bf16.msra.mxu0 %v1351
      %1410 = vmatprep.subr.bf16.mxu0 0
      %1411 = vmatpush2.bf16.msra.mxu0 0
      %1412 = vmatprep.subr.bf16.mxu0 0
      %1413 = vmatpush2.bf16.msra.mxu0 0
      %1414 = vmatprep.subr.bf16.mxu0 0
      %1415 = vmatpush2.bf16.msra.mxu0 0
      %1416 = vmatprep.subr.bf16.mxu0 0
      %1417 = vmatpush2.bf16.msra.mxu0 0
      %1418 = vmatprep.subr.bf16.mxu0 0
      %1419 = vmatpush2.bf16.msra.mxu0 0
      %1420 = vmatprep.subr.bf16.mxu0 0
      %1421 = vmatpush2.bf16.msra.mxu0 0
      %1422 = vmatprep.subr.bf16.mxu0 0
      %1423 = vmatpush2.bf16.msra.mxu0 0
      %1424 = vmatprep.subr.bf16.mxu0 0
      %1425 = vmatpush2.bf16.msra.mxu0 0
      %1426 = vmatprep.mubr.bf16.mxu0 0
      %1427 = vmatmul.mubr.bf16.gmra.mxu0 %v1342
      %v1428 = vpop.f32.mrf.mxu0
      %v1429 = vadd.f32 %v1339, %v1428
      %v1430 = vpop.f32.mrf.mxu0
      %v1431 = vpop.f32.mrf.mxu0
      %v1432 = vpop.f32.mrf.mxu0
      %1433 = vdwg.mxu0
      %v1434 = vxor.u32 %v1388, 2147483648
      %v1435 = vxor.u32 %v1390, 2147483648
      %v1436 = vxor.u32 %v1429, 2147483648
      %v1437 = vmul.f32 %v1434, 1.442695
      %v1438 = vpow.pop %v1437
      %v1439 = vmul.f32 %v1435, 1.442695
      %v1440 = vpow.pop %v1439
      %v1441 = vmul.f32 %v1436, 1.442695
      %v1442 = vpow.pop %v1441
      %v1443 = vadd.f32 %v1438, 1.0
      %v1444 = vadd.f32 %v1440, 1.0
      %v1445 = vadd.f32 %v1442, 1.0
      %v1446 = vrcp.pop %v1443
      %v1447 = vmul.f32 1.0, %v1446
      %v1448 = vrcp.pop %v1444
      %v1449 = vmul.f32 1.0, %v1448
      %v1450 = vrcp.pop %v1445
      %v1451 = vmul.f32 1.0, %v1450
      %v1454 = vcombine.low %v1447, %v1449
      %1456 = vst [vmem:[%s224] sm:$0xff] %v1454
      %vm1457 = vcmask 551936
      %1458 = vst.msk [vmem:[%s224 + $0x8] sm:$0xf] %vm1457, %v1451
      %p1459 = scmp.lt.s32.totalorder %s16, 1
      %s1460 = scalar_select %p1459, %s16, 1
      %s1461 = smul.addr %s1460, 3
      %s1462 = smul.addr %s1461, 4
      %s1463 = scalar_lea.vmem %s5, %s1462
      // Predicated region
      $region41: #{dsc_forward.10} parent=39 // pred_check
        %p1464 = pneg %p144
      $region42: #{dsc_forward.10} parent=39 // pred_check_branch
        %1466 = sbr.rel (%p1464) target = $region44
      $region43: #{dsc_forward.10} parent=39 // pred_region
        _
      $region44: #{dsc_forward.10} parent=39 // pred_fallthru
        _
    $region40: #{dsc_forward.10} parent=5 // pred_fallthru
      _
    %p1467 = scmp.le.s32.totalorder 2, %s11
    // Predicated region
    $region45: #{dsc_forward.10} parent=5 // pred_check
      %p1468 = pneg %p1467
    $region46: #{dsc_forward.10} parent=5 // pred_check_branch
      %1470 = sbr.rel (%p1468) target = $region48
    $region47: #{dsc_forward.10} parent=5 // pred_region
      %s1471 = ssub.s32 %s11, 2
      // Predicated region
      $region49: #{dsc_forward.10} parent=47 // pred_check
        %p1472 = pneg %p150
      $region50: #{dsc_forward.10} parent=47 // pred_check_branch
        %1474 = sbr.rel (%p1472) target = $region52
      $region51: #{dsc_forward.10} parent=47 // pred_region
        %p1475 = scmp.lt.s32.totalorder %s17, 1
        %s1476 = scalar_select %p1475, %s17, 1
        %s1477 = smul.addr %s1476, 3
        %s1478 = smul.addr %s1477, 4
        %s1479 = scalar_lea.vmem %s5, %s1478
      $region52: #{dsc_forward.10} parent=47 // pred_fallthru
        _
    $region48: #{dsc_forward.10} parent=5 // pred_fallthru
      _
  $region6: #{dsc_forward.10} parent=0 // loop_footer
    %s15 = sadd.s32 1, %s11
  $region7: #{dsc_forward.10} parent=0 // loop_footer_branch
    %10 = sbr.rel target = $region3
  $region8: #{dsc_forward.10} parent=0 // loop_exit
    _

// kernel: dsc_forward.13
$region0: #{dsc_forward.13}
  #allocation0 [shape = 'u32[]', space=smem, size = 0x4, offset = 0x4, fixed_abs, tag = 'smem constant byte address 0x4 - core index']
  #allocation1 [shape = 'u32[144,128]{1,0:T(1,128)}', space=vmem, size = 0x12000, scoped, tag = 'internal scratch']
  #allocation2 [shape = 'f32[8,16]{1,0:T(8,128)}', space=vmem, size = 0x1000, scoped, tag = 'scratch operand']
  #allocation3 [shape = 'f32[8,16]{1,0:T(8,128)}', space=vmem, size = 0x1000, scoped, tag = 'scratch operand']
  %s0 = inlined_call_operand.vmem [shape: bf16[2,8,16,16], index: 0, kind: input, shape index: {}, may-alias: {0,1}]
  %s1 = inlined_call_operand.vmem [shape: bf16[2,8,16,16], index: 1, kind: input, shape index: {}, may-alias: {0,1}]
  %s2 = inlined_call_operand.vmem [shape: f32[8,1], index: 2, kind: input, shape index: {}]
  %s3 = inlined_call_operand.vmem [shape: f32[8,1], index: 3, kind: input, shape index: {}]
  %s4 = inlined_call_operand.vmem [shape: f32[8,1], index: 4, kind: input, shape index: {}]
  %s5 = inlined_call_operand.vmem [shape: f32[8,1], index: 5, kind: input, shape index: {}]
  %s6 = inlined_call_operand.vmem [shape: bf16[2,8,16,16], index: 6, kind: output, shape index: {0}]
  %s7 = inlined_call_operand.vmem [shape: bf16[2,8,16,16], index: 7, kind: output, shape index: {1}]
  %8 = xla_tuple %s6, %s7
  %s9 = sld [smem:[#allocation0]]
  $region69: #{dsc_forward.13} parent=0
    _
  %s11 = ssub.s32 1, %s9
  %s12 = scalar_select 0, %s11, %s9
  loop: start=0, step=1, limit=4
  $region2: #{dsc_forward.13} parent=0 // loop_pre_header
    _
  $region3: #{dsc_forward.13} parent=0 // loop_header
    %s14 = sphi 0, %s18
    %p15 = scmp.ge.s32.totalorder %s14, 4
    %s21 = sphi 0, %s33
    %s22 = sphi 0, %s29
    %s23 = sphi 0, %s21
    %s24 = sphi 0, %s22
    %s25 = sphi 0, %s23
    %s26 = sphi 0, %s24
    %s38 = sphi 0, %s40
    %s41 = sphi 0, %s38
    %s42 = sphi 0, %s41
    %s58 = sphi 0, %s42
    %s68 = sphi 0, %s70
    %s71 = sphi 0, %s68
    %s72 = sphi 0, %s71
    %s88 = sphi 0, %s72
    %s92 = sphi 0, %s92
    %s94 = sphi 0, %s92
    %s95 = sphi 0, %s94
    %s109 = sphi 0, %s95
    %s113 = sphi 0, %s113
    %s115 = sphi 0, %s113
    %s116 = sphi 0, %s115
    %s130 = sphi 0, %s116
    %s134 = sphi 0, %s134
    %s136 = sphi 0, %s134
    %s137 = sphi 0, %s136
    %s151 = sphi 0, %s137
    %s155 = sphi 0, %s155
    %s157 = sphi 0, %s155
    %s158 = sphi 0, %s157
    %s172 = sphi 0, %s158
    %s180 = sphi 0, %s182
    %s183 = sphi 0, %s180
    %s184 = sphi 0, %s183
    %s200 = sphi 0, %s184
    %s210 = sphi 0, %s212
    %s213 = sphi 0, %s210
    %s214 = sphi 0, %s213
    %s230 = sphi 0, %s214
  $region4: #{dsc_forward.13} parent=0 // loop_header_branch
    %17 = sbr.rel (%p15) target = $region8
  $region5: #{dsc_forward.13} parent=0 // loop_body
    %s19 = ssub.s32 %s14, 1
    %s20 = ssub.s32 %s14, 2
    %s27 = sadd.s32 1, %s22
    %p28 = scmp.ge.s32.totalorder %s27, 1
    %s29 = scalar_select %p28, 0, %s27
    %s30 = sadd.s32 1, %s21
    %s31 = scalar_select %p28, %s30, %s21
    %p32 = scmp.ge.s32.totalorder %s31, 2
    %s33 = scalar_select %p32, 0, %s31
    %s34 = ssub.s32 %s21, %s33
    %s35 = ssub.s32 %s22, %s29
    %s36 = sor.u32 %s34, %s35
    %p37 = scmp.eq.s32.totalorder %s36, 0
    %s39 = sadd.s32 %s38, 1
    %s40 = scalar_select %p37, %s38, %s39
    %p43 = pneg %p37
    %p44 = scmp.eq.s32.totalorder %s14, 1
    %p45 = por %p43, %p44
    %p46 = scmp.ne.s32.totalorder %s38, %s41
    %p47 = scmp.eq.s32.totalorder %s14, 0
    %p48 = por %p46, %p47
    %p49 = scmp.ne.s32.totalorder %s38, %s41
    %p50 = scmp.eq.s32.totalorder %s19, 1
    %p51 = por %p49, %p50
    %p52 = scmp.ne.s32.totalorder %s41, %s42
    %p53 = scmp.eq.s32.totalorder %s19, 0
    %p54 = por %p52, %p53
    %p55 = scmp.ne.s32.totalorder %s41, %s42
    %p56 = scmp.eq.s32.totalorder %s20, 1
    %p57 = por %p55, %p56
    %p59 = scmp.ne.s32.totalorder %s42, %s58
    %p60 = scmp.eq.s32.totalorder %s20, 0
    %p61 = por %p59, %p60
    %s62 = ssub.s32 0, %s22
    %s63 = ssub.s32 0, %s29
    %s64 = ssub.s32 %s21, %s33
    %s65 = ssub.s32 %s62, %s63
    %s66 = sor.u32 %s64, %s65
    %p67 = scmp.eq.s32.totalorder %s66, 0
    %s69 = sadd.s32 %s68, 1
    %s70 = scalar_select %p67, %s68, %s69
    %p73 = pneg %p67
    %p74 = scmp.eq.s32.totalorder %s14, 1
    %p75 = por %p73, %p74
    %p76 = scmp.ne.s32.totalorder %s68, %s71
    %p77 = scmp.eq.s32.totalorder %s14, 0
    %p78 = por %p76, %p77
    %p79 = scmp.ne.s32.totalorder %s68, %s71
    %p80 = scmp.eq.s32.totalorder %s19, 1
    %p81 = por %p79, %p80
    %p82 = scmp.ne.s32.totalorder %s71, %s72
    %p83 = scmp.eq.s32.totalorder %s19, 0
    %p84 = por %p82, %p83
    %p85 = scmp.ne.s32.totalorder %s71, %s72
    %p86 = scmp.eq.s32.totalorder %s20, 1
    %p87 = por %p85, %p86
    %p89 = scmp.ne.s32.totalorder %s72, %s88
    %p90 = scmp.eq.s32.totalorder %s20, 0
    %p91 = por %p89, %p90
    %s93 = sadd.s32 %s92, 1
    %p96 = scmp.eq.s32.totalorder %s14, 1
    %p97 = scmp.ne.s32.totalorder %s92, %s94
    %p98 = scmp.eq.s32.totalorder %s14, 0
    %p99 = por %p97, %p98
    %p100 = scmp.ne.s32.totalorder %s92, %s94
    %p101 = scmp.eq.s32.totalorder %s19, 1
    %p102 = por %p100, %p101
    %p103 = scmp.ne.s32.totalorder %s94, %s95
    %p104 = scmp.eq.s32.totalorder %s19, 0
    %p105 = por %p103, %p104
    %p106 = scmp.ne.s32.totalorder %s94, %s95
    %p107 = scmp.eq.s32.totalorder %s20, 1
    %p108 = por %p106, %p107
    %p110 = scmp.ne.s32.totalorder %s95, %s109
    %p111 = scmp.eq.s32.totalorder %s20, 0
    %p112 = por %p110, %p111
    %s114 = sadd.s32 %s113, 1
    %p117 = scmp.eq.s32.totalorder %s14, 1
    %p118 = scmp.ne.s32.totalorder %s113, %s115
    %p119 = scmp.eq.s32.totalorder %s14, 0
    %p120 = por %p118, %p119
    %p121 = scmp.ne.s32.totalorder %s113, %s115
    %p122 = scmp.eq.s32.totalorder %s19, 1
    %p123 = por %p121, %p122
    %p124 = scmp.ne.s32.totalorder %s115, %s116
    %p125 = scmp.eq.s32.totalorder %s19, 0
    %p126 = por %p124, %p125
    %p127 = scmp.ne.s32.totalorder %s115, %s116
    %p128 = scmp.eq.s32.totalorder %s20, 1
    %p129 = por %p127, %p128
    %p131 = scmp.ne.s32.totalorder %s116, %s130
    %p132 = scmp.eq.s32.totalorder %s20, 0
    %p133 = por %p131, %p132
    %s135 = sadd.s32 %s134, 1
    %p138 = scmp.eq.s32.totalorder %s14, 1
    %p139 = scmp.ne.s32.totalorder %s134, %s136
    %p140 = scmp.eq.s32.totalorder %s14, 0
    %p141 = por %p139, %p140
    %p142 = scmp.ne.s32.totalorder %s134, %s136
    %p143 = scmp.eq.s32.totalorder %s19, 1
    %p144 = por %p142, %p143
    %p145 = scmp.ne.s32.totalorder %s136, %s137
    %p146 = scmp.eq.s32.totalorder %s19, 0
    %p147 = por %p145, %p146
    %p148 = scmp.ne.s32.totalorder %s136, %s137
    %p149 = scmp.eq.s32.totalorder %s20, 1
    %p150 = por %p148, %p149
    %p152 = scmp.ne.s32.totalorder %s137, %s151
    %p153 = scmp.eq.s32.totalorder %s20, 0
    %p154 = por %p152, %p153
    %s156 = sadd.s32 %s155, 1
    %p159 = scmp.eq.s32.totalorder %s14, 1
    %p160 = scmp.ne.s32.totalorder %s155, %s157
    %p161 = scmp.eq.s32.totalorder %s14, 0
    %p162 = por %p160, %p161
    %p163 = scmp.ne.s32.totalorder %s155, %s157
    %p164 = scmp.eq.s32.totalorder %s19, 1
    %p165 = por %p163, %p164
    %p166 = scmp.ne.s32.totalorder %s157, %s158
    %p167 = scmp.eq.s32.totalorder %s19, 0
    %p168 = por %p166, %p167
    %p169 = scmp.ne.s32.totalorder %s157, %s158
    %p170 = scmp.eq.s32.totalorder %s20, 1
    %p171 = por %p169, %p170
    %p173 = scmp.ne.s32.totalorder %s158, %s172
    %p174 = scmp.eq.s32.totalorder %s20, 0
    %p175 = por %p173, %p174
    %s176 = ssub.s32 %s21, %s33
    %s177 = ssub.s32 %s22, %s29
    %s178 = sor.u32 %s176, %s177
    %p179 = scmp.eq.s32.totalorder %s178, 0
    %s181 = sadd.s32 %s180, 1
    %s182 = scalar_select %p179, %s180, %s181
    %p185 = pneg %p179
    %p186 = scmp.eq.s32.totalorder %s14, 1
    %p187 = por %p185, %p186
    %p188 = scmp.ne.s32.totalorder %s180, %s183
    %p189 = scmp.eq.s32.totalorder %s14, 0
    %p190 = por %p188, %p189
    %p191 = scmp.ne.s32.totalorder %s180, %s183
    %p192 = scmp.eq.s32.totalorder %s19, 1
    %p193 = por %p191, %p192
    %p194 = scmp.ne.s32.totalorder %s183, %s184
    %p195 = scmp.eq.s32.totalorder %s19, 0
    %p196 = por %p194, %p195
    %p197 = scmp.ne.s32.totalorder %s183, %s184
    %p198 = scmp.eq.s32.totalorder %s20, 1
    %p199 = por %p197, %p198
    %p201 = scmp.ne.s32.totalorder %s184, %s200
    %p202 = scmp.eq.s32.totalorder %s20, 0
    %p203 = por %p201, %p202
    %s204 = ssub.s32 0, %s22
    %s205 = ssub.s32 0, %s29
    %s206 = ssub.s32 %s21, %s33
    %s207 = ssub.s32 %s204, %s205
    %s208 = sor.u32 %s206, %s207
    %p209 = scmp.eq.s32.totalorder %s208, 0
    %s211 = sadd.s32 %s210, 1
    %s212 = scalar_select %p209, %s210, %s211
    %p215 = pneg %p209
    %p216 = scmp.eq.s32.totalorder %s14, 1
    %p217 = por %p215, %p216
    %p218 = scmp.ne.s32.totalorder %s210, %s213
    %p219 = scmp.eq.s32.totalorder %s14, 0
    %p220 = por %p218, %p219
    %p221 = scmp.ne.s32.totalorder %s210, %s213
    %p222 = scmp.eq.s32.totalorder %s19, 1
    %p223 = por %p221, %p222
    %p224 = scmp.ne.s32.totalorder %s213, %s214
    %p225 = scmp.eq.s32.totalorder %s19, 0
    %p226 = por %p224, %p225
    %p227 = scmp.ne.s32.totalorder %s213, %s214
    %p228 = scmp.eq.s32.totalorder %s20, 1
    %p229 = por %p227, %p228
    %p231 = scmp.ne.s32.totalorder %s214, %s230
    %p232 = scmp.eq.s32.totalorder %s20, 0
    %p233 = por %p231, %p232
    %p234 = scmp.le.s32.totalorder 1, %s14
    %p235 = scmp.lt.s32.totalorder %s14, 3
    %p236 = pnand %p234, %p235
    %p237 = pneg %p236
    // Predicated region
    $region9: #{dsc_forward.13} parent=5 // pred_check
      _
    $region10: #{dsc_forward.13} parent=5 // pred_check_branch
      %239 = sbr.rel (%p236) target = $region12
    $region11: #{dsc_forward.13} parent=5 // pred_region
      %s240 = ssub.s32 %s14, 1
      // Predicated region
      $region13: #{dsc_forward.13} parent=11 // pred_check
        %p241 = pneg %p105
      $region14: #{dsc_forward.13} parent=11 // pred_check_branch
        %243 = sbr.rel (%p241) target = $region16
      $region15: #{dsc_forward.13} parent=11 // pred_region
        _
      $region16: #{dsc_forward.13} parent=11 // pred_fallthru
        _
      // Predicated region
      $region17: #{dsc_forward.13} parent=11 // pred_check
        %p244 = pneg %p126
      $region18: #{dsc_forward.13} parent=11 // pred_check_branch
        %246 = sbr.rel (%p244) target = $region20
      $region19: #{dsc_forward.13} parent=11 // pred_region
        _
      $region20: #{dsc_forward.13} parent=11 // pred_fallthru
        _
      // Predicated region
      $region21: #{dsc_forward.13} parent=11 // pred_check
        %p247 = pneg %p147
      $region22: #{dsc_forward.13} parent=11 // pred_check_branch
        %249 = sbr.rel (%p247) target = $region24
      $region23: #{dsc_forward.13} parent=11 // pred_region
        _
      $region24: #{dsc_forward.13} parent=11 // pred_fallthru
        _
      // Predicated region
      $region25: #{dsc_forward.13} parent=11 // pred_check
        %p250 = pneg %p168
      $region26: #{dsc_forward.13} parent=11 // pred_check_branch
        %252 = sbr.rel (%p250) target = $region28
      $region27: #{dsc_forward.13} parent=11 // pred_region
        _
      $region28: #{dsc_forward.13} parent=11 // pred_fallthru
        _
    $region12: #{dsc_forward.13} parent=5 // pred_fallthru
      _
    %p253 = scmp.lt.s32.totalorder %s14, 2
    // Predicated region
    $region29: #{dsc_forward.13} parent=5 // pred_check
      %p254 = pneg %p253
    $region30: #{dsc_forward.13} parent=5 // pred_check_branch
      %256 = sbr.rel (%p254) target = $region32
    $region31: #{dsc_forward.13} parent=5 // pred_region
      // Predicated region
      $region33: #{dsc_forward.13} parent=31 // pred_check
        %p257 = pneg %p48
      $region34: #{dsc_forward.13} parent=31 // pred_check_branch
        %259 = sbr.rel (%p257) target = $region36
      $region35: #{dsc_forward.13} parent=31 // pred_region
        %s260 = smul.u32 2, %s22
        %p261 = scmp.lt.s32.totalorder %s21, 1
        %s262 = scalar_select %p261, %s21, 1
        %p263 = scmp.lt.s32.totalorder %s260, 1
        %s264 = scalar_select %p263, %s260, 1
        %s265 = smul.addr %s262, 16
        %s266 = sadd.s32 %s264, %s265
        %s267 = smul.addr %s266, 4
        %s268 = scalar_lea.vmem %s0, %s267
        %s269 = smul.u32 2, %s22
      $region36: #{dsc_forward.13} parent=31 // pred_fallthru
        _
      // Predicated region
      $region37: #{dsc_forward.13} parent=31 // pred_check
        %p270 = pneg %p78
      $region38: #{dsc_forward.13} parent=31 // pred_check_branch
        %272 = sbr.rel (%p270) target = $region40
      $region39: #{dsc_forward.13} parent=31 // pred_region
        %s273 = ssub.s32 0, %s22
        %s274 = smul.u32 2, %s273
        %p275 = scmp.lt.s32.totalorder %s21, 1
        %s276 = scalar_select %p275, %s21, 1
        %p277 = scmp.lt.s32.totalorder %s274, 1
        %s278 = scalar_select %p277, %s274, 1
        %s279 = smul.addr %s276, 16
        %s280 = sadd.s32 %s278, %s279
        %s281 = smul.addr %s280, 4
        %s282 = scalar_lea.vmem %s1, %s281
        %s283 = ssub.s32 0, %s22
        %s284 = smul.u32 2, %s283
      $region40: #{dsc_forward.13} parent=31 // pred_fallthru
        _
    $region32: #{dsc_forward.13} parent=5 // pred_fallthru
      _
    %p285 = scmp.le.s32.totalorder 1, %s14
    %p286 = scmp.lt.s32.totalorder %s14, 3
    %p287 = pnand %p285, %p286
    %p288 = pneg %p287
    // Predicated region
    $region41: #{dsc_forward.13} parent=5 // pred_check
      _
    $region42: #{dsc_forward.13} parent=5 // pred_check_branch
      %290 = sbr.rel (%p287) target = $region44
    $region43: #{dsc_forward.13} parent=5 // pred_region
      %s291 = ssub.s32 %s14, 1
      %s292 = smul.u32 2, %s24
      %p293 = scmp.lt.s32.totalorder %s23, 1
      %s294 = scalar_select %p293, %s23, 1
      %p295 = scmp.lt.s32.totalorder %s292, 1
      %s296 = scalar_select %p295, %s292, 1
      %s297 = smul.addr %s294, 16
      %s298 = sadd.s32 %s296, %s297
      %s299 = smul.addr %s298, 4
      %s300 = scalar_lea.vmem %s0, %s299
      %p301 = pneg %p54
      %p302 = pneg %p51
      %s303 = ssub.s32 0, %s24
      %s304 = smul.u32 2, %s303
      %p305 = scmp.lt.s32.totalorder %s23, 1
      %s306 = scalar_select %p305, %s23, 1
      %p307 = scmp.lt.s32.totalorder %s304, 1
      %s308 = scalar_select %p307, %s304, 1
      %s309 = smul.addr %s306, 16
      %s310 = sadd.s32 %s308, %s309
      %s311 = smul.addr %s310, 4
      %s312 = scalar_lea.vmem %s1, %s311
      %p313 = pneg %p84
      %p314 = pneg %p81
      %p315 = pneg %p105
      %p316 = pneg %p102
      %p317 = pneg %p126
      %p318 = pneg %p123
      %p319 = pneg %p147
      %p320 = pneg %p144
      %p321 = pneg %p168
      %p322 = pneg %p165
      %p323 = pneg %p196
      %p324 = pneg %p193
      %s325 = smul.u32 2, %s24
      %p326 = scmp.lt.s32.totalorder %s23, 1
      %s327 = scalar_select %p326, %s23, 1
      %p328 = scmp.lt.s32.totalorder %s325, 1
      %s329 = scalar_select %p328, %s325, 1
      %s330 = smul.addr %s327, 16
      %s331 = sadd.s32 %s329, %s330
      %s332 = smul.addr %s331, 4
      %s333 = scalar_lea.vmem %s6, %s332
      %p334 = pneg %p226
      %p335 = pneg %p223
      %s336 = ssub.s32 0, %s24
      %s337 = smul.u32 2, %s336
      %p338 = scmp.lt.s32.totalorder %s23, 1
      %s339 = scalar_select %p338, %s23, 1
      %p340 = scmp.lt.s32.totalorder %s337, 1
      %s341 = scalar_select %p340, %s337, 1
      %s342 = smul.addr %s339, 16
      %s343 = sadd.s32 %s341, %s342
      %s344 = smul.addr %s343, 4
      %s345 = scalar_lea.vmem %s7, %s344
      %s346 = smul.u32 2, %s24
      %p347 = scmp.lt.s32.totalorder %s23, 1
      %s348 = scalar_select %p347, %s23, 1
      %p349 = scmp.lt.s32.totalorder %s346, 1
      %s350 = scalar_select %p349, %s346, 1
      %s351 = smul.addr %s348, 16
      %s352 = sadd.s32 %s350, %s351
      %s353 = smul.addr %s352, 4
      %s354 = scalar_lea.vmem %s0, %s353
      %s355 = smul.u32 2, %s24
      %s356 = ssub.s32 0, %s24
      %s357 = smul.u32 2, %s356
      %p358 = scmp.lt.s32.totalorder %s23, 1
      %s359 = scalar_select %p358, %s23, 1
      %p360 = scmp.lt.s32.totalorder %s357, 1
      %s361 = scalar_select %p360, %s357, 1
      %s362 = smul.addr %s359, 16
      %s363 = sadd.s32 %s361, %s362
      %s364 = smul.addr %s363, 4
      %s365 = scalar_lea.vmem %s1, %s364
      %s366 = ssub.s32 0, %s24
      %s367 = smul.u32 2, %s366
      %s368 = smul.u32 2, %s24
      %p369 = scmp.lt.s32.totalorder %s23, 1
      %s370 = scalar_select %p369, %s23, 1
      %p371 = scmp.lt.s32.totalorder %s368, 1
      %s372 = scalar_select %p371, %s368, 1
      %s373 = smul.addr %s370, 16
      %s374 = sadd.s32 %s372, %s373
      %s375 = smul.addr %s374, 4
      %s376 = scalar_lea.vmem %s6, %s375
      %s377 = smul.u32 2, %s24
      %s378 = ssub.s32 0, %s24
      %s379 = smul.u32 2, %s378
      %p380 = scmp.lt.s32.totalorder %s23, 1
      %s381 = scalar_select %p380, %s23, 1
      %p382 = scmp.lt.s32.totalorder %s379, 1
      %s383 = scalar_select %p382, %s379, 1
      %s384 = smul.addr %s381, 16
      %s385 = sadd.s32 %s383, %s384
      %s386 = smul.addr %s385, 4
      %s387 = scalar_lea.vmem %s7, %s386
      %s388 = ssub.s32 0, %s24
      %s389 = smul.u32 2, %s388
      %p390 = scmp.eq.s32.totalorder %s24, 0
      // Predicated region
      $region45: #{dsc_forward.13} parent=43 // pred_check
        %p391 = pneg %p390
      $region46: #{dsc_forward.13} parent=43 // pred_check_branch
        %393 = sbr.rel (%p391) target = $region48
      $region47: #{dsc_forward.13} parent=43 // pred_region
        %vm394 = vcmask 130048
        %395 = vst.msk [vmem:[#allocation2] sm:$0xff] %vm394, 0.0
        %396 = vst.msk [vmem:[#allocation3] sm:$0xff] %vm394, 0.0
      $region48: #{dsc_forward.13} parent=43 // pred_fallthru
        _
      %v397 = vld [vmem:[%s2] sm:$0xff]
      %v398 = vld [vmem:[%s3] sm:$0xff]
      %v399 = vld [vmem:[%s4] sm:$0xff]
      %v400 = vld [vmem:[%s5] sm:$0xff]
      %v401 = vld [vmem:[#allocation2] sm:$0xff]
      %v402 = vld [vmem:[%s354] sm:$0x1]
      %v403 = vld [vmem:[%s354 + $0x8] sm:$0x1]
      %v404 = vld [vmem:[%s354 + $0x10] sm:$0x1]
      %v405 = vld [vmem:[%s354 + $0x18] sm:$0x1]
      %v406 = vld [vmem:[%s354 + $0x20] sm:$0x1]
      %v407 = vld [vmem:[%s354 + $0x28] sm:$0x1]
      %v408 = vld [vmem:[%s354 + $0x30] sm:$0x1]
      %v409 = vld [vmem:[%s354 + $0x38] sm:$0x1]
      %v410 = vunpack.c.l.bf16 %v402
      %v411 = vunpack.c.l.bf16 %v403
      %v412 = vunpack.c.l.bf16 %v404
      %v413 = vunpack.c.l.bf16 %v405
      %v414 = vunpack.c.l.bf16 %v406
      %v415 = vunpack.c.l.bf16 %v407
      %v416 = vunpack.c.l.bf16 %v408
      %v417 = vunpack.c.l.bf16 %v409
      %419 = vset.pattern.permute.xlu0 0
      %420 = vperm.xlu0 %419, %v397
      %v421 = vpop.permute.xlu0 %420
      %v423 = vmul.f32 %v401, %v421
      %v432 = vrot.slane %v411, 7
      %vm433 = vcmask 1041409
      %v434 = vsel %vm433, %v432, %v410
      %v435 = vrot.slane %v412, 6
      %vm436 = vcmask 1042434
      %v437 = vsel %vm436, %v435, %v434
      %v438 = vrot.slane %v413, 5
      %vm439 = vcmask 1043459
      %v440 = vsel %vm439, %v438, %v437
      %v441 = vrot.slane %v414, 4
      %vm442 = vcmask 1044484
      %v443 = vsel %vm442, %v441, %v440
      %v444 = vrot.slane %v415, 3
      %vm445 = vcmask 1045509
      %v446 = vsel %vm445, %v444, %v443
      %v447 = vrot.slane %v416, 2
      %vm448 = vcmask 1046534
      %v449 = vsel %vm448, %v447, %v446
      %v450 = vrot.slane %v417, 1
      %vm451 = vcmask 1047559
      %v452 = vsel %vm451, %v450, %v449
      %v454 = vadd.f32 %v423, %v452
      %456 = vset.pattern.permute.xlu0 0
      %457 = vperm.xlu0 %456, %v398
      %v458 = vpop.permute.xlu0 %457
      %v460 = vadd.f32 %v454, %v458
      %v461 = vmax.f32 %v460, 0.0
      %s462 = scalar_select %p390, 1, 0
      %v463 = vstv %s462
      %vm464 = vcmp.eq.s32.totalorder %v463, 1
      %v466 = vrot.slane %v461, 1
      %v467 = vrot.slane %v461, 2
      %v468 = vrot.slane %v461, 3
      %v469 = vrot.slane %v461, 4
      %v470 = vrot.slane %v461, 5
      %v471 = vrot.slane %v461, 6
      %v472 = vrot.slane %v461, 7
      %v481 = vsel %vm464, %v410, %v461
      %v482 = vsel %vm464, %v411, %v466
      %v483 = vsel %vm464, %v412, %v467
      %v484 = vsel %vm464, %v413, %v468
      %v485 = vsel %vm464, %v414, %v469
      %v486 = vsel %vm464, %v415, %v470
      %v487 = vsel %vm464, %v416, %v471
      %v488 = vsel %vm464, %v417, %v472
      %v489 = vpack.c.bf16 %v481, %v481
      %v490 = vpack.c.bf16 %v482, %v482
      %v491 = vpack.c.bf16 %v483, %v483
      %v492 = vpack.c.bf16 %v484, %v484
      %v493 = vpack.c.bf16 %v485, %v485
      %v494 = vpack.c.bf16 %v486, %v486
      %v495 = vpack.c.bf16 %v487, %v487
      %v496 = vpack.c.bf16 %v488, %v488
      %vm497 = vcmask 122880
      %vm498 = vsmask.f32 256
      %vm499 = vmand %vm497, %vm498
      %v500 = vld [vmem:[%s376] sm:$0x1]
      %v501 = vsel %vm499, %v489, %v500
      %502 = vst [vmem:[%s376] sm:$0x1] %v501
      %v503 = vld [vmem:[%s376 + $0x8] sm:$0x1]
      %v504 = vsel %vm499, %v490, %v503
      %505 = vst [vmem:[%s376 + $0x8] sm:$0x1] %v504
      %v506 = vld [vmem:[%s376 + $0x10] sm:$0x1]
      %v507 = vsel %vm499, %v491, %v506
      %508 = vst [vmem:[%s376 + $0x10] sm:$0x1] %v507
      %v509 = vld [vmem:[%s376 + $0x18] sm:$0x1]
      %v510 = vsel %vm499, %v492, %v509
      %511 = vst [vmem:[%s376 + $0x18] sm:$0x1] %v510
      %v512 = vld [vmem:[%s376 + $0x20] sm:$0x1]
      %v513 = vsel %vm499, %v493, %v512
      %514 = vst [vmem:[%s376 + $0x20] sm:$0x1] %v513
      %v515 = vld [vmem:[%s376 + $0x28] sm:$0x1]
      %v516 = vsel %vm499, %v494, %v515
      %517 = vst [vmem:[%s376 + $0x28] sm:$0x1] %v516
      %v518 = vld [vmem:[%s376 + $0x30] sm:$0x1]
      %v519 = vsel %vm499, %v495, %v518
      %520 = vst [vmem:[%s376 + $0x30] sm:$0x1] %v519
      %v521 = vld [vmem:[%s376 + $0x38] sm:$0x1]
      %v522 = vsel %vm499, %v496, %v521
      %523 = vst [vmem:[%s376 + $0x38] sm:$0x1] %v522
      %v524 = vld [vmem:[%s354] sm:$0x1]
      %v525 = vld [vmem:[%s354 + $0x8] sm:$0x1]
      %v526 = vld [vmem:[%s354 + $0x10] sm:$0x1]
      %v527 = vld [vmem:[%s354 + $0x18] sm:$0x1]
      %v528 = vld [vmem:[%s354 + $0x20] sm:$0x1]
      %v529 = vld [vmem:[%s354 + $0x28] sm:$0x1]
      %v530 = vld [vmem:[%s354 + $0x30] sm:$0x1]
      %v531 = vld [vmem:[%s354 + $0x38] sm:$0x1]
      %v532 = vunpack.c.l.bf16 %v524
      %v533 = vunpack.c.l.bf16 %v525
      %v534 = vunpack.c.l.bf16 %v526
      %v535 = vunpack.c.l.bf16 %v527
      %v536 = vunpack.c.l.bf16 %v528
      %v537 = vunpack.c.l.bf16 %v529
      %v538 = vunpack.c.l.bf16 %v530
      %v539 = vunpack.c.l.bf16 %v531
      %v540 = vrot.slane %v421, 1
      %v541 = vrot.slane %v421, 2
      %v542 = vrot.slane %v421, 3
      %v543 = vrot.slane %v421, 4
      %v544 = vrot.slane %v421, 5
      %v545 = vrot.slane %v421, 6
      %v546 = vrot.slane %v421, 7
      %v554 = vmul.f32 %v481, %v421
      %v555 = vmul.f32 %v482, %v540
      %v556 = vmul.f32 %v483, %v541
      %v557 = vmul.f32 %v484, %v542
      %v558 = vmul.f32 %v485, %v543
      %v559 = vmul.f32 %v486, %v544
      %v560 = vmul.f32 %v487, %v545
      %v561 = vmul.f32 %v488, %v546
      %v570 = vrot.slane %v532, 1
      %v571 = vrot.slane %v533, 1
      %v572 = vrot.slane %v534, 1
      %v573 = vrot.slane %v535, 1
      %v574 = vrot.slane %v536, 1
      %v575 = vrot.slane %v537, 1
      %v576 = vrot.slane %v538, 1
      %v577 = vrot.slane %v539, 1
      %v586 = vadd.f32 %v554, %v570
      %v587 = vadd.f32 %v555, %v571
      %v588 = vadd.f32 %v556, %v572
      %v589 = vadd.f32 %v557, %v573
      %v590 = vadd.f32 %v558, %v574
      %v591 = vadd.f32 %v559, %v575
      %v592 = vadd.f32 %v560, %v576
      %v593 = vadd.f32 %v561, %v577
      %v594 = vrot.slane %v458, 1
      %v595 = vrot.slane %v458, 2
      %v596 = vrot.slane %v458, 3
      %v597 = vrot.slane %v458, 4
      %v598 = vrot.slane %v458, 5
      %v599 = vrot.slane %v458, 6
      %v600 = vrot.slane %v458, 7
      %v608 = vadd.f32 %v586, %v458
      %v609 = vadd.f32 %v587, %v594
      %v610 = vadd.f32 %v588, %v595
      %v611 = vadd.f32 %v589, %v596
      %v612 = vadd.f32 %v590, %v597
      %v613 = vadd.f32 %v591, %v598
      %v614 = vadd.f32 %v592, %v599
      %v615 = vadd.f32 %v593, %v600
      %v616 = vmax.f32 %v608, 0.0
      %v617 = vmax.f32 %v609, 0.0
      %v618 = vmax.f32 %v610, 0.0
      %v619 = vmax.f32 %v611, 0.0
      %v620 = vmax.f32 %v612, 0.0
      %v621 = vmax.f32 %v613, 0.0
      %v622 = vmax.f32 %v614, 0.0
      %v623 = vmax.f32 %v615, 0.0
      %v624 = vpack.c.bf16 %v616, %v616
      %v625 = vpack.c.bf16 %v617, %v617
      %v626 = vpack.c.bf16 %v618, %v618
      %v627 = vpack.c.bf16 %v619, %v619
      %v628 = vpack.c.bf16 %v620, %v620
      %v629 = vpack.c.bf16 %v621, %v621
      %v630 = vpack.c.bf16 %v622, %v622
      %v631 = vpack.c.bf16 %v623, %v623
      %v640 = vunpack.c.l.b16 %v624
      %v641 = vunpack.c.l.b16 %v625
      %v642 = vunpack.c.l.b16 %v626
      %v643 = vunpack.c.l.b16 %v627
      %v644 = vunpack.c.l.b16 %v628
      %v645 = vunpack.c.l.b16 %v629
      %v646 = vunpack.c.l.b16 %v630
      %v647 = vunpack.c.l.b16 %v631
      %v648 = vpack.c.b16 %v640, %v640
      %v649 = vpack.c.b16 %v641, %v641
      %v650 = vpack.c.b16 %v642, %v642
      %v651 = vpack.c.b16 %v643, %v643
      %v652 = vpack.c.b16 %v644, %v644
      %v653 = vpack.c.b16 %v645, %v645
      %v654 = vpack.c.b16 %v646, %v646
      %v655 = vpack.c.b16 %v647, %v647
      %v657 = vshll.u32 %v648, 16
      %v660 = vshll.u32 %v649, 16
      %v663 = vshll.u32 %v650, 16
      %v666 = vshll.u32 %v651, 16
      %v669 = vshll.u32 %v652, 16
      %v672 = vshll.u32 %v653, 16
      %v675 = vshll.u32 %v654, 16
      %v678 = vshll.u32 %v655, 16
      %vm688 = vsmask.f32 7938
      %vm689 = vmand %vm497, %vm688
      %v690 = vld [vmem:[%s376] sm:$0x1]
      %v691 = vsel %vm689, %v657, %v690
      %692 = vst [vmem:[%s376] sm:$0x1] %v691
      %v693 = vld [vmem:[%s376 + $0x8] sm:$0x1]
      %v694 = vsel %vm689, %v660, %v693
      %695 = vst [vmem:[%s376 + $0x8] sm:$0x1] %v694
      %v696 = vld [vmem:[%s376 + $0x10] sm:$0x1]
      %v697 = vsel %vm689, %v663, %v696
      %698 = vst [vmem:[%s376 + $0x10] sm:$0x1] %v697
      %v699 = vld [vmem:[%s376 + $0x18] sm:$0x1]
      %v700 = vsel %vm689, %v666, %v699
      %701 = vst [vmem:[%s376 + $0x18] sm:$0x1] %v700
      %v702 = vld [vmem:[%s376 + $0x20] sm:$0x1]
      %v703 = vsel %vm689, %v669, %v702
      %704 = vst [vmem:[%s376 + $0x20] sm:$0x1] %v703
      %v705 = vld [vmem:[%s376 + $0x28] sm:$0x1]
      %v706 = vsel %vm689, %v672, %v705
      %707 = vst [vmem:[%s376 + $0x28] sm:$0x1] %v706
      %v708 = vld [vmem:[%s376 + $0x30] sm:$0x1]
      %v709 = vsel %vm689, %v675, %v708
      %710 = vst [vmem:[%s376 + $0x30] sm:$0x1] %v709
      %v711 = vld [vmem:[%s376 + $0x38] sm:$0x1]
      %v712 = vsel %vm689, %v678, %v711
      %713 = vst [vmem:[%s376 + $0x38] sm:$0x1] %v712
      %v714 = vld [vmem:[%s354] sm:$0x2]
      %v715 = vld [vmem:[%s354 + $0x8] sm:$0x2]
      %v716 = vld [vmem:[%s354 + $0x10] sm:$0x2]
      %v717 = vld [vmem:[%s354 + $0x18] sm:$0x2]
      %v718 = vld [vmem:[%s354 + $0x20] sm:$0x2]
      %v719 = vld [vmem:[%s354 + $0x28] sm:$0x2]
      %v720 = vld [vmem:[%s354 + $0x30] sm:$0x2]
      %v721 = vld [vmem:[%s354 + $0x38] sm:$0x2]
      %v722 = vunpack.c.l.bf16 %v714
      %v723 = vunpack.c.l.bf16 %v715
      %v724 = vunpack.c.l.bf16 %v716
      %v725 = vunpack.c.l.bf16 %v717
      %v726 = vunpack.c.l.bf16 %v718
      %v727 = vunpack.c.l.bf16 %v719
      %v728 = vunpack.c.l.bf16 %v720
      %v729 = vunpack.c.l.bf16 %v721
      %v730 = vmul.f32 %v616, %v421
      %v731 = vmul.f32 %v617, %v540
      %v732 = vmul.f32 %v618, %v541
      %v733 = vmul.f32 %v619, %v542
      %v734 = vmul.f32 %v620, %v543
      %v735 = vmul.f32 %v621, %v544
      %v736 = vmul.f32 %v622, %v545
      %v737 = vmul.f32 %v623, %v546
      %v746 = vrot.slane %v722, 2
      %v747 = vrot.slane %v723, 2
      %v748 = vrot.slane %v724, 2
      %v749 = vrot.slane %v725, 2
      %v750 = vrot.slane %v726, 2
      %v751 = vrot.slane %v727, 2
      %v752 = vrot.slane %v728, 2
      %v753 = vrot.slane %v729, 2
      %v762 = vadd.f32 %v730, %v746
      %v763 = vadd.f32 %v731, %v747
      %v764 = vadd.f32 %v732, %v748
      %v765 = vadd.f32 %v733, %v749
      %v766 = vadd.f32 %v734, %v750
      %v767 = vadd.f32 %v735, %v751
      %v768 = vadd.f32 %v736, %v752
      %v769 = vadd.f32 %v737, %v753
      %v770 = vadd.f32 %v762, %v458
      %v771 = vadd.f32 %v763, %v594
      %v772 = vadd.f32 %v764, %v595
      %v773 = vadd.f32 %v765, %v596
      %v774 = vadd.f32 %v766, %v597
      %v775 = vadd.f32 %v767, %v598
      %v776 = vadd.f32 %v768, %v599
      %v777 = vadd.f32 %v769, %v600
      %v778 = vmax.f32 %v770, 0.0
      %v779 = vmax.f32 %v771, 0.0
      %v780 = vmax.f32 %v772, 0.0
      %v781 = vmax.f32 %v773, 0.0
      %v782 = vmax.f32 %v774, 0.0
      %v783 = vmax.f32 %v775, 0.0
      %v784 = vmax.f32 %v776, 0.0
      %v785 = vmax.f32 %v777, 0.0
      %v786 = vpack.c.bf16 %v778, %v778
      %v787 = vpack.c.bf16 %v779, %v779
      %v788 = vpack.c.bf16 %v780, %v780
      %v789 = vpack.c.bf16 %v781, %v781
      %v790 = vpack.c.bf16 %v782, %v782
      %v791 = vpack.c.bf16 %v783, %v783
      %v792 = vpack.c.bf16 %v784, %v784
      %v793 = vpack.c.bf16 %v785, %v785
      %v802 = vunpack.c.l.b16 %v786
      %v803 = vunpack.c.l.b16 %v787
      %v804 = vunpack.c.l.b16 %v788
      %v805 = vunpack.c.l.b16 %v789
      %v806 = vunpack.c.l.b16 %v790
      %v807 = vunpack.c.l.b16 %v791
      %v808 = vunpack.c.l.b16 %v792
      %v809 = vunpack.c.l.b16 %v793
      %v810 = vpack.c.b16 %v802, %v802
      %v811 = vpack.c.b16 %v803, %v803
      %v812 = vpack.c.b16 %v804, %v804
      %v813 = vpack.c.b16 %v805, %v805
      %v814 = vpack.c.b16 %v806, %v806
      %v815 = vpack.c.b16 %v807, %v807
      %v816 = vpack.c.b16 %v808, %v808
      %v817 = vpack.c.b16 %v809, %v809
      %v818 = vrot.slane %v810, 7
      %v819 = vrot.slane %v811, 7
      %v820 = vrot.slane %v812, 7
      %v821 = vrot.slane %v813, 7
      %v822 = vrot.slane %v814, 7
      %v823 = vrot.slane %v815, 7
      %v824 = vrot.slane %v816, 7
      %v825 = vrot.slane %v817, 7
      %vm834 = vcmask 123905
      %vm835 = vsmask.f32 1280
      %vm836 = vmand %vm834, %vm835
      %v837 = vld [vmem:[%s376] sm:$0x2]
      %v838 = vsel %vm836, %v818, %v837
      %839 = vst [vmem:[%s376] sm:$0x2] %v838
      %v840 = vld [vmem:[%s376 + $0x8] sm:$0x2]
      %v841 = vsel %vm836, %v819, %v840
      %842 = vst [vmem:[%s376 + $0x8] sm:$0x2] %v841
      %v843 = vld [vmem:[%s376 + $0x10] sm:$0x2]
      %v844 = vsel %vm836, %v820, %v843
      %845 = vst [vmem:[%s376 + $0x10] sm:$0x2] %v844
      %v846 = vld [vmem:[%s376 + $0x18] sm:$0x2]
      %v847 = vsel %vm836, %v821, %v846
      %848 = vst [vmem:[%s376 + $0x18] sm:$0x2] %v847
      %v849 = vld [vmem:[%s376 + $0x20] sm:$0x2]
      %v850 = vsel %vm836, %v822, %v849
      %851 = vst [vmem:[%s376 + $0x20] sm:$0x2] %v850
      %v852 = vld [vmem:[%s376 + $0x28] sm:$0x2]
      %v853 = vsel %vm836, %v823, %v852
      %854 = vst [vmem:[%s376 + $0x28] sm:$0x2] %v853
      %v855 = vld [vmem:[%s376 + $0x30] sm:$0x2]
      %v856 = vsel %vm836, %v824, %v855
      %857 = vst [vmem:[%s376 + $0x30] sm:$0x2] %v856
      %v858 = vld [vmem:[%s376 + $0x38] sm:$0x2]
      %v859 = vsel %vm836, %v825, %v858
      %860 = vst [vmem:[%s376 + $0x38] sm:$0x2] %v859
      %v861 = vld [vmem:[%s354] sm:$0x2]
      %v862 = vld [vmem:[%s354 + $0x8] sm:$0x2]
      %v863 = vld [vmem:[%s354 + $0x10] sm:$0x2]
      %v864 = vld [vmem:[%s354 + $0x18] sm:$0x2]
      %v865 = vld [vmem:[%s354 + $0x20] sm:$0x2]
      %v866 = vld [vmem:[%s354 + $0x28] sm:$0x2]
      %v867 = vld [vmem:[%s354 + $0x30] sm:$0x2]
      %v868 = vld [vmem:[%s354 + $0x38] sm:$0x2]
      %v869 = vunpack.c.l.bf16 %v861
      %v870 = vunpack.c.l.bf16 %v862
      %v871 = vunpack.c.l.bf16 %v863
      %v872 = vunpack.c.l.bf16 %v864
      %v873 = vunpack.c.l.bf16 %v865
      %v874 = vunpack.c.l.bf16 %v866
      %v875 = vunpack.c.l.bf16 %v867
      %v876 = vunpack.c.l.bf16 %v868
      %v877 = vmul.f32 %v778, %v421
      %v878 = vmul.f32 %v779, %v540
      %v879 = vmul.f32 %v780, %v541
      %v880 = vmul.f32 %v781, %v542
      %v881 = vmul.f32 %v782, %v543
      %v882 = vmul.f32 %v783, %v544
      %v883 = vmul.f32 %v784, %v545
      %v884 = vmul.f32 %v785, %v546
      %v893 = vrot.slane %v869, 3
      %v894 = vrot.slane %v870, 3
      %v895 = vrot.slane %v871, 3
      %v896 = vrot.slane %v872, 3
      %v897 = vrot.slane %v873, 3
      %v898 = vrot.slane %v874, 3
      %v899 = vrot.slane %v875, 3
      %v900 = vrot.slane %v876, 3
      %v909 = vadd.f32 %v877, %v893
      %v910 = vadd.f32 %v878, %v894
      %v911 = vadd.f32 %v879, %v895
      %v912 = vadd.f32 %v880, %v896
      %v913 = vadd.f32 %v881, %v897
      %v914 = vadd.f32 %v882, %v898
      %v915 = vadd.f32 %v883, %v899
      %v916 = vadd.f32 %v884, %v900
      %v917 = vadd.f32 %v909, %v458
      %v918 = vadd.f32 %v910, %v594
      %v919 = vadd.f32 %v911, %v595
      %v920 = vadd.f32 %v912, %v596
      %v921 = vadd.f32 %v913, %v597
      %v922 = vadd.f32 %v914, %v598
      %v923 = vadd.f32 %v915, %v599
      %v924 = vadd.f32 %v916, %v600
      %v925 = vmax.f32 %v917, 0.0
      %v926 = vmax.f32 %v918, 0.0
      %v927 = vmax.f32 %v919, 0.0
      %v928 = vmax.f32 %v920, 0.0
      %v929 = vmax.f32 %v921, 0.0
      %v930 = vmax.f32 %v922, 0.0
      %v931 = vmax.f32 %v923, 0.0
      %v932 = vmax.f32 %v924, 0.0
      %v933 = vpack.c.bf16 %v925, %v925
      %v934 = vpack.c.bf16 %v926, %v926
      %v935 = vpack.c.bf16 %v927, %v927
      %v936 = vpack.c.bf16 %v928, %v928
      %v937 = vpack.c.bf16 %v929, %v929
      %v938 = vpack.c.bf16 %v930, %v930
      %v939 = vpack.c.bf16 %v931, %v931
      %v940 = vpack.c.bf16 %v932, %v932
      %v949 = vunpack.c.l.b16 %v933
      %v950 = vunpack.c.l.b16 %v934
      %v951 = vunpack.c.l.b16 %v935
      %v952 = vunpack.c.l.b16 %v936
      %v953 = vunpack.c.l.b16 %v937
      %v954 = vunpack.c.l.b16 %v938
      %v955 = vunpack.c.l.b16 %v939
      %v956 = vunpack.c.l.b16 %v940
      %v957 = vpack.c.b16 %v949, %v949
      %v958 = vpack.c.b16 %v950, %v950
      %v959 = vpack.c.b16 %v951, %v951
      %v960 = vpack.c.b16 %v952, %v952
      %v961 = vpack.c.b16 %v953, %v953
      %v962 = vpack.c.b16 %v954, %v954
      %v963 = vpack.c.b16 %v955, %v955
      %v964 = vpack.c.b16 %v956, %v956
      %v966 = vshll.u32 %v957, 16
      %v968 = vrot.slane %v966, 7
      %v970 = vshll.u32 %v958, 16
      %v972 = vrot.slane %v970, 7
      %v974 = vshll.u32 %v959, 16
      %v976 = vrot.slane %v974, 7
      %v978 = vshll.u32 %v960, 16
      %v980 = vrot.slane %v978, 7
      %v982 = vshll.u32 %v961, 16
      %v984 = vrot.slane %v982, 7
      %v986 = vshll.u32 %v962, 16
      %v988 = vrot.slane %v986, 7
      %v990 = vshll.u32 %v963, 16
      %v992 = vrot.slane %v990, 7
      %v994 = vshll.u32 %v964, 16
      %v996 = vrot.slane %v994, 7
      %vm1005 = vsmask.f32 7942
      %vm1006 = vmand %vm834, %vm1005
      %v1007 = vld [vmem:[%s376] sm:$0x2]
      %v1008 = vsel %vm1006, %v968, %v1007
      %1009 = vst [vmem:[%s376] sm:$0x2] %v1008
      %v1010 = vld [vmem:[%s376 + $0x8] sm:$0x2]
      %v1011 = vsel %vm1006, %v972, %v1010
      %1012 = vst [vmem:[%s376 + $0x8] sm:$0x2] %v1011
      %v1013 = vld [vmem:[%s376 + $0x10] sm:$0x2]
      %v1014 = vsel %vm1006, %v976, %v1013
      %1015 = vst [vmem:[%s376 + $0x10] sm:$0x2] %v1014
      %v1016 = vld [vmem:[%s376 + $0x18] sm:$0x2]
      %v1017 = vsel %vm1006, %v980, %v1016
      %1018 = vst [vmem:[%s376 + $0x18] sm:$0x2] %v1017
      %v1019 = vld [vmem:[%s376 + $0x20] sm:$0x2]
      %v1020 = vsel %vm1006, %v984, %v1019
      %1021 = vst [vmem:[%s376 + $0x20] sm:$0x2] %v1020
      %v1022 = vld [vmem:[%s376 + $0x28] sm:$0x2]
      %v1023 = vsel %vm1006, %v988, %v1022
      %1024 = vst [vmem:[%s376 + $0x28] sm:$0x2] %v1023
      %v1025 = vld [vmem:[%s376 + $0x30] sm:$0x2]
      %v1026 = vsel %vm1006, %v992, %v1025
      %1027 = vst [vmem:[%s376 + $0x30] sm:$0x2] %v1026
      %v1028 = vld [vmem:[%s376 + $0x38] sm:$0x2]
      %v1029 = vsel %vm1006, %v996, %v1028
      %1030 = vst [vmem:[%s376 + $0x38] sm:$0x2] %v1029
      %v1031 = vld [vmem:[%s354] sm:$0x4]
      %v1032 = vld [vmem:[%s354 + $0x8] sm:$0x4]
      %v1033 = vld [vmem:[%s354 + $0x10] sm:$0x4]
      %v1034 = vld [vmem:[%s354 + $0x18] sm:$0x4]
      %v1035 = vld [vmem:[%s354 + $0x20] sm:$0x4]
      %v1036 = vld [vmem:[%s354 + $0x28] sm:$0x4]
      %v1037 = vld [vmem:[%s354 + $0x30] sm:$0x4]
      %v1038 = vld [vmem:[%s354 + $0x38] sm:$0x4]
      %v1039 = vunpack.c.l.bf16 %v1031
      %v1040 = vunpack.c.l.bf16 %v1032
      %v1041 = vunpack.c.l.bf16 %v1033
      %v1042 = vunpack.c.l.bf16 %v1034
      %v1043 = vunpack.c.l.bf16 %v1035
      %v1044 = vunpack.c.l.bf16 %v1036
      %v1045 = vunpack.c.l.bf16 %v1037
      %v1046 = vunpack.c.l.bf16 %v1038
      %v1047 = vmul.f32 %v925, %v421
      %v1048 = vmul.f32 %v926, %v540
      %v1049 = vmul.f32 %v927, %v541
      %v1050 = vmul.f32 %v928, %v542
      %v1051 = vmul.f32 %v929, %v543
      %v1052 = vmul.f32 %v930, %v544
      %v1053 = vmul.f32 %v931, %v545
      %v1054 = vmul.f32 %v932, %v546
      %v1063 = vrot.slane %v1039, 4
      %v1064 = vrot.slane %v1040, 4
      %v1065 = vrot.slane %v1041, 4
      %v1066 = vrot.slane %v1042, 4
      %v1067 = vrot.slane %v1043, 4
      %v1068 = vrot.slane %v1044, 4
      %v1069 = vrot.slane %v1045, 4
      %v1070 = vrot.slane %v1046, 4
      %v1079 = vadd.f32 %v1047, %v1063
      %v1080 = vadd.f32 %v1048, %v1064
      %v1081 = vadd.f32 %v1049, %v1065
      %v1082 = vadd.f32 %v1050, %v1066
      %v1083 = vadd.f32 %v1051, %v1067
      %v1084 = vadd.f32 %v1052, %v1068
      %v1085 = vadd.f32 %v1053, %v1069
      %v1086 = vadd.f32 %v1054, %v1070
      %v1087 = vadd.f32 %v1079, %v458
      %v1088 = vadd.f32 %v1080, %v594
      %v1089 = vadd.f32 %v1081, %v595
      %v1090 = vadd.f32 %v1082, %v596
      %v1091 = vadd.f32 %v1083, %v597
      %v1092 = vadd.f32 %v1084, %v598
      %v1093 = vadd.f32 %v1085, %v599
      %v1094 = vadd.f32 %v1086, %v600
      %v1095 = vmax.f32 %v1087, 0.0
      %v1096 = vmax.f32 %v1088, 0.0
      %v1097 = vmax.f32 %v1089, 0.0
      %v1098 = vmax.f32 %v1090, 0.0
      %v1099 = vmax.f32 %v1091, 0.0
      %v1100 = vmax.f32 %v1092, 0.0
      %v1101 = vmax.f32 %v1093, 0.0
      %v1102 = vmax.f32 %v1094, 0.0
      %v1103 = vpack.c.bf16 %v1095, %v1095
      %v1104 = vpack.c.bf16 %v1096, %v1096
      %v1105 = vpack.c.bf16 %v1097, %v1097
      %v1106 = vpack.c.bf16 %v1098, %v1098
      %v1107 = vpack.c.bf16 %v1099, %v1099
      %v1108 = vpack.c.bf16 %v1100, %v1100
      %v1109 = vpack.c.bf16 %v1101, %v1101
      %v1110 = vpack.c.bf16 %v1102, %v1102
      %v1119 = vunpack.c.l.b16 %v1103
      %v1120 = vunpack.c.l.b16 %v1104
      %v1121 = vunpack.c.l.b16 %v1105
      %v1122 = vunpack.c.l.b16 %v1106
      %v1123 = vunpack.c.l.b16 %v1107
      %v1124 = vunpack.c.l.b16 %v1108
      %v1125 = vunpack.c.l.b16 %v1109
      %v1126 = vunpack.c.l.b16 %v1110
      %v1127 = vpack.c.b16 %v1119, %v1119
      %v1128 = vpack.c.b16 %v1120, %v1120
      %v1129 = vpack.c.b16 %v1121, %v1121
      %v1130 = vpack.c.b16 %v1122, %v1122
      %v1131 = vpack.c.b16 %v1123, %v1123
      %v1132 = vpack.c.b16 %v1124, %v1124
      %v1133 = vpack.c.b16 %v1125, %v1125
      %v1134 = vpack.c.b16 %v1126, %v1126
      %v1135 = vrot.slane %v1127, 6
      %v1136 = vrot.slane %v1128, 6
      %v1137 = vrot.slane %v1129, 6
      %v1138 = vrot.slane %v1130, 6
      %v1139 = vrot.slane %v1131, 6
      %v1140 = vrot.slane %v1132, 6
      %v1141 = vrot.slane %v1133, 6
      %v1142 = vrot.slane %v1134, 6
      %vm1151 = vcmask 124930
      %vm1152 = vsmask.f32 2304
      %vm1153 = vmand %vm1151, %vm1152
      %v1154 = vld [vmem:[%s376] sm:$0x4]
      %v1155 = vsel %vm1153, %v1135, %v1154
      %1156 = vst [vmem:[%s376] sm:$0x4] %v1155
      %v1157 = vld [vmem:[%s376 + $0x8] sm:$0x4]
      %v1158 = vsel %vm1153, %v1136, %v1157
      %1159 = vst [vmem:[%s376 + $0x8] sm:$0x4] %v1158
      %v1160 = vld [vmem:[%s376 + $0x10] sm:$0x4]
      %v1161 = vsel %vm1153, %v1137, %v1160
      %1162 = vst [vmem:[%s376 + $0x10] sm:$0x4] %v1161
      %v1163 = vld [vmem:[%s376 + $0x18] sm:$0x4]
      %v1164 = vsel %vm1153, %v1138, %v1163
      %1165 = vst [vmem:[%s376 + $0x18] sm:$0x4] %v1164
      %v1166 = vld [vmem:[%s376 + $0x20] sm:$0x4]
      %v1167 = vsel %vm1153, %v1139, %v1166
      %1168 = vst [vmem:[%s376 + $0x20] sm:$0x4] %v1167
      %v1169 = vld [vmem:[%s376 + $0x28] sm:$0x4]
      %v1170 = vsel %vm1153, %v1140, %v1169
      %1171 = vst [vmem:[%s376 + $0x28] sm:$0x4] %v1170
      %v1172 = vld [vmem:[%s376 + $0x30] sm:$0x4]
      %v1173 = vsel %vm1153, %v1141, %v1172
      %1174 = vst [vmem:[%s376 + $0x30] sm:$0x4] %v1173
      %v1175 = vld [vmem:[%s376 + $0x38] sm:$0x4]
      %v1176 = vsel %vm1153, %v1142, %v1175
      %1177 = vst [vmem:[%s376 + $0x38] sm:$0x4] %v1176
      %v1178 = vld [vmem:[%s354] sm:$0x4]
      %v1179 = vld [vmem:[%s354 + $0x8] sm:$0x4]
      %v1180 = vld [vmem:[%s354 + $0x10] sm:$0x4]
      %v1181 = vld [vmem:[%s354 + $0x18] sm:$0x4]
      %v1182 = vld [vmem:[%s354 + $0x20] sm:$0x4]
      %v1183 = vld [vmem:[%s354 + $0x28] sm:$0x4]
      %v1184 = vld [vmem:[%s354 + $0x30] sm:$0x4]
      %v1185 = vld [vmem:[%s354 + $0x38] sm:$0x4]
      %v1186 = vunpack.c.l.bf16 %v1178
      %v1187 = vunpack.c.l.bf16 %v1179
      %v1188 = vunpack.c.l.bf16 %v1180
      %v1189 = vunpack.c.l.bf16 %v1181
      %v1190 = vunpack.c.l.bf16 %v1182
      %v1191 = vunpack.c.l.bf16 %v1183
      %v1192 = vunpack.c.l.bf16 %v1184
      %v1193 = vunpack.c.l.bf16 %v1185
      %v1194 = vmul.f32 %v1095, %v421
      %v1195 = vmul.f32 %v1096, %v540
      %v1196 = vmul.f32 %v1097, %v541
      %v1197 = vmul.f32 %v1098, %v542
      %v1198 = vmul.f32 %v1099, %v543
      %v1199 = vmul.f32 %v1100, %v544
      %v1200 = vmul.f32 %v1101, %v545
      %v1201 = vmul.f32 %v1102, %v546
      %v1210 = vrot.slane %v1186, 5
      %v1211 = vrot.slane %v1187, 5
      %v1212 = vrot.slane %v1188, 5
      %v1213 = vrot.slane %v1189, 5
      %v1214 = vrot.slane %v1190, 5
      %v1215 = vrot.slane %v1191, 5
      %v1216 = vrot.slane %v1192, 5
      %v1217 = vrot.slane %v1193, 5
      %v1226 = vadd.f32 %v1194, %v1210
      %v1227 = vadd.f32 %v1195, %v1211
      %v1228 = vadd.f32 %v1196, %v1212
      %v1229 = vadd.f32 %v1197, %v1213
      %v1230 = vadd.f32 %v1198, %v1214
      %v1231 = vadd.f32 %v1199, %v1215
      %v1232 = vadd.f32 %v1200, %v1216
      %v1233 = vadd.f32 %v1201, %v1217
      %v1234 = vadd.f32 %v1226, %v458
      %v1235 = vadd.f32 %v1227, %v594
      %v1236 = vadd.f32 %v1228, %v595
      %v1237 = vadd.f32 %v1229, %v596
      %v1238 = vadd.f32 %v1230, %v597
      %v1239 = vadd.f32 %v1231, %v598
      %v1240 = vadd.f32 %v1232, %v599
      %v1241 = vadd.f32 %v1233, %v600
      %v1242 = vmax.f32 %v1234, 0.0
      %v1243 = vmax.f32 %v1235, 0.0
      %v1244 = vmax.f32 %v1236, 0.0
      %v1245 = vmax.f32 %v1237, 0.0
      %v1246 = vmax.f32 %v1238, 0.0
      %v1247 = vmax.f32 %v1239, 0.0
      %v1248 = vmax.f32 %v1240, 0.0
      %v1249 = vmax.f32 %v1241, 0.0
      %v1250 = vpack.c.bf16 %v1242, %v1242
      %v1251 = vpack.c.bf16 %v1243, %v1243
      %v1252 = vpack.c.bf16 %v1244, %v1244
      %v1253 = vpack.c.bf16 %v1245, %v1245
      %v1254 = vpack.c.bf16 %v1246, %v1246
      %v1255 = vpack.c.bf16 %v1247, %v1247
      %v1256 = vpack.c.bf16 %v1248, %v1248
      %v1257 = vpack.c.bf16 %v1249, %v1249
      %v1266 = vunpack.c.l.b16 %v1250
      %v1267 = vunpack.c.l.b16 %v1251
      %v1268 = vunpack.c.l.b16 %v1252
      %v1269 = vunpack.c.l.b16 %v1253
      %v1270 = vunpack.c.l.b16 %v1254
      %v1271 = vunpack.c.l.b16 %v1255
      %v1272 = vunpack.c.l.b16 %v1256
      %v1273 = vunpack.c.l.b16 %v1257
      %v1274 = vpack.c.b16 %v1266, %v1266
      %v1275 = vpack.c.b16 %v1267, %v1267
      %v1276 = vpack.c.b16 %v1268, %v1268
      %v1277 = vpack.c.b16 %v1269, %v1269
      %v1278 = vpack.c.b16 %v1270, %v1270
      %v1279 = vpack.c.b16 %v1271, %v1271
      %v1280 = vpack.c.b16 %v1272, %v1272
      %v1281 = vpack.c.b16 %v1273, %v1273
      %v1283 = vshll.u32 %v1274, 16
      %v1285 = vrot.slane %v1283, 6
      %v1287 = vshll.u32 %v1275, 16
      %v1289 = vrot.slane %v1287, 6
      %v1291 = vshll.u32 %v1276, 16
      %v1293 = vrot.slane %v1291, 6
      %v1295 = vshll.u32 %v1277, 16
      %v1297 = vrot.slane %v1295, 6
      %v1299 = vshll.u32 %v1278, 16
      %v1301 = vrot.slane %v1299, 6
      %v1303 = vshll.u32 %v1279, 16
      %v1305 = vrot.slane %v1303, 6
      %v1307 = vshll.u32 %v1280, 16
      %v1309 = vrot.slane %v1307, 6
      %v1311 = vshll.u32 %v1281, 16
      %v1313 = vrot.slane %v1311, 6
      %vm1322 = vsmask.f32 7946
      %vm1323 = vmand %vm1151, %vm1322
      %v1324 = vld [vmem:[%s376] sm:$0x4]
      %v1325 = vsel %vm1323, %v1285, %v1324
      %1326 = vst [vmem:[%s376] sm:$0x4] %v1325
      %v1327 = vld [vmem:[%s376 + $0x8] sm:$0x4]
      %v1328 = vsel %vm1323, %v1289, %v1327
      %1329 = vst [vmem:[%s376 + $0x8] sm:$0x4] %v1328
      %v1330 = vld [vmem:[%s376 + $0x10] sm:$0x4]
      %v1331 = vsel %vm1323, %v1293, %v1330
      %1332 = vst [vmem:[%s376 + $0x10] sm:$0x4] %v1331
      %v1333 = vld [vmem:[%s376 + $0x18] sm:$0x4]
      %v1334 = vsel %vm1323, %v1297, %v1333
      %1335 = vst [vmem:[%s376 + $0x18] sm:$0x4] %v1334
      %v1336 = vld [vmem:[%s376 + $0x20] sm:$0x4]
      %v1337 = vsel %vm1323, %v1301, %v1336
      %1338 = vst [vmem:[%s376 + $0x20] sm:$0x4] %v1337
      %v1339 = vld [vmem:[%s376 + $0x28] sm:$0x4]
      %v1340 = vsel %vm1323, %v1305, %v1339
      %1341 = vst [vmem:[%s376 + $0x28] sm:$0x4] %v1340
      %v1342 = vld [vmem:[%s376 + $0x30] sm:$0x4]
      %v1343 = vsel %vm1323, %v1309, %v1342
      %1344 = vst [vmem:[%s376 + $0x30] sm:$0x4] %v1343
      %v1345 = vld [vmem:[%s376 + $0x38] sm:$0x4]
      %v1346 = vsel %vm1323, %v1313, %v1345
      %1347 = vst [vmem:[%s376 + $0x38] sm:$0x4] %v1346
      %v1348 = vld [vmem:[%s354] sm:$0x8]
      %v1349 = vld [vmem:[%s354 + $0x8] sm:$0x8]
      %v1350 = vld [vmem:[%s354 + $0x10] sm:$0x8]
      %v1351 = vld [vmem:[%s354 + $0x18] sm:$0x8]
      %v1352 = vld [vmem:[%s354 + $0x20] sm:$0x8]
      %v1353 = vld [vmem:[%s354 + $0x28] sm:$0x8]
      %v1354 = vld [vmem:[%s354 + $0x30] sm:$0x8]
      %v1355 = vld [vmem:[%s354 + $0x38] sm:$0x8]
      %v1356 = vunpack.c.l.bf16 %v1348
      %v1357 = vunpack.c.l.bf16 %v1349
      %v1358 = vunpack.c.l.bf16 %v1350
      %v1359 = vunpack.c.l.bf16 %v1351
      %v1360 = vunpack.c.l.bf16 %v1352
      %v1361 = vunpack.c.l.bf16 %v1353
      %v1362 = vunpack.c.l.bf16 %v1354
      %v1363 = vunpack.c.l.bf16 %v1355
      %v1364 = vmul.f32 %v1242, %v421
      %v1365 = vmul.f32 %v1243, %v540
      %v1366 = vmul.f32 %v1244, %v541
      %v1367 = vmul.f32 %v1245, %v542
      %v1368 = vmul.f32 %v1246, %v543
      %v1369 = vmul.f32 %v1247, %v544
      %v1370 = vmul.f32 %v1248, %v545
      %v1371 = vmul.f32 %v1249, %v546
      %v1380 = vrot.slane %v1356, 6
      %v1381 = vrot.slane %v1357, 6
      %v1382 = vrot.slane %v1358, 6
      %v1383 = vrot.slane %v1359, 6
      %v1384 = vrot.slane %v1360, 6
      %v1385 = vrot.slane %v1361, 6
      %v1386 = vrot.slane %v1362, 6
      %v1387 = vrot.slane %v1363, 6
      %v1396 = vadd.f32 %v1364, %v1380
      %v1397 = vadd.f32 %v1365, %v1381
      %v1398 = vadd.f32 %v1366, %v1382
      %v1399 = vadd.f32 %v1367, %v1383
      %v1400 = vadd.f32 %v1368, %v1384
      %v1401 = vadd.f32 %v1369, %v1385
      %v1402 = vadd.f32 %v1370, %v1386
      %v1403 = vadd.f32 %v1371, %v1387
      %v1404 = vadd.f32 %v1396, %v458
      %v1405 = vadd.f32 %v1397, %v594
      %v1406 = vadd.f32 %v1398, %v595
      %v1407 = vadd.f32 %v1399, %v596
      %v1408 = vadd.f32 %v1400, %v597
      %v1409 = vadd.f32 %v1401, %v598
      %v1410 = vadd.f32 %v1402, %v599
      %v1411 = vadd.f32 %v1403, %v600
      %v1412 = vmax.f32 %v1404, 0.0
      %v1413 = vmax.f32 %v1405, 0.0
      %v1414 = vmax.f32 %v1406, 0.0
      %v1415 = vmax.f32 %v1407, 0.0
      %v1416 = vmax.f32 %v1408, 0.0
      %v1417 = vmax.f32 %v1409, 0.0
      %v1418 = vmax.f32 %v1410, 0.0
      %v1419 = vmax.f32 %v1411, 0.0
      %v1420 = vpack.c.bf16 %v1412, %v1412
      %v1421 = vpack.c.bf16 %v1413, %v1413
      %v1422 = vpack.c.bf16 %v1414, %v1414
      %v1423 = vpack.c.bf16 %v1415, %v1415
      %v1424 = vpack.c.bf16 %v1416, %v1416
      %v1425 = vpack.c.bf16 %v1417, %v1417
      %v1426 = vpack.c.bf16 %v1418, %v1418
      %v1427 = vpack.c.bf16 %v1419, %v1419
      %v1436 = vunpack.c.l.b16 %v1420
      %v1437 = vunpack.c.l.b16 %v1421
      %v1438 = vunpack.c.l.b16 %v1422
      %v1439 = vunpack.c.l.b16 %v1423
      %v1440 = vunpack.c.l.b16 %v1424
      %v1441 = vunpack.c.l.b16 %v1425
      %v1442 = vunpack.c.l.b16 %v1426
      %v1443 = vunpack.c.l.b16 %v1427
      %v1444 = vpack.c.b16 %v1436, %v1436
      %v1445 = vpack.c.b16 %v1437, %v1437
      %v1446 = vpack.c.b16 %v1438, %v1438
      %v1447 = vpack.c.b16 %v1439, %v1439
      %v1448 = vpack.c.b16 %v1440, %v1440
      %v1449 = vpack.c.b16 %v1441, %v1441
      %v1450 = vpack.c.b16 %v1442, %v1442
      %v1451 = vpack.c.b16 %v1443, %v1443
      %v1452 = vrot.slane %v1444, 5
      %v1453 = vrot.slane %v1445, 5
      %v1454 = vrot.slane %v1446, 5
      %v1455 = vrot.slane %v1447, 5
      %v1456 = vrot.slane %v1448, 5
      %v1457 = vrot.slane %v1449, 5
      %v1458 = vrot.slane %v1450, 5
      %v1459 = vrot.slane %v1451, 5
      %vm1468 = vcmask 125955
      %vm1469 = vsmask.f32 3328
      %vm1470 = vmand %vm1468, %vm1469
      %v1471 = vld [vmem:[%s376] sm:$0x8]
      %v1472 = vsel %vm1470, %v1452, %v1471
      %1473 = vst [vmem:[%s376] sm:$0x8] %v1472
      %v1474 = vld [vmem:[%s376 + $0x8] sm:$0x8]
      %v1475 = vsel %vm1470, %v1453, %v1474
      %1476 = vst [vmem:[%s376 + $0x8] sm:$0x8] %v1475
      %v1477 = vld [vmem:[%s376 + $0x10] sm:$0x8]
      %v1478 = vsel %vm1470, %v1454, %v1477
      %1479 = vst [vmem:[%s376 + $0x10] sm:$0x8] %v1478
      %v1480 = vld [vmem:[%s376 + $0x18] sm:$0x8]
      %v1481 = vsel %vm1470, %v1455, %v1480
      %1482 = vst [vmem:[%s376 + $0x18] sm:$0x8] %v1481
      %v1483 = vld [vmem:[%s376 + $0x20] sm:$0x8]
      %v1484 = vsel %vm1470, %v1456, %v1483
      %1485 = vst [vmem:[%s376 + $0x20] sm:$0x8] %v1484
      %v1486 = vld [vmem:[%s376 + $0x28] sm:$0x8]
      %v1487 = vsel %vm1470, %v1457, %v1486
      %1488 = vst [vmem:[%s376 + $0x28] sm:$0x8] %v1487
      %v1489 = vld [vmem:[%s376 + $0x30] sm:$0x8]
      %v1490 = vsel %vm1470, %v1458, %v1489
      %1491 = vst [vmem:[%s376 + $0x30] sm:$0x8] %v1490
      %v1492 = vld [vmem:[%s376 + $0x38] sm:$0x8]
      %v1493 = vsel %vm1470, %v1459, %v1492
      %1494 = vst [vmem:[%s376 + $0x38] sm:$0x8] %v1493
      %v1495 = vld [vmem:[%s354] sm:$0x8]
      %v1496 = vld [vmem:[%s354 + $0x8] sm:$0x8]
      %v1497 = vld [vmem:[%s354 + $0x10] sm:$0x8]
      %v1498 = vld [vmem:[%s354 + $0x18] sm:$0x8]
      %v1499 = vld [vmem:[%s354 + $0x20] sm:$0x8]
      %v1500 = vld [vmem:[%s354 + $0x28] sm:$0x8]
      %v1501 = vld [vmem:[%s354 + $0x30] sm:$0x8]
      %v1502 = vld [vmem:[%s354 + $0x38] sm:$0x8]
      %v1503 = vunpack.c.l.bf16 %v1495
      %v1504 = vunpack.c.l.bf16 %v1496
      %v1505 = vunpack.c.l.bf16 %v1497
      %v1506 = vunpack.c.l.bf16 %v1498
      %v1507 = vunpack.c.l.bf16 %v1499
      %v1508 = vunpack.c.l.bf16 %v1500
      %v1509 = vunpack.c.l.bf16 %v1501
      %v1510 = vunpack.c.l.bf16 %v1502
      %v1511 = vmul.f32 %v1412, %v421
      %v1512 = vmul.f32 %v1413, %v540
      %v1513 = vmul.f32 %v1414, %v541
      %v1514 = vmul.f32 %v1415, %v542
      %v1515 = vmul.f32 %v1416, %v543
      %v1516 = vmul.f32 %v1417, %v544
      %v1517 = vmul.f32 %v1418, %v545
      %v1518 = vmul.f32 %v1419, %v546
      %v1527 = vrot.slane %v1503, 7
      %v1528 = vrot.slane %v1504, 7
      %v1529 = vrot.slane %v1505, 7
      %v1530 = vrot.slane %v1506, 7
      %v1531 = vrot.slane %v1507, 7
      %v1532 = vrot.slane %v1508, 7
      %v1533 = vrot.slane %v1509, 7
      %v1534 = vrot.slane %v1510, 7
      %v1543 = vadd.f32 %v1511, %v1527
      %v1544 = vadd.f32 %v1512, %v1528
      %v1545 = vadd.f32 %v1513, %v1529
      %v1546 = vadd.f32 %v1514, %v1530
      %v1547 = vadd.f32 %v1515, %v1531
      %v1548 = vadd.f32 %v1516, %v1532
      %v1549 = vadd.f32 %v1517, %v1533
      %v1550 = vadd.f32 %v1518, %v1534
      %v1551 = vadd.f32 %v1543, %v458
      %v1552 = vadd.f32 %v1544, %v594
      %v1553 = vadd.f32 %v1545, %v595
      %v1554 = vadd.f32 %v1546, %v596
      %v1555 = vadd.f32 %v1547, %v597
      %v1556 = vadd.f32 %v1548, %v598
      %v1557 = vadd.f32 %v1549, %v599
      %v1558 = vadd.f32 %v1550, %v600
      %v1559 = vmax.f32 %v1551, 0.0
      %v1560 = vmax.f32 %v1552, 0.0
      %v1561 = vmax.f32 %v1553, 0.0
      %v1562 = vmax.f32 %v1554, 0.0
      %v1563 = vmax.f32 %v1555, 0.0
      %v1564 = vmax.f32 %v1556, 0.0
      %v1565 = vmax.f32 %v1557, 0.0
      %v1566 = vmax.f32 %v1558, 0.0
      %v1567 = vpack.c.bf16 %v1559, %v1559
      %v1568 = vpack.c.bf16 %v1560, %v1560
      %v1569 = vpack.c.bf16 %v1561, %v1561
      %v1570 = vpack.c.bf16 %v1562, %v1562
      %v1571 = vpack.c.bf16 %v1563, %v1563
      %v1572 = vpack.c.bf16 %v1564, %v1564
      %v1573 = vpack.c.bf16 %v1565, %v1565
      %v1574 = vpack.c.bf16 %v1566, %v1566
      %v1583 = vunpack.c.l.b16 %v1567
      %v1584 = vunpack.c.l.b16 %v1568
      %v1585 = vunpack.c.l.b16 %v1569
      %v1586 = vunpack.c.l.b16 %v1570
      %v1587 = vunpack.c.l.b16 %v1571
      %v1588 = vunpack.c.l.b16 %v1572
      %v1589 = vunpack.c.l.b16 %v1573
      %v1590 = vunpack.c.l.b16 %v1574
      %v1591 = vpack.c.b16 %v1583, %v1583
      %v1592 = vpack.c.b16 %v1584, %v1584
      %v1593 = vpack.c.b16 %v1585, %v1585
      %v1594 = vpack.c.b16 %v1586, %v1586
      %v1595 = vpack.c.b16 %v1587, %v1587
      %v1596 = vpack.c.b16 %v1588, %v1588
      %v1597 = vpack.c.b16 %v1589, %v1589
      %v1598 = vpack.c.b16 %v1590, %v1590
      %v1600 = vshll.u32 %v1591, 16
      %v1602 = vrot.slane %v1600, 5
      %v1604 = vshll.u32 %v1592, 16
      %v1606 = vrot.slane %v1604, 5
      %v1608 = vshll.u32 %v1593, 16
      %v1610 = vrot.slane %v1608, 5
      %v1612 = vshll.u32 %v1594, 16
      %v1614 = vrot.slane %v1612, 5
      %v1616 = vshll.u32 %v1595, 16
      %v1618 = vrot.slane %v1616, 5
      %v1620 = vshll.u32 %v1596, 16
      %v1622 = vrot.slane %v1620, 5
      %v1624 = vshll.u32 %v1597, 16
      %v1626 = vrot.slane %v1624, 5
      %v1628 = vshll.u32 %v1598, 16
      %v1630 = vrot.slane %v1628, 5
      %vm1639 = vsmask.f32 7950
      %vm1640 = vmand %vm1468, %vm1639
      %v1641 = vld [vmem:[%s376] sm:$0x8]
      %v1642 = vsel %vm1640, %v1602, %v1641
      %1643 = vst [vmem:[%s376] sm:$0x8] %v1642
      %v1644 = vld [vmem:[%s376 + $0x8] sm:$0x8]
      %v1645 = vsel %vm1640, %v1606, %v1644
      %1646 = vst [vmem:[%s376 + $0x8] sm:$0x8] %v1645
      %v1647 = vld [vmem:[%s376 + $0x10] sm:$0x8]
      %v1648 = vsel %vm1640, %v1610, %v1647
      %1649 = vst [vmem:[%s376 + $0x10] sm:$0x8] %v1648
      %v1650 = vld [vmem:[%s376 + $0x18] sm:$0x8]
      %v1651 = vsel %vm1640, %v1614, %v1650
      %1652 = vst [vmem:[%s376 + $0x18] sm:$0x8] %v1651
      %v1653 = vld [vmem:[%s376 + $0x20] sm:$0x8]
      %v1654 = vsel %vm1640, %v1618, %v1653
      %1655 = vst [vmem:[%s376 + $0x20] sm:$0x8] %v1654
      %v1656 = vld [vmem:[%s376 + $0x28] sm:$0x8]
      %v1657 = vsel %vm1640, %v1622, %v1656
      %1658 = vst [vmem:[%s376 + $0x28] sm:$0x8] %v1657
      %v1659 = vld [vmem:[%s376 + $0x30] sm:$0x8]
      %v1660 = vsel %vm1640, %v1626, %v1659
      %1661 = vst [vmem:[%s376 + $0x30] sm:$0x8] %v1660
      %v1662 = vld [vmem:[%s376 + $0x38] sm:$0x8]
      %v1663 = vsel %vm1640, %v1630, %v1662
      %1664 = vst [vmem:[%s376 + $0x38] sm:$0x8] %v1663
      %v1665 = vld [vmem:[%s354 + $0x4] sm:$0x1]
      %v1666 = vld [vmem:[%s354 + $0xc] sm:$0x1]
      %v1667 = vld [vmem:[%s354 + $0x14] sm:$0x1]
      %v1668 = vld [vmem:[%s354 + $0x1c] sm:$0x1]
      %v1669 = vld [vmem:[%s354 + $0x24] sm:$0x1]
      %v1670 = vld [vmem:[%s354 + $0x2c] sm:$0x1]
      %v1671 = vld [vmem:[%s354 + $0x34] sm:$0x1]
      %v1672 = vld [vmem:[%s354 + $0x3c] sm:$0x1]
      %v1673 = vunpack.c.l.bf16 %v1665
      %v1674 = vunpack.c.l.bf16 %v1666
      %v1675 = vunpack.c.l.bf16 %v1667
      %v1676 = vunpack.c.l.bf16 %v1668
      %v1677 = vunpack.c.l.bf16 %v1669
      %v1678 = vunpack.c.l.bf16 %v1670
      %v1679 = vunpack.c.l.bf16 %v1671
      %v1680 = vunpack.c.l.bf16 %v1672
      %v1681 = vmul.f32 %v1559, %v421
      %v1682 = vmul.f32 %v1560, %v540
      %v1683 = vmul.f32 %v1561, %v541
      %v1684 = vmul.f32 %v1562, %v542
      %v1685 = vmul.f32 %v1563, %v543
      %v1686 = vmul.f32 %v1564, %v544
      %v1687 = vmul.f32 %v1565, %v545
      %v1688 = vmul.f32 %v1566, %v546
      %v1689 = vadd.f32 %v1681, %v1673
      %v1690 = vadd.f32 %v1682, %v1674
      %v1691 = vadd.f32 %v1683, %v1675
      %v1692 = vadd.f32 %v1684, %v1676
      %v1693 = vadd.f32 %v1685, %v1677
      %v1694 = vadd.f32 %v1686, %v1678
      %v1695 = vadd.f32 %v1687, %v1679
      %v1696 = vadd.f32 %v1688, %v1680
      %v1697 = vadd.f32 %v1689, %v458
      %v1698 = vadd.f32 %v1690, %v594
      %v1699 = vadd.f32 %v1691, %v595
      %v1700 = vadd.f32 %v1692, %v596
      %v1701 = vadd.f32 %v1693, %v597
      %v1702 = vadd.f32 %v1694, %v598
      %v1703 = vadd.f32 %v1695, %v599
      %v1704 = vadd.f32 %v1696, %v600
      %v1705 = vmax.f32 %v1697, 0.0
      %v1706 = vmax.f32 %v1698, 0.0
      %v1707 = vmax.f32 %v1699, 0.0
      %v1708 = vmax.f32 %v1700, 0.0
      %v1709 = vmax.f32 %v1701, 0.0
      %v1710 = vmax.f32 %v1702, 0.0
      %v1711 = vmax.f32 %v1703, 0.0
      %v1712 = vmax.f32 %v1704, 0.0
      %v1713 = vpack.c.bf16 %v1705, %v1705
      %v1714 = vpack.c.bf16 %v1706, %v1706
      %v1715 = vpack.c.bf16 %v1707, %v1707
      %v1716 = vpack.c.bf16 %v1708, %v1708
      %v1717 = vpack.c.bf16 %v1709, %v1709
      %v1718 = vpack.c.bf16 %v1710, %v1710
      %v1719 = vpack.c.bf16 %v1711, %v1711
      %v1720 = vpack.c.bf16 %v1712, %v1712
      %v1721 = vld [vmem:[%s376 + $0x4] sm:$0x1]
      %v1722 = vsel %vm499, %v1713, %v1721
      %1723 = vst [vmem:[%s376 + $0x4] sm:$0x1] %v1722
      %v1724 = vld [vmem:[%s376 + $0xc] sm:$0x1]
      %v1725 = vsel %vm499, %v1714, %v1724
      %1726 = vst [vmem:[%s376 + $0xc] sm:$0x1] %v1725
      %v1727 = vld [vmem:[%s376 + $0x14] sm:$0x1]
      %v1728 = vsel %vm499, %v1715, %v1727
      %1729 = vst [vmem:[%s376 + $0x14] sm:$0x1] %v1728
      %v1730 = vld [vmem:[%s376 + $0x1c] sm:$0x1]
      %v1731 = vsel %vm499, %v1716, %v1730
      %1732 = vst [vmem:[%s376 + $0x1c] sm:$0x1] %v1731
      %v1733 = vld [vmem:[%s376 + $0x24] sm:$0x1]
      %v1734 = vsel %vm499, %v1717, %v1733
      %1735 = vst [vmem:[%s376 + $0x24] sm:$0x1] %v1734
      %v1736 = vld [vmem:[%s376 + $0x2c] sm:$0x1]
      %v1737 = vsel %vm499, %v1718, %v1736
      %1738 = vst [vmem:[%s376 + $0x2c] sm:$0x1] %v1737
      %v1739 = vld [vmem:[%s376 + $0x34] sm:$0x1]
      %v1740 = vsel %vm499, %v1719, %v1739
      %1741 = vst [vmem:[%s376 + $0x34] sm:$0x1] %v1740
      %v1742 = vld [vmem:[%s376 + $0x3c] sm:$0x1]
      %v1743 = vsel %vm499, %v1720, %v1742
      %1744 = vst [vmem:[%s376 + $0x3c] sm:$0x1] %v1743
      %v1745 = vld [vmem:[%s354 + $0x4] sm:$0x1]
      %v1746 = vld [vmem:[%s354 + $0xc] sm:$0x1]
      %v1747 = vld [vmem:[%s354 + $0x14] sm:$0x1]
      %v1748 = vld [vmem:[%s354 + $0x1c] sm:$0x1]
      %v1749 = vld [vmem:[%s354 + $0x24] sm:$0x1]
      %v1750 = vld [vmem:[%s354 + $0x2c] sm:$0x1]
      %v1751 = vld [vmem:[%s354 + $0x34] sm:$0x1]
      %v1752 = vld [vmem:[%s354 + $0x3c] sm:$0x1]
      %v1753 = vunpack.c.l.bf16 %v1745
      %v1754 = vunpack.c.l.bf16 %v1746
      %v1755 = vunpack.c.l.bf16 %v1747
      %v1756 = vunpack.c.l.bf16 %v1748
      %v1757 = vunpack.c.l.bf16 %v1749
      %v1758 = vunpack.c.l.bf16 %v1750
      %v1759 = vunpack.c.l.bf16 %v1751
      %v1760 = vunpack.c.l.bf16 %v1752
      %v1761 = vmul.f32 %v1705, %v421
      %v1762 = vmul.f32 %v1706, %v540
      %v1763 = vmul.f32 %v1707, %v541
      %v1764 = vmul.f32 %v1708, %v542
      %v1765 = vmul.f32 %v1709, %v543
      %v1766 = vmul.f32 %v1710, %v544
      %v1767 = vmul.f32 %v1711, %v545
      %v1768 = vmul.f32 %v1712, %v546
      %v1777 = vrot.slane %v1753, 1
      %v1778 = vrot.slane %v1754, 1
      %v1779 = vrot.slane %v1755, 1
      %v1780 = vrot.slane %v1756, 1
      %v1781 = vrot.slane %v1757, 1
      %v1782 = vrot.slane %v1758, 1
      %v1783 = vrot.slane %v1759, 1
      %v1784 = vrot.slane %v1760, 1
      %v1793 = vadd.f32 %v1761, %v1777
      %v1794 = vadd.f32 %v1762, %v1778
      %v1795 = vadd.f32 %v1763, %v1779
      %v1796 = vadd.f32 %v1764, %v1780
      %v1797 = vadd.f32 %v1765, %v1781
      %v1798 = vadd.f32 %v1766, %v1782
      %v1799 = vadd.f32 %v1767, %v1783
      %v1800 = vadd.f32 %v1768, %v1784
      %v1801 = vadd.f32 %v1793, %v458
      %v1802 = vadd.f32 %v1794, %v594
      %v1803 = vadd.f32 %v1795, %v595
      %v1804 = vadd.f32 %v1796, %v596
      %v1805 = vadd.f32 %v1797, %v597
      %v1806 = vadd.f32 %v1798, %v598
      %v1807 = vadd.f32 %v1799, %v599
      %v1808 = vadd.f32 %v1800, %v600
      %v1809 = vmax.f32 %v1801, 0.0
      %v1810 = vmax.f32 %v1802, 0.0
      %v1811 = vmax.f32 %v1803, 0.0
      %v1812 = vmax.f32 %v1804, 0.0
      %v1813 = vmax.f32 %v1805, 0.0
      %v1814 = vmax.f32 %v1806, 0.0
      %v1815 = vmax.f32 %v1807, 0.0
      %v1816 = vmax.f32 %v1808, 0.0
      %v1817 = vpack.c.bf16 %v1809, %v1809
      %v1818 = vpack.c.bf16 %v1810, %v1810
      %v1819 = vpack.c.bf16 %v1811, %v1811
      %v1820 = vpack.c.bf16 %v1812, %v1812
      %v1821 = vpack.c.bf16 %v1813, %v1813
      %v1822 = vpack.c.bf16 %v1814, %v1814
      %v1823 = vpack.c.bf16 %v1815, %v1815
      %v1824 = vpack.c.bf16 %v1816, %v1816
      %v1833 = vunpack.c.l.b16 %v1817
      %v1834 = vunpack.c.l.b16 %v1818
      %v1835 = vunpack.c.l.b16 %v1819
      %v1836 = vunpack.c.l.b16 %v1820
      %v1837 = vunpack.c.l.b16 %v1821
      %v1838 = vunpack.c.l.b16 %v1822
      %v1839 = vunpack.c.l.b16 %v1823
      %v1840 = vunpack.c.l.b16 %v1824
      %v1841 = vpack.c.b16 %v1833, %v1833
      %v1842 = vpack.c.b16 %v1834, %v1834
      %v1843 = vpack.c.b16 %v1835, %v1835
      %v1844 = vpack.c.b16 %v1836, %v1836
      %v1845 = vpack.c.b16 %v1837, %v1837
      %v1846 = vpack.c.b16 %v1838, %v1838
      %v1847 = vpack.c.b16 %v1839, %v1839
      %v1848 = vpack.c.b16 %v1840, %v1840
      %v1850 = vshll.u32 %v1841, 16
      %v1853 = vshll.u32 %v1842, 16
      %v1856 = vshll.u32 %v1843, 16
      %v1859 = vshll.u32 %v1844, 16
      %v1862 = vshll.u32 %v1845, 16
      %v1865 = vshll.u32 %v1846, 16
      %v1868 = vshll.u32 %v1847, 16
      %v1871 = vshll.u32 %v1848, 16
      %v1881 = vld [vmem:[%s376 + $0x4] sm:$0x1]
      %v1882 = vsel %vm689, %v1850, %v1881
      %1883 = vst [vmem:[%s376 + $0x4] sm:$0x1] %v1882
      %v1884 = vld [vmem:[%s376 + $0xc] sm:$0x1]
      %v1885 = vsel %vm689, %v1853, %v1884
      %1886 = vst [vmem:[%s376 + $0xc] sm:$0x1] %v1885
      %v1887 = vld [vmem:[%s376 + $0x14] sm:$0x1]
      %v1888 = vsel %vm689, %v1856, %v1887
      %1889 = vst [vmem:[%s376 + $0x14] sm:$0x1] %v1888
      %v1890 = vld [vmem:[%s376 + $0x1c] sm:$0x1]
      %v1891 = vsel %vm689, %v1859, %v1890
      %1892 = vst [vmem:[%s376 + $0x1c] sm:$0x1] %v1891
      %v1893 = vld [vmem:[%s376 + $0x24] sm:$0x1]
      %v1894 = vsel %vm689, %v1862, %v1893
      %1895 = vst [vmem:[%s376 + $0x24] sm:$0x1] %v1894
      %v1896 = vld [vmem:[%s376 + $0x2c] sm:$0x1]
      %v1897 = vsel %vm689, %v1865, %v1896
      %1898 = vst [vmem:[%s376 + $0x2c] sm:$0x1] %v1897
      %v1899 = vld [vmem:[%s376 + $0x34] sm:$0x1]
      %v1900 = vsel %vm689, %v1868, %v1899
      %1901 = vst [vmem:[%s376 + $0x34] sm:$0x1] %v1900
      %v1902 = vld [vmem:[%s376 + $0x3c] sm:$0x1]
      %v1903 = vsel %vm689, %v1871, %v1902
      %1904 = vst [vmem:[%s376 + $0x3c] sm:$0x1] %v1903
      %v1905 = vld [vmem:[%s354 + $0x4] sm:$0x2]
      %v1906 = vld [vmem:[%s354 + $0xc] sm:$0x2]
      %v1907 = vld [vmem:[%s354 + $0x14] sm:$0x2]
      %v1908 = vld [vmem:[%s354 + $0x1c] sm:$0x2]
      %v1909 = vld [vmem:[%s354 + $0x24] sm:$0x2]
      %v1910 = vld [vmem:[%s354 + $0x2c] sm:$0x2]
      %v1911 = vld [vmem:[%s354 + $0x34] sm:$0x2]
      %v1912 = vld [vmem:[%s354 + $0x3c] sm:$0x2]
      %v1913 = vunpack.c.l.bf16 %v1905
      %v1914 = vunpack.c.l.bf16 %v1906
      %v1915 = vunpack.c.l.bf16 %v1907
      %v1916 = vunpack.c.l.bf16 %v1908
      %v1917 = vunpack.c.l.bf16 %v1909
      %v1918 = vunpack.c.l.bf16 %v1910
      %v1919 = vunpack.c.l.bf16 %v1911
      %v1920 = vunpack.c.l.bf16 %v1912
      %v1921 = vmul.f32 %v1809, %v421
      %v1922 = vmul.f32 %v1810, %v540
      %v1923 = vmul.f32 %v1811, %v541
      %v1924 = vmul.f32 %v1812, %v542
      %v1925 = vmul.f32 %v1813, %v543
      %v1926 = vmul.f32 %v1814, %v544
      %v1927 = vmul.f32 %v1815, %v545
      %v1928 = vmul.f32 %v1816, %v546
      %v1937 = vrot.slane %v1913, 2
      %v1938 = vrot.slane %v1914, 2
      %v1939 = vrot.slane %v1915, 2
      %v1940 = vrot.slane %v1916, 2
      %v1941 = vrot.slane %v1917, 2
      %v1942 = vrot.slane %v1918, 2
      %v1943 = vrot.slane %v1919, 2
      %v1944 = vrot.slane %v1920, 2
      %v1953 = vadd.f32 %v1921, %v1937
      %v1954 = vadd.f32 %v1922, %v1938
      %v1955 = vadd.f32 %v1923, %v1939
      %v1956 = vadd.f32 %v1924, %v1940
      %v1957 = vadd.f32 %v1925, %v1941
      %v1958 = vadd.f32 %v1926, %v1942
      %v1959 = vadd.f32 %v1927, %v1943
      %v1960 = vadd.f32 %v1928, %v1944
      %v1961 = vadd.f32 %v1953, %v458
      %v1962 = vadd.f32 %v1954, %v594
      %v1963 = vadd.f32 %v1955, %v595
      %v1964 = vadd.f32 %v1956, %v596
      %v1965 = vadd.f32 %v1957, %v597
      %v1966 = vadd.f32 %v1958, %v598
      %v1967 = vadd.f32 %v1959, %v599
      %v1968 = vadd.f32 %v1960, %v600
      %v1969 = vmax.f32 %v1961, 0.0
      %v1970 = vmax.f32 %v1962, 0.0
      %v1971 = vmax.f32 %v1963, 0.0
      %v1972 = vmax.f32 %v1964, 0.0
      %v1973 = vmax.f32 %v1965, 0.0
      %v1974 = vmax.f32 %v1966, 0.0
      %v1975 = vmax.f32 %v1967, 0.0
      %v1976 = vmax.f32 %v1968, 0.0
      %v1977 = vpack.c.bf16 %v1969, %v1969
      %v1978 = vpack.c.bf16 %v1970, %v1970
      %v1979 = vpack.c.bf16 %v1971, %v1971
      %v1980 = vpack.c.bf16 %v1972, %v1972
      %v1981 = vpack.c.bf16 %v1973, %v1973
      %v1982 = vpack.c.bf16 %v1974, %v1974
      %v1983 = vpack.c.bf16 %v1975, %v1975
      %v1984 = vpack.c.bf16 %v1976, %v1976
      %v1993 = vunpack.c.l.b16 %v1977
      %v1994 = vunpack.c.l.b16 %v1978
      %v1995 = vunpack.c.l.b16 %v1979
      %v1996 = vunpack.c.l.b16 %v1980
      %v1997 = vunpack.c.l.b16 %v1981
      %v1998 = vunpack.c.l.b16 %v1982
      %v1999 = vunpack.c.l.b16 %v1983
      %v2000 = vunpack.c.l.b16 %v1984
      %v2001 = vpack.c.b16 %v1993, %v1993
      %v2002 = vpack.c.b16 %v1994, %v1994
      %v2003 = vpack.c.b16 %v1995, %v1995
      %v2004 = vpack.c.b16 %v1996, %v1996
      %v2005 = vpack.c.b16 %v1997, %v1997
      %v2006 = vpack.c.b16 %v1998, %v1998
      %v2007 = vpack.c.b16 %v1999, %v1999
      %v2008 = vpack.c.b16 %v2000, %v2000
      %v2009 = vrot.slane %v2001, 7
      %v2010 = vrot.slane %v2002, 7
      %v2011 = vrot.slane %v2003, 7
      %v2012 = vrot.slane %v2004, 7
      %v2013 = vrot.slane %v2005, 7
      %v2014 = vrot.slane %v2006, 7
      %v2015 = vrot.slane %v2007, 7
      %v2016 = vrot.slane %v2008, 7
      %v2025 = vld [vmem:[%s376 + $0x4] sm:$0x2]
      %v2026 = vsel %vm836, %v2009, %v2025
      %2027 = vst [vmem:[%s376 + $0x4] sm:$0x2] %v2026
      %v2028 = vld [vmem:[%s376 + $0xc] sm:$0x2]
      %v2029 = vsel %vm836, %v2010, %v2028
      %2030 = vst [vmem:[%s376 + $0xc] sm:$0x2] %v2029
      %v2031 = vld [vmem:[%s376 + $0x14] sm:$0x2]
      %v2032 = vsel %vm836, %v2011, %v2031
      %2033 = vst [vmem:[%s376 + $0x14] sm:$0x2] %v2032
      %v2034 = vld [vmem:[%s376 + $0x1c] sm:$0x2]
      %v2035 = vsel %vm836, %v2012, %v2034
      %2036 = vst [vmem:[%s376 + $0x1c] sm:$0x2] %v2035
      %v2037 = vld [vmem:[%s376 + $0x24] sm:$0x2]
      %v2038 = vsel %vm836, %v2013, %v2037
      %2039 = vst [vmem:[%s376 + $0x24] sm:$0x2] %v2038
      %v2040 = vld [vmem:[%s376 + $0x2c] sm:$0x2]
      %v2041 = vsel %vm836, %v2014, %v2040
      %2042 = vst [vmem:[%s376 + $0x2c] sm:$0x2] %v2041
      %v2043 = vld [vmem:[%s376 + $0x34] sm:$0x2]
      %v2044 = vsel %vm836, %v2015, %v2043
      %2045 = vst [vmem:[%s376 + $0x34] sm:$0x2] %v2044
      %v2046 = vld [vmem:[%s376 + $0x3c] sm:$0x2]
      %v2047 = vsel %vm836, %v2016, %v2046
      %2048 = vst [vmem:[%s376 + $0x3c] sm:$0x2] %v2047
      %v2049 = vld [vmem:[%s354 + $0x4] sm:$0x2]
      %v2050 = vld [vmem:[%s354 + $0xc] sm:$0x2]
      %v2051 = vld [vmem:[%s354 + $0x14] sm:$0x2]
      %v2052 = vld [vmem:[%s354 + $0x1c] sm:$0x2]
      %v2053 = vld [vmem:[%s354 + $0x24] sm:$0x2]
      %v2054 = vld [vmem:[%s354 + $0x2c] sm:$0x2]
      %v2055 = vld [vmem:[%s354 + $0x34] sm:$0x2]
      %v2056 = vld [vmem:[%s354 + $0x3c] sm:$0x2]
      %v2057 = vunpack.c.l.bf16 %v2049
      %v2058 = vunpack.c.l.bf16 %v2050
      %v2059 = vunpack.c.l.bf16 %v2051
      %v2060 = vunpack.c.l.bf16 %v2052
      %v2061 = vunpack.c.l.bf16 %v2053
      %v2062 = vunpack.c.l.bf16 %v2054
      %v2063 = vunpack.c.l.bf16 %v2055
      %v2064 = vunpack.c.l.bf16 %v2056
      %v2065 = vmul.f32 %v1969, %v421
      %v2066 = vmul.f32 %v1970, %v540
      %v2067 = vmul.f32 %v1971, %v541
      %v2068 = vmul.f32 %v1972, %v542
      %v2069 = vmul.f32 %v1973, %v543
      %v2070 = vmul.f32 %v1974, %v544
      %v2071 = vmul.f32 %v1975, %v545
      %v2072 = vmul.f32 %v1976, %v546
      %v2081 = vrot.slane %v2057, 3
      %v2082 = vrot.slane %v2058, 3
      %v2083 = vrot.slane %v2059, 3
      %v2084 = vrot.slane %v2060, 3
      %v2085 = vrot.slane %v2061, 3
      %v2086 = vrot.slane %v2062, 3
      %v2087 = vrot.slane %v2063, 3
      %v2088 = vrot.slane %v2064, 3
      %v2097 = vadd.f32 %v2065, %v2081
      %v2098 = vadd.f32 %v2066, %v2082
      %v2099 = vadd.f32 %v2067, %v2083
      %v2100 = vadd.f32 %v2068, %v2084
      %v2101 = vadd.f32 %v2069, %v2085
      %v2102 = vadd.f32 %v2070, %v2086
      %v2103 = vadd.f32 %v2071, %v2087
      %v2104 = vadd.f32 %v2072, %v2088
      %v2105 = vadd.f32 %v2097, %v458
      %v2106 = vadd.f32 %v2098, %v594
      %v2107 = vadd.f32 %v2099, %v595
      %v2108 = vadd.f32 %v2100, %v596
      %v2109 = vadd.f32 %v2101, %v597
      %v2110 = vadd.f32 %v2102, %v598
      %v2111 = vadd.f32 %v2103, %v599
      %v2112 = vadd.f32 %v2104, %v600
      %v2113 = vmax.f32 %v2105, 0.0
      %v2114 = vmax.f32 %v2106, 0.0
      %v2115 = vmax.f32 %v2107, 0.0
      %v2116 = vmax.f32 %v2108, 0.0
      %v2117 = vmax.f32 %v2109, 0.0
      %v2118 = vmax.f32 %v2110, 0.0
      %v2119 = vmax.f32 %v2111, 0.0
      %v2120 = vmax.f32 %v2112, 0.0
      %v2121 = vpack.c.bf16 %v2113, %v2113
      %v2122 = vpack.c.bf16 %v2114, %v2114
      %v2123 = vpack.c.bf16 %v2115, %v2115
      %v2124 = vpack.c.bf16 %v2116, %v2116
      %v2125 = vpack.c.bf16 %v2117, %v2117
      %v2126 = vpack.c.bf16 %v2118, %v2118
      %v2127 = vpack.c.bf16 %v2119, %v2119
      %v2128 = vpack.c.bf16 %v2120, %v2120
      %v2137 = vunpack.c.l.b16 %v2121
      %v2138 = vunpack.c.l.b16 %v2122
      %v2139 = vunpack.c.l.b16 %v2123
      %v2140 = vunpack.c.l.b16 %v2124
      %v2141 = vunpack.c.l.b16 %v2125
      %v2142 = vunpack.c.l.b16 %v2126
      %v2143 = vunpack.c.l.b16 %v2127
      %v2144 = vunpack.c.l.b16 %v2128
      %v2145 = vpack.c.b16 %v2137, %v2137
      %v2146 = vpack.c.b16 %v2138, %v2138
      %v2147 = vpack.c.b16 %v2139, %v2139
      %v2148 = vpack.c.b16 %v2140, %v2140
      %v2149 = vpack.c.b16 %v2141, %v2141
      %v2150 = vpack.c.b16 %v2142, %v2142
      %v2151 = vpack.c.b16 %v2143, %v2143
      %v2152 = vpack.c.b16 %v2144, %v2144
      %v2154 = vshll.u32 %v2145, 16
      %v2156 = vrot.slane %v2154, 7
      %v2158 = vshll.u32 %v2146, 16
      %v2160 = vrot.slane %v2158, 7
      %v2162 = vshll.u32 %v2147, 16
      %v2164 = vrot.slane %v2162, 7
      %v2166 = vshll.u32 %v2148, 16
      %v2168 = vrot.slane %v2166, 7
      %v2170 = vshll.u32 %v2149, 16
      %v2172 = vrot.slane %v2170, 7
      %v2174 = vshll.u32 %v2150, 16
      %v2176 = vrot.slane %v2174, 7
      %v2178 = vshll.u32 %v2151, 16
      %v2180 = vrot.slane %v2178, 7
      %v2182 = vshll.u32 %v2152, 16
      %v2184 = vrot.slane %v2182, 7
      %v2193 = vld [vmem:[%s376 + $0x4] sm:$0x2]
      %v2194 = vsel %vm1006, %v2156, %v2193
      %2195 = vst [vmem:[%s376 + $0x4] sm:$0x2] %v2194
      %v2196 = vld [vmem:[%s376 + $0xc] sm:$0x2]
      %v2197 = vsel %vm1006, %v2160, %v2196
      %2198 = vst [vmem:[%s376 + $0xc] sm:$0x2] %v2197
      %v2199 = vld [vmem:[%s376 + $0x14] sm:$0x2]
      %v2200 = vsel %vm1006, %v2164, %v2199
      %2201 = vst [vmem:[%s376 + $0x14] sm:$0x2] %v2200
      %v2202 = vld [vmem:[%s376 + $0x1c] sm:$0x2]
      %v2203 = vsel %vm1006, %v2168, %v2202
      %2204 = vst [vmem:[%s376 + $0x1c] sm:$0x2] %v2203
      %v2205 = vld [vmem:[%s376 + $0x24] sm:$0x2]
      %v2206 = vsel %vm1006, %v2172, %v2205
      %2207 = vst [vmem:[%s376 + $0x24] sm:$0x2] %v2206
      %v2208 = vld [vmem:[%s376 + $0x2c] sm:$0x2]
      %v2209 = vsel %vm1006, %v2176, %v2208
      %2210 = vst [vmem:[%s376 + $0x2c] sm:$0x2] %v2209
      %v2211 = vld [vmem:[%s376 + $0x34] sm:$0x2]
      %v2212 = vsel %vm1006, %v2180, %v2211
      %2213 = vst [vmem:[%s376 + $0x34] sm:$0x2] %v2212
      %v2214 = vld [vmem:[%s376 + $0x3c] sm:$0x2]
      %v2215 = vsel %vm1006, %v2184, %v2214
      %2216 = vst [vmem:[%s376 + $0x3c] sm:$0x2] %v2215
      %v2217 = vld [vmem:[%s354 + $0x4] sm:$0x4]
      %v2218 = vld [vmem:[%s354 + $0xc] sm:$0x4]
      %v2219 = vld [vmem:[%s354 + $0x14] sm:$0x4]
      %v2220 = vld [vmem:[%s354 + $0x1c] sm:$0x4]
      %v2221 = vld [vmem:[%s354 + $0x24] sm:$0x4]
      %v2222 = vld [vmem:[%s354 + $0x2c] sm:$0x4]
      %v2223 = vld [vmem:[%s354 + $0x34] sm:$0x4]
      %v2224 = vld [vmem:[%s354 + $0x3c] sm:$0x4]
      %v2225 = vunpack.c.l.bf16 %v2217
      %v2226 = vunpack.c.l.bf16 %v2218
      %v2227 = vunpack.c.l.bf16 %v2219
      %v2228 = vunpack.c.l.bf16 %v2220
      %v2229 = vunpack.c.l.bf16 %v2221
      %v2230 = vunpack.c.l.bf16 %v2222
      %v2231 = vunpack.c.l.bf16 %v2223
      %v2232 = vunpack.c.l.bf16 %v2224
      %v2233 = vmul.f32 %v2113, %v421
      %v2234 = vmul.f32 %v2114, %v540
      %v2235 = vmul.f32 %v2115, %v541
      %v2236 = vmul.f32 %v2116, %v542
      %v2237 = vmul.f32 %v2117, %v543
      %v2238 = vmul.f32 %v2118, %v544
      %v2239 = vmul.f32 %v2119, %v545
      %v2240 = vmul.f32 %v2120, %v546
      %v2249 = vrot.slane %v2225, 4
      %v2250 = vrot.slane %v2226, 4
      %v2251 = vrot.slane %v2227, 4
      %v2252 = vrot.slane %v2228, 4
      %v2253 = vrot.slane %v2229, 4
      %v2254 = vrot.slane %v2230, 4
      %v2255 = vrot.slane %v2231, 4
      %v2256 = vrot.slane %v2232, 4
      %v2265 = vadd.f32 %v2233, %v2249
      %v2266 = vadd.f32 %v2234, %v2250
      %v2267 = vadd.f32 %v2235, %v2251
      %v2268 = vadd.f32 %v2236, %v2252
      %v2269 = vadd.f32 %v2237, %v2253
      %v2270 = vadd.f32 %v2238, %v2254
      %v2271 = vadd.f32 %v2239, %v2255
      %v2272 = vadd.f32 %v2240, %v2256
      %v2273 = vadd.f32 %v2265, %v458
      %v2274 = vadd.f32 %v2266, %v594
      %v2275 = vadd.f32 %v2267, %v595
      %v2276 = vadd.f32 %v2268, %v596
      %v2277 = vadd.f32 %v2269, %v597
      %v2278 = vadd.f32 %v2270, %v598
      %v2279 = vadd.f32 %v2271, %v599
      %v2280 = vadd.f32 %v2272, %v600
      %v2281 = vmax.f32 %v2273, 0.0
      %v2282 = vmax.f32 %v2274, 0.0
      %v2283 = vmax.f32 %v2275, 0.0
      %v2284 = vmax.f32 %v2276, 0.0
      %v2285 = vmax.f32 %v2277, 0.0
      %v2286 = vmax.f32 %v2278, 0.0
      %v2287 = vmax.f32 %v2279, 0.0
      %v2288 = vmax.f32 %v2280, 0.0
      %v2289 = vpack.c.bf16 %v2281, %v2281
      %v2290 = vpack.c.bf16 %v2282, %v2282
      %v2291 = vpack.c.bf16 %v2283, %v2283
      %v2292 = vpack.c.bf16 %v2284, %v2284
      %v2293 = vpack.c.bf16 %v2285, %v2285
      %v2294 = vpack.c.bf16 %v2286, %v2286
      %v2295 = vpack.c.bf16 %v2287, %v2287
      %v2296 = vpack.c.bf16 %v2288, %v2288
      %v2305 = vunpack.c.l.b16 %v2289
      %v2306 = vunpack.c.l.b16 %v2290
      %v2307 = vunpack.c.l.b16 %v2291
      %v2308 = vunpack.c.l.b16 %v2292
      %v2309 = vunpack.c.l.b16 %v2293
      %v2310 = vunpack.c.l.b16 %v2294
      %v2311 = vunpack.c.l.b16 %v2295
      %v2312 = vunpack.c.l.b16 %v2296
      %v2313 = vpack.c.b16 %v2305, %v2305
      %v2314 = vpack.c.b16 %v2306, %v2306
      %v2315 = vpack.c.b16 %v2307, %v2307
      %v2316 = vpack.c.b16 %v2308, %v2308
      %v2317 = vpack.c.b16 %v2309, %v2309
      %v2318 = vpack.c.b16 %v2310, %v2310
      %v2319 = vpack.c.b16 %v2311, %v2311
      %v2320 = vpack.c.b16 %v2312, %v2312
      %v2321 = vrot.slane %v2313, 6
      %v2322 = vrot.slane %v2314, 6
      %v2323 = vrot.slane %v2315, 6
      %v2324 = vrot.slane %v2316, 6
      %v2325 = vrot.slane %v2317, 6
      %v2326 = vrot.slane %v2318, 6
      %v2327 = vrot.slane %v2319, 6
      %v2328 = vrot.slane %v2320, 6
      %v2337 = vld [vmem:[%s376 + $0x4] sm:$0x4]
      %v2338 = vsel %vm1153, %v2321, %v2337
      %2339 = vst [vmem:[%s376 + $0x4] sm:$0x4] %v2338
      %v2340 = vld [vmem:[%s376 + $0xc] sm:$0x4]
      %v2341 = vsel %vm1153, %v2322, %v2340
      %2342 = vst [vmem:[%s376 + $0xc] sm:$0x4] %v2341
      %v2343 = vld [vmem:[%s376 + $0x14] sm:$0x4]
      %v2344 = vsel %vm1153, %v2323, %v2343
      %2345 = vst [vmem:[%s376 + $0x14] sm:$0x4] %v2344
      %v2346 = vld [vmem:[%s376 + $0x1c] sm:$0x4]
      %v2347 = vsel %vm1153, %v2324, %v2346
      %2348 = vst [vmem:[%s376 + $0x1c] sm:$0x4] %v2347
      %v2349 = vld [vmem:[%s376 + $0x24] sm:$0x4]
      %v2350 = vsel %vm1153, %v2325, %v2349
      %2351 = vst [vmem:[%s376 + $0x24] sm:$0x4] %v2350
      %v2352 = vld [vmem:[%s376 + $0x2c] sm:$0x4]
      %v2353 = vsel %vm1153, %v2326, %v2352
      %2354 = vst [vmem:[%s376 + $0x2c] sm:$0x4] %v2353
      %v2355 = vld [vmem:[%s376 + $0x34] sm:$0x4]
      %v2356 = vsel %vm1153, %v2327, %v2355
      %2357 = vst [vmem:[%s376 + $0x34] sm:$0x4] %v2356
      %v2358 = vld [vmem:[%s376 + $0x3c] sm:$0x4]
      %v2359 = vsel %vm1153, %v2328, %v2358
      %2360 = vst [vmem:[%s376 + $0x3c] sm:$0x4] %v2359
      %v2361 = vld [vmem:[%s354 + $0x4] sm:$0x4]
      %v2362 = vld [vmem:[%s354 + $0xc] sm:$0x4]
      %v2363 = vld [vmem:[%s354 + $0x14] sm:$0x4]
      %v2364 = vld [vmem:[%s354 + $0x1c] sm:$0x4]
      %v2365 = vld [vmem:[%s354 + $0x24] sm:$0x4]
      %v2366 = vld [vmem:[%s354 + $0x2c] sm:$0x4]
      %v2367 = vld [vmem:[%s354 + $0x34] sm:$0x4]
      %v2368 = vld [vmem:[%s354 + $0x3c] sm:$0x4]
      %v2369 = vunpack.c.l.bf16 %v2361
      %v2370 = vunpack.c.l.bf16 %v2362
      %v2371 = vunpack.c.l.bf16 %v2363
      %v2372 = vunpack.c.l.bf16 %v2364
      %v2373 = vunpack.c.l.bf16 %v2365
      %v2374 = vunpack.c.l.bf16 %v2366
      %v2375 = vunpack.c.l.bf16 %v2367
      %v2376 = vunpack.c.l.bf16 %v2368
      %v2377 = vmul.f32 %v2281, %v421
      %v2378 = vmul.f32 %v2282, %v540
      %v2379 = vmul.f32 %v2283, %v541
      %v2380 = vmul.f32 %v2284, %v542
      %v2381 = vmul.f32 %v2285, %v543
      %v2382 = vmul.f32 %v2286, %v544
      %v2383 = vmul.f32 %v2287, %v545
      %v2384 = vmul.f32 %v2288, %v546
      %v2393 = vrot.slane %v2369, 5
      %v2394 = vrot.slane %v2370, 5
      %v2395 = vrot.slane %v2371, 5
      %v2396 = vrot.slane %v2372, 5
      %v2397 = vrot.slane %v2373, 5
      %v2398 = vrot.slane %v2374, 5
      %v2399 = vrot.slane %v2375, 5
      %v2400 = vrot.slane %v2376, 5
      %v2409 = vadd.f32 %v2377, %v2393
      %v2410 = vadd.f32 %v2378, %v2394
      %v2411 = vadd.f32 %v2379, %v2395
      %v2412 = vadd.f32 %v2380, %v2396
      %v2413 = vadd.f32 %v2381, %v2397
      %v2414 = vadd.f32 %v2382, %v2398
      %v2415 = vadd.f32 %v2383, %v2399
      %v2416 = vadd.f32 %v2384, %v2400
      %v2417 = vadd.f32 %v2409, %v458
      %v2418 = vadd.f32 %v2410, %v594
      %v2419 = vadd.f32 %v2411, %v595
      %v2420 = vadd.f32 %v2412, %v596
      %v2421 = vadd.f32 %v2413, %v597
      %v2422 = vadd.f32 %v2414, %v598
      %v2423 = vadd.f32 %v2415, %v599
      %v2424 = vadd.f32 %v2416, %v600
      %v2425 = vmax.f32 %v2417, 0.0
      %v2426 = vmax.f32 %v2418, 0.0
      %v2427 = vmax.f32 %v2419, 0.0
      %v2428 = vmax.f32 %v2420, 0.0
      %v2429 = vmax.f32 %v2421, 0.0
      %v2430 = vmax.f32 %v2422, 0.0
      %v2431 = vmax.f32 %v2423, 0.0
      %v2432 = vmax.f32 %v2424, 0.0
      %v2433 = vpack.c.bf16 %v2425, %v2425
      %v2434 = vpack.c.bf16 %v2426, %v2426
      %v2435 = vpack.c.bf16 %v2427, %v2427
      %v2436 = vpack.c.bf16 %v2428, %v2428
      %v2437 = vpack.c.bf16 %v2429, %v2429
      %v2438 = vpack.c.bf16 %v2430, %v2430
      %v2439 = vpack.c.bf16 %v2431, %v2431
      %v2440 = vpack.c.bf16 %v2432, %v2432
      %v2449 = vunpack.c.l.b16 %v2433
      %v2450 = vunpack.c.l.b16 %v2434
      %v2451 = vunpack.c.l.b16 %v2435
      %v2452 = vunpack.c.l.b16 %v2436
      %v2453 = vunpack.c.l.b16 %v2437
      %v2454 = vunpack.c.l.b16 %v2438
      %v2455 = vunpack.c.l.b16 %v2439
      %v2456 = vunpack.c.l.b16 %v2440
      %v2457 = vpack.c.b16 %v2449, %v2449
      %v2458 = vpack.c.b16 %v2450, %v2450
      %v2459 = vpack.c.b16 %v2451, %v2451
      %v2460 = vpack.c.b16 %v2452, %v2452
      %v2461 = vpack.c.b16 %v2453, %v2453
      %v2462 = vpack.c.b16 %v2454, %v2454
      %v2463 = vpack.c.b16 %v2455, %v2455
      %v2464 = vpack.c.b16 %v2456, %v2456
      %v2466 = vshll.u32 %v2457, 16
      %v2468 = vrot.slane %v2466, 6
      %v2470 = vshll.u32 %v2458, 16
      %v2472 = vrot.slane %v2470, 6
      %v2474 = vshll.u32 %v2459, 16
      %v2476 = vrot.slane %v2474, 6
      %v2478 = vshll.u32 %v2460, 16
      %v2480 = vrot.slane %v2478, 6
      %v2482 = vshll.u32 %v2461, 16
      %v2484 = vrot.slane %v2482, 6
      %v2486 = vshll.u32 %v2462, 16
      %v2488 = vrot.slane %v2486, 6
      %v2490 = vshll.u32 %v2463, 16
      %v2492 = vrot.slane %v2490, 6
      %v2494 = vshll.u32 %v2464, 16
      %v2496 = vrot.slane %v2494, 6
      %v2505 = vld [vmem:[%s376 + $0x4] sm:$0x4]
      %v2506 = vsel %vm1323, %v2468, %v2505
      %2507 = vst [vmem:[%s376 + $0x4] sm:$0x4] %v2506
      %v2508 = vld [vmem:[%s376 + $0xc] sm:$0x4]
      %v2509 = vsel %vm1323, %v2472, %v2508
      %2510 = vst [vmem:[%s376 + $0xc] sm:$0x4] %v2509
      %v2511 = vld [vmem:[%s376 + $0x14] sm:$0x4]
      %v2512 = vsel %vm1323, %v2476, %v2511
      %2513 = vst [vmem:[%s376 + $0x14] sm:$0x4] %v2512
      %v2514 = vld [vmem:[%s376 + $0x1c] sm:$0x4]
      %v2515 = vsel %vm1323, %v2480, %v2514
      %2516 = vst [vmem:[%s376 + $0x1c] sm:$0x4] %v2515
      %v2517 = vld [vmem:[%s376 + $0x24] sm:$0x4]
      %v2518 = vsel %vm1323, %v2484, %v2517
      %2519 = vst [vmem:[%s376 + $0x24] sm:$0x4] %v2518
      %v2520 = vld [vmem:[%s376 + $0x2c] sm:$0x4]
      %v2521 = vsel %vm1323, %v2488, %v2520
      %2522 = vst [vmem:[%s376 + $0x2c] sm:$0x4] %v2521
      %v2523 = vld [vmem:[%s376 + $0x34] sm:$0x4]
      %v2524 = vsel %vm1323, %v2492, %v2523
      %2525 = vst [vmem:[%s376 + $0x34] sm:$0x4] %v2524
      %v2526 = vld [vmem:[%s376 + $0x3c] sm:$0x4]
      %v2527 = vsel %vm1323, %v2496, %v2526
      %2528 = vst [vmem:[%s376 + $0x3c] sm:$0x4] %v2527
      %v2529 = vld [vmem:[%s354 + $0x4] sm:$0x8]
      %v2530 = vld [vmem:[%s354 + $0xc] sm:$0x8]
      %v2531 = vld [vmem:[%s354 + $0x14] sm:$0x8]
      %v2532 = vld [vmem:[%s354 + $0x1c] sm:$0x8]
      %v2533 = vld [vmem:[%s354 + $0x24] sm:$0x8]
      %v2534 = vld [vmem:[%s354 + $0x2c] sm:$0x8]
      %v2535 = vld [vmem:[%s354 + $0x34] sm:$0x8]
      %v2536 = vld [vmem:[%s354 + $0x3c] sm:$0x8]
      %v2537 = vunpack.c.l.bf16 %v2529
      %v2538 = vunpack.c.l.bf16 %v2530
      %v2539 = vunpack.c.l.bf16 %v2531
      %v2540 = vunpack.c.l.bf16 %v2532
      %v2541 = vunpack.c.l.bf16 %v2533
      %v2542 = vunpack.c.l.bf16 %v2534
      %v2543 = vunpack.c.l.bf16 %v2535
      %v2544 = vunpack.c.l.bf16 %v2536
      %v2545 = vmul.f32 %v2425, %v421
      %v2546 = vmul.f32 %v2426, %v540
      %v2547 = vmul.f32 %v2427, %v541
      %v2548 = vmul.f32 %v2428, %v542
      %v2549 = vmul.f32 %v2429, %v543
      %v2550 = vmul.f32 %v2430, %v544
      %v2551 = vmul.f32 %v2431, %v545
      %v2552 = vmul.f32 %v2432, %v546
      %v2561 = vrot.slane %v2537, 6
      %v2562 = vrot.slane %v2538, 6
      %v2563 = vrot.slane %v2539, 6
      %v2564 = vrot.slane %v2540, 6
      %v2565 = vrot.slane %v2541, 6
      %v2566 = vrot.slane %v2542, 6
      %v2567 = vrot.slane %v2543, 6
      %v2568 = vrot.slane %v2544, 6
      %v2577 = vadd.f32 %v2545, %v2561
      %v2578 = vadd.f32 %v2546, %v2562
      %v2579 = vadd.f32 %v2547, %v2563
      %v2580 = vadd.f32 %v2548, %v2564
      %v2581 = vadd.f32 %v2549, %v2565
      %v2582 = vadd.f32 %v2550, %v2566
      %v2583 = vadd.f32 %v2551, %v2567
      %v2584 = vadd.f32 %v2552, %v2568
      %v2585 = vadd.f32 %v2577, %v458
      %v2586 = vadd.f32 %v2578, %v594
      %v2587 = vadd.f32 %v2579, %v595
      %v2588 = vadd.f32 %v2580, %v596
      %v2589 = vadd.f32 %v2581, %v597
      %v2590 = vadd.f32 %v2582, %v598
      %v2591 = vadd.f32 %v2583, %v599
      %v2592 = vadd.f32 %v2584, %v600
      %v2593 = vmax.f32 %v2585, 0.0
      %v2594 = vmax.f32 %v2586, 0.0
      %v2595 = vmax.f32 %v2587, 0.0
      %v2596 = vmax.f32 %v2588, 0.0
      %v2597 = vmax.f32 %v2589, 0.0
      %v2598 = vmax.f32 %v2590, 0.0
      %v2599 = vmax.f32 %v2591, 0.0
      %v2600 = vmax.f32 %v2592, 0.0
      %v2601 = vpack.c.bf16 %v2593, %v2593
      %v2602 = vpack.c.bf16 %v2594, %v2594
      %v2603 = vpack.c.bf16 %v2595, %v2595
      %v2604 = vpack.c.bf16 %v2596, %v2596
      %v2605 = vpack.c.bf16 %v2597, %v2597
      %v2606 = vpack.c.bf16 %v2598, %v2598
      %v2607 = vpack.c.bf16 %v2599, %v2599
      %v2608 = vpack.c.bf16 %v2600, %v2600
      %v2617 = vunpack.c.l.b16 %v2601
      %v2618 = vunpack.c.l.b16 %v2602
      %v2619 = vunpack.c.l.b16 %v2603
      %v2620 = vunpack.c.l.b16 %v2604
      %v2621 = vunpack.c.l.b16 %v2605
      %v2622 = vunpack.c.l.b16 %v2606
      %v2623 = vunpack.c.l.b16 %v2607
      %v2624 = vunpack.c.l.b16 %v2608
      %v2625 = vpack.c.b16 %v2617, %v2617
      %v2626 = vpack.c.b16 %v2618, %v2618
      %v2627 = vpack.c.b16 %v2619, %v2619
      %v2628 = vpack.c.b16 %v2620, %v2620
      %v2629 = vpack.c.b16 %v2621, %v2621
      %v2630 = vpack.c.b16 %v2622, %v2622
      %v2631 = vpack.c.b16 %v2623, %v2623
      %v2632 = vpack.c.b16 %v2624, %v2624
      %v2633 = vrot.slane %v2625, 5
      %v2634 = vrot.slane %v2626, 5
      %v2635 = vrot.slane %v2627, 5
      %v2636 = vrot.slane %v2628, 5
      %v2637 = vrot.slane %v2629, 5
      %v2638 = vrot.slane %v2630, 5
      %v2639 = vrot.slane %v2631, 5
      %v2640 = vrot.slane %v2632, 5
      %v2649 = vld [vmem:[%s376 + $0x4] sm:$0x8]
      %v2650 = vsel %vm1470, %v2633, %v2649
      %2651 = vst [vmem:[%s376 + $0x4] sm:$0x8] %v2650
      %v2652 = vld [vmem:[%s376 + $0xc] sm:$0x8]
      %v2653 = vsel %vm1470, %v2634, %v2652
      %2654 = vst [vmem:[%s376 + $0xc] sm:$0x8] %v2653
      %v2655 = vld [vmem:[%s376 + $0x14] sm:$0x8]
      %v2656 = vsel %vm1470, %v2635, %v2655
      %2657 = vst [vmem:[%s376 + $0x14] sm:$0x8] %v2656
      %v2658 = vld [vmem:[%s376 + $0x1c] sm:$0x8]
      %v2659 = vsel %vm1470, %v2636, %v2658
      %2660 = vst [vmem:[%s376 + $0x1c] sm:$0x8] %v2659
      %v2661 = vld [vmem:[%s376 + $0x24] sm:$0x8]
      %v2662 = vsel %vm1470, %v2637, %v2661
      %2663 = vst [vmem:[%s376 + $0x24] sm:$0x8] %v2662
      %v2664 = vld [vmem:[%s376 + $0x2c] sm:$0x8]
      %v2665 = vsel %vm1470, %v2638, %v2664
      %2666 = vst [vmem:[%s376 + $0x2c] sm:$0x8] %v2665
      %v2667 = vld [vmem:[%s376 + $0x34] sm:$0x8]
      %v2668 = vsel %vm1470, %v2639, %v2667
      %2669 = vst [vmem:[%s376 + $0x34] sm:$0x8] %v2668
      %v2670 = vld [vmem:[%s376 + $0x3c] sm:$0x8]
      %v2671 = vsel %vm1470, %v2640, %v2670
      %2672 = vst [vmem:[%s376 + $0x3c] sm:$0x8] %v2671
      %v2673 = vld [vmem:[%s354 + $0x4] sm:$0x8]
      %v2674 = vld [vmem:[%s354 + $0xc] sm:$0x8]
      %v2675 = vld [vmem:[%s354 + $0x14] sm:$0x8]
      %v2676 = vld [vmem:[%s354 + $0x1c] sm:$0x8]
      %v2677 = vld [vmem:[%s354 + $0x24] sm:$0x8]
      %v2678 = vld [vmem:[%s354 + $0x2c] sm:$0x8]
      %v2679 = vld [vmem:[%s354 + $0x34] sm:$0x8]
      %v2680 = vld [vmem:[%s354 + $0x3c] sm:$0x8]
      %v2681 = vunpack.c.l.bf16 %v2673
      %v2682 = vunpack.c.l.bf16 %v2674
      %v2683 = vunpack.c.l.bf16 %v2675
      %v2684 = vunpack.c.l.bf16 %v2676
      %v2685 = vunpack.c.l.bf16 %v2677
      %v2686 = vunpack.c.l.bf16 %v2678
      %v2687 = vunpack.c.l.bf16 %v2679
      %v2688 = vunpack.c.l.bf16 %v2680
      %v2689 = vmul.f32 %v2593, %v421
      %v2690 = vmul.f32 %v2594, %v540
      %v2691 = vmul.f32 %v2595, %v541
      %v2692 = vmul.f32 %v2596, %v542
      %v2693 = vmul.f32 %v2597, %v543
      %v2694 = vmul.f32 %v2598, %v544
      %v2695 = vmul.f32 %v2599, %v545
      %v2696 = vmul.f32 %v2600, %v546
      %v2705 = vrot.slane %v2681, 7
      %v2706 = vrot.slane %v2682, 7
      %v2707 = vrot.slane %v2683, 7
      %v2708 = vrot.slane %v2684, 7
      %v2709 = vrot.slane %v2685, 7
      %v2710 = vrot.slane %v2686, 7
      %v2711 = vrot.slane %v2687, 7
      %v2712 = vrot.slane %v2688, 7
      %v2721 = vadd.f32 %v2689, %v2705
      %v2722 = vadd.f32 %v2690, %v2706
      %v2723 = vadd.f32 %v2691, %v2707
      %v2724 = vadd.f32 %v2692, %v2708
      %v2725 = vadd.f32 %v2693, %v2709
      %v2726 = vadd.f32 %v2694, %v2710
      %v2727 = vadd.f32 %v2695, %v2711
      %v2728 = vadd.f32 %v2696, %v2712
      %v2729 = vadd.f32 %v2721, %v458
      %v2730 = vadd.f32 %v2722, %v594
      %v2731 = vadd.f32 %v2723, %v595
      %v2732 = vadd.f32 %v2724, %v596
      %v2733 = vadd.f32 %v2725, %v597
      %v2734 = vadd.f32 %v2726, %v598
      %v2735 = vadd.f32 %v2727, %v599
      %v2736 = vadd.f32 %v2728, %v600
      %v2737 = vmax.f32 %v2729, 0.0
      %v2738 = vmax.f32 %v2730, 0.0
      %v2739 = vmax.f32 %v2731, 0.0
      %v2740 = vmax.f32 %v2732, 0.0
      %v2741 = vmax.f32 %v2733, 0.0
      %v2742 = vmax.f32 %v2734, 0.0
      %v2743 = vmax.f32 %v2735, 0.0
      %v2744 = vmax.f32 %v2736, 0.0
      %v2745 = vpack.c.bf16 %v2737, %v2737
      %v2746 = vpack.c.bf16 %v2738, %v2738
      %v2747 = vpack.c.bf16 %v2739, %v2739
      %v2748 = vpack.c.bf16 %v2740, %v2740
      %v2749 = vpack.c.bf16 %v2741, %v2741
      %v2750 = vpack.c.bf16 %v2742, %v2742
      %v2751 = vpack.c.bf16 %v2743, %v2743
      %v2752 = vpack.c.bf16 %v2744, %v2744
      %v2761 = vunpack.c.l.b16 %v2745
      %v2762 = vunpack.c.l.b16 %v2746
      %v2763 = vunpack.c.l.b16 %v2747
      %v2764 = vunpack.c.l.b16 %v2748
      %v2765 = vunpack.c.l.b16 %v2749
      %v2766 = vunpack.c.l.b16 %v2750
      %v2767 = vunpack.c.l.b16 %v2751
      %v2768 = vunpack.c.l.b16 %v2752
      %v2769 = vpack.c.b16 %v2761, %v2761
      %v2770 = vpack.c.b16 %v2762, %v2762
      %v2771 = vpack.c.b16 %v2763, %v2763
      %v2772 = vpack.c.b16 %v2764, %v2764
      %v2773 = vpack.c.b16 %v2765, %v2765
      %v2774 = vpack.c.b16 %v2766, %v2766
      %v2775 = vpack.c.b16 %v2767, %v2767
      %v2776 = vpack.c.b16 %v2768, %v2768
      %v2778 = vshll.u32 %v2769, 16
      %v2780 = vrot.slane %v2778, 5
      %v2782 = vshll.u32 %v2770, 16
      %v2784 = vrot.slane %v2782, 5
      %v2786 = vshll.u32 %v2771, 16
      %v2788 = vrot.slane %v2786, 5
      %v2790 = vshll.u32 %v2772, 16
      %v2792 = vrot.slane %v2790, 5
      %v2794 = vshll.u32 %v2773, 16
      %v2796 = vrot.slane %v2794, 5
      %v2798 = vshll.u32 %v2774, 16
      %v2800 = vrot.slane %v2798, 5
      %v2802 = vshll.u32 %v2775, 16
      %v2804 = vrot.slane %v2802, 5
      %v2806 = vshll.u32 %v2776, 16
      %v2808 = vrot.slane %v2806, 5
      %v2817 = vld [vmem:[%s376 + $0x4] sm:$0x8]
      %v2818 = vsel %vm1640, %v2780, %v2817
      %2819 = vst [vmem:[%s376 + $0x4] sm:$0x8] %v2818
      %v2820 = vld [vmem:[%s376 + $0xc] sm:$0x8]
      %v2821 = vsel %vm1640, %v2784, %v2820
      %2822 = vst [vmem:[%s376 + $0xc] sm:$0x8] %v2821
      %v2823 = vld [vmem:[%s376 + $0x14] sm:$0x8]
      %v2824 = vsel %vm1640, %v2788, %v2823
      %2825 = vst [vmem:[%s376 + $0x14] sm:$0x8] %v2824
      %v2826 = vld [vmem:[%s376 + $0x1c] sm:$0x8]
      %v2827 = vsel %vm1640, %v2792, %v2826
      %2828 = vst [vmem:[%s376 + $0x1c] sm:$0x8] %v2827
      %v2829 = vld [vmem:[%s376 + $0x24] sm:$0x8]
      %v2830 = vsel %vm1640, %v2796, %v2829
      %2831 = vst [vmem:[%s376 + $0x24] sm:$0x8] %v2830
      %v2832 = vld [vmem:[%s376 + $0x2c] sm:$0x8]
      %v2833 = vsel %vm1640, %v2800, %v2832
      %2834 = vst [vmem:[%s376 + $0x2c] sm:$0x8] %v2833
      %v2835 = vld [vmem:[%s376 + $0x34] sm:$0x8]
      %v2836 = vsel %vm1640, %v2804, %v2835
      %2837 = vst [vmem:[%s376 + $0x34] sm:$0x8] %v2836
      %v2838 = vld [vmem:[%s376 + $0x3c] sm:$0x8]
      %v2839 = vsel %vm1640, %v2808, %v2838
      %2840 = vst [vmem:[%s376 + $0x3c] sm:$0x8] %v2839
      %v2849 = vrot.slane %v2738, 7
      %v2850 = vsel %vm433, %v2849, %v2737
      %v2851 = vrot.slane %v2739, 6
      %v2852 = vsel %vm436, %v2851, %v2850
      %v2853 = vrot.slane %v2740, 5
      %v2854 = vsel %vm439, %v2853, %v2852
      %v2855 = vrot.slane %v2741, 4
      %v2856 = vsel %vm442, %v2855, %v2854
      %v2857 = vrot.slane %v2742, 3
      %v2858 = vsel %vm445, %v2857, %v2856
      %v2859 = vrot.slane %v2743, 2
      %v2860 = vsel %vm448, %v2859, %v2858
      %v2861 = vrot.slane %v2744, 1
      %v2862 = vsel %vm451, %v2861, %v2860
      %vm2864 = vcmask 130048
      %2865 = vst.msk [vmem:[#allocation2] sm:$0xff] %vm2864, %v2862
      %v2866 = vld [vmem:[#allocation3] sm:$0xff]
      %v2867 = vld [vmem:[%s365 + $0x4] sm:$0x8]
      %v2868 = vld [vmem:[%s365 + $0xc] sm:$0x8]
      %v2869 = vld [vmem:[%s365 + $0x14] sm:$0x8]
      %v2870 = vld [vmem:[%s365 + $0x1c] sm:$0x8]
      %v2871 = vld [vmem:[%s365 + $0x24] sm:$0x8]
      %v2872 = vld [vmem:[%s365 + $0x2c] sm:$0x8]
      %v2873 = vld [vmem:[%s365 + $0x34] sm:$0x8]
      %v2874 = vld [vmem:[%s365 + $0x3c] sm:$0x8]
      %v2875 = vunpack.c.l.bf16 %v2867
      %v2876 = vunpack.c.l.bf16 %v2868
      %v2877 = vunpack.c.l.bf16 %v2869
      %v2878 = vunpack.c.l.bf16 %v2870
      %v2879 = vunpack.c.l.bf16 %v2871
      %v2880 = vunpack.c.l.bf16 %v2872
      %v2881 = vunpack.c.l.bf16 %v2873
      %v2882 = vunpack.c.l.bf16 %v2874
      %2884 = vset.pattern.permute.xlu0 0
      %2885 = vperm.xlu0 %2884, %v399
      %v2886 = vpop.permute.xlu0 %2885
      %v2888 = vmul.f32 %v2866, %v2886
      %v2897 = vrot.slane %v2875, 7
      %v2898 = vrot.slane %v2876, 6
      %v2899 = vsel %vm433, %v2898, %v2897
      %v2900 = vrot.slane %v2877, 5
      %v2901 = vsel %vm436, %v2900, %v2899
      %v2902 = vrot.slane %v2878, 4
      %v2903 = vsel %vm439, %v2902, %v2901
      %v2904 = vrot.slane %v2879, 3
      %v2905 = vsel %vm442, %v2904, %v2903
      %v2906 = vrot.slane %v2880, 2
      %v2907 = vsel %vm445, %v2906, %v2905
      %v2908 = vrot.slane %v2881, 1
      %v2909 = vsel %vm448, %v2908, %v2907
      %v2910 = vsel %vm451, %v2882, %v2909
      %v2912 = vadd.f32 %v2888, %v2910
      %2914 = vset.pattern.permute.xlu0 0
      %2915 = vperm.xlu0 %2914, %v400
      %v2916 = vpop.permute.xlu0 %2915
      %v2918 = vadd.f32 %v2912, %v2916
      %v2919 = vmax.f32 %v2918, 0.0
      %v2921 = vrot.slane %v2919, 1
      %v2922 = vrot.slane %v2919, 2
      %v2923 = vrot.slane %v2919, 3
      %v2924 = vrot.slane %v2919, 4
      %v2925 = vrot.slane %v2919, 5
      %v2926 = vrot.slane %v2919, 6
      %v2927 = vrot.slane %v2919, 7
      %v2936 = vsel %vm464, %v2875, %v2921
      %v2937 = vsel %vm464, %v2876, %v2922
      %v2938 = vsel %vm464, %v2877, %v2923
      %v2939 = vsel %vm464, %v2878, %v2924
      %v2940 = vsel %vm464, %v2879, %v2925
      %v2941 = vsel %vm464, %v2880, %v2926
      %v2942 = vsel %vm464, %v2881, %v2927
      %v2943 = vsel %vm464, %v2882, %v2919
      %v2944 = vpack.c.bf16 %v2936, %v2936
      %v2945 = vpack.c.bf16 %v2937, %v2937
      %v2946 = vpack.c.bf16 %v2938, %v2938
      %v2947 = vpack.c.bf16 %v2939, %v2939
      %v2948 = vpack.c.bf16 %v2940, %v2940
      %v2949 = vpack.c.bf16 %v2941, %v2941
      %v2950 = vpack.c.bf16 %v2942, %v2942
      %v2951 = vpack.c.bf16 %v2943, %v2943
      %v2952 = vld [vmem:[%s387 + $0x4] sm:$0x8]
      %v2953 = vsel %vm1640, %v2944, %v2952
      %2954 = vst [vmem:[%s387 + $0x4] sm:$0x8] %v2953
      %v2955 = vld [vmem:[%s387 + $0xc] sm:$0x8]
      %v2956 = vsel %vm1640, %v2945, %v2955
      %2957 = vst [vmem:[%s387 + $0xc] sm:$0x8] %v2956
      %v2958 = vld [vmem:[%s387 + $0x14] sm:$0x8]
      %v2959 = vsel %vm1640, %v2946, %v2958
      %2960 = vst [vmem:[%s387 + $0x14] sm:$0x8] %v2959
      %v2961 = vld [vmem:[%s387 + $0x1c] sm:$0x8]
      %v2962 = vsel %vm1640, %v2947, %v2961
      %2963 = vst [vmem:[%s387 + $0x1c] sm:$0x8] %v2962
      %v2964 = vld [vmem:[%s387 + $0x24] sm:$0x8]
      %v2965 = vsel %vm1640, %v2948, %v2964
      %2966 = vst [vmem:[%s387 + $0x24] sm:$0x8] %v2965
      %v2967 = vld [vmem:[%s387 + $0x2c] sm:$0x8]
      %v2968 = vsel %vm1640, %v2949, %v2967
      %2969 = vst [vmem:[%s387 + $0x2c] sm:$0x8] %v2968
      %v2970 = vld [vmem:[%s387 + $0x34] sm:$0x8]
      %v2971 = vsel %vm1640, %v2950, %v2970
      %2972 = vst [vmem:[%s387 + $0x34] sm:$0x8] %v2971
      %v2973 = vld [vmem:[%s387 + $0x3c] sm:$0x8]
      %v2974 = vsel %vm1640, %v2951, %v2973
      %2975 = vst [vmem:[%s387 + $0x3c] sm:$0x8] %v2974
      %v2976 = vld [vmem:[%s365 + $0x4] sm:$0x8]
      %v2977 = vld [vmem:[%s365 + $0xc] sm:$0x8]
      %v2978 = vld [vmem:[%s365 + $0x14] sm:$0x8]
      %v2979 = vld [vmem:[%s365 + $0x1c] sm:$0x8]
      %v2980 = vld [vmem:[%s365 + $0x24] sm:$0x8]
      %v2981 = vld [vmem:[%s365 + $0x2c] sm:$0x8]
      %v2982 = vld [vmem:[%s365 + $0x34] sm:$0x8]
      %v2983 = vld [vmem:[%s365 + $0x3c] sm:$0x8]
      %v2984 = vunpack.c.l.bf16 %v2976
      %v2985 = vunpack.c.l.bf16 %v2977
      %v2986 = vunpack.c.l.bf16 %v2978
      %v2987 = vunpack.c.l.bf16 %v2979
      %v2988 = vunpack.c.l.bf16 %v2980
      %v2989 = vunpack.c.l.bf16 %v2981
      %v2990 = vunpack.c.l.bf16 %v2982
      %v2991 = vunpack.c.l.bf16 %v2983
      %v2992 = vrot.slane %v2886, 1
      %v2993 = vrot.slane %v2886, 2
      %v2994 = vrot.slane %v2886, 3
      %v2995 = vrot.slane %v2886, 4
      %v2996 = vrot.slane %v2886, 5
      %v2997 = vrot.slane %v2886, 6
      %v2998 = vrot.slane %v2886, 7
      %v3006 = vmul.f32 %v2936, %v2992
      %v3007 = vmul.f32 %v2937, %v2993
      %v3008 = vmul.f32 %v2938, %v2994
      %v3009 = vmul.f32 %v2939, %v2995
      %v3010 = vmul.f32 %v2940, %v2996
      %v3011 = vmul.f32 %v2941, %v2997
      %v3012 = vmul.f32 %v2942, %v2998
      %v3013 = vmul.f32 %v2943, %v2886
      %v3022 = vrot.slane %v2984, 7
      %v3023 = vrot.slane %v2985, 7
      %v3024 = vrot.slane %v2986, 7
      %v3025 = vrot.slane %v2987, 7
      %v3026 = vrot.slane %v2988, 7
      %v3027 = vrot.slane %v2989, 7
      %v3028 = vrot.slane %v2990, 7
      %v3029 = vrot.slane %v2991, 7
      %v3038 = vadd.f32 %v3006, %v3022
      %v3039 = vadd.f32 %v3007, %v3023
      %v3040 = vadd.f32 %v3008, %v3024
      %v3041 = vadd.f32 %v3009, %v3025
      %v3042 = vadd.f32 %v3010, %v3026
      %v3043 = vadd.f32 %v3011, %v3027
      %v3044 = vadd.f32 %v3012, %v3028
      %v3045 = vadd.f32 %v3013, %v3029
      %v3046 = vrot.slane %v2916, 1
      %v3047 = vrot.slane %v2916, 2
      %v3048 = vrot.slane %v2916, 3
      %v3049 = vrot.slane %v2916, 4
      %v3050 = vrot.slane %v2916, 5
      %v3051 = vrot.slane %v2916, 6
      %v3052 = vrot.slane %v2916, 7
      %v3060 = vadd.f32 %v3038, %v3046
      %v3061 = vadd.f32 %v3039, %v3047
      %v3062 = vadd.f32 %v3040, %v3048
      %v3063 = vadd.f32 %v3041, %v3049
      %v3064 = vadd.f32 %v3042, %v3050
      %v3065 = vadd.f32 %v3043, %v3051
      %v3066 = vadd.f32 %v3044, %v3052
      %v3067 = vadd.f32 %v3045, %v2916
      %v3068 = vmax.f32 %v3060, 0.0
      %v3069 = vmax.f32 %v3061, 0.0
      %v3070 = vmax.f32 %v3062, 0.0
      %v3071 = vmax.f32 %v3063, 0.0
      %v3072 = vmax.f32 %v3064, 0.0
      %v3073 = vmax.f32 %v3065, 0.0
      %v3074 = vmax.f32 %v3066, 0.0
      %v3075 = vmax.f32 %v3067, 0.0
      %v3076 = vpack.c.bf16 %v3068, %v3068
      %v3077 = vpack.c.bf16 %v3069, %v3069
      %v3078 = vpack.c.bf16 %v3070, %v3070
      %v3079 = vpack.c.bf16 %v3071, %v3071
      %v3080 = vpack.c.bf16 %v3072, %v3072
      %v3081 = vpack.c.bf16 %v3073, %v3073
      %v3082 = vpack.c.bf16 %v3074, %v3074
      %v3083 = vpack.c.bf16 %v3075, %v3075
      %v3092 = vunpack.c.l.b16 %v3076
      %v3093 = vunpack.c.l.b16 %v3077
      %v3094 = vunpack.c.l.b16 %v3078
      %v3095 = vunpack.c.l.b16 %v3079
      %v3096 = vunpack.c.l.b16 %v3080
      %v3097 = vunpack.c.l.b16 %v3081
      %v3098 = vunpack.c.l.b16 %v3082
      %v3099 = vunpack.c.l.b16 %v3083
      %v3100 = vpack.c.b16 %v3092, %v3092
      %v3101 = vpack.c.b16 %v3093, %v3093
      %v3102 = vpack.c.b16 %v3094, %v3094
      %v3103 = vpack.c.b16 %v3095, %v3095
      %v3104 = vpack.c.b16 %v3096, %v3096
      %v3105 = vpack.c.b16 %v3097, %v3097
      %v3106 = vpack.c.b16 %v3098, %v3098
      %v3107 = vpack.c.b16 %v3099, %v3099
      %v3109 = vshrl.u32 %v3100, 16
      %v3111 = vrot.slane %v3109, 4
      %v3112 = vrot.slane %v3111, 4
      %v3114 = vshrl.u32 %v3101, 16
      %v3116 = vrot.slane %v3114, 4
      %v3117 = vrot.slane %v3116, 4
      %v3119 = vshrl.u32 %v3102, 16
      %v3121 = vrot.slane %v3119, 4
      %v3122 = vrot.slane %v3121, 4
      %v3124 = vshrl.u32 %v3103, 16
      %v3126 = vrot.slane %v3124, 4
      %v3127 = vrot.slane %v3126, 4
      %v3129 = vshrl.u32 %v3104, 16
      %v3131 = vrot.slane %v3129, 4
      %v3132 = vrot.slane %v3131, 4
      %v3134 = vshrl.u32 %v3105, 16
      %v3136 = vrot.slane %v3134, 4
      %v3137 = vrot.slane %v3136, 4
      %v3139 = vshrl.u32 %v3106, 16
      %v3141 = vrot.slane %v3139, 4
      %v3142 = vrot.slane %v3141, 4
      %v3144 = vshrl.u32 %v3107, 16
      %v3146 = vrot.slane %v3144, 4
      %v3147 = vrot.slane %v3146, 4
      %v3156 = vld [vmem:[%s387 + $0x4] sm:$0x8]
      %v3157 = vsel %vm1470, %v3112, %v3156
      %3158 = vst [vmem:[%s387 + $0x4] sm:$0x8] %v3157
      %v3159 = vld [vmem:[%s387 + $0xc] sm:$0x8]
      %v3160 = vsel %vm1470, %v3117, %v3159
      %3161 = vst [vmem:[%s387 + $0xc] sm:$0x8] %v3160
      %v3162 = vld [vmem:[%s387 + $0x14] sm:$0x8]
      %v3163 = vsel %vm1470, %v3122, %v3162
      %3164 = vst [vmem:[%s387 + $0x14] sm:$0x8] %v3163
      %v3165 = vld [vmem:[%s387 + $0x1c] sm:$0x8]
      %v3166 = vsel %vm1470, %v3127, %v3165
      %3167 = vst [vmem:[%s387 + $0x1c] sm:$0x8] %v3166
      %v3168 = vld [vmem:[%s387 + $0x24] sm:$0x8]
      %v3169 = vsel %vm1470, %v3132, %v3168
      %3170 = vst [vmem:[%s387 + $0x24] sm:$0x8] %v3169
      %v3171 = vld [vmem:[%s387 + $0x2c] sm:$0x8]
      %v3172 = vsel %vm1470, %v3137, %v3171
      %3173 = vst [vmem:[%s387 + $0x2c] sm:$0x8] %v3172
      %v3174 = vld [vmem:[%s387 + $0x34] sm:$0x8]
      %v3175 = vsel %vm1470, %v3142, %v3174
      %3176 = vst [vmem:[%s387 + $0x34] sm:$0x8] %v3175
      %v3177 = vld [vmem:[%s387 + $0x3c] sm:$0x8]
      %v3178 = vsel %vm1470, %v3147, %v3177
      %3179 = vst [vmem:[%s387 + $0x3c] sm:$0x8] %v3178
      %v3180 = vld [vmem:[%s365 + $0x4] sm:$0x4]
      %v3181 = vld [vmem:[%s365 + $0xc] sm:$0x4]
      %v3182 = vld [vmem:[%s365 + $0x14] sm:$0x4]
      %v3183 = vld [vmem:[%s365 + $0x1c] sm:$0x4]
      %v3184 = vld [vmem:[%s365 + $0x24] sm:$0x4]
      %v3185 = vld [vmem:[%s365 + $0x2c] sm:$0x4]
      %v3186 = vld [vmem:[%s365 + $0x34] sm:$0x4]
      %v3187 = vld [vmem:[%s365 + $0x3c] sm:$0x4]
      %v3188 = vunpack.c.l.bf16 %v3180
      %v3189 = vunpack.c.l.bf16 %v3181
      %v3190 = vunpack.c.l.bf16 %v3182
      %v3191 = vunpack.c.l.bf16 %v3183
      %v3192 = vunpack.c.l.bf16 %v3184
      %v3193 = vunpack.c.l.bf16 %v3185
      %v3194 = vunpack.c.l.bf16 %v3186
      %v3195 = vunpack.c.l.bf16 %v3187
      %v3196 = vmul.f32 %v3068, %v2992
      %v3197 = vmul.f32 %v3069, %v2993
      %v3198 = vmul.f32 %v3070, %v2994
      %v3199 = vmul.f32 %v3071, %v2995
      %v3200 = vmul.f32 %v3072, %v2996
      %v3201 = vmul.f32 %v3073, %v2997
      %v3202 = vmul.f32 %v3074, %v2998
      %v3203 = vmul.f32 %v3075, %v2886
      %v3212 = vrot.slane %v3188, 6
      %v3213 = vrot.slane %v3189, 6
      %v3214 = vrot.slane %v3190, 6
      %v3215 = vrot.slane %v3191, 6
      %v3216 = vrot.slane %v3192, 6
      %v3217 = vrot.slane %v3193, 6
      %v3218 = vrot.slane %v3194, 6
      %v3219 = vrot.slane %v3195, 6
      %v3228 = vadd.f32 %v3196, %v3212
      %v3229 = vadd.f32 %v3197, %v3213
      %v3230 = vadd.f32 %v3198, %v3214
      %v3231 = vadd.f32 %v3199, %v3215
      %v3232 = vadd.f32 %v3200, %v3216
      %v3233 = vadd.f32 %v3201, %v3217
      %v3234 = vadd.f32 %v3202, %v3218
      %v3235 = vadd.f32 %v3203, %v3219
      %v3236 = vadd.f32 %v3228, %v3046
      %v3237 = vadd.f32 %v3229, %v3047
      %v3238 = vadd.f32 %v3230, %v3048
      %v3239 = vadd.f32 %v3231, %v3049
      %v3240 = vadd.f32 %v3232, %v3050
      %v3241 = vadd.f32 %v3233, %v3051
      %v3242 = vadd.f32 %v3234, %v3052
      %v3243 = vadd.f32 %v3235, %v2916
      %v3244 = vmax.f32 %v3236, 0.0
      %v3245 = vmax.f32 %v3237, 0.0
      %v3246 = vmax.f32 %v3238, 0.0
      %v3247 = vmax.f32 %v3239, 0.0
      %v3248 = vmax.f32 %v3240, 0.0
      %v3249 = vmax.f32 %v3241, 0.0
      %v3250 = vmax.f32 %v3242, 0.0
      %v3251 = vmax.f32 %v3243, 0.0
      %v3252 = vpack.c.bf16 %v3244, %v3244
      %v3253 = vpack.c.bf16 %v3245, %v3245
      %v3254 = vpack.c.bf16 %v3246, %v3246
      %v3255 = vpack.c.bf16 %v3247, %v3247
      %v3256 = vpack.c.bf16 %v3248, %v3248
      %v3257 = vpack.c.bf16 %v3249, %v3249
      %v3258 = vpack.c.bf16 %v3250, %v3250
      %v3259 = vpack.c.bf16 %v3251, %v3251
      %v3268 = vunpack.c.l.b16 %v3252
      %v3269 = vunpack.c.l.b16 %v3253
      %v3270 = vunpack.c.l.b16 %v3254
      %v3271 = vunpack.c.l.b16 %v3255
      %v3272 = vunpack.c.l.b16 %v3256
      %v3273 = vunpack.c.l.b16 %v3257
      %v3274 = vunpack.c.l.b16 %v3258
      %v3275 = vunpack.c.l.b16 %v3259
      %v3276 = vpack.c.b16 %v3268, %v3268
      %v3277 = vpack.c.b16 %v3269, %v3269
      %v3278 = vpack.c.b16 %v3270, %v3270
      %v3279 = vpack.c.b16 %v3271, %v3271
      %v3280 = vpack.c.b16 %v3272, %v3272
      %v3281 = vpack.c.b16 %v3273, %v3273
      %v3282 = vpack.c.b16 %v3274, %v3274
      %v3283 = vpack.c.b16 %v3275, %v3275
      %v3284 = vrot.slane %v3276, 5
      %v3285 = vrot.slane %v3284, 4
      %v3286 = vrot.slane %v3277, 5
      %v3287 = vrot.slane %v3286, 4
      %v3288 = vrot.slane %v3278, 5
      %v3289 = vrot.slane %v3288, 4
      %v3290 = vrot.slane %v3279, 5
      %v3291 = vrot.slane %v3290, 4
      %v3292 = vrot.slane %v3280, 5
      %v3293 = vrot.slane %v3292, 4
      %v3294 = vrot.slane %v3281, 5
      %v3295 = vrot.slane %v3294, 4
      %v3296 = vrot.slane %v3282, 5
      %v3297 = vrot.slane %v3296, 4
      %v3298 = vrot.slane %v3283, 5
      %v3299 = vrot.slane %v3298, 4
      %v3308 = vld [vmem:[%s387 + $0x4] sm:$0x4]
      %v3309 = vsel %vm1323, %v3285, %v3308
      %3310 = vst [vmem:[%s387 + $0x4] sm:$0x4] %v3309
      %v3311 = vld [vmem:[%s387 + $0xc] sm:$0x4]
      %v3312 = vsel %vm1323, %v3287, %v3311
      %3313 = vst [vmem:[%s387 + $0xc] sm:$0x4] %v3312
      %v3314 = vld [vmem:[%s387 + $0x14] sm:$0x4]
      %v3315 = vsel %vm1323, %v3289, %v3314
      %3316 = vst [vmem:[%s387 + $0x14] sm:$0x4] %v3315
      %v3317 = vld [vmem:[%s387 + $0x1c] sm:$0x4]
      %v3318 = vsel %vm1323, %v3291, %v3317
      %3319 = vst [vmem:[%s387 + $0x1c] sm:$0x4] %v3318
      %v3320 = vld [vmem:[%s387 + $0x24] sm:$0x4]
      %v3321 = vsel %vm1323, %v3293, %v3320
      %3322 = vst [vmem:[%s387 + $0x24] sm:$0x4] %v3321
      %v3323 = vld [vmem:[%s387 + $0x2c] sm:$0x4]
      %v3324 = vsel %vm1323, %v3295, %v3323
      %3325 = vst [vmem:[%s387 + $0x2c] sm:$0x4] %v3324
      %v3326 = vld [vmem:[%s387 + $0x34] sm:$0x4]
      %v3327 = vsel %vm1323, %v3297, %v3326
      %3328 = vst [vmem:[%s387 + $0x34] sm:$0x4] %v3327
      %v3329 = vld [vmem:[%s387 + $0x3c] sm:$0x4]
      %v3330 = vsel %vm1323, %v3299, %v3329
      %3331 = vst [vmem:[%s387 + $0x3c] sm:$0x4] %v3330
      %v3332 = vld [vmem:[%s365 + $0x4] sm:$0x4]
      %v3333 = vld [vmem:[%s365 + $0xc] sm:$0x4]
      %v3334 = vld [vmem:[%s365 + $0x14] sm:$0x4]
      %v3335 = vld [vmem:[%s365 + $0x1c] sm:$0x4]
      %v3336 = vld [vmem:[%s365 + $0x24] sm:$0x4]
      %v3337 = vld [vmem:[%s365 + $0x2c] sm:$0x4]
      %v3338 = vld [vmem:[%s365 + $0x34] sm:$0x4]
      %v3339 = vld [vmem:[%s365 + $0x3c] sm:$0x4]
      %v3340 = vunpack.c.l.bf16 %v3332
      %v3341 = vunpack.c.l.bf16 %v3333
      %v3342 = vunpack.c.l.bf16 %v3334
      %v3343 = vunpack.c.l.bf16 %v3335
      %v3344 = vunpack.c.l.bf16 %v3336
      %v3345 = vunpack.c.l.bf16 %v3337
      %v3346 = vunpack.c.l.bf16 %v3338
      %v3347 = vunpack.c.l.bf16 %v3339
      %v3348 = vmul.f32 %v3244, %v2992
      %v3349 = vmul.f32 %v3245, %v2993
      %v3350 = vmul.f32 %v3246, %v2994
      %v3351 = vmul.f32 %v3247, %v2995
      %v3352 = vmul.f32 %v3248, %v2996
      %v3353 = vmul.f32 %v3249, %v2997
      %v3354 = vmul.f32 %v3250, %v2998
      %v3355 = vmul.f32 %v3251, %v2886
      %v3364 = vrot.slane %v3340, 5
      %v3365 = vrot.slane %v3341, 5
      %v3366 = vrot.slane %v3342, 5
      %v3367 = vrot.slane %v3343, 5
      %v3368 = vrot.slane %v3344, 5
      %v3369 = vrot.slane %v3345, 5
      %v3370 = vrot.slane %v3346, 5
      %v3371 = vrot.slane %v3347, 5
      %v3380 = vadd.f32 %v3348, %v3364
      %v3381 = vadd.f32 %v3349, %v3365
      %v3382 = vadd.f32 %v3350, %v3366
      %v3383 = vadd.f32 %v3351, %v3367
      %v3384 = vadd.f32 %v3352, %v3368
      %v3385 = vadd.f32 %v3353, %v3369
      %v3386 = vadd.f32 %v3354, %v3370
      %v3387 = vadd.f32 %v3355, %v3371
      %v3388 = vadd.f32 %v3380, %v3046
      %v3389 = vadd.f32 %v3381, %v3047
      %v3390 = vadd.f32 %v3382, %v3048
      %v3391 = vadd.f32 %v3383, %v3049
      %v3392 = vadd.f32 %v3384, %v3050
      %v3393 = vadd.f32 %v3385, %v3051
      %v3394 = vadd.f32 %v3386, %v3052
      %v3395 = vadd.f32 %v3387, %v2916
      %v3396 = vmax.f32 %v3388, 0.0
      %v3397 = vmax.f32 %v3389, 0.0
      %v3398 = vmax.f32 %v3390, 0.0
      %v3399 = vmax.f32 %v3391, 0.0
      %v3400 = vmax.f32 %v3392, 0.0
      %v3401 = vmax.f32 %v3393, 0.0
      %v3402 = vmax.f32 %v3394, 0.0
      %v3403 = vmax.f32 %v3395, 0.0
      %v3404 = vpack.c.bf16 %v3396, %v3396
      %v3405 = vpack.c.bf16 %v3397, %v3397
      %v3406 = vpack.c.bf16 %v3398, %v3398
      %v3407 = vpack.c.bf16 %v3399, %v3399
      %v3408 = vpack.c.bf16 %v3400, %v3400
      %v3409 = vpack.c.bf16 %v3401, %v3401
      %v3410 = vpack.c.bf16 %v3402, %v3402
      %v3411 = vpack.c.bf16 %v3403, %v3403
      %v3420 = vunpack.c.l.b16 %v3404
      %v3421 = vunpack.c.l.b16 %v3405
      %v3422 = vunpack.c.l.b16 %v3406
      %v3423 = vunpack.c.l.b16 %v3407
      %v3424 = vunpack.c.l.b16 %v3408
      %v3425 = vunpack.c.l.b16 %v3409
      %v3426 = vunpack.c.l.b16 %v3410
      %v3427 = vunpack.c.l.b16 %v3411
      %v3428 = vpack.c.b16 %v3420, %v3420
      %v3429 = vpack.c.b16 %v3421, %v3421
      %v3430 = vpack.c.b16 %v3422, %v3422
      %v3431 = vpack.c.b16 %v3423, %v3423
      %v3432 = vpack.c.b16 %v3424, %v3424
      %v3433 = vpack.c.b16 %v3425, %v3425
      %v3434 = vpack.c.b16 %v3426, %v3426
      %v3435 = vpack.c.b16 %v3427, %v3427
      %v3437 = vshrl.u32 %v3428, 16
      %v3439 = vrot.slane %v3437, 5
      %v3440 = vrot.slane %v3439, 4
      %v3442 = vshrl.u32 %v3429, 16
      %v3444 = vrot.slane %v3442, 5
      %v3445 = vrot.slane %v3444, 4
      %v3447 = vshrl.u32 %v3430, 16
      %v3449 = vrot.slane %v3447, 5
      %v3450 = vrot.slane %v3449, 4
      %v3452 = vshrl.u32 %v3431, 16
      %v3454 = vrot.slane %v3452, 5
      %v3455 = vrot.slane %v3454, 4
      %v3457 = vshrl.u32 %v3432, 16
      %v3459 = vrot.slane %v3457, 5
      %v3460 = vrot.slane %v3459, 4
      %v3462 = vshrl.u32 %v3433, 16
      %v3464 = vrot.slane %v3462, 5
      %v3465 = vrot.slane %v3464, 4
      %v3467 = vshrl.u32 %v3434, 16
      %v3469 = vrot.slane %v3467, 5
      %v3470 = vrot.slane %v3469, 4
      %v3472 = vshrl.u32 %v3435, 16
      %v3474 = vrot.slane %v3472, 5
      %v3475 = vrot.slane %v3474, 4
      %v3484 = vld [vmem:[%s387 + $0x4] sm:$0x4]
      %v3485 = vsel %vm1153, %v3440, %v3484
      %3486 = vst [vmem:[%s387 + $0x4] sm:$0x4] %v3485
      %v3487 = vld [vmem:[%s387 + $0xc] sm:$0x4]
      %v3488 = vsel %vm1153, %v3445, %v3487
      %3489 = vst [vmem:[%s387 + $0xc] sm:$0x4] %v3488
      %v3490 = vld [vmem:[%s387 + $0x14] sm:$0x4]
      %v3491 = vsel %vm1153, %v3450, %v3490
      %3492 = vst [vmem:[%s387 + $0x14] sm:$0x4] %v3491
      %v3493 = vld [vmem:[%s387 + $0x1c] sm:$0x4]
      %v3494 = vsel %vm1153, %v3455, %v3493
      %3495 = vst [vmem:[%s387 + $0x1c] sm:$0x4] %v3494
      %v3496 = vld [vmem:[%s387 + $0x24] sm:$0x4]
      %v3497 = vsel %vm1153, %v3460, %v3496
      %3498 = vst [vmem:[%s387 + $0x24] sm:$0x4] %v3497
      %v3499 = vld [vmem:[%s387 + $0x2c] sm:$0x4]
      %v3500 = vsel %vm1153, %v3465, %v3499
      %3501 = vst [vmem:[%s387 + $0x2c] sm:$0x4] %v3500
      %v3502 = vld [vmem:[%s387 + $0x34] sm:$0x4]
      %v3503 = vsel %vm1153, %v3470, %v3502
      %3504 = vst [vmem:[%s387 + $0x34] sm:$0x4] %v3503
      %v3505 = vld [vmem:[%s387 + $0x3c] sm:$0x4]
      %v3506 = vsel %vm1153, %v3475, %v3505
      %3507 = vst [vmem:[%s387 + $0x3c] sm:$0x4] %v3506
      %v3508 = vld [vmem:[%s365 + $0x4] sm:$0x2]
      %v3509 = vld [vmem:[%s365 + $0xc] sm:$0x2]
      %v3510 = vld [vmem:[%s365 + $0x14] sm:$0x2]
      %v3511 = vld [vmem:[%s365 + $0x1c] sm:$0x2]
      %v3512 = vld [vmem:[%s365 + $0x24] sm:$0x2]
      %v3513 = vld [vmem:[%s365 + $0x2c] sm:$0x2]
      %v3514 = vld [vmem:[%s365 + $0x34] sm:$0x2]
      %v3515 = vld [vmem:[%s365 + $0x3c] sm:$0x2]
      %v3516 = vunpack.c.l.bf16 %v3508
      %v3517 = vunpack.c.l.bf16 %v3509
      %v3518 = vunpack.c.l.bf16 %v3510
      %v3519 = vunpack.c.l.bf16 %v3511
      %v3520 = vunpack.c.l.bf16 %v3512
      %v3521 = vunpack.c.l.bf16 %v3513
      %v3522 = vunpack.c.l.bf16 %v3514
      %v3523 = vunpack.c.l.bf16 %v3515
      %v3524 = vmul.f32 %v3396, %v2992
      %v3525 = vmul.f32 %v3397, %v2993
      %v3526 = vmul.f32 %v3398, %v2994
      %v3527 = vmul.f32 %v3399, %v2995
      %v3528 = vmul.f32 %v3400, %v2996
      %v3529 = vmul.f32 %v3401, %v2997
      %v3530 = vmul.f32 %v3402, %v2998
      %v3531 = vmul.f32 %v3403, %v2886
      %v3540 = vrot.slane %v3516, 4
      %v3541 = vrot.slane %v3517, 4
      %v3542 = vrot.slane %v3518, 4
      %v3543 = vrot.slane %v3519, 4
      %v3544 = vrot.slane %v3520, 4
      %v3545 = vrot.slane %v3521, 4
      %v3546 = vrot.slane %v3522, 4
      %v3547 = vrot.slane %v3523, 4
      %v3556 = vadd.f32 %v3524, %v3540
      %v3557 = vadd.f32 %v3525, %v3541
      %v3558 = vadd.f32 %v3526, %v3542
      %v3559 = vadd.f32 %v3527, %v3543
      %v3560 = vadd.f32 %v3528, %v3544
      %v3561 = vadd.f32 %v3529, %v3545
      %v3562 = vadd.f32 %v3530, %v3546
      %v3563 = vadd.f32 %v3531, %v3547
      %v3564 = vadd.f32 %v3556, %v3046
      %v3565 = vadd.f32 %v3557, %v3047
      %v3566 = vadd.f32 %v3558, %v3048
      %v3567 = vadd.f32 %v3559, %v3049
      %v3568 = vadd.f32 %v3560, %v3050
      %v3569 = vadd.f32 %v3561, %v3051
      %v3570 = vadd.f32 %v3562, %v3052
      %v3571 = vadd.f32 %v3563, %v2916
      %v3572 = vmax.f32 %v3564, 0.0
      %v3573 = vmax.f32 %v3565, 0.0
      %v3574 = vmax.f32 %v3566, 0.0
      %v3575 = vmax.f32 %v3567, 0.0
      %v3576 = vmax.f32 %v3568, 0.0
      %v3577 = vmax.f32 %v3569, 0.0
      %v3578 = vmax.f32 %v3570, 0.0
      %v3579 = vmax.f32 %v3571, 0.0
      %v3580 = vpack.c.bf16 %v3572, %v3572
      %v3581 = vpack.c.bf16 %v3573, %v3573
      %v3582 = vpack.c.bf16 %v3574, %v3574
      %v3583 = vpack.c.bf16 %v3575, %v3575
      %v3584 = vpack.c.bf16 %v3576, %v3576
      %v3585 = vpack.c.bf16 %v3577, %v3577
      %v3586 = vpack.c.bf16 %v3578, %v3578
      %v3587 = vpack.c.bf16 %v3579, %v3579
      %v3596 = vunpack.c.l.b16 %v3580
      %v3597 = vunpack.c.l.b16 %v3581
      %v3598 = vunpack.c.l.b16 %v3582
      %v3599 = vunpack.c.l.b16 %v3583
      %v3600 = vunpack.c.l.b16 %v3584
      %v3601 = vunpack.c.l.b16 %v3585
      %v3602 = vunpack.c.l.b16 %v3586
      %v3603 = vunpack.c.l.b16 %v3587
      %v3604 = vpack.c.b16 %v3596, %v3596
      %v3605 = vpack.c.b16 %v3597, %v3597
      %v3606 = vpack.c.b16 %v3598, %v3598
      %v3607 = vpack.c.b16 %v3599, %v3599
      %v3608 = vpack.c.b16 %v3600, %v3600
      %v3609 = vpack.c.b16 %v3601, %v3601
      %v3610 = vpack.c.b16 %v3602, %v3602
      %v3611 = vpack.c.b16 %v3603, %v3603
      %v3612 = vrot.slane %v3604, 6
      %v3613 = vrot.slane %v3612, 4
      %v3614 = vrot.slane %v3605, 6
      %v3615 = vrot.slane %v3614, 4
      %v3616 = vrot.slane %v3606, 6
      %v3617 = vrot.slane %v3616, 4
      %v3618 = vrot.slane %v3607, 6
      %v3619 = vrot.slane %v3618, 4
      %v3620 = vrot.slane %v3608, 6
      %v3621 = vrot.slane %v3620, 4
      %v3622 = vrot.slane %v3609, 6
      %v3623 = vrot.slane %v3622, 4
      %v3624 = vrot.slane %v3610, 6
      %v3625 = vrot.slane %v3624, 4
      %v3626 = vrot.slane %v3611, 6
      %v3627 = vrot.slane %v3626, 4
      %v3636 = vld [vmem:[%s387 + $0x4] sm:$0x2]
      %v3637 = vsel %vm1006, %v3613, %v3636
      %3638 = vst [vmem:[%s387 + $0x4] sm:$0x2] %v3637
      %v3639 = vld [vmem:[%s387 + $0xc] sm:$0x2]
      %v3640 = vsel %vm1006, %v3615, %v3639
      %3641 = vst [vmem:[%s387 + $0xc] sm:$0x2] %v3640
      %v3642 = vld [vmem:[%s387 + $0x14] sm:$0x2]
      %v3643 = vsel %vm1006, %v3617, %v3642
      %3644 = vst [vmem:[%s387 + $0x14] sm:$0x2] %v3643
      %v3645 = vld [vmem:[%s387 + $0x1c] sm:$0x2]
      %v3646 = vsel %vm1006, %v3619, %v3645
      %3647 = vst [vmem:[%s387 + $0x1c] sm:$0x2] %v3646
      %v3648 = vld [vmem:[%s387 + $0x24] sm:$0x2]
      %v3649 = vsel %vm1006, %v3621, %v3648
      %3650 = vst [vmem:[%s387 + $0x24] sm:$0x2] %v3649
      %v3651 = vld [vmem:[%s387 + $0x2c] sm:$0x2]
      %v3652 = vsel %vm1006, %v3623, %v3651
      %3653 = vst [vmem:[%s387 + $0x2c] sm:$0x2] %v3652
      %v3654 = vld [vmem:[%s387 + $0x34] sm:$0x2]
      %v3655 = vsel %vm1006, %v3625, %v3654
      %3656 = vst [vmem:[%s387 + $0x34] sm:$0x2] %v3655
      %v3657 = vld [vmem:[%s387 + $0x3c] sm:$0x2]
      %v3658 = vsel %vm1006, %v3627, %v3657
      %3659 = vst [vmem:[%s387 + $0x3c] sm:$0x2] %v3658
      %v3660 = vld [vmem:[%s365 + $0x4] sm:$0x2]
      %v3661 = vld [vmem:[%s365 + $0xc] sm:$0x2]
      %v3662 = vld [vmem:[%s365 + $0x14] sm:$0x2]
      %v3663 = vld [vmem:[%s365 + $0x1c] sm:$0x2]
      %v3664 = vld [vmem:[%s365 + $0x24] sm:$0x2]
      %v3665 = vld [vmem:[%s365 + $0x2c] sm:$0x2]
      %v3666 = vld [vmem:[%s365 + $0x34] sm:$0x2]
      %v3667 = vld [vmem:[%s365 + $0x3c] sm:$0x2]
      %v3668 = vunpack.c.l.bf16 %v3660
      %v3669 = vunpack.c.l.bf16 %v3661
      %v3670 = vunpack.c.l.bf16 %v3662
      %v3671 = vunpack.c.l.bf16 %v3663
      %v3672 = vunpack.c.l.bf16 %v3664
      %v3673 = vunpack.c.l.bf16 %v3665
      %v3674 = vunpack.c.l.bf16 %v3666
      %v3675 = vunpack.c.l.bf16 %v3667
      %v3676 = vmul.f32 %v3572, %v2992
      %v3677 = vmul.f32 %v3573, %v2993
      %v3678 = vmul.f32 %v3574, %v2994
      %v3679 = vmul.f32 %v3575, %v2995
      %v3680 = vmul.f32 %v3576, %v2996
      %v3681 = vmul.f32 %v3577, %v2997
      %v3682 = vmul.f32 %v3578, %v2998
      %v3683 = vmul.f32 %v3579, %v2886
      %v3692 = vrot.slane %v3668, 3
      %v3693 = vrot.slane %v3669, 3
      %v3694 = vrot.slane %v3670, 3
      %v3695 = vrot.slane %v3671, 3
      %v3696 = vrot.slane %v3672, 3
      %v3697 = vrot.slane %v3673, 3
      %v3698 = vrot.slane %v3674, 3
      %v3699 = vrot.slane %v3675, 3
      %v3708 = vadd.f32 %v3676, %v3692
      %v3709 = vadd.f32 %v3677, %v3693
      %v3710 = vadd.f32 %v3678, %v3694
      %v3711 = vadd.f32 %v3679, %v3695
      %v3712 = vadd.f32 %v3680, %v3696
      %v3713 = vadd.f32 %v3681, %v3697
      %v3714 = vadd.f32 %v3682, %v3698
      %v3715 = vadd.f32 %v3683, %v3699
      %v3716 = vadd.f32 %v3708, %v3046
      %v3717 = vadd.f32 %v3709, %v3047
      %v3718 = vadd.f32 %v3710, %v3048
      %v3719 = vadd.f32 %v3711, %v3049
      %v3720 = vadd.f32 %v3712, %v3050
      %v3721 = vadd.f32 %v3713, %v3051
      %v3722 = vadd.f32 %v3714, %v3052
      %v3723 = vadd.f32 %v3715, %v2916
      %v3724 = vmax.f32 %v3716, 0.0
      %v3725 = vmax.f32 %v3717, 0.0
      %v3726 = vmax.f32 %v3718, 0.0
      %v3727 = vmax.f32 %v3719, 0.0
      %v3728 = vmax.f32 %v3720, 0.0
      %v3729 = vmax.f32 %v3721, 0.0
      %v3730 = vmax.f32 %v3722, 0.0
      %v3731 = vmax.f32 %v3723, 0.0
      %v3732 = vpack.c.bf16 %v3724, %v3724
      %v3733 = vpack.c.bf16 %v3725, %v3725
      %v3734 = vpack.c.bf16 %v3726, %v3726
      %v3735 = vpack.c.bf16 %v3727, %v3727
      %v3736 = vpack.c.bf16 %v3728, %v3728
      %v3737 = vpack.c.bf16 %v3729, %v3729
      %v3738 = vpack.c.bf16 %v3730, %v3730
      %v3739 = vpack.c.bf16 %v3731, %v3731
      %v3748 = vunpack.c.l.b16 %v3732
      %v3749 = vunpack.c.l.b16 %v3733
      %v3750 = vunpack.c.l.b16 %v3734
      %v3751 = vunpack.c.l.b16 %v3735
      %v3752 = vunpack.c.l.b16 %v3736
      %v3753 = vunpack.c.l.b16 %v3737
      %v3754 = vunpack.c.l.b16 %v3738
      %v3755 = vunpack.c.l.b16 %v3739
      %v3756 = vpack.c.b16 %v3748, %v3748
      %v3757 = vpack.c.b16 %v3749, %v3749
      %v3758 = vpack.c.b16 %v3750, %v3750
      %v3759 = vpack.c.b16 %v3751, %v3751
      %v3760 = vpack.c.b16 %v3752, %v3752
      %v3761 = vpack.c.b16 %v3753, %v3753
      %v3762 = vpack.c.b16 %v3754, %v3754
      %v3763 = vpack.c.b16 %v3755, %v3755
      %v3765 = vshrl.u32 %v3756, 16
      %v3767 = vrot.slane %v3765, 6
      %v3768 = vrot.slane %v3767, 4
      %v3770 = vshrl.u32 %v3757, 16
      %v3772 = vrot.slane %v3770, 6
      %v3773 = vrot.slane %v3772, 4
      %v3775 = vshrl.u32 %v3758, 16
      %v3777 = vrot.slane %v3775, 6
      %v3778 = vrot.slane %v3777, 4
      %v3780 = vshrl.u32 %v3759, 16
      %v3782 = vrot.slane %v3780, 6
      %v3783 = vrot.slane %v3782, 4
      %v3785 = vshrl.u32 %v3760, 16
      %v3787 = vrot.slane %v3785, 6
      %v3788 = vrot.slane %v3787, 4
      %v3790 = vshrl.u32 %v3761, 16
      %v3792 = vrot.slane %v3790, 6
      %v3793 = vrot.slane %v3792, 4
      %v3795 = vshrl.u32 %v3762, 16
      %v3797 = vrot.slane %v3795, 6
      %v3798 = vrot.slane %v3797, 4
      %v3800 = vshrl.u32 %v3763, 16
      %v3802 = vrot.slane %v3800, 6
      %v3803 = vrot.slane %v3802, 4
      %v3812 = vld [vmem:[%s387 + $0x4] sm:$0x2]
      %v3813 = vsel %vm836, %v3768, %v3812
      %3814 = vst [vmem:[%s387 + $0x4] sm:$0x2] %v3813
      %v3815 = vld [vmem:[%s387 + $0xc] sm:$0x2]
      %v3816 = vsel %vm836, %v3773, %v3815
      %3817 = vst [vmem:[%s387 + $0xc] sm:$0x2] %v3816
      %v3818 = vld [vmem:[%s387 + $0x14] sm:$0x2]
      %v3819 = vsel %vm836, %v3778, %v3818
      %3820 = vst [vmem:[%s387 + $0x14] sm:$0x2] %v3819
      %v3821 = vld [vmem:[%s387 + $0x1c] sm:$0x2]
      %v3822 = vsel %vm836, %v3783, %v3821
      %3823 = vst [vmem:[%s387 + $0x1c] sm:$0x2] %v3822
      %v3824 = vld [vmem:[%s387 + $0x24] sm:$0x2]
      %v3825 = vsel %vm836, %v3788, %v3824
      %3826 = vst [vmem:[%s387 + $0x24] sm:$0x2] %v3825
      %v3827 = vld [vmem:[%s387 + $0x2c] sm:$0x2]
      %v3828 = vsel %vm836, %v3793, %v3827
      %3829 = vst [vmem:[%s387 + $0x2c] sm:$0x2] %v3828
      %v3830 = vld [vmem:[%s387 + $0x34] sm:$0x2]
      %v3831 = vsel %vm836, %v3798, %v3830
      %3832 = vst [vmem:[%s387 + $0x34] sm:$0x2] %v3831
      %v3833 = vld [vmem:[%s387 + $0x3c] sm:$0x2]
      %v3834 = vsel %vm836, %v3803, %v3833
      %3835 = vst [vmem:[%s387 + $0x3c] sm:$0x2] %v3834
      %v3836 = vld [vmem:[%s365 + $0x4] sm:$0x1]
      %v3837 = vld [vmem:[%s365 + $0xc] sm:$0x1]
      %v3838 = vld [vmem:[%s365 + $0x14] sm:$0x1]
      %v3839 = vld [vmem:[%s365 + $0x1c] sm:$0x1]
      %v3840 = vld [vmem:[%s365 + $0x24] sm:$0x1]
      %v3841 = vld [vmem:[%s365 + $0x2c] sm:$0x1]
      %v3842 = vld [vmem:[%s365 + $0x34] sm:$0x1]
      %v3843 = vld [vmem:[%s365 + $0x3c] sm:$0x1]
      %v3844 = vunpack.c.l.bf16 %v3836
      %v3845 = vunpack.c.l.bf16 %v3837
      %v3846 = vunpack.c.l.bf16 %v3838
      %v3847 = vunpack.c.l.bf16 %v3839
      %v3848 = vunpack.c.l.bf16 %v3840
      %v3849 = vunpack.c.l.bf16 %v3841
      %v3850 = vunpack.c.l.bf16 %v3842
      %v3851 = vunpack.c.l.bf16 %v3843
      %v3852 = vmul.f32 %v3724, %v2992
      %v3853 = vmul.f32 %v3725, %v2993
      %v3854 = vmul.f32 %v3726, %v2994
      %v3855 = vmul.f32 %v3727, %v2995
      %v3856 = vmul.f32 %v3728, %v2996
      %v3857 = vmul.f32 %v3729, %v2997
      %v3858 = vmul.f32 %v3730, %v2998
      %v3859 = vmul.f32 %v3731, %v2886
      %v3868 = vrot.slane %v3844, 2
      %v3869 = vrot.slane %v3845, 2
      %v3870 = vrot.slane %v3846, 2
      %v3871 = vrot.slane %v3847, 2
      %v3872 = vrot.slane %v3848, 2
      %v3873 = vrot.slane %v3849, 2
      %v3874 = vrot.slane %v3850, 2
      %v3875 = vrot.slane %v3851, 2
      %v3884 = vadd.f32 %v3852, %v3868
      %v3885 = vadd.f32 %v3853, %v3869
      %v3886 = vadd.f32 %v3854, %v3870
      %v3887 = vadd.f32 %v3855, %v3871
      %v3888 = vadd.f32 %v3856, %v3872
      %v3889 = vadd.f32 %v3857, %v3873
      %v3890 = vadd.f32 %v3858, %v3874
      %v3891 = vadd.f32 %v3859, %v3875
      %v3892 = vadd.f32 %v3884, %v3046
      %v3893 = vadd.f32 %v3885, %v3047
      %v3894 = vadd.f32 %v3886, %v3048
      %v3895 = vadd.f32 %v3887, %v3049
      %v3896 = vadd.f32 %v3888, %v3050
      %v3897 = vadd.f32 %v3889, %v3051
      %v3898 = vadd.f32 %v3890, %v3052
      %v3899 = vadd.f32 %v3891, %v2916
      %v3900 = vmax.f32 %v3892, 0.0
      %v3901 = vmax.f32 %v3893, 0.0
      %v3902 = vmax.f32 %v3894, 0.0
      %v3903 = vmax.f32 %v3895, 0.0
      %v3904 = vmax.f32 %v3896, 0.0
      %v3905 = vmax.f32 %v3897, 0.0
      %v3906 = vmax.f32 %v3898, 0.0
      %v3907 = vmax.f32 %v3899, 0.0
      %v3908 = vpack.c.bf16 %v3900, %v3900
      %v3909 = vpack.c.bf16 %v3901, %v3901
      %v3910 = vpack.c.bf16 %v3902, %v3902
      %v3911 = vpack.c.bf16 %v3903, %v3903
      %v3912 = vpack.c.bf16 %v3904, %v3904
      %v3913 = vpack.c.bf16 %v3905, %v3905
      %v3914 = vpack.c.bf16 %v3906, %v3906
      %v3915 = vpack.c.bf16 %v3907, %v3907
      %v3924 = vunpack.c.l.b16 %v3908
      %v3925 = vunpack.c.l.b16 %v3909
      %v3926 = vunpack.c.l.b16 %v3910
      %v3927 = vunpack.c.l.b16 %v3911
      %v3928 = vunpack.c.l.b16 %v3912
      %v3929 = vunpack.c.l.b16 %v3913
      %v3930 = vunpack.c.l.b16 %v3914
      %v3931 = vunpack.c.l.b16 %v3915
      %v3932 = vpack.c.b16 %v3924, %v3924
      %v3933 = vpack.c.b16 %v3925, %v3925
      %v3934 = vpack.c.b16 %v3926, %v3926
      %v3935 = vpack.c.b16 %v3927, %v3927
      %v3936 = vpack.c.b16 %v3928, %v3928
      %v3937 = vpack.c.b16 %v3929, %v3929
      %v3938 = vpack.c.b16 %v3930, %v3930
      %v3939 = vpack.c.b16 %v3931, %v3931
      %v3940 = vrot.slane %v3932, 7
      %v3941 = vrot.slane %v3940, 4
      %v3942 = vrot.slane %v3933, 7
      %v3943 = vrot.slane %v3942, 4
      %v3944 = vrot.slane %v3934, 7
      %v3945 = vrot.slane %v3944, 4
      %v3946 = vrot.slane %v3935, 7
      %v3947 = vrot.slane %v3946, 4
      %v3948 = vrot.slane %v3936, 7
      %v3949 = vrot.slane %v3948, 4
      %v3950 = vrot.slane %v3937, 7
      %v3951 = vrot.slane %v3950, 4
      %v3952 = vrot.slane %v3938, 7
      %v3953 = vrot.slane %v3952, 4
      %v3954 = vrot.slane %v3939, 7
      %v3955 = vrot.slane %v3954, 4
      %v3964 = vld [vmem:[%s387 + $0x4] sm:$0x1]
      %v3965 = vsel %vm689, %v3941, %v3964
      %3966 = vst [vmem:[%s387 + $0x4] sm:$0x1] %v3965
      %v3967 = vld [vmem:[%s387 + $0xc] sm:$0x1]
      %v3968 = vsel %vm689, %v3943, %v3967
      %3969 = vst [vmem:[%s387 + $0xc] sm:$0x1] %v3968
      %v3970 = vld [vmem:[%s387 + $0x14] sm:$0x1]
      %v3971 = vsel %vm689, %v3945, %v3970
      %3972 = vst [vmem:[%s387 + $0x14] sm:$0x1] %v3971
      %v3973 = vld [vmem:[%s387 + $0x1c] sm:$0x1]
      %v3974 = vsel %vm689, %v3947, %v3973
      %3975 = vst [vmem:[%s387 + $0x1c] sm:$0x1] %v3974
      %v3976 = vld [vmem:[%s387 + $0x24] sm:$0x1]
      %v3977 = vsel %vm689, %v3949, %v3976
      %3978 = vst [vmem:[%s387 + $0x24] sm:$0x1] %v3977
      %v3979 = vld [vmem:[%s387 + $0x2c] sm:$0x1]
      %v3980 = vsel %vm689, %v3951, %v3979
      %3981 = vst [vmem:[%s387 + $0x2c] sm:$0x1] %v3980
      %v3982 = vld [vmem:[%s387 + $0x34] sm:$0x1]
      %v3983 = vsel %vm689, %v3953, %v3982
      %3984 = vst [vmem:[%s387 + $0x34] sm:$0x1] %v3983
      %v3985 = vld [vmem:[%s387 + $0x3c] sm:$0x1]
      %v3986 = vsel %vm689, %v3955, %v3985
      %3987 = vst [vmem:[%s387 + $0x3c] sm:$0x1] %v3986
      %v3988 = vld [vmem:[%s365 + $0x4] sm:$0x1]
      %v3989 = vld [vmem:[%s365 + $0xc] sm:$0x1]
      %v3990 = vld [vmem:[%s365 + $0x14] sm:$0x1]
      %v3991 = vld [vmem:[%s365 + $0x1c] sm:$0x1]
      %v3992 = vld [vmem:[%s365 + $0x24] sm:$0x1]
      %v3993 = vld [vmem:[%s365 + $0x2c] sm:$0x1]
      %v3994 = vld [vmem:[%s365 + $0x34] sm:$0x1]
      %v3995 = vld [vmem:[%s365 + $0x3c] sm:$0x1]
      %v3996 = vunpack.c.l.bf16 %v3988
      %v3997 = vunpack.c.l.bf16 %v3989
      %v3998 = vunpack.c.l.bf16 %v3990
      %v3999 = vunpack.c.l.bf16 %v3991
      %v4000 = vunpack.c.l.bf16 %v3992
      %v4001 = vunpack.c.l.bf16 %v3993
      %v4002 = vunpack.c.l.bf16 %v3994
      %v4003 = vunpack.c.l.bf16 %v3995
      %v4004 = vmul.f32 %v3900, %v2992
      %v4005 = vmul.f32 %v3901, %v2993
      %v4006 = vmul.f32 %v3902, %v2994
      %v4007 = vmul.f32 %v3903, %v2995
      %v4008 = vmul.f32 %v3904, %v2996
      %v4009 = vmul.f32 %v3905, %v2997
      %v4010 = vmul.f32 %v3906, %v2998
      %v4011 = vmul.f32 %v3907, %v2886
      %v4020 = vrot.slane %v3996, 1
      %v4021 = vrot.slane %v3997, 1
      %v4022 = vrot.slane %v3998, 1
      %v4023 = vrot.slane %v3999, 1
      %v4024 = vrot.slane %v4000, 1
      %v4025 = vrot.slane %v4001, 1
      %v4026 = vrot.slane %v4002, 1
      %v4027 = vrot.slane %v4003, 1
      %v4036 = vadd.f32 %v4004, %v4020
      %v4037 = vadd.f32 %v4005, %v4021
      %v4038 = vadd.f32 %v4006, %v4022
      %v4039 = vadd.f32 %v4007, %v4023
      %v4040 = vadd.f32 %v4008, %v4024
      %v4041 = vadd.f32 %v4009, %v4025
      %v4042 = vadd.f32 %v4010, %v4026
      %v4043 = vadd.f32 %v4011, %v4027
      %v4044 = vadd.f32 %v4036, %v3046
      %v4045 = vadd.f32 %v4037, %v3047
      %v4046 = vadd.f32 %v4038, %v3048
      %v4047 = vadd.f32 %v4039, %v3049
      %v4048 = vadd.f32 %v4040, %v3050
      %v4049 = vadd.f32 %v4041, %v3051
      %v4050 = vadd.f32 %v4042, %v3052
      %v4051 = vadd.f32 %v4043, %v2916
      %v4052 = vmax.f32 %v4044, 0.0
      %v4053 = vmax.f32 %v4045, 0.0
      %v4054 = vmax.f32 %v4046, 0.0
      %v4055 = vmax.f32 %v4047, 0.0
      %v4056 = vmax.f32 %v4048, 0.0
      %v4057 = vmax.f32 %v4049, 0.0
      %v4058 = vmax.f32 %v4050, 0.0
      %v4059 = vmax.f32 %v4051, 0.0
      %v4060 = vpack.c.bf16 %v4052, %v4052
      %v4061 = vpack.c.bf16 %v4053, %v4053
      %v4062 = vpack.c.bf16 %v4054, %v4054
      %v4063 = vpack.c.bf16 %v4055, %v4055
      %v4064 = vpack.c.bf16 %v4056, %v4056
      %v4065 = vpack.c.bf16 %v4057, %v4057
      %v4066 = vpack.c.bf16 %v4058, %v4058
      %v4067 = vpack.c.bf16 %v4059, %v4059
      %v4076 = vunpack.c.l.b16 %v4060
      %v4077 = vunpack.c.l.b16 %v4061
      %v4078 = vunpack.c.l.b16 %v4062
      %v4079 = vunpack.c.l.b16 %v4063
      %v4080 = vunpack.c.l.b16 %v4064
      %v4081 = vunpack.c.l.b16 %v4065
      %v4082 = vunpack.c.l.b16 %v4066
      %v4083 = vunpack.c.l.b16 %v4067
      %v4084 = vpack.c.b16 %v4076, %v4076
      %v4085 = vpack.c.b16 %v4077, %v4077
      %v4086 = vpack.c.b16 %v4078, %v4078
      %v4087 = vpack.c.b16 %v4079, %v4079
      %v4088 = vpack.c.b16 %v4080, %v4080
      %v4089 = vpack.c.b16 %v4081, %v4081
      %v4090 = vpack.c.b16 %v4082, %v4082
      %v4091 = vpack.c.b16 %v4083, %v4083
      %v4093 = vshrl.u32 %v4084, 16
      %v4095 = vrot.slane %v4093, 7
      %v4096 = vrot.slane %v4095, 4
      %v4098 = vshrl.u32 %v4085, 16
      %v4100 = vrot.slane %v4098, 7
      %v4101 = vrot.slane %v4100, 4
      %v4103 = vshrl.u32 %v4086, 16
      %v4105 = vrot.slane %v4103, 7
      %v4106 = vrot.slane %v4105, 4
      %v4108 = vshrl.u32 %v4087, 16
      %v4110 = vrot.slane %v4108, 7
      %v4111 = vrot.slane %v4110, 4
      %v4113 = vshrl.u32 %v4088, 16
      %v4115 = vrot.slane %v4113, 7
      %v4116 = vrot.slane %v4115, 4
      %v4118 = vshrl.u32 %v4089, 16
      %v4120 = vrot.slane %v4118, 7
      %v4121 = vrot.slane %v4120, 4
      %v4123 = vshrl.u32 %v4090, 16
      %v4125 = vrot.slane %v4123, 7
      %v4126 = vrot.slane %v4125, 4
      %v4128 = vshrl.u32 %v4091, 16
      %v4130 = vrot.slane %v4128, 7
      %v4131 = vrot.slane %v4130, 4
      %v4140 = vld [vmem:[%s387 + $0x4] sm:$0x1]
      %v4141 = vsel %vm499, %v4096, %v4140
      %4142 = vst [vmem:[%s387 + $0x4] sm:$0x1] %v4141
      %v4143 = vld [vmem:[%s387 + $0xc] sm:$0x1]
      %v4144 = vsel %vm499, %v4101, %v4143
      %4145 = vst [vmem:[%s387 + $0xc] sm:$0x1] %v4144
      %v4146 = vld [vmem:[%s387 + $0x14] sm:$0x1]
      %v4147 = vsel %vm499, %v4106, %v4146
      %4148 = vst [vmem:[%s387 + $0x14] sm:$0x1] %v4147
      %v4149 = vld [vmem:[%s387 + $0x1c] sm:$0x1]
      %v4150 = vsel %vm499, %v4111, %v4149
      %4151 = vst [vmem:[%s387 + $0x1c] sm:$0x1] %v4150
      %v4152 = vld [vmem:[%s387 + $0x24] sm:$0x1]
      %v4153 = vsel %vm499, %v4116, %v4152
      %4154 = vst [vmem:[%s387 + $0x24] sm:$0x1] %v4153
      %v4155 = vld [vmem:[%s387 + $0x2c] sm:$0x1]
      %v4156 = vsel %vm499, %v4121, %v4155
      %4157 = vst [vmem:[%s387 + $0x2c] sm:$0x1] %v4156
      %v4158 = vld [vmem:[%s387 + $0x34] sm:$0x1]
      %v4159 = vsel %vm499, %v4126, %v4158
      %4160 = vst [vmem:[%s387 + $0x34] sm:$0x1] %v4159
      %v4161 = vld [vmem:[%s387 + $0x3c] sm:$0x1]
      %v4162 = vsel %vm499, %v4131, %v4161
      %4163 = vst [vmem:[%s387 + $0x3c] sm:$0x1] %v4162
      %v4164 = vld [vmem:[%s365] sm:$0x8]
      %v4165 = vld [vmem:[%s365 + $0x8] sm:$0x8]
      %v4166 = vld [vmem:[%s365 + $0x10] sm:$0x8]
      %v4167 = vld [vmem:[%s365 + $0x18] sm:$0x8]
      %v4168 = vld [vmem:[%s365 + $0x20] sm:$0x8]
      %v4169 = vld [vmem:[%s365 + $0x28] sm:$0x8]
      %v4170 = vld [vmem:[%s365 + $0x30] sm:$0x8]
      %v4171 = vld [vmem:[%s365 + $0x38] sm:$0x8]
      %v4172 = vunpack.c.l.bf16 %v4164
      %v4173 = vunpack.c.l.bf16 %v4165
      %v4174 = vunpack.c.l.bf16 %v4166
      %v4175 = vunpack.c.l.bf16 %v4167
      %v4176 = vunpack.c.l.bf16 %v4168
      %v4177 = vunpack.c.l.bf16 %v4169
      %v4178 = vunpack.c.l.bf16 %v4170
      %v4179 = vunpack.c.l.bf16 %v4171
      %v4180 = vmul.f32 %v4052, %v2992
      %v4181 = vmul.f32 %v4053, %v2993
      %v4182 = vmul.f32 %v4054, %v2994
      %v4183 = vmul.f32 %v4055, %v2995
      %v4184 = vmul.f32 %v4056, %v2996
      %v4185 = vmul.f32 %v4057, %v2997
      %v4186 = vmul.f32 %v4058, %v2998
      %v4187 = vmul.f32 %v4059, %v2886
      %v4188 = vadd.f32 %v4180, %v4172
      %v4189 = vadd.f32 %v4181, %v4173
      %v4190 = vadd.f32 %v4182, %v4174
      %v4191 = vadd.f32 %v4183, %v4175
      %v4192 = vadd.f32 %v4184, %v4176
      %v4193 = vadd.f32 %v4185, %v4177
      %v4194 = vadd.f32 %v4186, %v4178
      %v4195 = vadd.f32 %v4187, %v4179
      %v4196 = vadd.f32 %v4188, %v3046
      %v4197 = vadd.f32 %v4189, %v3047
      %v4198 = vadd.f32 %v4190, %v3048
      %v4199 = vadd.f32 %v4191, %v3049
      %v4200 = vadd.f32 %v4192, %v3050
      %v4201 = vadd.f32 %v4193, %v3051
      %v4202 = vadd.f32 %v4194, %v3052
      %v4203 = vadd.f32 %v4195, %v2916
      %v4204 = vmax.f32 %v4196, 0.0
      %v4205 = vmax.f32 %v4197, 0.0
      %v4206 = vmax.f32 %v4198, 0.0
      %v4207 = vmax.f32 %v4199, 0.0
      %v4208 = vmax.f32 %v4200, 0.0
      %v4209 = vmax.f32 %v4201, 0.0
      %v4210 = vmax.f32 %v4202, 0.0
      %v4211 = vmax.f32 %v4203, 0.0
      %v4212 = vpack.c.bf16 %v4204, %v4204
      %v4213 = vpack.c.bf16 %v4205, %v4205
      %v4214 = vpack.c.bf16 %v4206, %v4206
      %v4215 = vpack.c.bf16 %v4207, %v4207
      %v4216 = vpack.c.bf16 %v4208, %v4208
      %v4217 = vpack.c.bf16 %v4209, %v4209
      %v4218 = vpack.c.bf16 %v4210, %v4210
      %v4219 = vpack.c.bf16 %v4211, %v4211
      %v4220 = vld [vmem:[%s387] sm:$0x8]
      %v4221 = vsel %vm1640, %v4212, %v4220
      %4222 = vst [vmem:[%s387] sm:$0x8] %v4221
      %v4223 = vld [vmem:[%s387 + $0x8] sm:$0x8]
      %v4224 = vsel %vm1640, %v4213, %v4223
      %4225 = vst [vmem:[%s387 + $0x8] sm:$0x8] %v4224
      %v4226 = vld [vmem:[%s387 + $0x10] sm:$0x8]
      %v4227 = vsel %vm1640, %v4214, %v4226
      %4228 = vst [vmem:[%s387 + $0x10] sm:$0x8] %v4227
      %v4229 = vld [vmem:[%s387 + $0x18] sm:$0x8]
      %v4230 = vsel %vm1640, %v4215, %v4229
      %4231 = vst [vmem:[%s387 + $0x18] sm:$0x8] %v4230
      %v4232 = vld [vmem:[%s387 + $0x20] sm:$0x8]
      %v4233 = vsel %vm1640, %v4216, %v4232
      %4234 = vst [vmem:[%s387 + $0x20] sm:$0x8] %v4233
      %v4235 = vld [vmem:[%s387 + $0x28] sm:$0x8]
      %v4236 = vsel %vm1640, %v4217, %v4235
      %4237 = vst [vmem:[%s387 + $0x28] sm:$0x8] %v4236
      %v4238 = vld [vmem:[%s387 + $0x30] sm:$0x8]
      %v4239 = vsel %vm1640, %v4218, %v4238
      %4240 = vst [vmem:[%s387 + $0x30] sm:$0x8] %v4239
      %v4241 = vld [vmem:[%s387 + $0x38] sm:$0x8]
      %v4242 = vsel %vm1640, %v4219, %v4241
      %4243 = vst [vmem:[%s387 + $0x38] sm:$0x8] %v4242
      %v4244 = vld [vmem:[%s365] sm:$0x8]
      %v4245 = vld [vmem:[%s365 + $0x8] sm:$0x8]
      %v4246 = vld [vmem:[%s365 + $0x10] sm:$0x8]
      %v4247 = vld [vmem:[%s365 + $0x18] sm:$0x8]
      %v4248 = vld [vmem:[%s365 + $0x20] sm:$0x8]
      %v4249 = vld [vmem:[%s365 + $0x28] sm:$0x8]
      %v4250 = vld [vmem:[%s365 + $0x30] sm:$0x8]
      %v4251 = vld [vmem:[%s365 + $0x38] sm:$0x8]
      %v4252 = vunpack.c.l.bf16 %v4244
      %v4253 = vunpack.c.l.bf16 %v4245
      %v4254 = vunpack.c.l.bf16 %v4246
      %v4255 = vunpack.c.l.bf16 %v4247
      %v4256 = vunpack.c.l.bf16 %v4248
      %v4257 = vunpack.c.l.bf16 %v4249
      %v4258 = vunpack.c.l.bf16 %v4250
      %v4259 = vunpack.c.l.bf16 %v4251
      %v4260 = vmul.f32 %v4204, %v2992
      %v4261 = vmul.f32 %v4205, %v2993
      %v4262 = vmul.f32 %v4206, %v2994
      %v4263 = vmul.f32 %v4207, %v2995
      %v4264 = vmul.f32 %v4208, %v2996
      %v4265 = vmul.f32 %v4209, %v2997
      %v4266 = vmul.f32 %v4210, %v2998
      %v4267 = vmul.f32 %v4211, %v2886
      %v4276 = vrot.slane %v4252, 7
      %v4277 = vrot.slane %v4253, 7
      %v4278 = vrot.slane %v4254, 7
      %v4279 = vrot.slane %v4255, 7
      %v4280 = vrot.slane %v4256, 7
      %v4281 = vrot.slane %v4257, 7
      %v4282 = vrot.slane %v4258, 7
      %v4283 = vrot.slane %v4259, 7
      %v4292 = vadd.f32 %v4260, %v4276
      %v4293 = vadd.f32 %v4261, %v4277
      %v4294 = vadd.f32 %v4262, %v4278
      %v4295 = vadd.f32 %v4263, %v4279
      %v4296 = vadd.f32 %v4264, %v4280
      %v4297 = vadd.f32 %v4265, %v4281
      %v4298 = vadd.f32 %v4266, %v4282
      %v4299 = vadd.f32 %v4267, %v4283
      %v4300 = vadd.f32 %v4292, %v3046
      %v4301 = vadd.f32 %v4293, %v3047
      %v4302 = vadd.f32 %v4294, %v3048
      %v4303 = vadd.f32 %v4295, %v3049
      %v4304 = vadd.f32 %v4296, %v3050
      %v4305 = vadd.f32 %v4297, %v3051
      %v4306 = vadd.f32 %v4298, %v3052
      %v4307 = vadd.f32 %v4299, %v2916
      %v4308 = vmax.f32 %v4300, 0.0
      %v4309 = vmax.f32 %v4301, 0.0
      %v4310 = vmax.f32 %v4302, 0.0
      %v4311 = vmax.f32 %v4303, 0.0
      %v4312 = vmax.f32 %v4304, 0.0
      %v4313 = vmax.f32 %v4305, 0.0
      %v4314 = vmax.f32 %v4306, 0.0
      %v4315 = vmax.f32 %v4307, 0.0
      %v4316 = vpack.c.bf16 %v4308, %v4308
      %v4317 = vpack.c.bf16 %v4309, %v4309
      %v4318 = vpack.c.bf16 %v4310, %v4310
      %v4319 = vpack.c.bf16 %v4311, %v4311
      %v4320 = vpack.c.bf16 %v4312, %v4312
      %v4321 = vpack.c.bf16 %v4313, %v4313
      %v4322 = vpack.c.bf16 %v4314, %v4314
      %v4323 = vpack.c.bf16 %v4315, %v4315
      %v4332 = vunpack.c.l.b16 %v4316
      %v4333 = vunpack.c.l.b16 %v4317
      %v4334 = vunpack.c.l.b16 %v4318
      %v4335 = vunpack.c.l.b16 %v4319
      %v4336 = vunpack.c.l.b16 %v4320
      %v4337 = vunpack.c.l.b16 %v4321
      %v4338 = vunpack.c.l.b16 %v4322
      %v4339 = vunpack.c.l.b16 %v4323
      %v4340 = vpack.c.b16 %v4332, %v4332
      %v4341 = vpack.c.b16 %v4333, %v4333
      %v4342 = vpack.c.b16 %v4334, %v4334
      %v4343 = vpack.c.b16 %v4335, %v4335
      %v4344 = vpack.c.b16 %v4336, %v4336
      %v4345 = vpack.c.b16 %v4337, %v4337
      %v4346 = vpack.c.b16 %v4338, %v4338
      %v4347 = vpack.c.b16 %v4339, %v4339
      %v4349 = vshrl.u32 %v4340, 16
      %v4351 = vrot.slane %v4349, 4
      %v4352 = vrot.slane %v4351, 4
      %v4354 = vshrl.u32 %v4341, 16
      %v4356 = vrot.slane %v4354, 4
      %v4357 = vrot.slane %v4356, 4
      %v4359 = vshrl.u32 %v4342, 16
      %v4361 = vrot.slane %v4359, 4
      %v4362 = vrot.slane %v4361, 4
      %v4364 = vshrl.u32 %v4343, 16
      %v4366 = vrot.slane %v4364, 4
      %v4367 = vrot.slane %v4366, 4
      %v4369 = vshrl.u32 %v4344, 16
      %v4371 = vrot.slane %v4369, 4
      %v4372 = vrot.slane %v4371, 4
      %v4374 = vshrl.u32 %v4345, 16
      %v4376 = vrot.slane %v4374, 4
      %v4377 = vrot.slane %v4376, 4
      %v4379 = vshrl.u32 %v4346, 16
      %v4381 = vrot.slane %v4379, 4
      %v4382 = vrot.slane %v4381, 4
      %v4384 = vshrl.u32 %v4347, 16
      %v4386 = vrot.slane %v4384, 4
      %v4387 = vrot.slane %v4386, 4
      %v4396 = vld [vmem:[%s387] sm:$0x8]
      %v4397 = vsel %vm1470, %v4352, %v4396
      %4398 = vst [vmem:[%s387] sm:$0x8] %v4397
      %v4399 = vld [vmem:[%s387 + $0x8] sm:$0x8]
      %v4400 = vsel %vm1470, %v4357, %v4399
      %4401 = vst [vmem:[%s387 + $0x8] sm:$0x8] %v4400
      %v4402 = vld [vmem:[%s387 + $0x10] sm:$0x8]
      %v4403 = vsel %vm1470, %v4362, %v4402
      %4404 = vst [vmem:[%s387 + $0x10] sm:$0x8] %v4403
      %v4405 = vld [vmem:[%s387 + $0x18] sm:$0x8]
      %v4406 = vsel %vm1470, %v4367, %v4405
      %4407 = vst [vmem:[%s387 + $0x18] sm:$0x8] %v4406
      %v4408 = vld [vmem:[%s387 + $0x20] sm:$0x8]
      %v4409 = vsel %vm1470, %v4372, %v4408
      %4410 = vst [vmem:[%s387 + $0x20] sm:$0x8] %v4409
      %v4411 = vld [vmem:[%s387 + $0x28] sm:$0x8]
      %v4412 = vsel %vm1470, %v4377, %v4411
      %4413 = vst [vmem:[%s387 + $0x28] sm:$0x8] %v4412
      %v4414 = vld [vmem:[%s387 + $0x30] sm:$0x8]
      %v4415 = vsel %vm1470, %v4382, %v4414
      %4416 = vst [vmem:[%s387 + $0x30] sm:$0x8] %v4415
      %v4417 = vld [vmem:[%s387 + $0x38] sm:$0x8]
      %v4418 = vsel %vm1470, %v4387, %v4417
      %4419 = vst [vmem:[%s387 + $0x38] sm:$0x8] %v4418
      %v4420 = vld [vmem:[%s365] sm:$0x4]
      %v4421 = vld [vmem:[%s365 + $0x8] sm:$0x4]
      %v4422 = vld [vmem:[%s365 + $0x10] sm:$0x4]
      %v4423 = vld [vmem:[%s365 + $0x18] sm:$0x4]
      %v4424 = vld [vmem:[%s365 + $0x20] sm:$0x4]
      %v4425 = vld [vmem:[%s365 + $0x28] sm:$0x4]
      %v4426 = vld [vmem:[%s365 + $0x30] sm:$0x4]
      %v4427 = vld [vmem:[%s365 + $0x38] sm:$0x4]
      %v4428 = vunpack.c.l.bf16 %v4420
      %v4429 = vunpack.c.l.bf16 %v4421
      %v4430 = vunpack.c.l.bf16 %v4422
      %v4431 = vunpack.c.l.bf16 %v4423
      %v4432 = vunpack.c.l.bf16 %v4424
      %v4433 = vunpack.c.l.bf16 %v4425
      %v4434 = vunpack.c.l.bf16 %v4426
      %v4435 = vunpack.c.l.bf16 %v4427
      %v4436 = vmul.f32 %v4308, %v2992
      %v4437 = vmul.f32 %v4309, %v2993
      %v4438 = vmul.f32 %v4310, %v2994
      %v4439 = vmul.f32 %v4311, %v2995
      %v4440 = vmul.f32 %v4312, %v2996
      %v4441 = vmul.f32 %v4313, %v2997
      %v4442 = vmul.f32 %v4314, %v2998
      %v4443 = vmul.f32 %v4315, %v2886
      %v4452 = vrot.slane %v4428, 6
      %v4453 = vrot.slane %v4429, 6
      %v4454 = vrot.slane %v4430, 6
      %v4455 = vrot.slane %v4431, 6
      %v4456 = vrot.slane %v4432, 6
      %v4457 = vrot.slane %v4433, 6
      %v4458 = vrot.slane %v4434, 6
      %v4459 = vrot.slane %v4435, 6
      %v4468 = vadd.f32 %v4436, %v4452
      %v4469 = vadd.f32 %v4437, %v4453
      %v4470 = vadd.f32 %v4438, %v4454
      %v4471 = vadd.f32 %v4439, %v4455
      %v4472 = vadd.f32 %v4440, %v4456
      %v4473 = vadd.f32 %v4441, %v4457
      %v4474 = vadd.f32 %v4442, %v4458
      %v4475 = vadd.f32 %v4443, %v4459
      %v4476 = vadd.f32 %v4468, %v3046
      %v4477 = vadd.f32 %v4469, %v3047
      %v4478 = vadd.f32 %v4470, %v3048
      %v4479 = vadd.f32 %v4471, %v3049
      %v4480 = vadd.f32 %v4472, %v3050
      %v4481 = vadd.f32 %v4473, %v3051
      %v4482 = vadd.f32 %v4474, %v3052
      %v4483 = vadd.f32 %v4475, %v2916
      %v4484 = vmax.f32 %v4476, 0.0
      %v4485 = vmax.f32 %v4477, 0.0
      %v4486 = vmax.f32 %v4478, 0.0
      %v4487 = vmax.f32 %v4479, 0.0
      %v4488 = vmax.f32 %v4480, 0.0
      %v4489 = vmax.f32 %v4481, 0.0
      %v4490 = vmax.f32 %v4482, 0.0
      %v4491 = vmax.f32 %v4483, 0.0
      %v4492 = vpack.c.bf16 %v4484, %v4484
      %v4493 = vpack.c.bf16 %v4485, %v4485
      %v4494 = vpack.c.bf16 %v4486, %v4486
      %v4495 = vpack.c.bf16 %v4487, %v4487
      %v4496 = vpack.c.bf16 %v4488, %v4488
      %v4497 = vpack.c.bf16 %v4489, %v4489
      %v4498 = vpack.c.bf16 %v4490, %v4490
      %v4499 = vpack.c.bf16 %v4491, %v4491
      %v4508 = vunpack.c.l.b16 %v4492
      %v4509 = vunpack.c.l.b16 %v4493
      %v4510 = vunpack.c.l.b16 %v4494
      %v4511 = vunpack.c.l.b16 %v4495
      %v4512 = vunpack.c.l.b16 %v4496
      %v4513 = vunpack.c.l.b16 %v4497
      %v4514 = vunpack.c.l.b16 %v4498
      %v4515 = vunpack.c.l.b16 %v4499
      %v4516 = vpack.c.b16 %v4508, %v4508
      %v4517 = vpack.c.b16 %v4509, %v4509
      %v4518 = vpack.c.b16 %v4510, %v4510
      %v4519 = vpack.c.b16 %v4511, %v4511
      %v4520 = vpack.c.b16 %v4512, %v4512
      %v4521 = vpack.c.b16 %v4513, %v4513
      %v4522 = vpack.c.b16 %v4514, %v4514
      %v4523 = vpack.c.b16 %v4515, %v4515
      %v4524 = vrot.slane %v4516, 5
      %v4525 = vrot.slane %v4524, 4
      %v4526 = vrot.slane %v4517, 5
      %v4527 = vrot.slane %v4526, 4
      %v4528 = vrot.slane %v4518, 5
      %v4529 = vrot.slane %v4528, 4
      %v4530 = vrot.slane %v4519, 5
      %v4531 = vrot.slane %v4530, 4
      %v4532 = vrot.slane %v4520, 5
      %v4533 = vrot.slane %v4532, 4
      %v4534 = vrot.slane %v4521, 5
      %v4535 = vrot.slane %v4534, 4
      %v4536 = vrot.slane %v4522, 5
      %v4537 = vrot.slane %v4536, 4
      %v4538 = vrot.slane %v4523, 5
      %v4539 = vrot.slane %v4538, 4
      %v4548 = vld [vmem:[%s387] sm:$0x4]
      %v4549 = vsel %vm1323, %v4525, %v4548
      %4550 = vst [vmem:[%s387] sm:$0x4] %v4549
      %v4551 = vld [vmem:[%s387 + $0x8] sm:$0x4]
      %v4552 = vsel %vm1323, %v4527, %v4551
      %4553 = vst [vmem:[%s387 + $0x8] sm:$0x4] %v4552
      %v4554 = vld [vmem:[%s387 + $0x10] sm:$0x4]
      %v4555 = vsel %vm1323, %v4529, %v4554
      %4556 = vst [vmem:[%s387 + $0x10] sm:$0x4] %v4555
      %v4557 = vld [vmem:[%s387 + $0x18] sm:$0x4]
      %v4558 = vsel %vm1323, %v4531, %v4557
      %4559 = vst [vmem:[%s387 + $0x18] sm:$0x4] %v4558
      %v4560 = vld [vmem:[%s387 + $0x20] sm:$0x4]
      %v4561 = vsel %vm1323, %v4533, %v4560
      %4562 = vst [vmem:[%s387 + $0x20] sm:$0x4] %v4561
      %v4563 = vld [vmem:[%s387 + $0x28] sm:$0x4]
      %v4564 = vsel %vm1323, %v4535, %v4563
      %4565 = vst [vmem:[%s387 + $0x28] sm:$0x4] %v4564
      %v4566 = vld [vmem:[%s387 + $0x30] sm:$0x4]
      %v4567 = vsel %vm1323, %v4537, %v4566
      %4568 = vst [vmem:[%s387 + $0x30] sm:$0x4] %v4567
      %v4569 = vld [vmem:[%s387 + $0x38] sm:$0x4]
      %v4570 = vsel %vm1323, %v4539, %v4569
      %4571 = vst [vmem:[%s387 + $0x38] sm:$0x4] %v4570
      %v4572 = vld [vmem:[%s365] sm:$0x4]
      %v4573 = vld [vmem:[%s365 + $0x8] sm:$0x4]
      %v4574 = vld [vmem:[%s365 + $0x10] sm:$0x4]
      %v4575 = vld [vmem:[%s365 + $0x18] sm:$0x4]
      %v4576 = vld [vmem:[%s365 + $0x20] sm:$0x4]
      %v4577 = vld [vmem:[%s365 + $0x28] sm:$0x4]
      %v4578 = vld [vmem:[%s365 + $0x30] sm:$0x4]
      %v4579 = vld [vmem:[%s365 + $0x38] sm:$0x4]
      %v4580 = vunpack.c.l.bf16 %v4572
      %v4581 = vunpack.c.l.bf16 %v4573
      %v4582 = vunpack.c.l.bf16 %v4574
      %v4583 = vunpack.c.l.bf16 %v4575
      %v4584 = vunpack.c.l.bf16 %v4576
      %v4585 = vunpack.c.l.bf16 %v4577
      %v4586 = vunpack.c.l.bf16 %v4578
      %v4587 = vunpack.c.l.bf16 %v4579
      %v4588 = vmul.f32 %v4484, %v2992
      %v4589 = vmul.f32 %v4485, %v2993
      %v4590 = vmul.f32 %v4486, %v2994
      %v4591 = vmul.f32 %v4487, %v2995
      %v4592 = vmul.f32 %v4488, %v2996
      %v4593 = vmul.f32 %v4489, %v2997
      %v4594 = vmul.f32 %v4490, %v2998
      %v4595 = vmul.f32 %v4491, %v2886
      %v4604 = vrot.slane %v4580, 5
      %v4605 = vrot.slane %v4581, 5
      %v4606 = vrot.slane %v4582, 5
      %v4607 = vrot.slane %v4583, 5
      %v4608 = vrot.slane %v4584, 5
      %v4609 = vrot.slane %v4585, 5
      %v4610 = vrot.slane %v4586, 5
      %v4611 = vrot.slane %v4587, 5
      %v4620 = vadd.f32 %v4588, %v4604
      %v4621 = vadd.f32 %v4589, %v4605
      %v4622 = vadd.f32 %v4590, %v4606
      %v4623 = vadd.f32 %v4591, %v4607
      %v4624 = vadd.f32 %v4592, %v4608
      %v4625 = vadd.f32 %v4593, %v4609
      %v4626 = vadd.f32 %v4594, %v4610
      %v4627 = vadd.f32 %v4595, %v4611
      %v4628 = vadd.f32 %v4620, %v3046
      %v4629 = vadd.f32 %v4621, %v3047
      %v4630 = vadd.f32 %v4622, %v3048
      %v4631 = vadd.f32 %v4623, %v3049
      %v4632 = vadd.f32 %v4624, %v3050
      %v4633 = vadd.f32 %v4625, %v3051
      %v4634 = vadd.f32 %v4626, %v3052
      %v4635 = vadd.f32 %v4627, %v2916
      %v4636 = vmax.f32 %v4628, 0.0
      %v4637 = vmax.f32 %v4629, 0.0
      %v4638 = vmax.f32 %v4630, 0.0
      %v4639 = vmax.f32 %v4631, 0.0
      %v4640 = vmax.f32 %v4632, 0.0
      %v4641 = vmax.f32 %v4633, 0.0
      %v4642 = vmax.f32 %v4634, 0.0
      %v4643 = vmax.f32 %v4635, 0.0
      %v4644 = vpack.c.bf16 %v4636, %v4636
      %v4645 = vpack.c.bf16 %v4637, %v4637
      %v4646 = vpack.c.bf16 %v4638, %v4638
      %v4647 = vpack.c.bf16 %v4639, %v4639
      %v4648 = vpack.c.bf16 %v4640, %v4640
      %v4649 = vpack.c.bf16 %v4641, %v4641
      %v4650 = vpack.c.bf16 %v4642, %v4642
      %v4651 = vpack.c.bf16 %v4643, %v4643
      %v4660 = vunpack.c.l.b16 %v4644
      %v4661 = vunpack.c.l.b16 %v4645
      %v4662 = vunpack.c.l.b16 %v4646
      %v4663 = vunpack.c.l.b16 %v4647
      %v4664 = vunpack.c.l.b16 %v4648
      %v4665 = vunpack.c.l.b16 %v4649
      %v4666 = vunpack.c.l.b16 %v4650
      %v4667 = vunpack.c.l.b16 %v4651
      %v4668 = vpack.c.b16 %v4660, %v4660
      %v4669 = vpack.c.b16 %v4661, %v4661
      %v4670 = vpack.c.b16 %v4662, %v4662
      %v4671 = vpack.c.b16 %v4663, %v4663
      %v4672 = vpack.c.b16 %v4664, %v4664
      %v4673 = vpack.c.b16 %v4665, %v4665
      %v4674 = vpack.c.b16 %v4666, %v4666
      %v4675 = vpack.c.b16 %v4667, %v4667
      %v4677 = vshrl.u32 %v4668, 16
      %v4679 = vrot.slane %v4677, 5
      %v4680 = vrot.slane %v4679, 4
      %v4682 = vshrl.u32 %v4669, 16
      %v4684 = vrot.slane %v4682, 5
      %v4685 = vrot.slane %v4684, 4
      %v4687 = vshrl.u32 %v4670, 16
      %v4689 = vrot.slane %v4687, 5
      %v4690 = vrot.slane %v4689, 4
      %v4692 = vshrl.u32 %v4671, 16
      %v4694 = vrot.slane %v4692, 5
      %v4695 = vrot.slane %v4694, 4
      %v4697 = vshrl.u32 %v4672, 16
      %v4699 = vrot.slane %v4697, 5
      %v4700 = vrot.slane %v4699, 4
      %v4702 = vshrl.u32 %v4673, 16
      %v4704 = vrot.slane %v4702, 5
      %v4705 = vrot.slane %v4704, 4
      %v4707 = vshrl.u32 %v4674, 16
      %v4709 = vrot.slane %v4707, 5
      %v4710 = vrot.slane %v4709, 4
      %v4712 = vshrl.u32 %v4675, 16
      %v4714 = vrot.slane %v4712, 5
      %v4715 = vrot.slane %v4714, 4
      %v4724 = vld [vmem:[%s387] sm:$0x4]
      %v4725 = vsel %vm1153, %v4680, %v4724
      %4726 = vst [vmem:[%s387] sm:$0x4] %v4725
      %v4727 = vld [vmem:[%s387 + $0x8] sm:$0x4]
      %v4728 = vsel %vm1153, %v4685, %v4727
      %4729 = vst [vmem:[%s387 + $0x8] sm:$0x4] %v4728
      %v4730 = vld [vmem:[%s387 + $0x10] sm:$0x4]
      %v4731 = vsel %vm1153, %v4690, %v4730
      %4732 = vst [vmem:[%s387 + $0x10] sm:$0x4] %v4731
      %v4733 = vld [vmem:[%s387 + $0x18] sm:$0x4]
      %v4734 = vsel %vm1153, %v4695, %v4733
      %4735 = vst [vmem:[%s387 + $0x18] sm:$0x4] %v4734
      %v4736 = vld [vmem:[%s387 + $0x20] sm:$0x4]
      %v4737 = vsel %vm1153, %v4700, %v4736
      %4738 = vst [vmem:[%s387 + $0x20] sm:$0x4] %v4737
      %v4739 = vld [vmem:[%s387 + $0x28] sm:$0x4]
      %v4740 = vsel %vm1153, %v4705, %v4739
      %4741 = vst [vmem:[%s387 + $0x28] sm:$0x4] %v4740
      %v4742 = vld [vmem:[%s387 + $0x30] sm:$0x4]
      %v4743 = vsel %vm1153, %v4710, %v4742
      %4744 = vst [vmem:[%s387 + $0x30] sm:$0x4] %v4743
      %v4745 = vld [vmem:[%s387 + $0x38] sm:$0x4]
      %v4746 = vsel %vm1153, %v4715, %v4745
      %4747 = vst [vmem:[%s387 + $0x38] sm:$0x4] %v4746
      %v4748 = vld [vmem:[%s365] sm:$0x2]
      %v4749 = vld [vmem:[%s365 + $0x8] sm:$0x2]
      %v4750 = vld [vmem:[%s365 + $0x10] sm:$0x2]
      %v4751 = vld [vmem:[%s365 + $0x18] sm:$0x2]
      %v4752 = vld [vmem:[%s365 + $0x20] sm:$0x2]
      %v4753 = vld [vmem:[%s365 + $0x28] sm:$0x2]
      %v4754 = vld [vmem:[%s365 + $0x30] sm:$0x2]
      %v4755 = vld [vmem:[%s365 + $0x38] sm:$0x2]
      %v4756 = vunpack.c.l.bf16 %v4748
      %v4757 = vunpack.c.l.bf16 %v4749
      %v4758 = vunpack.c.l.bf16 %v4750
      %v4759 = vunpack.c.l.bf16 %v4751
      %v4760 = vunpack.c.l.bf16 %v4752
      %v4761 = vunpack.c.l.bf16 %v4753
      %v4762 = vunpack.c.l.bf16 %v4754
      %v4763 = vunpack.c.l.bf16 %v4755
      %v4764 = vmul.f32 %v4636, %v2992
      %v4765 = vmul.f32 %v4637, %v2993
      %v4766 = vmul.f32 %v4638, %v2994
      %v4767 = vmul.f32 %v4639, %v2995
      %v4768 = vmul.f32 %v4640, %v2996
      %v4769 = vmul.f32 %v4641, %v2997
      %v4770 = vmul.f32 %v4642, %v2998
      %v4771 = vmul.f32 %v4643, %v2886
      %v4780 = vrot.slane %v4756, 4
      %v4781 = vrot.slane %v4757, 4
      %v4782 = vrot.slane %v4758, 4
      %v4783 = vrot.slane %v4759, 4
      %v4784 = vrot.slane %v4760, 4
      %v4785 = vrot.slane %v4761, 4
      %v4786 = vrot.slane %v4762, 4
      %v4787 = vrot.slane %v4763, 4
      %v4796 = vadd.f32 %v4764, %v4780
      %v4797 = vadd.f32 %v4765, %v4781
      %v4798 = vadd.f32 %v4766, %v4782
      %v4799 = vadd.f32 %v4767, %v4783
      %v4800 = vadd.f32 %v4768, %v4784
      %v4801 = vadd.f32 %v4769, %v4785
      %v4802 = vadd.f32 %v4770, %v4786
      %v4803 = vadd.f32 %v4771, %v4787
      %v4804 = vadd.f32 %v4796, %v3046
      %v4805 = vadd.f32 %v4797, %v3047
      %v4806 = vadd.f32 %v4798, %v3048
      %v4807 = vadd.f32 %v4799, %v3049
      %v4808 = vadd.f32 %v4800, %v3050
      %v4809 = vadd.f32 %v4801, %v3051
      %v4810 = vadd.f32 %v4802, %v3052
      %v4811 = vadd.f32 %v4803, %v2916
      %v4812 = vmax.f32 %v4804, 0.0
      %v4813 = vmax.f32 %v4805, 0.0
      %v4814 = vmax.f32 %v4806, 0.0
      %v4815 = vmax.f32 %v4807, 0.0
      %v4816 = vmax.f32 %v4808, 0.0
      %v4817 = vmax.f32 %v4809, 0.0
      %v4818 = vmax.f32 %v4810, 0.0
      %v4819 = vmax.f32 %v4811, 0.0
      %v4820 = vpack.c.bf16 %v4812, %v4812
      %v4821 = vpack.c.bf16 %v4813, %v4813
      %v4822 = vpack.c.bf16 %v4814, %v4814
      %v4823 = vpack.c.bf16 %v4815, %v4815
      %v4824 = vpack.c.bf16 %v4816, %v4816
      %v4825 = vpack.c.bf16 %v4817, %v4817
      %v4826 = vpack.c.bf16 %v4818, %v4818
      %v4827 = vpack.c.bf16 %v4819, %v4819
      %v4836 = vunpack.c.l.b16 %v4820
      %v4837 = vunpack.c.l.b16 %v4821
      %v4838 = vunpack.c.l.b16 %v4822
      %v4839 = vunpack.c.l.b16 %v4823
      %v4840 = vunpack.c.l.b16 %v4824
      %v4841 = vunpack.c.l.b16 %v4825
      %v4842 = vunpack.c.l.b16 %v4826
      %v4843 = vunpack.c.l.b16 %v4827
      %v4844 = vpack.c.b16 %v4836, %v4836
      %v4845 = vpack.c.b16 %v4837, %v4837
      %v4846 = vpack.c.b16 %v4838, %v4838
      %v4847 = vpack.c.b16 %v4839, %v4839
      %v4848 = vpack.c.b16 %v4840, %v4840
      %v4849 = vpack.c.b16 %v4841, %v4841
      %v4850 = vpack.c.b16 %v4842, %v4842
      %v4851 = vpack.c.b16 %v4843, %v4843
      %v4852 = vrot.slane %v4844, 6
      %v4853 = vrot.slane %v4852, 4
      %v4854 = vrot.slane %v4845, 6
      %v4855 = vrot.slane %v4854, 4
      %v4856 = vrot.slane %v4846, 6
      %v4857 = vrot.slane %v4856, 4
      %v4858 = vrot.slane %v4847, 6
      %v4859 = vrot.slane %v4858, 4
      %v4860 = vrot.slane %v4848, 6
      %v4861 = vrot.slane %v4860, 4
      %v4862 = vrot.slane %v4849, 6
      %v4863 = vrot.slane %v4862, 4
      %v4864 = vrot.slane %v4850, 6
      %v4865 = vrot.slane %v4864, 4
      %v4866 = vrot.slane %v4851, 6
      %v4867 = vrot.slane %v4866, 4
      %v4876 = vld [vmem:[%s387] sm:$0x2]
      %v4877 = vsel %vm1006, %v4853, %v4876
      %4878 = vst [vmem:[%s387] sm:$0x2] %v4877
      %v4879 = vld [vmem:[%s387 + $0x8] sm:$0x2]
      %v4880 = vsel %vm1006, %v4855, %v4879
      %4881 = vst [vmem:[%s387 + $0x8] sm:$0x2] %v4880
      %v4882 = vld [vmem:[%s387 + $0x10] sm:$0x2]
      %v4883 = vsel %vm1006, %v4857, %v4882
      %4884 = vst [vmem:[%s387 + $0x10] sm:$0x2] %v4883
      %v4885 = vld [vmem:[%s387 + $0x18] sm:$0x2]
      %v4886 = vsel %vm1006, %v4859, %v4885
      %4887 = vst [vmem:[%s387 + $0x18] sm:$0x2] %v4886
      %v4888 = vld [vmem:[%s387 + $0x20] sm:$0x2]
      %v4889 = vsel %vm1006, %v4861, %v4888
      %4890 = vst [vmem:[%s387 + $0x20] sm:$0x2] %v4889
      %v4891 = vld [vmem:[%s387 + $0x28] sm:$0x2]
      %v4892 = vsel %vm1006, %v4863, %v4891
      %4893 = vst [vmem:[%s387 + $0x28] sm:$0x2] %v4892
      %v4894 = vld [vmem:[%s387 + $0x30] sm:$0x2]
      %v4895 = vsel %vm1006, %v4865, %v4894
      %4896 = vst [vmem:[%s387 + $0x30] sm:$0x2] %v4895
      %v4897 = vld [vmem:[%s387 + $0x38] sm:$0x2]
      %v4898 = vsel %vm1006, %v4867, %v4897
      %4899 = vst [vmem:[%s387 + $0x38] sm:$0x2] %v4898
      %v4900 = vld [vmem:[%s365] sm:$0x2]
      %v4901 = vld [vmem:[%s365 + $0x8] sm:$0x2]
      %v4902 = vld [vmem:[%s365 + $0x10] sm:$0x2]
      %v4903 = vld [vmem:[%s365 + $0x18] sm:$0x2]
      %v4904 = vld [vmem:[%s365 + $0x20] sm:$0x2]
      %v4905 = vld [vmem:[%s365 + $0x28] sm:$0x2]
      %v4906 = vld [vmem:[%s365 + $0x30] sm:$0x2]
      %v4907 = vld [vmem:[%s365 + $0x38] sm:$0x2]
      %v4908 = vunpack.c.l.bf16 %v4900
      %v4909 = vunpack.c.l.bf16 %v4901
      %v4910 = vunpack.c.l.bf16 %v4902
      %v4911 = vunpack.c.l.bf16 %v4903
      %v4912 = vunpack.c.l.bf16 %v4904
      %v4913 = vunpack.c.l.bf16 %v4905
      %v4914 = vunpack.c.l.bf16 %v4906
      %v4915 = vunpack.c.l.bf16 %v4907
      %v4916 = vmul.f32 %v4812, %v2992
      %v4917 = vmul.f32 %v4813, %v2993
      %v4918 = vmul.f32 %v4814, %v2994
      %v4919 = vmul.f32 %v4815, %v2995
      %v4920 = vmul.f32 %v4816, %v2996
      %v4921 = vmul.f32 %v4817, %v2997
      %v4922 = vmul.f32 %v4818, %v2998
      %v4923 = vmul.f32 %v4819, %v2886
      %v4932 = vrot.slane %v4908, 3
      %v4933 = vrot.slane %v4909, 3
      %v4934 = vrot.slane %v4910, 3
      %v4935 = vrot.slane %v4911, 3
      %v4936 = vrot.slane %v4912, 3
      %v4937 = vrot.slane %v4913, 3
      %v4938 = vrot.slane %v4914, 3
      %v4939 = vrot.slane %v4915, 3
      %v4948 = vadd.f32 %v4916, %v4932
      %v4949 = vadd.f32 %v4917, %v4933
      %v4950 = vadd.f32 %v4918, %v4934
      %v4951 = vadd.f32 %v4919, %v4935
      %v4952 = vadd.f32 %v4920, %v4936
      %v4953 = vadd.f32 %v4921, %v4937
      %v4954 = vadd.f32 %v4922, %v4938
      %v4955 = vadd.f32 %v4923, %v4939
      %v4956 = vadd.f32 %v4948, %v3046
      %v4957 = vadd.f32 %v4949, %v3047
      %v4958 = vadd.f32 %v4950, %v3048
      %v4959 = vadd.f32 %v4951, %v3049
      %v4960 = vadd.f32 %v4952, %v3050
      %v4961 = vadd.f32 %v4953, %v3051
      %v4962 = vadd.f32 %v4954, %v3052
      %v4963 = vadd.f32 %v4955, %v2916
      %v4964 = vmax.f32 %v4956, 0.0
      %v4965 = vmax.f32 %v4957, 0.0
      %v4966 = vmax.f32 %v4958, 0.0
      %v4967 = vmax.f32 %v4959, 0.0
      %v4968 = vmax.f32 %v4960, 0.0
      %v4969 = vmax.f32 %v4961, 0.0
      %v4970 = vmax.f32 %v4962, 0.0
      %v4971 = vmax.f32 %v4963, 0.0
      %v4972 = vpack.c.bf16 %v4964, %v4964
      %v4973 = vpack.c.bf16 %v4965, %v4965
      %v4974 = vpack.c.bf16 %v4966, %v4966
      %v4975 = vpack.c.bf16 %v4967, %v4967
      %v4976 = vpack.c.bf16 %v4968, %v4968
      %v4977 = vpack.c.bf16 %v4969, %v4969
      %v4978 = vpack.c.bf16 %v4970, %v4970
      %v4979 = vpack.c.bf16 %v4971, %v4971
      %v4988 = vunpack.c.l.b16 %v4972
      %v4989 = vunpack.c.l.b16 %v4973
      %v4990 = vunpack.c.l.b16 %v4974
      %v4991 = vunpack.c.l.b16 %v4975
      %v4992 = vunpack.c.l.b16 %v4976
      %v4993 = vunpack.c.l.b16 %v4977
      %v4994 = vunpack.c.l.b16 %v4978
      %v4995 = vunpack.c.l.b16 %v4979
      %v4996 = vpack.c.b16 %v4988, %v4988
      %v4997 = vpack.c.b16 %v4989, %v4989
      %v4998 = vpack.c.b16 %v4990, %v4990
      %v4999 = vpack.c.b16 %v4991, %v4991
      %v5000 = vpack.c.b16 %v4992, %v4992
      %v5001 = vpack.c.b16 %v4993, %v4993
      %v5002 = vpack.c.b16 %v4994, %v4994
      %v5003 = vpack.c.b16 %v4995, %v4995
      %v5005 = vshrl.u32 %v4996, 16
      %v5007 = vrot.slane %v5005, 6
      %v5008 = vrot.slane %v5007, 4
      %v5010 = vshrl.u32 %v4997, 16
      %v5012 = vrot.slane %v5010, 6
      %v5013 = vrot.slane %v5012, 4
      %v5015 = vshrl.u32 %v4998, 16
      %v5017 = vrot.slane %v5015, 6
      %v5018 = vrot.slane %v5017, 4
      %v5020 = vshrl.u32 %v4999, 16
      %v5022 = vrot.slane %v5020, 6
      %v5023 = vrot.slane %v5022, 4
      %v5025 = vshrl.u32 %v5000, 16
      %v5027 = vrot.slane %v5025, 6
      %v5028 = vrot.slane %v5027, 4
      %v5030 = vshrl.u32 %v5001, 16
      %v5032 = vrot.slane %v5030, 6
      %v5033 = vrot.slane %v5032, 4
      %v5035 = vshrl.u32 %v5002, 16
      %v5037 = vrot.slane %v5035, 6
      %v5038 = vrot.slane %v5037, 4
      %v5040 = vshrl.u32 %v5003, 16
      %v5042 = vrot.slane %v5040, 6
      %v5043 = vrot.slane %v5042, 4
      %v5052 = vld [vmem:[%s387] sm:$0x2]
      %v5053 = vsel %vm836, %v5008, %v5052
      %5054 = vst [vmem:[%s387] sm:$0x2] %v5053
      %v5055 = vld [vmem:[%s387 + $0x8] sm:$0x2]
      %v5056 = vsel %vm836, %v5013, %v5055
      %5057 = vst [vmem:[%s387 + $0x8] sm:$0x2] %v5056
      %v5058 = vld [vmem:[%s387 + $0x10] sm:$0x2]
      %v5059 = vsel %vm836, %v5018, %v5058
      %5060 = vst [vmem:[%s387 + $0x10] sm:$0x2] %v5059
      %v5061 = vld [vmem:[%s387 + $0x18] sm:$0x2]
      %v5062 = vsel %vm836, %v5023, %v5061
      %5063 = vst [vmem:[%s387 + $0x18] sm:$0x2] %v5062
      %v5064 = vld [vmem:[%s387 + $0x20] sm:$0x2]
      %v5065 = vsel %vm836, %v5028, %v5064
      %5066 = vst [vmem:[%s387 + $0x20] sm:$0x2] %v5065
      %v5067 = vld [vmem:[%s387 + $0x28] sm:$0x2]
      %v5068 = vsel %vm836, %v5033, %v5067
      %5069 = vst [vmem:[%s387 + $0x28] sm:$0x2] %v5068
      %v5070 = vld [vmem:[%s387 + $0x30] sm:$0x2]
      %v5071 = vsel %vm836, %v5038, %v5070
      %5072 = vst [vmem:[%s387 + $0x30] sm:$0x2] %v5071
      %v5073 = vld [vmem:[%s387 + $0x38] sm:$0x2]
      %v5074 = vsel %vm836, %v5043, %v5073
      %5075 = vst [vmem:[%s387 + $0x38] sm:$0x2] %v5074
      %v5076 = vld [vmem:[%s365] sm:$0x1]
      %v5077 = vld [vmem:[%s365 + $0x8] sm:$0x1]
      %v5078 = vld [vmem:[%s365 + $0x10] sm:$0x1]
      %v5079 = vld [vmem:[%s365 + $0x18] sm:$0x1]
      %v5080 = vld [vmem:[%s365 + $0x20] sm:$0x1]
      %v5081 = vld [vmem:[%s365 + $0x28] sm:$0x1]
      %v5082 = vld [vmem:[%s365 + $0x30] sm:$0x1]
      %v5083 = vld [vmem:[%s365 + $0x38] sm:$0x1]
      %v5084 = vunpack.c.l.bf16 %v5076
      %v5085 = vunpack.c.l.bf16 %v5077
      %v5086 = vunpack.c.l.bf16 %v5078
      %v5087 = vunpack.c.l.bf16 %v5079
      %v5088 = vunpack.c.l.bf16 %v5080
      %v5089 = vunpack.c.l.bf16 %v5081
      %v5090 = vunpack.c.l.bf16 %v5082
      %v5091 = vunpack.c.l.bf16 %v5083
      %v5092 = vmul.f32 %v4964, %v2992
      %v5093 = vmul.f32 %v4965, %v2993
      %v5094 = vmul.f32 %v4966, %v2994
      %v5095 = vmul.f32 %v4967, %v2995
      %v5096 = vmul.f32 %v4968, %v2996
      %v5097 = vmul.f32 %v4969, %v2997
      %v5098 = vmul.f32 %v4970, %v2998
      %v5099 = vmul.f32 %v4971, %v2886
      %v5108 = vrot.slane %v5084, 2
      %v5109 = vrot.slane %v5085, 2
      %v5110 = vrot.slane %v5086, 2
      %v5111 = vrot.slane %v5087, 2
      %v5112 = vrot.slane %v5088, 2
      %v5113 = vrot.slane %v5089, 2
      %v5114 = vrot.slane %v5090, 2
      %v5115 = vrot.slane %v5091, 2
      %v5124 = vadd.f32 %v5092, %v5108
      %v5125 = vadd.f32 %v5093, %v5109
      %v5126 = vadd.f32 %v5094, %v5110
      %v5127 = vadd.f32 %v5095, %v5111
      %v5128 = vadd.f32 %v5096, %v5112
      %v5129 = vadd.f32 %v5097, %v5113
      %v5130 = vadd.f32 %v5098, %v5114
      %v5131 = vadd.f32 %v5099, %v5115
      %v5132 = vadd.f32 %v5124, %v3046
      %v5133 = vadd.f32 %v5125, %v3047
      %v5134 = vadd.f32 %v5126, %v3048
      %v5135 = vadd.f32 %v5127, %v3049
      %v5136 = vadd.f32 %v5128, %v3050
      %v5137 = vadd.f32 %v5129, %v3051
      %v5138 = vadd.f32 %v5130, %v3052
      %v5139 = vadd.f32 %v5131, %v2916
      %v5140 = vmax.f32 %v5132, 0.0
      %v5141 = vmax.f32 %v5133, 0.0
      %v5142 = vmax.f32 %v5134, 0.0
      %v5143 = vmax.f32 %v5135, 0.0
      %v5144 = vmax.f32 %v5136, 0.0
      %v5145 = vmax.f32 %v5137, 0.0
      %v5146 = vmax.f32 %v5138, 0.0
      %v5147 = vmax.f32 %v5139, 0.0
      %v5148 = vpack.c.bf16 %v5140, %v5140
      %v5149 = vpack.c.bf16 %v5141, %v5141
      %v5150 = vpack.c.bf16 %v5142, %v5142
      %v5151 = vpack.c.bf16 %v5143, %v5143
      %v5152 = vpack.c.bf16 %v5144, %v5144
      %v5153 = vpack.c.bf16 %v5145, %v5145
      %v5154 = vpack.c.bf16 %v5146, %v5146
      %v5155 = vpack.c.bf16 %v5147, %v5147
      %v5164 = vunpack.c.l.b16 %v5148
      %v5165 = vunpack.c.l.b16 %v5149
      %v5166 = vunpack.c.l.b16 %v5150
      %v5167 = vunpack.c.l.b16 %v5151
      %v5168 = vunpack.c.l.b16 %v5152
      %v5169 = vunpack.c.l.b16 %v5153
      %v5170 = vunpack.c.l.b16 %v5154
      %v5171 = vunpack.c.l.b16 %v5155
      %v5172 = vpack.c.b16 %v5164, %v5164
      %v5173 = vpack.c.b16 %v5165, %v5165
      %v5174 = vpack.c.b16 %v5166, %v5166
      %v5175 = vpack.c.b16 %v5167, %v5167
      %v5176 = vpack.c.b16 %v5168, %v5168
      %v5177 = vpack.c.b16 %v5169, %v5169
      %v5178 = vpack.c.b16 %v5170, %v5170
      %v5179 = vpack.c.b16 %v5171, %v5171
      %v5180 = vrot.slane %v5172, 7
      %v5181 = vrot.slane %v5180, 4
      %v5182 = vrot.slane %v5173, 7
      %v5183 = vrot.slane %v5182, 4
      %v5184 = vrot.slane %v5174, 7
      %v5185 = vrot.slane %v5184, 4
      %v5186 = vrot.slane %v5175, 7
      %v5187 = vrot.slane %v5186, 4
      %v5188 = vrot.slane %v5176, 7
      %v5189 = vrot.slane %v5188, 4
      %v5190 = vrot.slane %v5177, 7
      %v5191 = vrot.slane %v5190, 4
      %v5192 = vrot.slane %v5178, 7
      %v5193 = vrot.slane %v5192, 4
      %v5194 = vrot.slane %v5179, 7
      %v5195 = vrot.slane %v5194, 4
      %v5204 = vld [vmem:[%s387] sm:$0x1]
      %v5205 = vsel %vm689, %v5181, %v5204
      %5206 = vst [vmem:[%s387] sm:$0x1] %v5205
      %v5207 = vld [vmem:[%s387 + $0x8] sm:$0x1]
      %v5208 = vsel %vm689, %v5183, %v5207
      %5209 = vst [vmem:[%s387 + $0x8] sm:$0x1] %v5208
      %v5210 = vld [vmem:[%s387 + $0x10] sm:$0x1]
      %v5211 = vsel %vm689, %v5185, %v5210
      %5212 = vst [vmem:[%s387 + $0x10] sm:$0x1] %v5211
      %v5213 = vld [vmem:[%s387 + $0x18] sm:$0x1]
      %v5214 = vsel %vm689, %v5187, %v5213
      %5215 = vst [vmem:[%s387 + $0x18] sm:$0x1] %v5214
      %v5216 = vld [vmem:[%s387 + $0x20] sm:$0x1]
      %v5217 = vsel %vm689, %v5189, %v5216
      %5218 = vst [vmem:[%s387 + $0x20] sm:$0x1] %v5217
      %v5219 = vld [vmem:[%s387 + $0x28] sm:$0x1]
      %v5220 = vsel %vm689, %v5191, %v5219
      %5221 = vst [vmem:[%s387 + $0x28] sm:$0x1] %v5220
      %v5222 = vld [vmem:[%s387 + $0x30] sm:$0x1]
      %v5223 = vsel %vm689, %v5193, %v5222
      %5224 = vst [vmem:[%s387 + $0x30] sm:$0x1] %v5223
      %v5225 = vld [vmem:[%s387 + $0x38] sm:$0x1]
      %v5226 = vsel %vm689, %v5195, %v5225
      %5227 = vst [vmem:[%s387 + $0x38] sm:$0x1] %v5226
      %v5228 = vld [vmem:[%s365] sm:$0x1]
      %v5229 = vld [vmem:[%s365 + $0x8] sm:$0x1]
      %v5230 = vld [vmem:[%s365 + $0x10] sm:$0x1]
      %v5231 = vld [vmem:[%s365 + $0x18] sm:$0x1]
      %v5232 = vld [vmem:[%s365 + $0x20] sm:$0x1]
      %v5233 = vld [vmem:[%s365 + $0x28] sm:$0x1]
      %v5234 = vld [vmem:[%s365 + $0x30] sm:$0x1]
      %v5235 = vld [vmem:[%s365 + $0x38] sm:$0x1]
      %v5236 = vunpack.c.l.bf16 %v5228
      %v5237 = vunpack.c.l.bf16 %v5229
      %v5238 = vunpack.c.l.bf16 %v5230
      %v5239 = vunpack.c.l.bf16 %v5231
      %v5240 = vunpack.c.l.bf16 %v5232
      %v5241 = vunpack.c.l.bf16 %v5233
      %v5242 = vunpack.c.l.bf16 %v5234
      %v5243 = vunpack.c.l.bf16 %v5235
      %v5244 = vmul.f32 %v5140, %v2992
      %v5245 = vmul.f32 %v5141, %v2993
      %v5246 = vmul.f32 %v5142, %v2994
      %v5247 = vmul.f32 %v5143, %v2995
      %v5248 = vmul.f32 %v5144, %v2996
      %v5249 = vmul.f32 %v5145, %v2997
      %v5250 = vmul.f32 %v5146, %v2998
      %v5251 = vmul.f32 %v5147, %v2886
      %v5260 = vrot.slane %v5236, 1
      %v5261 = vrot.slane %v5237, 1
      %v5262 = vrot.slane %v5238, 1
      %v5263 = vrot.slane %v5239, 1
      %v5264 = vrot.slane %v5240, 1
      %v5265 = vrot.slane %v5241, 1
      %v5266 = vrot.slane %v5242, 1
      %v5267 = vrot.slane %v5243, 1
      %v5276 = vadd.f32 %v5244, %v5260
      %v5277 = vadd.f32 %v5245, %v5261
      %v5278 = vadd.f32 %v5246, %v5262
      %v5279 = vadd.f32 %v5247, %v5263
      %v5280 = vadd.f32 %v5248, %v5264
      %v5281 = vadd.f32 %v5249, %v5265
      %v5282 = vadd.f32 %v5250, %v5266
      %v5283 = vadd.f32 %v5251, %v5267
      %v5284 = vadd.f32 %v5276, %v3046
      %v5285 = vadd.f32 %v5277, %v3047
      %v5286 = vadd.f32 %v5278, %v3048
      %v5287 = vadd.f32 %v5279, %v3049
      %v5288 = vadd.f32 %v5280, %v3050
      %v5289 = vadd.f32 %v5281, %v3051
      %v5290 = vadd.f32 %v5282, %v3052
      %v5291 = vadd.f32 %v5283, %v2916
      %v5292 = vmax.f32 %v5284, 0.0
      %v5293 = vmax.f32 %v5285, 0.0
      %v5294 = vmax.f32 %v5286, 0.0
      %v5295 = vmax.f32 %v5287, 0.0
      %v5296 = vmax.f32 %v5288, 0.0
      %v5297 = vmax.f32 %v5289, 0.0
      %v5298 = vmax.f32 %v5290, 0.0
      %v5299 = vmax.f32 %v5291, 0.0
      %v5300 = vpack.c.bf16 %v5292, %v5292
      %v5301 = vpack.c.bf16 %v5293, %v5293
      %v5302 = vpack.c.bf16 %v5294, %v5294
      %v5303 = vpack.c.bf16 %v5295, %v5295
      %v5304 = vpack.c.bf16 %v5296, %v5296
      %v5305 = vpack.c.bf16 %v5297, %v5297
      %v5306 = vpack.c.bf16 %v5298, %v5298
      %v5307 = vpack.c.bf16 %v5299, %v5299
      %v5316 = vunpack.c.l.b16 %v5300
      %v5317 = vunpack.c.l.b16 %v5301
      %v5318 = vunpack.c.l.b16 %v5302
      %v5319 = vunpack.c.l.b16 %v5303
      %v5320 = vunpack.c.l.b16 %v5304
      %v5321 = vunpack.c.l.b16 %v5305
      %v5322 = vunpack.c.l.b16 %v5306
      %v5323 = vunpack.c.l.b16 %v5307
      %v5324 = vpack.c.b16 %v5316, %v5316
      %v5325 = vpack.c.b16 %v5317, %v5317
      %v5326 = vpack.c.b16 %v5318, %v5318
      %v5327 = vpack.c.b16 %v5319, %v5319
      %v5328 = vpack.c.b16 %v5320, %v5320
      %v5329 = vpack.c.b16 %v5321, %v5321
      %v5330 = vpack.c.b16 %v5322, %v5322
      %v5331 = vpack.c.b16 %v5323, %v5323
      %v5333 = vshrl.u32 %v5324, 16
      %v5335 = vrot.slane %v5333, 7
      %v5336 = vrot.slane %v5335, 4
      %v5338 = vshrl.u32 %v5325, 16
      %v5340 = vrot.slane %v5338, 7
      %v5341 = vrot.slane %v5340, 4
      %v5343 = vshrl.u32 %v5326, 16
      %v5345 = vrot.slane %v5343, 7
      %v5346 = vrot.slane %v5345, 4
      %v5348 = vshrl.u32 %v5327, 16
      %v5350 = vrot.slane %v5348, 7
      %v5351 = vrot.slane %v5350, 4
      %v5353 = vshrl.u32 %v5328, 16
      %v5355 = vrot.slane %v5353, 7
      %v5356 = vrot.slane %v5355, 4
      %v5358 = vshrl.u32 %v5329, 16
      %v5360 = vrot.slane %v5358, 7
      %v5361 = vrot.slane %v5360, 4
      %v5363 = vshrl.u32 %v5330, 16
      %v5365 = vrot.slane %v5363, 7
      %v5366 = vrot.slane %v5365, 4
      %v5368 = vshrl.u32 %v5331, 16
      %v5370 = vrot.slane %v5368, 7
      %v5371 = vrot.slane %v5370, 4
      %v5380 = vld [vmem:[%s387] sm:$0x1]
      %v5381 = vsel %vm499, %v5336, %v5380
      %5382 = vst [vmem:[%s387] sm:$0x1] %v5381
      %v5383 = vld [vmem:[%s387 + $0x8] sm:$0x1]
      %v5384 = vsel %vm499, %v5341, %v5383
      %5385 = vst [vmem:[%s387 + $0x8] sm:$0x1] %v5384
      %v5386 = vld [vmem:[%s387 + $0x10] sm:$0x1]
      %v5387 = vsel %vm499, %v5346, %v5386
      %5388 = vst [vmem:[%s387 + $0x10] sm:$0x1] %v5387
      %v5389 = vld [vmem:[%s387 + $0x18] sm:$0x1]
      %v5390 = vsel %vm499, %v5351, %v5389
      %5391 = vst [vmem:[%s387 + $0x18] sm:$0x1] %v5390
      %v5392 = vld [vmem:[%s387 + $0x20] sm:$0x1]
      %v5393 = vsel %vm499, %v5356, %v5392
      %5394 = vst [vmem:[%s387 + $0x20] sm:$0x1] %v5393
      %v5395 = vld [vmem:[%s387 + $0x28] sm:$0x1]
      %v5396 = vsel %vm499, %v5361, %v5395
      %5397 = vst [vmem:[%s387 + $0x28] sm:$0x1] %v5396
      %v5398 = vld [vmem:[%s387 + $0x30] sm:$0x1]
      %v5399 = vsel %vm499, %v5366, %v5398
      %5400 = vst [vmem:[%s387 + $0x30] sm:$0x1] %v5399
      %v5401 = vld [vmem:[%s387 + $0x38] sm:$0x1]
      %v5402 = vsel %vm499, %v5371, %v5401
      %5403 = vst [vmem:[%s387 + $0x38] sm:$0x1] %v5402
      %v5412 = vrot.slane %v5293, 7
      %v5413 = vrot.slane %v5294, 6
      %v5414 = vsel %vm433, %v5413, %v5412
      %v5415 = vrot.slane %v5295, 5
      %v5416 = vsel %vm436, %v5415, %v5414
      %v5417 = vrot.slane %v5296, 4
      %v5418 = vsel %vm439, %v5417, %v5416
      %v5419 = vrot.slane %v5297, 3
      %v5420 = vsel %vm442, %v5419, %v5418
      %v5421 = vrot.slane %v5298, 2
      %v5422 = vsel %vm445, %v5421, %v5420
      %v5423 = vrot.slane %v5299, 1
      %v5424 = vsel %vm448, %v5423, %v5422
      %vm5427 = vcmask 130055
      %5428 = vst.msk [vmem:[#allocation3 - $0x7] sm:$0x80] %vm5427, %v5292
      %vm5429 = vcmask 129024
      %5430 = vst.msk [vmem:[#allocation3 + $0x1] sm:$0x7f] %vm5429, %v5424
      %s5431 = smul.u32 2, %s24
      %p5432 = scmp.lt.s32.totalorder %s23, 1
      %s5433 = scalar_select %p5432, %s23, 1
      %p5434 = scmp.lt.s32.totalorder %s5431, 1
      %s5435 = scalar_select %p5434, %s5431, 1
      %s5436 = smul.addr %s5433, 16
      %s5437 = sadd.s32 %s5435, %s5436
      %s5438 = smul.addr %s5437, 4
      %s5439 = scalar_lea.vmem %s6, %s5438
      %s5440 = ssub.s32 0, %s24
      %s5441 = smul.u32 2, %s5440
      %p5442 = scmp.lt.s32.totalorder %s23, 1
      %s5443 = scalar_select %p5442, %s23, 1
      %p5444 = scmp.lt.s32.totalorder %s5441, 1
      %s5445 = scalar_select %p5444, %s5441, 1
      %s5446 = smul.addr %s5443, 16
      %s5447 = sadd.s32 %s5445, %s5446
      %s5448 = smul.addr %s5447, 4
      %s5449 = scalar_lea.vmem %s7, %s5448
      // Predicated region
      $region49: #{dsc_forward.13} parent=43 // pred_check
        %p5450 = pneg %p193
      $region50: #{dsc_forward.13} parent=43 // pred_check_branch
        %5452 = sbr.rel (%p5450) target = $region52
      $region51: #{dsc_forward.13} parent=43 // pred_region
        %s5453 = smul.u32 2, %s24
      $region52: #{dsc_forward.13} parent=43 // pred_fallthru
        _
      // Predicated region
      $region53: #{dsc_forward.13} parent=43 // pred_check
        %p5454 = pneg %p223
      $region54: #{dsc_forward.13} parent=43 // pred_check_branch
        %5456 = sbr.rel (%p5454) target = $region56
      $region55: #{dsc_forward.13} parent=43 // pred_region
        %s5457 = ssub.s32 0, %s24
        %s5458 = smul.u32 2, %s5457
      $region56: #{dsc_forward.13} parent=43 // pred_fallthru
        _
    $region44: #{dsc_forward.13} parent=5 // pred_fallthru
      _
    %p5459 = scmp.le.s32.totalorder 2, %s14
    // Predicated region
    $region57: #{dsc_forward.13} parent=5 // pred_check
      %p5460 = pneg %p5459
    $region58: #{dsc_forward.13} parent=5 // pred_check_branch
      %5462 = sbr.rel (%p5460) target = $region60
    $region59: #{dsc_forward.13} parent=5 // pred_region
      %s5463 = ssub.s32 %s14, 2
      // Predicated region
      $region61: #{dsc_forward.13} parent=59 // pred_check
        %p5464 = pneg %p199
      $region62: #{dsc_forward.13} parent=59 // pred_check_branch
        %5466 = sbr.rel (%p5464) target = $region64
      $region63: #{dsc_forward.13} parent=59 // pred_region
        %s5467 = smul.u32 2, %s26
        %p5468 = scmp.lt.s32.totalorder %s25, 1
        %s5469 = scalar_select %p5468, %s25, 1
        %p5470 = scmp.lt.s32.totalorder %s5467, 1
        %s5471 = scalar_select %p5470, %s5467, 1
        %s5472 = smul.addr %s5469, 16
        %s5473 = sadd.s32 %s5471, %s5472
        %s5474 = smul.addr %s5473, 4
        %s5475 = scalar_lea.vmem %s6, %s5474
      $region64: #{dsc_forward.13} parent=59 // pred_fallthru
        _
      // Predicated region
      $region65: #{dsc_forward.13} parent=59 // pred_check
        %p5476 = pneg %p229
      $region66: #{dsc_forward.13} parent=59 // pred_check_branch
        %5478 = sbr.rel (%p5476) target = $region68
      $region67: #{dsc_forward.13} parent=59 // pred_region
        %s5479 = ssub.s32 0, %s26
        %s5480 = smul.u32 2, %s5479
        %p5481 = scmp.lt.s32.totalorder %s25, 1
        %s5482 = scalar_select %p5481, %s25, 1
        %p5483 = scmp.lt.s32.totalorder %s5480, 1
        %s5484 = scalar_select %p5483, %s5480, 1
        %s5485 = smul.addr %s5482, 16
        %s5486 = sadd.s32 %s5484, %s5485
        %s5487 = smul.addr %s5486, 4
        %s5488 = scalar_lea.vmem %s7, %s5487
      $region68: #{dsc_forward.13} parent=59 // pred_fallthru
        _
    $region60: #{dsc_forward.13} parent=5 // pred_fallthru
      _
  $region6: #{dsc_forward.13} parent=0 // loop_footer
    %s18 = sadd.s32 1, %s14
  $region7: #{dsc_forward.13} parent=0 // loop_footer_branch
    %13 = sbr.rel target = $region3
  $region8: #{dsc_forward.13} parent=0 // loop_exit
    _

</llo_original>
